<compile_context>
chip_gen: v7x
topology: tpu7x:2x2x1
jax: 0.10.0
libtpu: 0.0.40
codegen_flags: <defaults>
</compile_context>

<pallas_src>
import functools

import jax
import jax.numpy as jnp
from jax import lax
from jax.experimental import pallas as pl
from jax.experimental.pallas import tpu as pltpu

_PREC = lax.Precision.HIGHEST  # PyTorch does the attention math in true fp32


# ---------------------------------------------------------------------------
# Fused Pallas kernel: one batch element per grid step.
# ---------------------------------------------------------------------------
def _fused_attention_kernel(x_ref, wqkv_ref, wproj_ref, bproj_ref, o_ref, *,
                            num_heads, head_dim):
    N = x_ref.shape[1]
    C = x_ref.shape[2]

    x = x_ref[0]                                            # (N, C)

    # qkv = x @ Wqkv  (scale already folded into the Q columns of Wqkv)
    qkv = jnp.dot(x, wqkv_ref[...],
                  preferred_element_type=jnp.float32,
                  precision=_PREC)                          # (N, 3C) f32

    # Per-head attention; heads are sliced straight out of the channel axis,
    # so no (B,N,3,H,Dh) permute is ever materialized.  H is small -> the
    # Python loop unrolls.
    head_outs = []
    for h in range(num_heads):
        q = qkv[:, h * head_dim:(h + 1) * head_dim]                     # (N, Dh)
        k = qkv[:, C + h * head_dim:C + (h + 1) * head_dim]             # (N, Dh)
        v = qkv[:, 2 * C + h * head_dim:2 * C + (h + 1) * head_dim]     # (N, Dh)

        # logits = q @ k^T : contract the last dims directly (no .T copy).
        s = lax.dot_general(q, k, (((1,), (1,)), ((), ())),
                            preferred_element_type=jnp.float32,
                            precision=_PREC)                            # (N, N)

        # numerically-stable softmax; defer the 1/l normalization until
        # after the PV matmul (touches N*Dh instead of N*N elements).
        s = s - jnp.max(s, axis=-1, keepdims=True)
        p = jnp.exp(s)
        l = jnp.sum(p, axis=-1, keepdims=True)                          # (N, 1)

        o_h = jnp.dot(p, v, preferred_element_type=jnp.float32,
                      precision=_PREC)                                  # (N, Dh)
        o_h = o_h / l                                                   # exact
        head_outs.append(o_h)

    attn_out = jnp.concatenate(head_outs, axis=-1)                      # (N, C)

    # output projection (+ bias); proj_drop p=0.0 -> identity.
    out = jnp.dot(attn_out, wproj_ref[...].astype(jnp.float32),
                  preferred_element_type=jnp.float32,
                  precision=_PREC)
    out = out + bproj_ref[...].astype(jnp.float32)                      # (1,C) bcast
    o_ref[0] = out.astype(o_ref.dtype)


# ---------------------------------------------------------------------------
# Wrapper
# ---------------------------------------------------------------------------
def pallas_attention(x, w_qkv, w_proj, b_proj, num_heads):
    """Forward pass of the Attention module (qkv_bias=False, dropout p=0).

    x:      (B, N, C)
    w_qkv:  (3C, C)   PyTorch layout (out, in), no bias
    w_proj: (C, C)    PyTorch layout (out, in)
    b_proj: (C,)
    """
    B, N, C = x.shape
    H = num_heads
    Dh = C // H
    scale = Dh ** (-0.5)

    # Fold q*scale into the Q rows of the qkv weight (once, outside the kernel),
    # then transpose to (in, out) so the kernel computes x @ W.
    w_qkv_scaled = jnp.concatenate([w_qkv[:C] * scale, w_qkv[C:]], axis=0)
    w_qkv_t = w_qkv_scaled.T.astype(x.dtype)     # (C, 3C)
    w_proj_t = w_proj.T.astype(x.dtype)          # (C, C)
    b2d = b_proj.reshape(1, C)

    kern = functools.partial(_fused_attention_kernel,
                             num_heads=H, head_dim=Dh)

    return pl.pallas_call(
        kern,
        out_shape=jax.ShapeDtypeStruct((B, N, C), x.dtype),
        grid=(B,),
        in_specs=[
            pl.BlockSpec((1, N, C), lambda b: (b, 0, 0)),     # x (per-batch)
            pl.BlockSpec((C, 3 * C), lambda b: (0, 0)),       # Wqkv (resident)
            pl.BlockSpec((C, C), lambda b: (0, 0)),           # Wproj (resident)
            pl.BlockSpec((1, C), lambda b: (0, 0)),           # bias
        ],
        out_specs=pl.BlockSpec((1, N, C), lambda b: (b, 0, 0)),
        compiler_params=pltpu.CompilerParams(
            dimension_semantics=("parallel",),
        ),
    )(x, w_qkv_t, w_proj_t, b2d)


# ---------------------------------------------------------------------------
# Pure-JAX reference (mirrors the PyTorch forward exactly) for validation
# ---------------------------------------------------------------------------
def reference_attention(x, w_qkv, w_proj, b_proj, num_heads):
    B, N, C = x.shape
    H = num_heads
    Dh = C // H
    scale = Dh ** (-0.5)
    qkv = jnp.dot(x, w_qkv.T, precision=_PREC)
    qkv = qkv.reshape(B, N, 3, H, Dh).transpose(2, 0, 3, 1, 4)
    q, k, v = qkv[0], qkv[1], qkv[2]
    q = q * scale
    attn = jnp.einsum(
        "bhnd,bhmd->bhnm", q.astype(jnp.float32), k.astype(jnp.float32),
        precision=_PREC,
    )
    attn = jax.nn.softmax(attn, axis=-1).astype(x.dtype)
    out = jnp.einsum("bhnm,bhmd->bhnd", attn, v, precision=_PREC)
    out = out.transpose(0, 2, 1, 3).reshape(B, N, C)
    return jnp.dot(out, w_proj.T, precision=_PREC) + b_proj


# ---------------------------------------------------------------------------
# Main
# ---------------------------------------------------------------------------
if __name__ == "__main__":
    B, N, C = 2, 16, 64
    num_heads = 8

    key = jax.random.PRNGKey(0)
    kx, kqkv, kpw, kpb = jax.random.split(key, 4)

    x = jax.random.normal(kx, (B, N, C), dtype=jnp.float32)
    # Deterministic synthetic parameters (PyTorch nn.Linear layout: (out, in)).
    w_qkv = jax.random.normal(kqkv, (3 * C, C), dtype=jnp.float32) * 0.05
    w_proj = jax.random.normal(kpw, (C, C), dtype=jnp.float32) * 0.05
    b_proj = jax.random.normal(kpb, (C,), dtype=jnp.float32) * 0.05

    y = pallas_attention(x, w_qkv, w_proj, b_proj, num_heads)
    y = jax.block_until_ready(y)

    y_ref = reference_attention(x, w_qkv, w_proj, b_proj, num_heads)
    assert y.shape == (B, N, C)
    assert jnp.allclose(y, y_ref, atol=2e-3, rtol=2e-3), "mismatch vs reference"

    print("KERNEL_OK")
</pallas_src>

<mosaic_0001>
module attributes {stable_mosaic.version = 11 : i64} {
  func.func @_fused_attention_kernel(%arg0: i32, %arg1: memref<1x16x64xf32, #tpu.memory_space<vmem>>, %arg2: memref<64x192xf32, #tpu.memory_space<vmem>>, %arg3: memref<64x64xf32, #tpu.memory_space<vmem>>, %arg4: memref<1x64xf32, #tpu.memory_space<vmem>>, %arg5: memref<1x16x64xf32, #tpu.memory_space<vmem>>) attributes {dimension_semantics = [#tpu.dimension_semantics<parallel>], iteration_bounds = array<i64: 2>, scalar_prefetch = 0 : i64, scratch_operands = 0 : i64, tpu.core_type = #tpu.core_type<tc>, window_params = [{transform_indices = @transform_0, window_bounds = array<i64: 1, 16, 64>}, {pipeline_mode = #tpu.pipeline_mode<synchronous>, transform_indices = @transform_1, window_bounds = array<i64: 64, 192>}, {pipeline_mode = #tpu.pipeline_mode<synchronous>, transform_indices = @transform_2, window_bounds = array<i64: 64, 64>}, {pipeline_mode = #tpu.pipeline_mode<synchronous>, transform_indices = @transform_3, window_bounds = array<i64: 1, 64>}, {transform_indices = @transform_4, window_bounds = array<i64: 1, 16, 64>}]} {
    %c0 = arith.constant 0 : index
    %c0_0 = arith.constant 0 : index
    %c0_1 = arith.constant 0 : index
    %0 = vector.load %arg1[%c0, %c0_0, %c0_1] : memref<1x16x64xf32, #tpu.memory_space<vmem>>, vector<1x16x64xf32>
    %1 = vector.shape_cast %0 : vector<1x16x64xf32> to vector<16x64xf32>
    %c0_2 = arith.constant 0 : index
    %c0_3 = arith.constant 0 : index
    %2 = vector.load %arg2[%c0_2, %c0_3] : memref<64x192xf32, #tpu.memory_space<vmem>>, vector<64x192xf32>
    %cst = arith.constant dense<0.000000e+00> : vector<16x192xf32>
    %3 = tpu.matmul %1, %2, %cst {dimension_numbers = #tpu.dot_dimension_numbers<[1], [0], [0], [1], [0, 0, 1, 1], [], []>, precision = #tpu.contract_precision<fp32>} : vector<16x64xf32>, vector<64x192xf32>, vector<16x192xf32> -> vector<16x192xf32>
    %4 = vector.extract_strided_slice %3 {offsets = [0, 0], sizes = [16, 8], strides = [1, 1]} : vector<16x192xf32> to vector<16x8xf32>
    %5 = vector.extract_strided_slice %3 {offsets = [0, 64], sizes = [16, 8], strides = [1, 1]} : vector<16x192xf32> to vector<16x8xf32>
    %6 = vector.extract_strided_slice %3 {offsets = [0, 128], sizes = [16, 8], strides = [1, 1]} : vector<16x192xf32> to vector<16x8xf32>
    %cst_4 = arith.constant dense<0.000000e+00> : vector<16x16xf32>
    %7 = tpu.matmul %4, %5, %cst_4 {dimension_numbers = #tpu.dot_dimension_numbers<[1], [1], [0], [0], [0, 0, 1, 0], [], []>, precision = #tpu.contract_precision<fp32>} : vector<16x8xf32>, vector<16x8xf32>, vector<16x16xf32> -> vector<16x16xf32>
    %cst_5 = arith.constant dense<0xFF800000> : vector<16xf32>
    %8 = vector.multi_reduction <maximumf>, %7, %cst_5 [1] : vector<16x16xf32> to vector<16xf32>
    %9 = vector.shape_cast %8 : vector<16xf32> to vector<16x1xf32>
    %10 = vector.broadcast %9 : vector<16x1xf32> to vector<16x16xf32>
    %11 = arith.subf %7, %10 : vector<16x16xf32>
    %12 = math.exp %11 : vector<16x16xf32>
    %cst_6 = arith.constant dense<0.000000e+00> : vector<16xf32>
    %13 = vector.multi_reduction <add>, %12, %cst_6 [1] : vector<16x16xf32> to vector<16xf32>
    %14 = vector.shape_cast %13 : vector<16xf32> to vector<16x1xf32>
    %cst_7 = arith.constant dense<0.000000e+00> : vector<16x8xf32>
    %15 = tpu.matmul %12, %6, %cst_7 {dimension_numbers = #tpu.dot_dimension_numbers<[1], [0], [0], [1], [0, 0, 1, 1], [], []>, precision = #tpu.contract_precision<fp32>} : vector<16x16xf32>, vector<16x8xf32>, vector<16x8xf32> -> vector<16x8xf32>
    %16 = vector.broadcast %14 : vector<16x1xf32> to vector<16x8xf32>
    %17 = arith.divf %15, %16 : vector<16x8xf32>
    %18 = vector.extract_strided_slice %3 {offsets = [0, 8], sizes = [16, 8], strides = [1, 1]} : vector<16x192xf32> to vector<16x8xf32>
    %19 = vector.extract_strided_slice %3 {offsets = [0, 72], sizes = [16, 8], strides = [1, 1]} : vector<16x192xf32> to vector<16x8xf32>
    %20 = vector.extract_strided_slice %3 {offsets = [0, 136], sizes = [16, 8], strides = [1, 1]} : vector<16x192xf32> to vector<16x8xf32>
    %cst_8 = arith.constant dense<0.000000e+00> : vector<16x16xf32>
    %21 = tpu.matmul %18, %19, %cst_8 {dimension_numbers = #tpu.dot_dimension_numbers<[1], [1], [0], [0], [0, 0, 1, 0], [], []>, precision = #tpu.contract_precision<fp32>} : vector<16x8xf32>, vector<16x8xf32>, vector<16x16xf32> -> vector<16x16xf32>
    %cst_9 = arith.constant dense<0xFF800000> : vector<16xf32>
    %22 = vector.multi_reduction <maximumf>, %21, %cst_9 [1] : vector<16x16xf32> to vector<16xf32>
    %23 = vector.shape_cast %22 : vector<16xf32> to vector<16x1xf32>
    %24 = vector.broadcast %23 : vector<16x1xf32> to vector<16x16xf32>
    %25 = arith.subf %21, %24 : vector<16x16xf32>
    %26 = math.exp %25 : vector<16x16xf32>
    %cst_10 = arith.constant dense<0.000000e+00> : vector<16xf32>
    %27 = vector.multi_reduction <add>, %26, %cst_10 [1] : vector<16x16xf32> to vector<16xf32>
    %28 = vector.shape_cast %27 : vector<16xf32> to vector<16x1xf32>
    %cst_11 = arith.constant dense<0.000000e+00> : vector<16x8xf32>
    %29 = tpu.matmul %26, %20, %cst_11 {dimension_numbers = #tpu.dot_dimension_numbers<[1], [0], [0], [1], [0, 0, 1, 1], [], []>, precision = #tpu.contract_precision<fp32>} : vector<16x16xf32>, vector<16x8xf32>, vector<16x8xf32> -> vector<16x8xf32>
    %30 = vector.broadcast %28 : vector<16x1xf32> to vector<16x8xf32>
    %31 = arith.divf %29, %30 : vector<16x8xf32>
    %32 = vector.extract_strided_slice %3 {offsets = [0, 16], sizes = [16, 8], strides = [1, 1]} : vector<16x192xf32> to vector<16x8xf32>
    %33 = vector.extract_strided_slice %3 {offsets = [0, 80], sizes = [16, 8], strides = [1, 1]} : vector<16x192xf32> to vector<16x8xf32>
    %34 = vector.extract_strided_slice %3 {offsets = [0, 144], sizes = [16, 8], strides = [1, 1]} : vector<16x192xf32> to vector<16x8xf32>
    %cst_12 = arith.constant dense<0.000000e+00> : vector<16x16xf32>
    %35 = tpu.matmul %32, %33, %cst_12 {dimension_numbers = #tpu.dot_dimension_numbers<[1], [1], [0], [0], [0, 0, 1, 0], [], []>, precision = #tpu.contract_precision<fp32>} : vector<16x8xf32>, vector<16x8xf32>, vector<16x16xf32> -> vector<16x16xf32>
    %cst_13 = arith.constant dense<0xFF800000> : vector<16xf32>
    %36 = vector.multi_reduction <maximumf>, %35, %cst_13 [1] : vector<16x16xf32> to vector<16xf32>
    %37 = vector.shape_cast %36 : vector<16xf32> to vector<16x1xf32>
    %38 = vector.broadcast %37 : vector<16x1xf32> to vector<16x16xf32>
    %39 = arith.subf %35, %38 : vector<16x16xf32>
    %40 = math.exp %39 : vector<16x16xf32>
    %cst_14 = arith.constant dense<0.000000e+00> : vector<16xf32>
    %41 = vector.multi_reduction <add>, %40, %cst_14 [1] : vector<16x16xf32> to vector<16xf32>
    %42 = vector.shape_cast %41 : vector<16xf32> to vector<16x1xf32>
    %cst_15 = arith.constant dense<0.000000e+00> : vector<16x8xf32>
    %43 = tpu.matmul %40, %34, %cst_15 {dimension_numbers = #tpu.dot_dimension_numbers<[1], [0], [0], [1], [0, 0, 1, 1], [], []>, precision = #tpu.contract_precision<fp32>} : vector<16x16xf32>, vector<16x8xf32>, vector<16x8xf32> -> vector<16x8xf32>
    %44 = vector.broadcast %42 : vector<16x1xf32> to vector<16x8xf32>
    %45 = arith.divf %43, %44 : vector<16x8xf32>
    %46 = vector.extract_strided_slice %3 {offsets = [0, 24], sizes = [16, 8], strides = [1, 1]} : vector<16x192xf32> to vector<16x8xf32>
    %47 = vector.extract_strided_slice %3 {offsets = [0, 88], sizes = [16, 8], strides = [1, 1]} : vector<16x192xf32> to vector<16x8xf32>
    %48 = vector.extract_strided_slice %3 {offsets = [0, 152], sizes = [16, 8], strides = [1, 1]} : vector<16x192xf32> to vector<16x8xf32>
    %cst_16 = arith.constant dense<0.000000e+00> : vector<16x16xf32>
    %49 = tpu.matmul %46, %47, %cst_16 {dimension_numbers = #tpu.dot_dimension_numbers<[1], [1], [0], [0], [0, 0, 1, 0], [], []>, precision = #tpu.contract_precision<fp32>} : vector<16x8xf32>, vector<16x8xf32>, vector<16x16xf32> -> vector<16x16xf32>
    %cst_17 = arith.constant dense<0xFF800000> : vector<16xf32>
    %50 = vector.multi_reduction <maximumf>, %49, %cst_17 [1] : vector<16x16xf32> to vector<16xf32>
    %51 = vector.shape_cast %50 : vector<16xf32> to vector<16x1xf32>
    %52 = vector.broadcast %51 : vector<16x1xf32> to vector<16x16xf32>
    %53 = arith.subf %49, %52 : vector<16x16xf32>
    %54 = math.exp %53 : vector<16x16xf32>
    %cst_18 = arith.constant dense<0.000000e+00> : vector<16xf32>
    %55 = vector.multi_reduction <add>, %54, %cst_18 [1] : vector<16x16xf32> to vector<16xf32>
    %56 = vector.shape_cast %55 : vector<16xf32> to vector<16x1xf32>
    %cst_19 = arith.constant dense<0.000000e+00> : vector<16x8xf32>
    %57 = tpu.matmul %54, %48, %cst_19 {dimension_numbers = #tpu.dot_dimension_numbers<[1], [0], [0], [1], [0, 0, 1, 1], [], []>, precision = #tpu.contract_precision<fp32>} : vector<16x16xf32>, vector<16x8xf32>, vector<16x8xf32> -> vector<16x8xf32>
    %58 = vector.broadcast %56 : vector<16x1xf32> to vector<16x8xf32>
    %59 = arith.divf %57, %58 : vector<16x8xf32>
    %60 = vector.extract_strided_slice %3 {offsets = [0, 32], sizes = [16, 8], strides = [1, 1]} : vector<16x192xf32> to vector<16x8xf32>
    %61 = vector.extract_strided_slice %3 {offsets = [0, 96], sizes = [16, 8], strides = [1, 1]} : vector<16x192xf32> to vector<16x8xf32>
    %62 = vector.extract_strided_slice %3 {offsets = [0, 160], sizes = [16, 8], strides = [1, 1]} : vector<16x192xf32> to vector<16x8xf32>
    %cst_20 = arith.constant dense<0.000000e+00> : vector<16x16xf32>
    %63 = tpu.matmul %60, %61, %cst_20 {dimension_numbers = #tpu.dot_dimension_numbers<[1], [1], [0], [0], [0, 0, 1, 0], [], []>, precision = #tpu.contract_precision<fp32>} : vector<16x8xf32>, vector<16x8xf32>, vector<16x16xf32> -> vector<16x16xf32>
    %cst_21 = arith.constant dense<0xFF800000> : vector<16xf32>
    %64 = vector.multi_reduction <maximumf>, %63, %cst_21 [1] : vector<16x16xf32> to vector<16xf32>
    %65 = vector.shape_cast %64 : vector<16xf32> to vector<16x1xf32>
    %66 = vector.broadcast %65 : vector<16x1xf32> to vector<16x16xf32>
    %67 = arith.subf %63, %66 : vector<16x16xf32>
    %68 = math.exp %67 : vector<16x16xf32>
    %cst_22 = arith.constant dense<0.000000e+00> : vector<16xf32>
    %69 = vector.multi_reduction <add>, %68, %cst_22 [1] : vector<16x16xf32> to vector<16xf32>
    %70 = vector.shape_cast %69 : vector<16xf32> to vector<16x1xf32>
    %cst_23 = arith.constant dense<0.000000e+00> : vector<16x8xf32>
    %71 = tpu.matmul %68, %62, %cst_23 {dimension_numbers = #tpu.dot_dimension_numbers<[1], [0], [0], [1], [0, 0, 1, 1], [], []>, precision = #tpu.contract_precision<fp32>} : vector<16x16xf32>, vector<16x8xf32>, vector<16x8xf32> -> vector<16x8xf32>
    %72 = vector.broadcast %70 : vector<16x1xf32> to vector<16x8xf32>
    %73 = arith.divf %71, %72 : vector<16x8xf32>
    %74 = vector.extract_strided_slice %3 {offsets = [0, 40], sizes = [16, 8], strides = [1, 1]} : vector<16x192xf32> to vector<16x8xf32>
    %75 = vector.extract_strided_slice %3 {offsets = [0, 104], sizes = [16, 8], strides = [1, 1]} : vector<16x192xf32> to vector<16x8xf32>
    %76 = vector.extract_strided_slice %3 {offsets = [0, 168], sizes = [16, 8], strides = [1, 1]} : vector<16x192xf32> to vector<16x8xf32>
    %cst_24 = arith.constant dense<0.000000e+00> : vector<16x16xf32>
    %77 = tpu.matmul %74, %75, %cst_24 {dimension_numbers = #tpu.dot_dimension_numbers<[1], [1], [0], [0], [0, 0, 1, 0], [], []>, precision = #tpu.contract_precision<fp32>} : vector<16x8xf32>, vector<16x8xf32>, vector<16x16xf32> -> vector<16x16xf32>
    %cst_25 = arith.constant dense<0xFF800000> : vector<16xf32>
    %78 = vector.multi_reduction <maximumf>, %77, %cst_25 [1] : vector<16x16xf32> to vector<16xf32>
    %79 = vector.shape_cast %78 : vector<16xf32> to vector<16x1xf32>
    %80 = vector.broadcast %79 : vector<16x1xf32> to vector<16x16xf32>
    %81 = arith.subf %77, %80 : vector<16x16xf32>
    %82 = math.exp %81 : vector<16x16xf32>
    %cst_26 = arith.constant dense<0.000000e+00> : vector<16xf32>
    %83 = vector.multi_reduction <add>, %82, %cst_26 [1] : vector<16x16xf32> to vector<16xf32>
    %84 = vector.shape_cast %83 : vector<16xf32> to vector<16x1xf32>
    %cst_27 = arith.constant dense<0.000000e+00> : vector<16x8xf32>
    %85 = tpu.matmul %82, %76, %cst_27 {dimension_numbers = #tpu.dot_dimension_numbers<[1], [0], [0], [1], [0, 0, 1, 1], [], []>, precision = #tpu.contract_precision<fp32>} : vector<16x16xf32>, vector<16x8xf32>, vector<16x8xf32> -> vector<16x8xf32>
    %86 = vector.broadcast %84 : vector<16x1xf32> to vector<16x8xf32>
    %87 = arith.divf %85, %86 : vector<16x8xf32>
    %88 = vector.extract_strided_slice %3 {offsets = [0, 48], sizes = [16, 8], strides = [1, 1]} : vector<16x192xf32> to vector<16x8xf32>
    %89 = vector.extract_strided_slice %3 {offsets = [0, 112], sizes = [16, 8], strides = [1, 1]} : vector<16x192xf32> to vector<16x8xf32>
    %90 = vector.extract_strided_slice %3 {offsets = [0, 176], sizes = [16, 8], strides = [1, 1]} : vector<16x192xf32> to vector<16x8xf32>
    %cst_28 = arith.constant dense<0.000000e+00> : vector<16x16xf32>
    %91 = tpu.matmul %88, %89, %cst_28 {dimension_numbers = #tpu.dot_dimension_numbers<[1], [1], [0], [0], [0, 0, 1, 0], [], []>, precision = #tpu.contract_precision<fp32>} : vector<16x8xf32>, vector<16x8xf32>, vector<16x16xf32> -> vector<16x16xf32>
    %cst_29 = arith.constant dense<0xFF800000> : vector<16xf32>
    %92 = vector.multi_reduction <maximumf>, %91, %cst_29 [1] : vector<16x16xf32> to vector<16xf32>
    %93 = vector.shape_cast %92 : vector<16xf32> to vector<16x1xf32>
    %94 = vector.broadcast %93 : vector<16x1xf32> to vector<16x16xf32>
    %95 = arith.subf %91, %94 : vector<16x16xf32>
    %96 = math.exp %95 : vector<16x16xf32>
    %cst_30 = arith.constant dense<0.000000e+00> : vector<16xf32>
    %97 = vector.multi_reduction <add>, %96, %cst_30 [1] : vector<16x16xf32> to vector<16xf32>
    %98 = vector.shape_cast %97 : vector<16xf32> to vector<16x1xf32>
    %cst_31 = arith.constant dense<0.000000e+00> : vector<16x8xf32>
    %99 = tpu.matmul %96, %90, %cst_31 {dimension_numbers = #tpu.dot_dimension_numbers<[1], [0], [0], [1], [0, 0, 1, 1], [], []>, precision = #tpu.contract_precision<fp32>} : vector<16x16xf32>, vector<16x8xf32>, vector<16x8xf32> -> vector<16x8xf32>
    %100 = vector.broadcast %98 : vector<16x1xf32> to vector<16x8xf32>
    %101 = arith.divf %99, %100 : vector<16x8xf32>
    %102 = vector.extract_strided_slice %3 {offsets = [0, 56], sizes = [16, 8], strides = [1, 1]} : vector<16x192xf32> to vector<16x8xf32>
    %103 = vector.extract_strided_slice %3 {offsets = [0, 120], sizes = [16, 8], strides = [1, 1]} : vector<16x192xf32> to vector<16x8xf32>
    %104 = vector.extract_strided_slice %3 {offsets = [0, 184], sizes = [16, 8], strides = [1, 1]} : vector<16x192xf32> to vector<16x8xf32>
    %cst_32 = arith.constant dense<0.000000e+00> : vector<16x16xf32>
    %105 = tpu.matmul %102, %103, %cst_32 {dimension_numbers = #tpu.dot_dimension_numbers<[1], [1], [0], [0], [0, 0, 1, 0], [], []>, precision = #tpu.contract_precision<fp32>} : vector<16x8xf32>, vector<16x8xf32>, vector<16x16xf32> -> vector<16x16xf32>
    %cst_33 = arith.constant dense<0xFF800000> : vector<16xf32>
    %106 = vector.multi_reduction <maximumf>, %105, %cst_33 [1] : vector<16x16xf32> to vector<16xf32>
    %107 = vector.shape_cast %106 : vector<16xf32> to vector<16x1xf32>
    %108 = vector.broadcast %107 : vector<16x1xf32> to vector<16x16xf32>
    %109 = arith.subf %105, %108 : vector<16x16xf32>
    %110 = math.exp %109 : vector<16x16xf32>
    %cst_34 = arith.constant dense<0.000000e+00> : vector<16xf32>
    %111 = vector.multi_reduction <add>, %110, %cst_34 [1] : vector<16x16xf32> to vector<16xf32>
    %112 = vector.shape_cast %111 : vector<16xf32> to vector<16x1xf32>
    %cst_35 = arith.constant dense<0.000000e+00> : vector<16x8xf32>
    %113 = tpu.matmul %110, %104, %cst_35 {dimension_numbers = #tpu.dot_dimension_numbers<[1], [0], [0], [1], [0, 0, 1, 1], [], []>, precision = #tpu.contract_precision<fp32>} : vector<16x16xf32>, vector<16x8xf32>, vector<16x8xf32> -> vector<16x8xf32>
    %114 = vector.broadcast %112 : vector<16x1xf32> to vector<16x8xf32>
    %115 = arith.divf %113, %114 : vector<16x8xf32>
    %116 = tpu.concatenate %17, %31, %45, %59, %73, %87, %101, %115 in 1 : vector<16x8xf32>, vector<16x8xf32>, vector<16x8xf32>, vector<16x8xf32>, vector<16x8xf32>, vector<16x8xf32>, vector<16x8xf32>, vector<16x8xf32> -> vector<16x64xf32>
    %c0_36 = arith.constant 0 : index
    %c0_37 = arith.constant 0 : index
    %117 = vector.load %arg3[%c0_36, %c0_37] : memref<64x64xf32, #tpu.memory_space<vmem>>, vector<64x64xf32>
    %cst_38 = arith.constant dense<0.000000e+00> : vector<16x64xf32>
    %118 = tpu.matmul %116, %117, %cst_38 {dimension_numbers = #tpu.dot_dimension_numbers<[1], [0], [0], [1], [0, 0, 1, 1], [], []>, precision = #tpu.contract_precision<fp32>} : vector<16x64xf32>, vector<64x64xf32>, vector<16x64xf32> -> vector<16x64xf32>
    %c0_39 = arith.constant 0 : index
    %c0_40 = arith.constant 0 : index
    %119 = vector.load %arg4[%c0_39, %c0_40] : memref<1x64xf32, #tpu.memory_space<vmem>>, vector<1x64xf32>
    %120 = vector.broadcast %119 : vector<1x64xf32> to vector<16x64xf32>
    %121 = arith.addf %118, %120 : vector<16x64xf32>
    %c0_41 = arith.constant 0 : index
    %c0_42 = arith.constant 0 : index
    %c0_43 = arith.constant 0 : index
    %122 = vector.load %arg5[%c0_41, %c0_42, %c0_43] : memref<1x16x64xf32, #tpu.memory_space<vmem>>, vector<1x16x64xf32>
    %123 = vector.shape_cast %122 : vector<1x16x64xf32> to vector<16x64xf32>
    %124 = vector.shape_cast %121 : vector<16x64xf32> to vector<1x16x64xf32>
    tpu.vector_store %arg5[%c0_41, %c0_42, %c0_43], %124 {strides = array<i32>} : memref<1x16x64xf32, #tpu.memory_space<vmem>>, vector<1x16x64xf32>,
    return
  }
  func.func @transform_0(%arg0: i32) -> (i32, i32, i32) {
    %c0_i32 = arith.constant 0 : i32
    %c0_i32_0 = arith.constant 0 : i32
    %c0_i32_1 = arith.constant 0 : i32
    return %arg0, %c0_i32, %c0_i32_0 : i32, i32, i32
  }
  func.func @transform_1(%arg0: i32) -> (i32, i32) {
    %c0_i32 = arith.constant 0 : i32
    %c0_i32_0 = arith.constant 0 : i32
    %c0_i32_1 = arith.constant 0 : i32
    return %c0_i32, %c0_i32_0 : i32, i32
  }
  func.func @transform_2(%arg0: i32) -> (i32, i32) {
    %c0_i32 = arith.constant 0 : i32
    %c0_i32_0 = arith.constant 0 : i32
    %c0_i32_1 = arith.constant 0 : i32
    return %c0_i32, %c0_i32_0 : i32, i32
  }
  func.func @transform_3(%arg0: i32) -> (i32, i32) {
    %c0_i32 = arith.constant 0 : i32
    %c0_i32_0 = arith.constant 0 : i32
    %c0_i32_1 = arith.constant 0 : i32
    return %c0_i32, %c0_i32_0 : i32, i32
  }
  func.func @transform_4(%arg0: i32) -> (i32, i32, i32) {
    %c0_i32 = arith.constant 0 : i32
    %c0_i32_0 = arith.constant 0 : i32
    %c0_i32_1 = arith.constant 0 : i32
    return %arg0, %c0_i32, %c0_i32_0 : i32, i32, i32
  }
}

</mosaic_0001>

<llo_original>
// kernel: tpu_custom_call.1
$region0: #{tpu_custom_call.1}
  #allocation0 [shape = 'u32[]', space=smem, size = 0x4, offset = 0x4, fixed_abs, tag = 'smem constant byte address 0x4 - core index']
  #allocation1 [shape = 'u32[144,128]{1,0:T(1,128)}', space=vmem, size = 0x12000, scoped, tag = 'internal scratch']
  %s0 = inlined_call_operand.hbm [shape: f32[2,16,64], index: 0, kind: input, shape index: {}]
  %s1 = inlined_call_operand.hbm [shape: f32[64,192], index: 1, kind: input, shape index: {}]
  %s2 = inlined_call_operand.hbm [shape: f32[64,64], index: 2, kind: input, shape index: {}]
  %s3 = inlined_call_operand.vmem [shape: f32[1,64], index: 3, kind: input, shape index: {}]
  %s4 = inlined_call_operand.hbm [shape: f32[2,16,64], index: 4, kind: output, shape index: {}]
  %s5 = sld [smem:[#allocation0]]
  $region61: #{tpu_custom_call.1} parent=0
    _
  %s7 = ssub.s32 1, %s5
  %s8 = scalar_select 0, %s7, %s5
  $region1: #{tpu_custom_call.1} parent=0
    #allocation2 [shape = 'u8[16384]{0}', space=vmem, size = 0x4000, scoped, tag = 'input window, operand 0']
    #allocation3 [shape = 's32[2]{0}', space=sflag, size = 0x8, scoped, tag = 'scoped memory for tpu_custom_call.1']
    #allocation4 [shape = 's32[2]{0}', space=sflag, size = 0x8, scoped, tag = 'scoped memory for tpu_custom_call.1']
    #allocation5 [shape = 'u8[65536]{0}', space=vmem, size = 0x10000, scoped, tag = 'input window, operand 1, single buffered']
    #allocation6 [shape = 's32[1]{0}', space=sflag, size = 0x4, scoped, tag = 'scoped memory for tpu_custom_call.1']
    #allocation7 [shape = 'u8[32768]{0}', space=vmem, size = 0x8000, scoped, tag = 'input window, operand 2, single buffered']
    #allocation8 [shape = 'u8[16384]{0}', space=vmem, size = 0x4000, scoped, tag = 'output window, operand 0']
    %9 = vsyncpa [#allocation3], 0
    %s10 = scalar_lea.sflag [#allocation3], 1
    %11 = vsyncpa %s10, 0
    %12 = vsyncpa [#allocation6], 0
    %13 = vsyncpa [#allocation4], 0
    %s14 = scalar_lea.sflag [#allocation4], 1
    %15 = vsyncpa %s14, 0
    loop: start=0, step=1, limit=4
    $region2: #{tpu_custom_call.1} parent=1 // loop_pre_header
      _
    $region3: #{tpu_custom_call.1} parent=1 // loop_header
      %s17 = sphi 0, %s21
      %p18 = scmp.ge.s32.totalorder %s17, 4
      %s27 = sphi 0, %s29
      %s30 = sphi 0, %s27
      %s31 = sphi 0, %s30
      %s47 = sphi 0, %s31
      %s51 = sphi 0, %s51
      %s53 = sphi 0, %s51
      %s54 = sphi 0, %s53
      %s68 = sphi 0, %s54
      %s72 = sphi 0, %s72
      %s74 = sphi 0, %s72
      %s75 = sphi 0, %s74
      %s89 = sphi 0, %s75
      %s93 = sphi 0, %s93
      %s95 = sphi 0, %s93
      %s96 = sphi 0, %s95
      %s110 = sphi 0, %s96
      %s116 = sphi 0, %s118
      %s119 = sphi 0, %s116
      %s120 = sphi 0, %s119
      %s136 = sphi 0, %s120
    $region4: #{tpu_custom_call.1} parent=1 // loop_header_branch
      %20 = sbr.rel (%p18) target = $region8
    $region5: #{tpu_custom_call.1} parent=1 // loop_body
      %s22 = ssub.s32 %s17, 1
      %s23 = ssub.s32 %s17, 2
      %s24 = sadd.s32 %s17, 1
      %s25 = ssub.s32 %s17, %s24
      %p26 = scmp.eq.s32.totalorder %s25, 0
      %s28 = sadd.s32 %s27, 1
      %s29 = scalar_select %p26, %s27, %s28
      %p32 = pneg %p26
      %p33 = scmp.eq.s32.totalorder %s17, 1
      %p34 = por %p32, %p33
      %p35 = scmp.ne.s32.totalorder %s27, %s30
      %p36 = scmp.eq.s32.totalorder %s17, 0
      %p37 = por %p35, %p36
      %p38 = scmp.ne.s32.totalorder %s27, %s30
      %p39 = scmp.eq.s32.totalorder %s22, 1
      %p40 = por %p38, %p39
      %p41 = scmp.ne.s32.totalorder %s30, %s31
      %p42 = scmp.eq.s32.totalorder %s22, 0
      %p43 = por %p41, %p42
      %p44 = scmp.ne.s32.totalorder %s30, %s31
      %p45 = scmp.eq.s32.totalorder %s23, 1
      %p46 = por %p44, %p45
      %p48 = scmp.ne.s32.totalorder %s31, %s47
      %p49 = scmp.eq.s32.totalorder %s23, 0
      %p50 = por %p48, %p49
      %s52 = sadd.s32 %s51, 1
      %p55 = scmp.eq.s32.totalorder %s17, 1
      %p56 = scmp.ne.s32.totalorder %s51, %s53
      %p57 = scmp.eq.s32.totalorder %s17, 0
      %p58 = por %p56, %p57
      %p59 = scmp.ne.s32.totalorder %s51, %s53
      %p60 = scmp.eq.s32.totalorder %s22, 1
      %p61 = por %p59, %p60
      %p62 = scmp.ne.s32.totalorder %s53, %s54
      %p63 = scmp.eq.s32.totalorder %s22, 0
      %p64 = por %p62, %p63
      %p65 = scmp.ne.s32.totalorder %s53, %s54
      %p66 = scmp.eq.s32.totalorder %s23, 1
      %p67 = por %p65, %p66
      %p69 = scmp.ne.s32.totalorder %s54, %s68
      %p70 = scmp.eq.s32.totalorder %s23, 0
      %p71 = por %p69, %p70
      %s73 = sadd.s32 %s72, 1
      %p76 = scmp.eq.s32.totalorder %s17, 1
      %p77 = scmp.ne.s32.totalorder %s72, %s74
      %p78 = scmp.eq.s32.totalorder %s17, 0
      %p79 = por %p77, %p78
      %p80 = scmp.ne.s32.totalorder %s72, %s74
      %p81 = scmp.eq.s32.totalorder %s22, 1
      %p82 = por %p80, %p81
      %p83 = scmp.ne.s32.totalorder %s74, %s75
      %p84 = scmp.eq.s32.totalorder %s22, 0
      %p85 = por %p83, %p84
      %p86 = scmp.ne.s32.totalorder %s74, %s75
      %p87 = scmp.eq.s32.totalorder %s23, 1
      %p88 = por %p86, %p87
      %p90 = scmp.ne.s32.totalorder %s75, %s89
      %p91 = scmp.eq.s32.totalorder %s23, 0
      %p92 = por %p90, %p91
      %s94 = sadd.s32 %s93, 1
      %p97 = scmp.eq.s32.totalorder %s17, 1
      %p98 = scmp.ne.s32.totalorder %s93, %s95
      %p99 = scmp.eq.s32.totalorder %s17, 0
      %p100 = por %p98, %p99
      %p101 = scmp.ne.s32.totalorder %s93, %s95
      %p102 = scmp.eq.s32.totalorder %s22, 1
      %p103 = por %p101, %p102
      %p104 = scmp.ne.s32.totalorder %s95, %s96
      %p105 = scmp.eq.s32.totalorder %s22, 0
      %p106 = por %p104, %p105
      %p107 = scmp.ne.s32.totalorder %s95, %s96
      %p108 = scmp.eq.s32.totalorder %s23, 1
      %p109 = por %p107, %p108
      %p111 = scmp.ne.s32.totalorder %s96, %s110
      %p112 = scmp.eq.s32.totalorder %s23, 0
      %p113 = por %p111, %p112
      %s114 = ssub.s32 %s17, %s24
      %p115 = scmp.eq.s32.totalorder %s114, 0
      %s117 = sadd.s32 %s116, 1
      %s118 = scalar_select %p115, %s116, %s117
      %p121 = pneg %p115
      %p122 = scmp.eq.s32.totalorder %s17, 1
      %p123 = por %p121, %p122
      %p124 = scmp.ne.s32.totalorder %s116, %s119
      %p125 = scmp.eq.s32.totalorder %s17, 0
      %p126 = por %p124, %p125
      %p127 = scmp.ne.s32.totalorder %s116, %s119
      %p128 = scmp.eq.s32.totalorder %s22, 1
      %p129 = por %p127, %p128
      %p130 = scmp.ne.s32.totalorder %s119, %s120
      %p131 = scmp.eq.s32.totalorder %s22, 0
      %p132 = por %p130, %p131
      %p133 = scmp.ne.s32.totalorder %s119, %s120
      %p134 = scmp.eq.s32.totalorder %s23, 1
      %p135 = por %p133, %p134
      %p137 = scmp.ne.s32.totalorder %s120, %s136
      %p138 = scmp.eq.s32.totalorder %s23, 0
      %p139 = por %p137, %p138
      %p140 = scmp.le.s32.totalorder 1, %s17
      %p141 = scmp.lt.s32.totalorder %s17, 3
      %p142 = pnand %p140, %p141
      %p143 = pneg %p142
      // Predicated region
      $region9: #{tpu_custom_call.1} parent=5 // pred_check
        _
      $region10: #{tpu_custom_call.1} parent=5 // pred_check_branch
        %145 = sbr.rel (%p142) target = $region12
      $region11: #{tpu_custom_call.1} parent=5 // pred_region
        %s146 = ssub.s32 %s17, 1
        // Predicated region
        $region13: #{tpu_custom_call.1} parent=11 // pred_check
          %p147 = pneg %p64
        $region14: #{tpu_custom_call.1} parent=11 // pred_check_branch
          %149 = sbr.rel (%p147) target = $region16
        $region15: #{tpu_custom_call.1} parent=11 // pred_region
          %s151 = ssub.s32 2048, 2048
          %152 = vsyncadd [#allocation6], %s151
          %s153 = sshll.u32 [#allocation5], 4
          %s154 = int_to_ptr.vmem [resolvable:$true] %s153
          %159 = dma.hbm_to_vmem [thread:$0]  %s1, 2048, %s154, [#allocation6], 256, 256, 16
        $region16: #{tpu_custom_call.1} parent=11 // pred_fallthru
          _
        // Predicated region
        $region17: #{tpu_custom_call.1} parent=11 // pred_check
          %p160 = pneg %p85
        $region18: #{tpu_custom_call.1} parent=11 // pred_check_branch
          %162 = sbr.rel (%p160) target = $region20
        $region19: #{tpu_custom_call.1} parent=11 // pred_region
          %s164 = ssub.s32 1024, 1024
          %165 = vsyncadd [#allocation6], %s164
          %s166 = sshll.u32 [#allocation7], 4
          %s167 = int_to_ptr.vmem [resolvable:$true] %s166
          %172 = dma.hbm_to_vmem [thread:$0]  %s2, 1024, %s167, [#allocation6], 128, 128, 8
        $region20: #{tpu_custom_call.1} parent=11 // pred_fallthru
          _
        // Predicated region
        $region21: #{tpu_custom_call.1} parent=11 // pred_check
          %p173 = pneg %p106
        $region22: #{tpu_custom_call.1} parent=11 // pred_check_branch
          %175 = sbr.rel (%p173) target = $region24
        $region23: #{tpu_custom_call.1} parent=11 // pred_region
          _
        $region24: #{tpu_custom_call.1} parent=11 // pred_fallthru
          _
      $region12: #{tpu_custom_call.1} parent=5 // pred_fallthru
        _
      %p176 = scmp.lt.s32.totalorder %s17, 2
      // Predicated region
      $region25: #{tpu_custom_call.1} parent=5 // pred_check
        %p177 = pneg %p176
      $region26: #{tpu_custom_call.1} parent=5 // pred_check_branch
        %179 = sbr.rel (%p177) target = $region28
      $region27: #{tpu_custom_call.1} parent=5 // pred_region
        // Predicated region
        $region29: #{tpu_custom_call.1} parent=27 // pred_check
          %p180 = pneg %p37
        $region30: #{tpu_custom_call.1} parent=27 // pred_check_branch
          %182 = sbr.rel (%p180) target = $region32
        $region31: #{tpu_custom_call.1} parent=27 // pred_region
          %s183 = sand.u32 %s27, 1
          %s184 = scalar_lea.sflag [#allocation3], %s183
          %s185 = sand.u32 %s27, 1
          %s186 = smul.addr %s185, 16
          %s187 = scalar_lea.vmem [#allocation2], %s186
          %s189 = ssub.s32 256, 256
          %190 = vsyncadd %s184, %s189
          %s191 = smul.addr %s17, 2
          %s192 = smul.addr %s191, 128
          %s193 = scalar_lea.hbm %s0, %s192
          %s194 = sshll.u32 %s187, 4
          %s195 = int_to_ptr.vmem [resolvable:$true] %s194
          %200 = dma.hbm_to_vmem [thread:$0]  %s193, 256, %s195, %s184, 128, 128, 8
        $region32: #{tpu_custom_call.1} parent=27 // pred_fallthru
          _
      $region28: #{tpu_custom_call.1} parent=5 // pred_fallthru
        _
      %p201 = scmp.le.s32.totalorder 1, %s17
      %p202 = scmp.lt.s32.totalorder %s17, 3
      %p203 = pnand %p201, %p202
      %p204 = pneg %p203
      // Predicated region
      $region33: #{tpu_custom_call.1} parent=5 // pred_check
        _
      $region34: #{tpu_custom_call.1} parent=5 // pred_check_branch
        %206 = sbr.rel (%p203) target = $region36
      $region35: #{tpu_custom_call.1} parent=5 // pred_region
        %s207 = ssub.s32 %s17, 1
        %s208 = sand.u32 %s30, 1
        %s209 = scalar_lea.sflag [#allocation3], %s208
        %s210 = sand.u32 %s30, 1
        %s211 = smul.addr %s210, 16
        %s212 = scalar_lea.vmem [#allocation2], %s211
        // Predicated region
        $region37: #{tpu_custom_call.1} parent=35 // pred_check
          %p213 = pneg %p43
        $region38: #{tpu_custom_call.1} parent=35 // pred_check_branch
          %215 = sbr.rel (%p213) target = $region40
        $region39: #{tpu_custom_call.1} parent=35 // pred_region
          %216 = dma.done %s209, 256
        $region40: #{tpu_custom_call.1} parent=35 // pred_fallthru
          _
        // Predicated region
        $region41: #{tpu_custom_call.1} parent=35 // pred_check
          %p217 = pneg %p64
        $region42: #{tpu_custom_call.1} parent=35 // pred_check_branch
          %219 = sbr.rel (%p217) target = $region44
        $region43: #{tpu_custom_call.1} parent=35 // pred_region
          %220 = dma.done [#allocation6], 2048
        $region44: #{tpu_custom_call.1} parent=35 // pred_fallthru
          _
        // Predicated region
        $region45: #{tpu_custom_call.1} parent=35 // pred_check
          %p221 = pneg %p85
        $region46: #{tpu_custom_call.1} parent=35 // pred_check_branch
          %223 = sbr.rel (%p221) target = $region48
        $region47: #{tpu_custom_call.1} parent=35 // pred_region
          %224 = dma.done [#allocation6], 1024
        $region48: #{tpu_custom_call.1} parent=35 // pred_fallthru
          _
        %s225 = sand.u32 %s30, 1
        %s226 = scalar_lea.sflag [#allocation3], %s225
        %s227 = sand.u32 %s30, 1
        %s228 = smul.addr %s227, 16
        %s229 = scalar_lea.vmem [#allocation2], %s228
        %p230 = pneg %p43
        %p231 = pneg %p40
        %p232 = pneg %p64
        %p233 = pneg %p61
        %p234 = pneg %p85
        %p235 = pneg %p82
        %p236 = pneg %p106
        %p237 = pneg %p103
        %p238 = pneg %p132
        %p239 = pneg %p129
        %s240 = sand.u32 %s119, 1
        %s241 = scalar_lea.sflag [#allocation4], %s240
        %s242 = sand.u32 %s119, 1
        %s243 = smul.addr %s242, 16
        %s244 = scalar_lea.vmem [#allocation8], %s243
        %v245 = vld [vmem:[%s212] sm:$0xff]
        %v246 = vld [vmem:[%s212 + $0x8] sm:$0xff]
        %v247 = vld [vmem:[#allocation5] sm:$0xff]
        %v248 = vld [vmem:[#allocation5 + $0x8] sm:$0xff]
        %v249 = vld [vmem:[#allocation5 + $0x10] sm:$0xff]
        %v250 = vld [vmem:[#allocation5 + $0x18] sm:$0xff]
        %v251 = vld [vmem:[#allocation5 + $0x20] sm:$0xff]
        %v252 = vld [vmem:[#allocation5 + $0x28] sm:$0xff]
        %v253 = vld [vmem:[#allocation5 + $0x30] sm:$0xff]
        %v254 = vld [vmem:[#allocation5 + $0x38] sm:$0xff]
        %v255 = vld [vmem:[#allocation5 + $0x40] sm:$0xff]
        %v256 = vld [vmem:[#allocation5 + $0x48] sm:$0xff]
        %v257 = vld [vmem:[#allocation5 + $0x50] sm:$0xff]
        %v258 = vld [vmem:[#allocation5 + $0x58] sm:$0xff]
        %v259 = vld [vmem:[#allocation5 + $0x60] sm:$0xff]
        %v260 = vld [vmem:[#allocation5 + $0x68] sm:$0xff]
        %v261 = vld [vmem:[#allocation5 + $0x70] sm:$0xff]
        %v262 = vld [vmem:[#allocation5 + $0x78] sm:$0xff]
        %vm263 = vcmask 523264
        %v265 = vsel %vm263, %v245, 0
        %v268 = vsel %vm263, %v246, 0
        %v270 = vand.u32 %v248, 4294901760
        %271 = vmatprep.subr.mxu0 %v270
        %v272 = vand.u32 %v247, 4294901760
        %273 = vmatpush1.msra.mxu0 %v272
        %v274 = vand.u32 %v250, 4294901760
        %275 = vmatprep.subr.mxu0 %v274
        %v276 = vand.u32 %v249, 4294901760
        %277 = vmatpush1.msra.mxu0 %v276
        %v278 = vand.u32 %v252, 4294901760
        %279 = vmatprep.subr.mxu0 %v278
        %v280 = vand.u32 %v251, 4294901760
        %281 = vmatpush1.msra.mxu0 %v280
        %v282 = vand.u32 %v254, 4294901760
        %283 = vmatprep.subr.mxu0 %v282
        %v284 = vand.u32 %v253, 4294901760
        %285 = vmatpush1.msra.mxu0 %v284
        %v286 = vand.u32 %v256, 4294901760
        %287 = vmatprep.subr.mxu0 %v286
        %v288 = vand.u32 %v255, 4294901760
        %289 = vmatpush1.msra.mxu0 %v288
        %v290 = vand.u32 %v258, 4294901760
        %291 = vmatprep.subr.mxu0 %v290
        %v292 = vand.u32 %v257, 4294901760
        %293 = vmatpush1.msra.mxu0 %v292
        %v294 = vand.u32 %v260, 4294901760
        %295 = vmatprep.subr.mxu0 %v294
        %v296 = vand.u32 %v259, 4294901760
        %297 = vmatpush1.msra.mxu0 %v296
        %v298 = vand.u32 %v262, 4294901760
        %299 = vmatprep.subr.mxu0 %v298
        %v300 = vand.u32 %v261, 4294901760
        %301 = vmatpush1.msra.mxu0 %v300
        %302 = vmatprep.subr.mxu0 0.0
        %303 = vmatpush1.msra.mxu0 0.0
        %304 = vmatprep.subr.mxu0 0.0
        %305 = vmatpush1.msra.mxu0 0.0
        %306 = vmatprep.subr.mxu0 0.0
        %307 = vmatpush1.msra.mxu0 0.0
        %308 = vmatprep.subr.mxu0 0.0
        %309 = vmatpush1.msra.mxu0 0.0
        %310 = vmatprep.subr.mxu0 0.0
        %311 = vmatpush1.msra.mxu0 0.0
        %312 = vmatprep.subr.mxu0 0.0
        %313 = vmatpush1.msra.mxu0 0.0
        %314 = vmatprep.subr.mxu0 0.0
        %315 = vmatpush1.msra.mxu0 0.0
        %316 = vmatprep.subr.mxu0 0.0
        %317 = vmatpush1.msra.mxu0 0.0
        %318 = vmatprep.subr.mxu0 0.0
        %319 = vmatpush1.msra.mxu0 0.0
        %320 = vmatprep.subr.mxu0 0.0
        %321 = vmatpush1.msra.mxu0 0.0
        %322 = vmatprep.subr.mxu0 0.0
        %323 = vmatpush1.msra.mxu0 0.0
        %324 = vmatprep.subr.mxu0 0.0
        %325 = vmatpush1.msra.mxu0 0.0
        %326 = vmatprep.subr.mxu0 0.0
        %327 = vmatpush1.msra.mxu0 0.0
        %328 = vmatprep.subr.mxu0 0.0
        %329 = vmatpush1.msra.mxu0 0.0
        %330 = vmatprep.subr.mxu0 0.0
        %331 = vmatpush1.msra.mxu0 0.0
        %332 = vmatprep.subr.mxu0 0.0
        %333 = vmatpush1.msra.mxu0 0.0
        %334 = vmatprep.subr.mxu0 0.0
        %335 = vmatpush1.msra.mxu0 0.0
        %336 = vmatprep.subr.mxu0 0.0
        %337 = vmatpush1.msra.mxu0 0.0
        %338 = vmatprep.subr.mxu0 0.0
        %339 = vmatpush1.msra.mxu0 0.0
        %340 = vmatprep.subr.mxu0 0.0
        %341 = vmatpush1.msra.mxu0 0.0
        %342 = vmatprep.subr.mxu0 0.0
        %343 = vmatpush1.msra.mxu0 0.0
        %344 = vmatprep.subr.mxu0 0.0
        %345 = vmatpush1.msra.mxu0 0.0
        %346 = vmatprep.subr.mxu0 0.0
        %347 = vmatpush1.msra.mxu0 0.0
        %348 = vmatprep.subr.mxu0 0.0
        %349 = vmatpush1.msra.mxu0 0.0
        %350 = vmatprep.mubr.f32.mxu0 0.0
        %v351 = vand.u32 %v265, 4294901760
        %v352 = vsub.f32 %v265, %v351
        %v353 = vand.u32 %v352, 4294901760
        %v354 = vsub.f32 %v352, %v353
        %v355 = vand.u32 %v354, 4294901760
        %356 = vmatmul.mubr.f32.gmra.mrb[0].mxu0 %v355
        %v357 = vpop.f32.mrb[0].mxu0
        %v358 = vadd.f32 0.0, %v357
        %v359 = vpop.f32.mrb[0].mxu0
        %v360 = vadd.f32 0.0, %v359
        %361 = vmatprep.mubr.f32.mxu0 0.0
        %v362 = vand.u32 %v268, 4294901760
        %v363 = vsub.f32 %v268, %v362
        %v364 = vand.u32 %v363, 4294901760
        %v365 = vsub.f32 %v363, %v364
        %v366 = vand.u32 %v365, 4294901760
        %367 = vmatmul.mubr.f32.gmra.mrb[0].mxu0 %v366
        %v368 = vpop.f32.mrb[0].mxu0
        %v369 = vadd.f32 0.0, %v368
        %v370 = vpop.f32.mrb[0].mxu0
        %v371 = vadd.f32 0.0, %v370
        %372 = vdwg.mxu0
        %v373 = vand.u32 %v248, 4294901760
        %v374 = vsub.f32 %v248, %v373
        %v375 = vand.u32 %v374, 4294901760
        %v376 = vsub.f32 %v374, %v375
        %v377 = vand.u32 %v376, 4294901760
        %378 = vmatprep.subr.mxu0 %v377
        %v379 = vand.u32 %v247, 4294901760
        %v380 = vsub.f32 %v247, %v379
        %v381 = vand.u32 %v380, 4294901760
        %v382 = vsub.f32 %v380, %v381
        %v383 = vand.u32 %v382, 4294901760
        %384 = vmatpush1.msra.mxu0 %v383
        %v385 = vand.u32 %v250, 4294901760
        %v386 = vsub.f32 %v250, %v385
        %v387 = vand.u32 %v386, 4294901760
        %v388 = vsub.f32 %v386, %v387
        %v389 = vand.u32 %v388, 4294901760
        %390 = vmatprep.subr.mxu0 %v389
        %v391 = vand.u32 %v249, 4294901760
        %v392 = vsub.f32 %v249, %v391
        %v393 = vand.u32 %v392, 4294901760
        %v394 = vsub.f32 %v392, %v393
        %v395 = vand.u32 %v394, 4294901760
        %396 = vmatpush1.msra.mxu0 %v395
        %v397 = vand.u32 %v252, 4294901760
        %v398 = vsub.f32 %v252, %v397
        %v399 = vand.u32 %v398, 4294901760
        %v400 = vsub.f32 %v398, %v399
        %v401 = vand.u32 %v400, 4294901760
        %402 = vmatprep.subr.mxu0 %v401
        %v403 = vand.u32 %v251, 4294901760
        %v404 = vsub.f32 %v251, %v403
        %v405 = vand.u32 %v404, 4294901760
        %v406 = vsub.f32 %v404, %v405
        %v407 = vand.u32 %v406, 4294901760
        %408 = vmatpush1.msra.mxu0 %v407
        %v409 = vand.u32 %v254, 4294901760
        %v410 = vsub.f32 %v254, %v409
        %v411 = vand.u32 %v410, 4294901760
        %v412 = vsub.f32 %v410, %v411
        %v413 = vand.u32 %v412, 4294901760
        %414 = vmatprep.subr.mxu0 %v413
        %v415 = vand.u32 %v253, 4294901760
        %v416 = vsub.f32 %v253, %v415
        %v417 = vand.u32 %v416, 4294901760
        %v418 = vsub.f32 %v416, %v417
        %v419 = vand.u32 %v418, 4294901760
        %420 = vmatpush1.msra.mxu0 %v419
        %v421 = vand.u32 %v256, 4294901760
        %v422 = vsub.f32 %v256, %v421
        %v423 = vand.u32 %v422, 4294901760
        %v424 = vsub.f32 %v422, %v423
        %v425 = vand.u32 %v424, 4294901760
        %426 = vmatprep.subr.mxu0 %v425
        %v427 = vand.u32 %v255, 4294901760
        %v428 = vsub.f32 %v255, %v427
        %v429 = vand.u32 %v428, 4294901760
        %v430 = vsub.f32 %v428, %v429
        %v431 = vand.u32 %v430, 4294901760
        %432 = vmatpush1.msra.mxu0 %v431
        %v433 = vand.u32 %v258, 4294901760
        %v434 = vsub.f32 %v258, %v433
        %v435 = vand.u32 %v434, 4294901760
        %v436 = vsub.f32 %v434, %v435
        %v437 = vand.u32 %v436, 4294901760
        %438 = vmatprep.subr.mxu0 %v437
        %v439 = vand.u32 %v257, 4294901760
        %v440 = vsub.f32 %v257, %v439
        %v441 = vand.u32 %v440, 4294901760
        %v442 = vsub.f32 %v440, %v441
        %v443 = vand.u32 %v442, 4294901760
        %444 = vmatpush1.msra.mxu0 %v443
        %v445 = vand.u32 %v260, 4294901760
        %v446 = vsub.f32 %v260, %v445
        %v447 = vand.u32 %v446, 4294901760
        %v448 = vsub.f32 %v446, %v447
        %v449 = vand.u32 %v448, 4294901760
        %450 = vmatprep.subr.mxu0 %v449
        %v451 = vand.u32 %v259, 4294901760
        %v452 = vsub.f32 %v259, %v451
        %v453 = vand.u32 %v452, 4294901760
        %v454 = vsub.f32 %v452, %v453
        %v455 = vand.u32 %v454, 4294901760
        %456 = vmatpush1.msra.mxu0 %v455
        %v457 = vand.u32 %v262, 4294901760
        %v458 = vsub.f32 %v262, %v457
        %v459 = vand.u32 %v458, 4294901760
        %v460 = vsub.f32 %v458, %v459
        %v461 = vand.u32 %v460, 4294901760
        %462 = vmatprep.subr.mxu0 %v461
        %v463 = vand.u32 %v261, 4294901760
        %v464 = vsub.f32 %v261, %v463
        %v465 = vand.u32 %v464, 4294901760
        %v466 = vsub.f32 %v464, %v465
        %v467 = vand.u32 %v466, 4294901760
        %468 = vmatpush1.msra.mxu0 %v467
        %469 = vmatprep.subr.mxu0 0.0
        %470 = vmatpush1.msra.mxu0 0.0
        %471 = vmatprep.subr.mxu0 0.0
        %472 = vmatpush1.msra.mxu0 0.0
        %473 = vmatprep.subr.mxu0 0.0
        %474 = vmatpush1.msra.mxu0 0.0
        %475 = vmatprep.subr.mxu0 0.0
        %476 = vmatpush1.msra.mxu0 0.0
        %477 = vmatprep.subr.mxu0 0.0
        %478 = vmatpush1.msra.mxu0 0.0
        %479 = vmatprep.subr.mxu0 0.0
        %480 = vmatpush1.msra.mxu0 0.0
        %481 = vmatprep.subr.mxu0 0.0
        %482 = vmatpush1.msra.mxu0 0.0
        %483 = vmatprep.subr.mxu0 0.0
        %484 = vmatpush1.msra.mxu0 0.0
        %485 = vmatprep.subr.mxu0 0.0
        %486 = vmatpush1.msra.mxu0 0.0
        %487 = vmatprep.subr.mxu0 0.0
        %488 = vmatpush1.msra.mxu0 0.0
        %489 = vmatprep.subr.mxu0 0.0
        %490 = vmatpush1.msra.mxu0 0.0
        %491 = vmatprep.subr.mxu0 0.0
        %492 = vmatpush1.msra.mxu0 0.0
        %493 = vmatprep.subr.mxu0 0.0
        %494 = vmatpush1.msra.mxu0 0.0
        %495 = vmatprep.subr.mxu0 0.0
        %496 = vmatpush1.msra.mxu0 0.0
        %497 = vmatprep.subr.mxu0 0.0
        %498 = vmatpush1.msra.mxu0 0.0
        %499 = vmatprep.subr.mxu0 0.0
        %500 = vmatpush1.msra.mxu0 0.0
        %501 = vmatprep.subr.mxu0 0.0
        %502 = vmatpush1.msra.mxu0 0.0
        %503 = vmatprep.subr.mxu0 0.0
        %504 = vmatpush1.msra.mxu0 0.0
        %505 = vmatprep.subr.mxu0 0.0
        %506 = vmatpush1.msra.mxu0 0.0
        %507 = vmatprep.subr.mxu0 0.0
        %508 = vmatpush1.msra.mxu0 0.0
        %509 = vmatprep.subr.mxu0 0.0
        %510 = vmatpush1.msra.mxu0 0.0
        %511 = vmatprep.subr.mxu0 0.0
        %512 = vmatpush1.msra.mxu0 0.0
        %513 = vmatprep.subr.mxu0 0.0
        %514 = vmatpush1.msra.mxu0 0.0
        %515 = vmatprep.subr.mxu0 0.0
        %516 = vmatpush1.msra.mxu0 0.0
        %517 = vmatprep.mubr.f32.mxu0 0.0
        %v518 = vand.u32 %v265, 4294901760
        %519 = vmatmul.mubr.f32.gmra.mrb[0].mxu0 %v518
        %v520 = vpop.f32.mrb[0].mxu0
        %v521 = vadd.f32 %v358, %v520
        %v522 = vpop.f32.mrb[0].mxu0
        %v523 = vadd.f32 %v360, %v522
        %524 = vmatprep.mubr.f32.mxu0 0.0
        %v525 = vand.u32 %v268, 4294901760
        %526 = vmatmul.mubr.f32.gmra.mrb[0].mxu0 %v525
        %v527 = vpop.f32.mrb[0].mxu0
        %v528 = vadd.f32 %v369, %v527
        %v529 = vpop.f32.mrb[0].mxu0
        %v530 = vadd.f32 %v371, %v529
        %531 = vdwg.mxu0
        %v532 = vand.u32 %v248, 4294901760
        %v533 = vsub.f32 %v248, %v532
        %534 = vmatprep.subr.mxu0 %v533
        %v535 = vand.u32 %v247, 4294901760
        %v536 = vsub.f32 %v247, %v535
        %537 = vmatpush1.msra.mxu0 %v536
        %v538 = vand.u32 %v250, 4294901760
        %v539 = vsub.f32 %v250, %v538
        %540 = vmatprep.subr.mxu0 %v539
        %v541 = vand.u32 %v249, 4294901760
        %v542 = vsub.f32 %v249, %v541
        %543 = vmatpush1.msra.mxu0 %v542
        %v544 = vand.u32 %v252, 4294901760
        %v545 = vsub.f32 %v252, %v544
        %546 = vmatprep.subr.mxu0 %v545
        %v547 = vand.u32 %v251, 4294901760
        %v548 = vsub.f32 %v251, %v547
        %549 = vmatpush1.msra.mxu0 %v548
        %v550 = vand.u32 %v254, 4294901760
        %v551 = vsub.f32 %v254, %v550
        %552 = vmatprep.subr.mxu0 %v551
        %v553 = vand.u32 %v253, 4294901760
        %v554 = vsub.f32 %v253, %v553
        %555 = vmatpush1.msra.mxu0 %v554
        %v556 = vand.u32 %v256, 4294901760
        %v557 = vsub.f32 %v256, %v556
        %558 = vmatprep.subr.mxu0 %v557
        %v559 = vand.u32 %v255, 4294901760
        %v560 = vsub.f32 %v255, %v559
        %561 = vmatpush1.msra.mxu0 %v560
        %v562 = vand.u32 %v258, 4294901760
        %v563 = vsub.f32 %v258, %v562
        %564 = vmatprep.subr.mxu0 %v563
        %v565 = vand.u32 %v257, 4294901760
        %v566 = vsub.f32 %v257, %v565
        %567 = vmatpush1.msra.mxu0 %v566
        %v568 = vand.u32 %v260, 4294901760
        %v569 = vsub.f32 %v260, %v568
        %570 = vmatprep.subr.mxu0 %v569
        %v571 = vand.u32 %v259, 4294901760
        %v572 = vsub.f32 %v259, %v571
        %573 = vmatpush1.msra.mxu0 %v572
        %v574 = vand.u32 %v262, 4294901760
        %v575 = vsub.f32 %v262, %v574
        %576 = vmatprep.subr.mxu0 %v575
        %v577 = vand.u32 %v261, 4294901760
        %v578 = vsub.f32 %v261, %v577
        %579 = vmatpush1.msra.mxu0 %v578
        %580 = vmatprep.subr.mxu0 0.0
        %581 = vmatpush1.msra.mxu0 0.0
        %582 = vmatprep.subr.mxu0 0.0
        %583 = vmatpush1.msra.mxu0 0.0
        %584 = vmatprep.subr.mxu0 0.0
        %585 = vmatpush1.msra.mxu0 0.0
        %586 = vmatprep.subr.mxu0 0.0
        %587 = vmatpush1.msra.mxu0 0.0
        %588 = vmatprep.subr.mxu0 0.0
        %589 = vmatpush1.msra.mxu0 0.0
        %590 = vmatprep.subr.mxu0 0.0
        %591 = vmatpush1.msra.mxu0 0.0
        %592 = vmatprep.subr.mxu0 0.0
        %593 = vmatpush1.msra.mxu0 0.0
        %594 = vmatprep.subr.mxu0 0.0
        %595 = vmatpush1.msra.mxu0 0.0
        %596 = vmatprep.subr.mxu0 0.0
        %597 = vmatpush1.msra.mxu0 0.0
        %598 = vmatprep.subr.mxu0 0.0
        %599 = vmatpush1.msra.mxu0 0.0
        %600 = vmatprep.subr.mxu0 0.0
        %601 = vmatpush1.msra.mxu0 0.0
        %602 = vmatprep.subr.mxu0 0.0
        %603 = vmatpush1.msra.mxu0 0.0
        %604 = vmatprep.subr.mxu0 0.0
        %605 = vmatpush1.msra.mxu0 0.0
        %606 = vmatprep.subr.mxu0 0.0
        %607 = vmatpush1.msra.mxu0 0.0
        %608 = vmatprep.subr.mxu0 0.0
        %609 = vmatpush1.msra.mxu0 0.0
        %610 = vmatprep.subr.mxu0 0.0
        %611 = vmatpush1.msra.mxu0 0.0
        %612 = vmatprep.subr.mxu0 0.0
        %613 = vmatpush1.msra.mxu0 0.0
        %614 = vmatprep.subr.mxu0 0.0
        %615 = vmatpush1.msra.mxu0 0.0
        %616 = vmatprep.subr.mxu0 0.0
        %617 = vmatpush1.msra.mxu0 0.0
        %618 = vmatprep.subr.mxu0 0.0
        %619 = vmatpush1.msra.mxu0 0.0
        %620 = vmatprep.subr.mxu0 0.0
        %621 = vmatpush1.msra.mxu0 0.0
        %622 = vmatprep.subr.mxu0 0.0
        %623 = vmatpush1.msra.mxu0 0.0
        %624 = vmatprep.subr.mxu0 0.0
        %625 = vmatpush1.msra.mxu0 0.0
        %626 = vmatprep.subr.mxu0 0.0
        %627 = vmatpush1.msra.mxu0 0.0
        %628 = vmatprep.mubr.f32.mxu0 0.0
        %v629 = vand.u32 %v265, 4294901760
        %v630 = vsub.f32 %v265, %v629
        %631 = vmatmul.mubr.f32.gmra.mrb[0].mxu0 %v630
        %v632 = vpop.f32.mrb[0].mxu0
        %v633 = vadd.f32 %v521, %v632
        %v634 = vpop.f32.mrb[0].mxu0
        %v635 = vadd.f32 %v523, %v634
        %636 = vmatprep.mubr.f32.mxu0 0.0
        %v637 = vand.u32 %v268, 4294901760
        %v638 = vsub.f32 %v268, %v637
        %639 = vmatmul.mubr.f32.gmra.mrb[0].mxu0 %v638
        %v640 = vpop.f32.mrb[0].mxu0
        %v641 = vadd.f32 %v528, %v640
        %v642 = vpop.f32.mrb[0].mxu0
        %v643 = vadd.f32 %v530, %v642
        %644 = vdwg.mxu0
        %v645 = vand.u32 %v248, 4294901760
        %646 = vmatprep.subr.mxu0 %v645
        %v647 = vand.u32 %v247, 4294901760
        %648 = vmatpush1.msra.mxu0 %v647
        %v649 = vand.u32 %v250, 4294901760
        %650 = vmatprep.subr.mxu0 %v649
        %v651 = vand.u32 %v249, 4294901760
        %652 = vmatpush1.msra.mxu0 %v651
        %v653 = vand.u32 %v252, 4294901760
        %654 = vmatprep.subr.mxu0 %v653
        %v655 = vand.u32 %v251, 4294901760
        %656 = vmatpush1.msra.mxu0 %v655
        %v657 = vand.u32 %v254, 4294901760
        %658 = vmatprep.subr.mxu0 %v657
        %v659 = vand.u32 %v253, 4294901760
        %660 = vmatpush1.msra.mxu0 %v659
        %v661 = vand.u32 %v256, 4294901760
        %662 = vmatprep.subr.mxu0 %v661
        %v663 = vand.u32 %v255, 4294901760
        %664 = vmatpush1.msra.mxu0 %v663
        %v665 = vand.u32 %v258, 4294901760
        %666 = vmatprep.subr.mxu0 %v665
        %v667 = vand.u32 %v257, 4294901760
        %668 = vmatpush1.msra.mxu0 %v667
        %v669 = vand.u32 %v260, 4294901760
        %670 = vmatprep.subr.mxu0 %v669
        %v671 = vand.u32 %v259, 4294901760
        %672 = vmatpush1.msra.mxu0 %v671
        %v673 = vand.u32 %v262, 4294901760
        %674 = vmatprep.subr.mxu0 %v673
        %v675 = vand.u32 %v261, 4294901760
        %676 = vmatpush1.msra.mxu0 %v675
        %677 = vmatprep.subr.mxu0 0.0
        %678 = vmatpush1.msra.mxu0 0.0
        %679 = vmatprep.subr.mxu0 0.0
        %680 = vmatpush1.msra.mxu0 0.0
        %681 = vmatprep.subr.mxu0 0.0
        %682 = vmatpush1.msra.mxu0 0.0
        %683 = vmatprep.subr.mxu0 0.0
        %684 = vmatpush1.msra.mxu0 0.0
        %685 = vmatprep.subr.mxu0 0.0
        %686 = vmatpush1.msra.mxu0 0.0
        %687 = vmatprep.subr.mxu0 0.0
        %688 = vmatpush1.msra.mxu0 0.0
        %689 = vmatprep.subr.mxu0 0.0
        %690 = vmatpush1.msra.mxu0 0.0
        %691 = vmatprep.subr.mxu0 0.0
        %692 = vmatpush1.msra.mxu0 0.0
        %693 = vmatprep.subr.mxu0 0.0
        %694 = vmatpush1.msra.mxu0 0.0
        %695 = vmatprep.subr.mxu0 0.0
        %696 = vmatpush1.msra.mxu0 0.0
        %697 = vmatprep.subr.mxu0 0.0
        %698 = vmatpush1.msra.mxu0 0.0
        %699 = vmatprep.subr.mxu0 0.0
        %700 = vmatpush1.msra.mxu0 0.0
        %701 = vmatprep.subr.mxu0 0.0
        %702 = vmatpush1.msra.mxu0 0.0
        %703 = vmatprep.subr.mxu0 0.0
        %704 = vmatpush1.msra.mxu0 0.0
        %705 = vmatprep.subr.mxu0 0.0
        %706 = vmatpush1.msra.mxu0 0.0
        %707 = vmatprep.subr.mxu0 0.0
        %708 = vmatpush1.msra.mxu0 0.0
        %709 = vmatprep.subr.mxu0 0.0
        %710 = vmatpush1.msra.mxu0 0.0
        %711 = vmatprep.subr.mxu0 0.0
        %712 = vmatpush1.msra.mxu0 0.0
        %713 = vmatprep.subr.mxu0 0.0
        %714 = vmatpush1.msra.mxu0 0.0
        %715 = vmatprep.subr.mxu0 0.0
        %716 = vmatpush1.msra.mxu0 0.0
        %717 = vmatprep.subr.mxu0 0.0
        %718 = vmatpush1.msra.mxu0 0.0
        %719 = vmatprep.subr.mxu0 0.0
        %720 = vmatpush1.msra.mxu0 0.0
        %721 = vmatprep.subr.mxu0 0.0
        %722 = vmatpush1.msra.mxu0 0.0
        %723 = vmatprep.subr.mxu0 0.0
        %724 = vmatpush1.msra.mxu0 0.0
        %725 = vmatprep.mubr.f32.mxu0 0.0
        %v726 = vand.u32 %v265, 4294901760
        %v727 = vsub.f32 %v265, %v726
        %v728 = vand.u32 %v727, 4294901760
        %729 = vmatmul.mubr.f32.gmra.mrb[0].mxu0 %v728
        %v730 = vpop.f32.mrb[0].mxu0
        %v731 = vadd.f32 %v633, %v730
        %v732 = vpop.f32.mrb[0].mxu0
        %v733 = vadd.f32 %v635, %v732
        %734 = vmatprep.mubr.f32.mxu0 0.0
        %v735 = vand.u32 %v268, 4294901760
        %v736 = vsub.f32 %v268, %v735
        %v737 = vand.u32 %v736, 4294901760
        %738 = vmatmul.mubr.f32.gmra.mrb[0].mxu0 %v737
        %v739 = vpop.f32.mrb[0].mxu0
        %v740 = vadd.f32 %v641, %v739
        %v741 = vpop.f32.mrb[0].mxu0
        %v742 = vadd.f32 %v643, %v741
        %743 = vdwg.mxu0
        %v744 = vand.u32 %v248, 4294901760
        %v745 = vsub.f32 %v248, %v744
        %v746 = vand.u32 %v745, 4294901760
        %747 = vmatprep.subr.mxu0 %v746
        %v748 = vand.u32 %v247, 4294901760
        %v749 = vsub.f32 %v247, %v748
        %v750 = vand.u32 %v749, 4294901760
        %751 = vmatpush1.msra.mxu0 %v750
        %v752 = vand.u32 %v250, 4294901760
        %v753 = vsub.f32 %v250, %v752
        %v754 = vand.u32 %v753, 4294901760
        %755 = vmatprep.subr.mxu0 %v754
        %v756 = vand.u32 %v249, 4294901760
        %v757 = vsub.f32 %v249, %v756
        %v758 = vand.u32 %v757, 4294901760
        %759 = vmatpush1.msra.mxu0 %v758
        %v760 = vand.u32 %v252, 4294901760
        %v761 = vsub.f32 %v252, %v760
        %v762 = vand.u32 %v761, 4294901760
        %763 = vmatprep.subr.mxu0 %v762
        %v764 = vand.u32 %v251, 4294901760
        %v765 = vsub.f32 %v251, %v764
        %v766 = vand.u32 %v765, 4294901760
        %767 = vmatpush1.msra.mxu0 %v766
        %v768 = vand.u32 %v254, 4294901760
        %v769 = vsub.f32 %v254, %v768
        %v770 = vand.u32 %v769, 4294901760
        %771 = vmatprep.subr.mxu0 %v770
        %v772 = vand.u32 %v253, 4294901760
        %v773 = vsub.f32 %v253, %v772
        %v774 = vand.u32 %v773, 4294901760
        %775 = vmatpush1.msra.mxu0 %v774
        %v776 = vand.u32 %v256, 4294901760
        %v777 = vsub.f32 %v256, %v776
        %v778 = vand.u32 %v777, 4294901760
        %779 = vmatprep.subr.mxu0 %v778
        %v780 = vand.u32 %v255, 4294901760
        %v781 = vsub.f32 %v255, %v780
        %v782 = vand.u32 %v781, 4294901760
        %783 = vmatpush1.msra.mxu0 %v782
        %v784 = vand.u32 %v258, 4294901760
        %v785 = vsub.f32 %v258, %v784
        %v786 = vand.u32 %v785, 4294901760
        %787 = vmatprep.subr.mxu0 %v786
        %v788 = vand.u32 %v257, 4294901760
        %v789 = vsub.f32 %v257, %v788
        %v790 = vand.u32 %v789, 4294901760
        %791 = vmatpush1.msra.mxu0 %v790
        %v792 = vand.u32 %v260, 4294901760
        %v793 = vsub.f32 %v260, %v792
        %v794 = vand.u32 %v793, 4294901760
        %795 = vmatprep.subr.mxu0 %v794
        %v796 = vand.u32 %v259, 4294901760
        %v797 = vsub.f32 %v259, %v796
        %v798 = vand.u32 %v797, 4294901760
        %799 = vmatpush1.msra.mxu0 %v798
        %v800 = vand.u32 %v262, 4294901760
        %v801 = vsub.f32 %v262, %v800
        %v802 = vand.u32 %v801, 4294901760
        %803 = vmatprep.subr.mxu0 %v802
        %v804 = vand.u32 %v261, 4294901760
        %v805 = vsub.f32 %v261, %v804
        %v806 = vand.u32 %v805, 4294901760
        %807 = vmatpush1.msra.mxu0 %v806
        %808 = vmatprep.subr.mxu0 0.0
        %809 = vmatpush1.msra.mxu0 0.0
        %810 = vmatprep.subr.mxu0 0.0
        %811 = vmatpush1.msra.mxu0 0.0
        %812 = vmatprep.subr.mxu0 0.0
        %813 = vmatpush1.msra.mxu0 0.0
        %814 = vmatprep.subr.mxu0 0.0
        %815 = vmatpush1.msra.mxu0 0.0
        %816 = vmatprep.subr.mxu0 0.0
        %817 = vmatpush1.msra.mxu0 0.0
        %818 = vmatprep.subr.mxu0 0.0
        %819 = vmatpush1.msra.mxu0 0.0
        %820 = vmatprep.subr.mxu0 0.0
        %821 = vmatpush1.msra.mxu0 0.0
        %822 = vmatprep.subr.mxu0 0.0
        %823 = vmatpush1.msra.mxu0 0.0
        %824 = vmatprep.subr.mxu0 0.0
        %825 = vmatpush1.msra.mxu0 0.0
        %826 = vmatprep.subr.mxu0 0.0
        %827 = vmatpush1.msra.mxu0 0.0
        %828 = vmatprep.subr.mxu0 0.0
        %829 = vmatpush1.msra.mxu0 0.0
        %830 = vmatprep.subr.mxu0 0.0
        %831 = vmatpush1.msra.mxu0 0.0
        %832 = vmatprep.subr.mxu0 0.0
        %833 = vmatpush1.msra.mxu0 0.0
        %834 = vmatprep.subr.mxu0 0.0
        %835 = vmatpush1.msra.mxu0 0.0
        %836 = vmatprep.subr.mxu0 0.0
        %837 = vmatpush1.msra.mxu0 0.0
        %838 = vmatprep.subr.mxu0 0.0
        %839 = vmatpush1.msra.mxu0 0.0
        %840 = vmatprep.subr.mxu0 0.0
        %841 = vmatpush1.msra.mxu0 0.0
        %842 = vmatprep.subr.mxu0 0.0
        %843 = vmatpush1.msra.mxu0 0.0
        %844 = vmatprep.subr.mxu0 0.0
        %845 = vmatpush1.msra.mxu0 0.0
        %846 = vmatprep.subr.mxu0 0.0
        %847 = vmatpush1.msra.mxu0 0.0
        %848 = vmatprep.subr.mxu0 0.0
        %849 = vmatpush1.msra.mxu0 0.0
        %850 = vmatprep.subr.mxu0 0.0
        %851 = vmatpush1.msra.mxu0 0.0
        %852 = vmatprep.subr.mxu0 0.0
        %853 = vmatpush1.msra.mxu0 0.0
        %854 = vmatprep.subr.mxu0 0.0
        %855 = vmatpush1.msra.mxu0 0.0
        %856 = vmatprep.mubr.f32.mxu0 0.0
        %v857 = vand.u32 %v265, 4294901760
        %858 = vmatmul.mubr.f32.gmra.mrb[0].mxu0 %v857
        %v859 = vpop.f32.mrb[0].mxu0
        %v860 = vadd.f32 %v731, %v859
        %v861 = vpop.f32.mrb[0].mxu0
        %v862 = vadd.f32 %v733, %v861
        %863 = vmatprep.mubr.f32.mxu0 0.0
        %v864 = vand.u32 %v268, 4294901760
        %865 = vmatmul.mubr.f32.gmra.mrb[0].mxu0 %v864
        %v866 = vpop.f32.mrb[0].mxu0
        %v867 = vadd.f32 %v740, %v866
        %v868 = vpop.f32.mrb[0].mxu0
        %v869 = vadd.f32 %v742, %v868
        %870 = vdwg.mxu0
        %v871 = vand.u32 %v248, 4294901760
        %872 = vmatprep.subr.mxu0 %v871
        %v873 = vand.u32 %v247, 4294901760
        %874 = vmatpush1.msra.mxu0 %v873
        %v875 = vand.u32 %v250, 4294901760
        %876 = vmatprep.subr.mxu0 %v875
        %v877 = vand.u32 %v249, 4294901760
        %878 = vmatpush1.msra.mxu0 %v877
        %v879 = vand.u32 %v252, 4294901760
        %880 = vmatprep.subr.mxu0 %v879
        %v881 = vand.u32 %v251, 4294901760
        %882 = vmatpush1.msra.mxu0 %v881
        %v883 = vand.u32 %v254, 4294901760
        %884 = vmatprep.subr.mxu0 %v883
        %v885 = vand.u32 %v253, 4294901760
        %886 = vmatpush1.msra.mxu0 %v885
        %v887 = vand.u32 %v256, 4294901760
        %888 = vmatprep.subr.mxu0 %v887
        %v889 = vand.u32 %v255, 4294901760
        %890 = vmatpush1.msra.mxu0 %v889
        %v891 = vand.u32 %v258, 4294901760
        %892 = vmatprep.subr.mxu0 %v891
        %v893 = vand.u32 %v257, 4294901760
        %894 = vmatpush1.msra.mxu0 %v893
        %v895 = vand.u32 %v260, 4294901760
        %896 = vmatprep.subr.mxu0 %v895
        %v897 = vand.u32 %v259, 4294901760
        %898 = vmatpush1.msra.mxu0 %v897
        %v899 = vand.u32 %v262, 4294901760
        %900 = vmatprep.subr.mxu0 %v899
        %v901 = vand.u32 %v261, 4294901760
        %902 = vmatpush1.msra.mxu0 %v901
        %903 = vmatprep.subr.mxu0 0.0
        %904 = vmatpush1.msra.mxu0 0.0
        %905 = vmatprep.subr.mxu0 0.0
        %906 = vmatpush1.msra.mxu0 0.0
        %907 = vmatprep.subr.mxu0 0.0
        %908 = vmatpush1.msra.mxu0 0.0
        %909 = vmatprep.subr.mxu0 0.0
        %910 = vmatpush1.msra.mxu0 0.0
        %911 = vmatprep.subr.mxu0 0.0
        %912 = vmatpush1.msra.mxu0 0.0
        %913 = vmatprep.subr.mxu0 0.0
        %914 = vmatpush1.msra.mxu0 0.0
        %915 = vmatprep.subr.mxu0 0.0
        %916 = vmatpush1.msra.mxu0 0.0
        %917 = vmatprep.subr.mxu0 0.0
        %918 = vmatpush1.msra.mxu0 0.0
        %919 = vmatprep.subr.mxu0 0.0
        %920 = vmatpush1.msra.mxu0 0.0
        %921 = vmatprep.subr.mxu0 0.0
        %922 = vmatpush1.msra.mxu0 0.0
        %923 = vmatprep.subr.mxu0 0.0
        %924 = vmatpush1.msra.mxu0 0.0
        %925 = vmatprep.subr.mxu0 0.0
        %926 = vmatpush1.msra.mxu0 0.0
        %927 = vmatprep.subr.mxu0 0.0
        %928 = vmatpush1.msra.mxu0 0.0
        %929 = vmatprep.subr.mxu0 0.0
        %930 = vmatpush1.msra.mxu0 0.0
        %931 = vmatprep.subr.mxu0 0.0
        %932 = vmatpush1.msra.mxu0 0.0
        %933 = vmatprep.subr.mxu0 0.0
        %934 = vmatpush1.msra.mxu0 0.0
        %935 = vmatprep.subr.mxu0 0.0
        %936 = vmatpush1.msra.mxu0 0.0
        %937 = vmatprep.subr.mxu0 0.0
        %938 = vmatpush1.msra.mxu0 0.0
        %939 = vmatprep.subr.mxu0 0.0
        %940 = vmatpush1.msra.mxu0 0.0
        %941 = vmatprep.subr.mxu0 0.0
        %942 = vmatpush1.msra.mxu0 0.0
        %943 = vmatprep.subr.mxu0 0.0
        %944 = vmatpush1.msra.mxu0 0.0
        %945 = vmatprep.subr.mxu0 0.0
        %946 = vmatpush1.msra.mxu0 0.0
        %947 = vmatprep.subr.mxu0 0.0
        %948 = vmatpush1.msra.mxu0 0.0
        %949 = vmatprep.subr.mxu0 0.0
        %950 = vmatpush1.msra.mxu0 0.0
        %951 = vmatprep.mubr.f32.mxu0 0.0
        %v952 = vand.u32 %v265, 4294901760
        %953 = vmatmul.mubr.f32.gmra.mrb[0].mxu0 %v952
        %v954 = vpop.f32.mrb[0].mxu0
        %v955 = vadd.f32 %v860, %v954
        %v956 = vpop.f32.mrb[0].mxu0
        %v957 = vadd.f32 %v862, %v956
        %958 = vmatprep.mubr.f32.mxu0 0.0
        %v959 = vand.u32 %v268, 4294901760
        %960 = vmatmul.mubr.f32.gmra.mrb[0].mxu0 %v959
        %v961 = vpop.f32.mrb[0].mxu0
        %v962 = vadd.f32 %v867, %v961
        %v963 = vpop.f32.mrb[0].mxu0
        %v964 = vadd.f32 %v869, %v963
        %965 = vdwg.mxu0
        %968 = vrot.lane.b32.xlu0 %v955, 64
        %v969 = vpop.permute.xlu0 %968
        %970 = vrot.lane.b32.xlu0 %v962, 64
        %v971 = vpop.permute.xlu0 %970
        %vm972 = vcmask 64512
        %v973 = vsel %vm972, %v955, 0
        %v975 = vsel %vm972, %v962, 0
        %v977 = vsel %vm972, %v969, 0
        %v979 = vsel %vm972, %v971, 0
        %981 = vmatprep.subr.mxu0 0.0
        %v982 = vand.u32 %v977, 4294901760
        %983 = vmatpush1.xpose.msra.mxu0 %v982
        %984 = vmatprep.subr.mxu0 0.0
        %v985 = vand.u32 %v979, 4294901760
        %986 = vmatpush1.xpose.msra.mxu0 %v985
        %987 = vmatprep.subr.mxu0 0.0
        %988 = vmatpush1.xpose.msra.mxu0 0.0
        %989 = vmatprep.subr.mxu0 0.0
        %990 = vmatpush1.xpose.msra.mxu0 0.0
        %991 = vmatprep.subr.mxu0 0.0
        %992 = vmatpush1.xpose.msra.mxu0 0.0
        %993 = vmatprep.subr.mxu0 0.0
        %994 = vmatpush1.xpose.msra.mxu0 0.0
        %995 = vmatprep.subr.mxu0 0.0
        %996 = vmatpush1.xpose.msra.mxu0 0.0
        %997 = vmatprep.subr.mxu0 0.0
        %998 = vmatpush1.xpose.msra.mxu0 0.0
        %999 = vmatprep.subr.mxu0 0.0
        %1000 = vmatpush1.xpose.msra.mxu0 0.0
        %1001 = vmatprep.subr.mxu0 0.0
        %1002 = vmatpush1.xpose.msra.mxu0 0.0
        %1003 = vmatprep.subr.mxu0 0.0
        %1004 = vmatpush1.xpose.msra.mxu0 0.0
        %1005 = vmatprep.subr.mxu0 0.0
        %1006 = vmatpush1.xpose.msra.mxu0 0.0
        %1007 = vmatprep.subr.mxu0 0.0
        %1008 = vmatpush1.xpose.msra.mxu0 0.0
        %1009 = vmatprep.subr.mxu0 0.0
        %1010 = vmatpush1.xpose.msra.mxu0 0.0
        %1011 = vmatprep.subr.mxu0 0.0
        %1012 = vmatpush1.xpose.msra.mxu0 0.0
        %1013 = vmatprep.subr.mxu0 0.0
        %1014 = vmatpush1.xpose.msra.mxu0 0.0
        %1015 = vmatprep.subr.mxu0 0.0
        %1016 = vmatpush1.xpose.msra.mxu0 0.0
        %1017 = vmatprep.subr.mxu0 0.0
        %1018 = vmatpush1.xpose.msra.mxu0 0.0
        %1019 = vmatprep.subr.mxu0 0.0
        %1020 = vmatpush1.xpose.msra.mxu0 0.0
        %1021 = vmatprep.subr.mxu0 0.0
        %1022 = vmatpush1.xpose.msra.mxu0 0.0
        %1023 = vmatprep.subr.mxu0 0.0
        %1024 = vmatpush1.xpose.msra.mxu0 0.0
        %1025 = vmatprep.subr.mxu0 0.0
        %1026 = vmatpush1.xpose.msra.mxu0 0.0
        %1027 = vmatprep.subr.mxu0 0.0
        %1028 = vmatpush1.xpose.msra.mxu0 0.0
        %1029 = vmatprep.subr.mxu0 0.0
        %1030 = vmatpush1.xpose.msra.mxu0 0.0
        %1031 = vmatprep.subr.mxu0 0.0
        %1032 = vmatpush1.xpose.msra.mxu0 0.0
        %1033 = vmatprep.subr.mxu0 0.0
        %1034 = vmatpush1.xpose.msra.mxu0 0.0
        %1035 = vmatprep.subr.mxu0 0.0
        %1036 = vmatpush1.xpose.msra.mxu0 0.0
        %1037 = vmatprep.subr.mxu0 0.0
        %1038 = vmatpush1.xpose.msra.mxu0 0.0
        %1039 = vmatprep.subr.mxu0 0.0
        %1040 = vmatpush1.xpose.msra.mxu0 0.0
        %1041 = vmatprep.subr.mxu0 0.0
        %1042 = vmatpush1.xpose.msra.mxu0 0.0
        %1043 = vmatprep.subr.mxu0 0.0
        %1044 = vmatpush1.xpose.msra.mxu0 0.0
        %1045 = vmatprep.subr.mxu0 0.0
        %1046 = vmatpush1.xpose.msra.mxu0 0.0
        %1047 = vmatprep.mubr.f32.mxu0 0.0
        %v1048 = vand.u32 %v973, 4294901760
        %v1049 = vsub.f32 %v973, %v1048
        %v1050 = vand.u32 %v1049, 4294901760
        %v1051 = vsub.f32 %v1049, %v1050
        %v1052 = vand.u32 %v1051, 4294901760
        %1053 = vmatmul.mubr.f32.gmra.mrb[0].mxu0 %v1052
        %v1054 = vpop.f32.mrb[0].mxu0
        %v1055 = vadd.f32 0.0, %v1054
        %v1056 = vpop.f32.mrb[0].mxu0
        %1057 = vmatprep.mubr.f32.mxu0 0.0
        %v1058 = vand.u32 %v975, 4294901760
        %v1059 = vsub.f32 %v975, %v1058
        %v1060 = vand.u32 %v1059, 4294901760
        %v1061 = vsub.f32 %v1059, %v1060
        %v1062 = vand.u32 %v1061, 4294901760
        %1063 = vmatmul.mubr.f32.gmra.mrb[0].mxu0 %v1062
        %v1064 = vpop.f32.mrb[0].mxu0
        %v1065 = vadd.f32 0.0, %v1064
        %v1066 = vpop.f32.mrb[0].mxu0
        %1067 = vdwg.mxu0
        %1068 = vmatprep.subr.mxu0 0.0
        %v1069 = vand.u32 %v977, 4294901760
        %v1070 = vsub.f32 %v977, %v1069
        %v1071 = vand.u32 %v1070, 4294901760
        %v1072 = vsub.f32 %v1070, %v1071
        %v1073 = vand.u32 %v1072, 4294901760
        %1074 = vmatpush1.xpose.msra.mxu0 %v1073
        %1075 = vmatprep.subr.mxu0 0.0
        %v1076 = vand.u32 %v979, 4294901760
        %v1077 = vsub.f32 %v979, %v1076
        %v1078 = vand.u32 %v1077, 4294901760
        %v1079 = vsub.f32 %v1077, %v1078
        %v1080 = vand.u32 %v1079, 4294901760
        %1081 = vmatpush1.xpose.msra.mxu0 %v1080
        %1082 = vmatprep.subr.mxu0 0.0
        %1083 = vmatpush1.xpose.msra.mxu0 0.0
        %1084 = vmatprep.subr.mxu0 0.0
        %1085 = vmatpush1.xpose.msra.mxu0 0.0
        %1086 = vmatprep.subr.mxu0 0.0
        %1087 = vmatpush1.xpose.msra.mxu0 0.0
        %1088 = vmatprep.subr.mxu0 0.0
        %1089 = vmatpush1.xpose.msra.mxu0 0.0
        %1090 = vmatprep.subr.mxu0 0.0
        %1091 = vmatpush1.xpose.msra.mxu0 0.0
        %1092 = vmatprep.subr.mxu0 0.0
        %1093 = vmatpush1.xpose.msra.mxu0 0.0
        %1094 = vmatprep.subr.mxu0 0.0
        %1095 = vmatpush1.xpose.msra.mxu0 0.0
        %1096 = vmatprep.subr.mxu0 0.0
        %1097 = vmatpush1.xpose.msra.mxu0 0.0
        %1098 = vmatprep.subr.mxu0 0.0
        %1099 = vmatpush1.xpose.msra.mxu0 0.0
        %1100 = vmatprep.subr.mxu0 0.0
        %1101 = vmatpush1.xpose.msra.mxu0 0.0
        %1102 = vmatprep.subr.mxu0 0.0
        %1103 = vmatpush1.xpose.msra.mxu0 0.0
        %1104 = vmatprep.subr.mxu0 0.0
        %1105 = vmatpush1.xpose.msra.mxu0 0.0
        %1106 = vmatprep.subr.mxu0 0.0
        %1107 = vmatpush1.xpose.msra.mxu0 0.0
        %1108 = vmatprep.subr.mxu0 0.0
        %1109 = vmatpush1.xpose.msra.mxu0 0.0
        %1110 = vmatprep.subr.mxu0 0.0
        %1111 = vmatpush1.xpose.msra.mxu0 0.0
        %1112 = vmatprep.subr.mxu0 0.0
        %1113 = vmatpush1.xpose.msra.mxu0 0.0
        %1114 = vmatprep.subr.mxu0 0.0
        %1115 = vmatpush1.xpose.msra.mxu0 0.0
        %1116 = vmatprep.subr.mxu0 0.0
        %1117 = vmatpush1.xpose.msra.mxu0 0.0
        %1118 = vmatprep.subr.mxu0 0.0
        %1119 = vmatpush1.xpose.msra.mxu0 0.0
        %1120 = vmatprep.subr.mxu0 0.0
        %1121 = vmatpush1.xpose.msra.mxu0 0.0
        %1122 = vmatprep.subr.mxu0 0.0
        %1123 = vmatpush1.xpose.msra.mxu0 0.0
        %1124 = vmatprep.subr.mxu0 0.0
        %1125 = vmatpush1.xpose.msra.mxu0 0.0
        %1126 = vmatprep.subr.mxu0 0.0
        %1127 = vmatpush1.xpose.msra.mxu0 0.0
        %1128 = vmatprep.subr.mxu0 0.0
        %1129 = vmatpush1.xpose.msra.mxu0 0.0
        %1130 = vmatprep.subr.mxu0 0.0
        %1131 = vmatpush1.xpose.msra.mxu0 0.0
        %1132 = vmatprep.subr.mxu0 0.0
        %1133 = vmatpush1.xpose.msra.mxu0 0.0
        %1134 = vmatprep.subr.mxu0 0.0
        %1135 = vmatpush1.xpose.msra.mxu0 0.0
        %1136 = vmatprep.subr.mxu0 0.0
        %1137 = vmatpush1.xpose.msra.mxu0 0.0
        %1138 = vmatprep.subr.mxu0 0.0
        %1139 = vmatpush1.xpose.msra.mxu0 0.0
        %1140 = vmatprep.subr.mxu0 0.0
        %1141 = vmatpush1.xpose.msra.mxu0 0.0
        %1142 = vmatprep.mubr.f32.mxu0 0.0
        %v1143 = vand.u32 %v973, 4294901760
        %1144 = vmatmul.mubr.f32.gmra.mrb[0].mxu0 %v1143
        %v1145 = vpop.f32.mrb[0].mxu0
        %v1146 = vadd.f32 %v1055, %v1145
        %v1147 = vpop.f32.mrb[0].mxu0
        %1148 = vmatprep.mubr.f32.mxu0 0.0
        %v1149 = vand.u32 %v975, 4294901760
        %1150 = vmatmul.mubr.f32.gmra.mrb[0].mxu0 %v1149
        %v1151 = vpop.f32.mrb[0].mxu0
        %v1152 = vadd.f32 %v1065, %v1151
        %v1153 = vpop.f32.mrb[0].mxu0
        %1154 = vdwg.mxu0
        %1155 = vmatprep.subr.mxu0 0.0
        %v1156 = vand.u32 %v977, 4294901760
        %v1157 = vsub.f32 %v977, %v1156
        %1158 = vmatpush1.xpose.msra.mxu0 %v1157
        %1159 = vmatprep.subr.mxu0 0.0
        %v1160 = vand.u32 %v979, 4294901760
        %v1161 = vsub.f32 %v979, %v1160
        %1162 = vmatpush1.xpose.msra.mxu0 %v1161
        %1163 = vmatprep.subr.mxu0 0.0
        %1164 = vmatpush1.xpose.msra.mxu0 0.0
        %1165 = vmatprep.subr.mxu0 0.0
        %1166 = vmatpush1.xpose.msra.mxu0 0.0
        %1167 = vmatprep.subr.mxu0 0.0
        %1168 = vmatpush1.xpose.msra.mxu0 0.0
        %1169 = vmatprep.subr.mxu0 0.0
        %1170 = vmatpush1.xpose.msra.mxu0 0.0
        %1171 = vmatprep.subr.mxu0 0.0
        %1172 = vmatpush1.xpose.msra.mxu0 0.0
        %1173 = vmatprep.subr.mxu0 0.0
        %1174 = vmatpush1.xpose.msra.mxu0 0.0
        %1175 = vmatprep.subr.mxu0 0.0
        %1176 = vmatpush1.xpose.msra.mxu0 0.0
        %1177 = vmatprep.subr.mxu0 0.0
        %1178 = vmatpush1.xpose.msra.mxu0 0.0
        %1179 = vmatprep.subr.mxu0 0.0
        %1180 = vmatpush1.xpose.msra.mxu0 0.0
        %1181 = vmatprep.subr.mxu0 0.0
        %1182 = vmatpush1.xpose.msra.mxu0 0.0
        %1183 = vmatprep.subr.mxu0 0.0
        %1184 = vmatpush1.xpose.msra.mxu0 0.0
        %1185 = vmatprep.subr.mxu0 0.0
        %1186 = vmatpush1.xpose.msra.mxu0 0.0
        %1187 = vmatprep.subr.mxu0 0.0
        %1188 = vmatpush1.xpose.msra.mxu0 0.0
        %1189 = vmatprep.subr.mxu0 0.0
        %1190 = vmatpush1.xpose.msra.mxu0 0.0
        %1191 = vmatprep.subr.mxu0 0.0
        %1192 = vmatpush1.xpose.msra.mxu0 0.0
        %1193 = vmatprep.subr.mxu0 0.0
        %1194 = vmatpush1.xpose.msra.mxu0 0.0
        %1195 = vmatprep.subr.mxu0 0.0
        %1196 = vmatpush1.xpose.msra.mxu0 0.0
        %1197 = vmatprep.subr.mxu0 0.0
        %1198 = vmatpush1.xpose.msra.mxu0 0.0
        %1199 = vmatprep.subr.mxu0 0.0
        %1200 = vmatpush1.xpose.msra.mxu0 0.0
        %1201 = vmatprep.subr.mxu0 0.0
        %1202 = vmatpush1.xpose.msra.mxu0 0.0
        %1203 = vmatprep.subr.mxu0 0.0
        %1204 = vmatpush1.xpose.msra.mxu0 0.0
        %1205 = vmatprep.subr.mxu0 0.0
        %1206 = vmatpush1.xpose.msra.mxu0 0.0
        %1207 = vmatprep.subr.mxu0 0.0
        %1208 = vmatpush1.xpose.msra.mxu0 0.0
        %1209 = vmatprep.subr.mxu0 0.0
        %1210 = vmatpush1.xpose.msra.mxu0 0.0
        %1211 = vmatprep.subr.mxu0 0.0
        %1212 = vmatpush1.xpose.msra.mxu0 0.0
        %1213 = vmatprep.subr.mxu0 0.0
        %1214 = vmatpush1.xpose.msra.mxu0 0.0
        %1215 = vmatprep.subr.mxu0 0.0
        %1216 = vmatpush1.xpose.msra.mxu0 0.0
        %1217 = vmatprep.subr.mxu0 0.0
        %1218 = vmatpush1.xpose.msra.mxu0 0.0
        %1219 = vmatprep.subr.mxu0 0.0
        %1220 = vmatpush1.xpose.msra.mxu0 0.0
        %1221 = vmatprep.subr.mxu0 0.0
        %1222 = vmatpush1.xpose.msra.mxu0 0.0
        %1223 = vmatprep.mubr.f32.mxu0 0.0
        %v1224 = vand.u32 %v973, 4294901760
        %v1225 = vsub.f32 %v973, %v1224
        %1226 = vmatmul.mubr.f32.gmra.mrb[0].mxu0 %v1225
        %v1227 = vpop.f32.mrb[0].mxu0
        %v1228 = vadd.f32 %v1146, %v1227
        %v1229 = vpop.f32.mrb[0].mxu0
        %1230 = vmatprep.mubr.f32.mxu0 0.0
        %v1231 = vand.u32 %v975, 4294901760
        %v1232 = vsub.f32 %v975, %v1231
        %1233 = vmatmul.mubr.f32.gmra.mrb[0].mxu0 %v1232
        %v1234 = vpop.f32.mrb[0].mxu0
        %v1235 = vadd.f32 %v1152, %v1234
        %v1236 = vpop.f32.mrb[0].mxu0
        %1237 = vdwg.mxu0
        %1238 = vmatprep.subr.mxu0 0.0
        %v1239 = vand.u32 %v977, 4294901760
        %1240 = vmatpush1.xpose.msra.mxu0 %v1239
        %1241 = vmatprep.subr.mxu0 0.0
        %v1242 = vand.u32 %v979, 4294901760
        %1243 = vmatpush1.xpose.msra.mxu0 %v1242
        %1244 = vmatprep.subr.mxu0 0.0
        %1245 = vmatpush1.xpose.msra.mxu0 0.0
        %1246 = vmatprep.subr.mxu0 0.0
        %1247 = vmatpush1.xpose.msra.mxu0 0.0
        %1248 = vmatprep.subr.mxu0 0.0
        %1249 = vmatpush1.xpose.msra.mxu0 0.0
        %1250 = vmatprep.subr.mxu0 0.0
        %1251 = vmatpush1.xpose.msra.mxu0 0.0
        %1252 = vmatprep.subr.mxu0 0.0
        %1253 = vmatpush1.xpose.msra.mxu0 0.0
        %1254 = vmatprep.subr.mxu0 0.0
        %1255 = vmatpush1.xpose.msra.mxu0 0.0
        %1256 = vmatprep.subr.mxu0 0.0
        %1257 = vmatpush1.xpose.msra.mxu0 0.0
        %1258 = vmatprep.subr.mxu0 0.0
        %1259 = vmatpush1.xpose.msra.mxu0 0.0
        %1260 = vmatprep.subr.mxu0 0.0
        %1261 = vmatpush1.xpose.msra.mxu0 0.0
        %1262 = vmatprep.subr.mxu0 0.0
        %1263 = vmatpush1.xpose.msra.mxu0 0.0
        %1264 = vmatprep.subr.mxu0 0.0
        %1265 = vmatpush1.xpose.msra.mxu0 0.0
        %1266 = vmatprep.subr.mxu0 0.0
        %1267 = vmatpush1.xpose.msra.mxu0 0.0
        %1268 = vmatprep.subr.mxu0 0.0
        %1269 = vmatpush1.xpose.msra.mxu0 0.0
        %1270 = vmatprep.subr.mxu0 0.0
        %1271 = vmatpush1.xpose.msra.mxu0 0.0
        %1272 = vmatprep.subr.mxu0 0.0
        %1273 = vmatpush1.xpose.msra.mxu0 0.0
        %1274 = vmatprep.subr.mxu0 0.0
        %1275 = vmatpush1.xpose.msra.mxu0 0.0
        %1276 = vmatprep.subr.mxu0 0.0
        %1277 = vmatpush1.xpose.msra.mxu0 0.0
        %1278 = vmatprep.subr.mxu0 0.0
        %1279 = vmatpush1.xpose.msra.mxu0 0.0
        %1280 = vmatprep.subr.mxu0 0.0
        %1281 = vmatpush1.xpose.msra.mxu0 0.0
        %1282 = vmatprep.subr.mxu0 0.0
        %1283 = vmatpush1.xpose.msra.mxu0 0.0
        %1284 = vmatprep.subr.mxu0 0.0
        %1285 = vmatpush1.xpose.msra.mxu0 0.0
        %1286 = vmatprep.subr.mxu0 0.0
        %1287 = vmatpush1.xpose.msra.mxu0 0.0
        %1288 = vmatprep.subr.mxu0 0.0
        %1289 = vmatpush1.xpose.msra.mxu0 0.0
        %1290 = vmatprep.subr.mxu0 0.0
        %1291 = vmatpush1.xpose.msra.mxu0 0.0
        %1292 = vmatprep.subr.mxu0 0.0
        %1293 = vmatpush1.xpose.msra.mxu0 0.0
        %1294 = vmatprep.subr.mxu0 0.0
        %1295 = vmatpush1.xpose.msra.mxu0 0.0
        %1296 = vmatprep.subr.mxu0 0.0
        %1297 = vmatpush1.xpose.msra.mxu0 0.0
        %1298 = vmatprep.subr.mxu0 0.0
        %1299 = vmatpush1.xpose.msra.mxu0 0.0
        %1300 = vmatprep.subr.mxu0 0.0
        %1301 = vmatpush1.xpose.msra.mxu0 0.0
        %1302 = vmatprep.subr.mxu0 0.0
        %1303 = vmatpush1.xpose.msra.mxu0 0.0
        %1304 = vmatprep.mubr.f32.mxu0 0.0
        %v1305 = vand.u32 %v973, 4294901760
        %v1306 = vsub.f32 %v973, %v1305
        %v1307 = vand.u32 %v1306, 4294901760
        %1308 = vmatmul.mubr.f32.gmra.mrb[0].mxu0 %v1307
        %v1309 = vpop.f32.mrb[0].mxu0
        %v1310 = vadd.f32 %v1228, %v1309
        %v1311 = vpop.f32.mrb[0].mxu0
        %1312 = vmatprep.mubr.f32.mxu0 0.0
        %v1313 = vand.u32 %v975, 4294901760
        %v1314 = vsub.f32 %v975, %v1313
        %v1315 = vand.u32 %v1314, 4294901760
        %1316 = vmatmul.mubr.f32.gmra.mrb[0].mxu0 %v1315
        %v1317 = vpop.f32.mrb[0].mxu0
        %v1318 = vadd.f32 %v1235, %v1317
        %v1319 = vpop.f32.mrb[0].mxu0
        %1320 = vdwg.mxu0
        %1321 = vmatprep.subr.mxu0 0.0
        %v1322 = vand.u32 %v977, 4294901760
        %v1323 = vsub.f32 %v977, %v1322
        %v1324 = vand.u32 %v1323, 4294901760
        %1325 = vmatpush1.xpose.msra.mxu0 %v1324
        %1326 = vmatprep.subr.mxu0 0.0
        %v1327 = vand.u32 %v979, 4294901760
        %v1328 = vsub.f32 %v979, %v1327
        %v1329 = vand.u32 %v1328, 4294901760
        %1330 = vmatpush1.xpose.msra.mxu0 %v1329
        %1331 = vmatprep.subr.mxu0 0.0
        %1332 = vmatpush1.xpose.msra.mxu0 0.0
        %1333 = vmatprep.subr.mxu0 0.0
        %1334 = vmatpush1.xpose.msra.mxu0 0.0
        %1335 = vmatprep.subr.mxu0 0.0
        %1336 = vmatpush1.xpose.msra.mxu0 0.0
        %1337 = vmatprep.subr.mxu0 0.0
        %1338 = vmatpush1.xpose.msra.mxu0 0.0
        %1339 = vmatprep.subr.mxu0 0.0
        %1340 = vmatpush1.xpose.msra.mxu0 0.0
        %1341 = vmatprep.subr.mxu0 0.0
        %1342 = vmatpush1.xpose.msra.mxu0 0.0
        %1343 = vmatprep.subr.mxu0 0.0
        %1344 = vmatpush1.xpose.msra.mxu0 0.0
        %1345 = vmatprep.subr.mxu0 0.0
        %1346 = vmatpush1.xpose.msra.mxu0 0.0
        %1347 = vmatprep.subr.mxu0 0.0
        %1348 = vmatpush1.xpose.msra.mxu0 0.0
        %1349 = vmatprep.subr.mxu0 0.0
        %1350 = vmatpush1.xpose.msra.mxu0 0.0
        %1351 = vmatprep.subr.mxu0 0.0
        %1352 = vmatpush1.xpose.msra.mxu0 0.0
        %1353 = vmatprep.subr.mxu0 0.0
        %1354 = vmatpush1.xpose.msra.mxu0 0.0
        %1355 = vmatprep.subr.mxu0 0.0
        %1356 = vmatpush1.xpose.msra.mxu0 0.0
        %1357 = vmatprep.subr.mxu0 0.0
        %1358 = vmatpush1.xpose.msra.mxu0 0.0
        %1359 = vmatprep.subr.mxu0 0.0
        %1360 = vmatpush1.xpose.msra.mxu0 0.0
        %1361 = vmatprep.subr.mxu0 0.0
        %1362 = vmatpush1.xpose.msra.mxu0 0.0
        %1363 = vmatprep.subr.mxu0 0.0
        %1364 = vmatpush1.xpose.msra.mxu0 0.0
        %1365 = vmatprep.subr.mxu0 0.0
        %1366 = vmatpush1.xpose.msra.mxu0 0.0
        %1367 = vmatprep.subr.mxu0 0.0
        %1368 = vmatpush1.xpose.msra.mxu0 0.0
        %1369 = vmatprep.subr.mxu0 0.0
        %1370 = vmatpush1.xpose.msra.mxu0 0.0
        %1371 = vmatprep.subr.mxu0 0.0
        %1372 = vmatpush1.xpose.msra.mxu0 0.0
        %1373 = vmatprep.subr.mxu0 0.0
        %1374 = vmatpush1.xpose.msra.mxu0 0.0
        %1375 = vmatprep.subr.mxu0 0.0
        %1376 = vmatpush1.xpose.msra.mxu0 0.0
        %1377 = vmatprep.subr.mxu0 0.0
        %1378 = vmatpush1.xpose.msra.mxu0 0.0
        %1379 = vmatprep.subr.mxu0 0.0
        %1380 = vmatpush1.xpose.msra.mxu0 0.0
        %1381 = vmatprep.subr.mxu0 0.0
        %1382 = vmatpush1.xpose.msra.mxu0 0.0
        %1383 = vmatprep.subr.mxu0 0.0
        %1384 = vmatpush1.xpose.msra.mxu0 0.0
        %1385 = vmatprep.subr.mxu0 0.0
        %1386 = vmatpush1.xpose.msra.mxu0 0.0
        %1387 = vmatprep.subr.mxu0 0.0
        %1388 = vmatpush1.xpose.msra.mxu0 0.0
        %1389 = vmatprep.subr.mxu0 0.0
        %1390 = vmatpush1.xpose.msra.mxu0 0.0
        %1391 = vmatprep.mubr.f32.mxu0 0.0
        %v1392 = vand.u32 %v973, 4294901760
        %1393 = vmatmul.mubr.f32.gmra.mrb[0].mxu0 %v1392
        %v1394 = vpop.f32.mrb[0].mxu0
        %v1395 = vadd.f32 %v1310, %v1394
        %v1396 = vpop.f32.mrb[0].mxu0
        %1397 = vmatprep.mubr.f32.mxu0 0.0
        %v1398 = vand.u32 %v975, 4294901760
        %1399 = vmatmul.mubr.f32.gmra.mrb[0].mxu0 %v1398
        %v1400 = vpop.f32.mrb[0].mxu0
        %v1401 = vadd.f32 %v1318, %v1400
        %v1402 = vpop.f32.mrb[0].mxu0
        %1403 = vdwg.mxu0
        %1404 = vmatprep.subr.mxu0 0.0
        %v1405 = vand.u32 %v977, 4294901760
        %1406 = vmatpush1.xpose.msra.mxu0 %v1405
        %1407 = vmatprep.subr.mxu0 0.0
        %v1408 = vand.u32 %v979, 4294901760
        %1409 = vmatpush1.xpose.msra.mxu0 %v1408
        %1410 = vmatprep.subr.mxu0 0.0
        %1411 = vmatpush1.xpose.msra.mxu0 0.0
        %1412 = vmatprep.subr.mxu0 0.0
        %1413 = vmatpush1.xpose.msra.mxu0 0.0
        %1414 = vmatprep.subr.mxu0 0.0
        %1415 = vmatpush1.xpose.msra.mxu0 0.0
        %1416 = vmatprep.subr.mxu0 0.0
        %1417 = vmatpush1.xpose.msra.mxu0 0.0
        %1418 = vmatprep.subr.mxu0 0.0
        %1419 = vmatpush1.xpose.msra.mxu0 0.0
        %1420 = vmatprep.subr.mxu0 0.0
        %1421 = vmatpush1.xpose.msra.mxu0 0.0
        %1422 = vmatprep.subr.mxu0 0.0
        %1423 = vmatpush1.xpose.msra.mxu0 0.0
        %1424 = vmatprep.subr.mxu0 0.0
        %1425 = vmatpush1.xpose.msra.mxu0 0.0
        %1426 = vmatprep.subr.mxu0 0.0
        %1427 = vmatpush1.xpose.msra.mxu0 0.0
        %1428 = vmatprep.subr.mxu0 0.0
        %1429 = vmatpush1.xpose.msra.mxu0 0.0
        %1430 = vmatprep.subr.mxu0 0.0
        %1431 = vmatpush1.xpose.msra.mxu0 0.0
        %1432 = vmatprep.subr.mxu0 0.0
        %1433 = vmatpush1.xpose.msra.mxu0 0.0
        %1434 = vmatprep.subr.mxu0 0.0
        %1435 = vmatpush1.xpose.msra.mxu0 0.0
        %1436 = vmatprep.subr.mxu0 0.0
        %1437 = vmatpush1.xpose.msra.mxu0 0.0
        %1438 = vmatprep.subr.mxu0 0.0
        %1439 = vmatpush1.xpose.msra.mxu0 0.0
        %1440 = vmatprep.subr.mxu0 0.0
        %1441 = vmatpush1.xpose.msra.mxu0 0.0
        %1442 = vmatprep.subr.mxu0 0.0
        %1443 = vmatpush1.xpose.msra.mxu0 0.0
        %1444 = vmatprep.subr.mxu0 0.0
        %1445 = vmatpush1.xpose.msra.mxu0 0.0
        %1446 = vmatprep.subr.mxu0 0.0
        %1447 = vmatpush1.xpose.msra.mxu0 0.0
        %1448 = vmatprep.subr.mxu0 0.0
        %1449 = vmatpush1.xpose.msra.mxu0 0.0
        %1450 = vmatprep.subr.mxu0 0.0
        %1451 = vmatpush1.xpose.msra.mxu0 0.0
        %1452 = vmatprep.subr.mxu0 0.0
        %1453 = vmatpush1.xpose.msra.mxu0 0.0
        %1454 = vmatprep.subr.mxu0 0.0
        %1455 = vmatpush1.xpose.msra.mxu0 0.0
        %1456 = vmatprep.subr.mxu0 0.0
        %1457 = vmatpush1.xpose.msra.mxu0 0.0
        %1458 = vmatprep.subr.mxu0 0.0
        %1459 = vmatpush1.xpose.msra.mxu0 0.0
        %1460 = vmatprep.subr.mxu0 0.0
        %1461 = vmatpush1.xpose.msra.mxu0 0.0
        %1462 = vmatprep.subr.mxu0 0.0
        %1463 = vmatpush1.xpose.msra.mxu0 0.0
        %1464 = vmatprep.subr.mxu0 0.0
        %1465 = vmatpush1.xpose.msra.mxu0 0.0
        %1466 = vmatprep.subr.mxu0 0.0
        %1467 = vmatpush1.xpose.msra.mxu0 0.0
        %1468 = vmatprep.subr.mxu0 0.0
        %1469 = vmatpush1.xpose.msra.mxu0 0.0
        %1470 = vmatprep.mubr.f32.mxu0 0.0
        %v1471 = vand.u32 %v973, 4294901760
        %1472 = vmatmul.mubr.f32.gmra.mrb[0].mxu0 %v1471
        %v1473 = vpop.f32.mrb[0].mxu0
        %v1474 = vadd.f32 %v1395, %v1473
        %v1475 = vpop.f32.mrb[0].mxu0
        %1476 = vmatprep.mubr.f32.mxu0 0.0
        %v1477 = vand.u32 %v975, 4294901760
        %1478 = vmatmul.mubr.f32.gmra.mrb[0].mxu0 %v1477
        %v1479 = vpop.f32.mrb[0].mxu0
        %v1480 = vadd.f32 %v1401, %v1479
        %v1481 = vpop.f32.mrb[0].mxu0
        %1482 = vdwg.mxu0
        %vm1483 = vcmask 130048
        %v1484 = vsel %vm1483, %v1474, -inf
        %1485 = vmax.xlane.f32.xlu0 %v1484
        %v1486 = vpop.xlane.xlu0 %1485
        %v1487 = vsel %vm1483, %v1480, -inf
        %1488 = vmax.xlane.f32.xlu0 %v1487
        %v1489 = vpop.xlane.xlu0 %1488
        %v1490 = vsub.f32 %v1474, %v1486
        %v1491 = vsub.f32 %v1480, %v1489
        %v1492 = vmul.f32 %v1490, 1.442695
        %v1493 = vpow.pop %v1492
        %v1494 = vmul.f32 %v1491, 1.442695
        %v1495 = vpow.pop %v1494
        %v1496 = vsel %vm1483, %v1493, 0.0
        %1497 = vadd.xlane.f32.xlu0 %v1496
        %v1498 = vpop.xlane.xlu0 %1497
        %v1499 = vsel %vm1483, %v1495, 0.0
        %1500 = vadd.xlane.f32.xlu0 %v1499
        %v1501 = vpop.xlane.xlu0 %1500
        %v1503 = vsel %vm1483, %v1493, 0
        %v1506 = vsel %vm1483, %v1495, 0
        %1508 = vmatprep.subr.mxu0 0.0
        %v1509 = vand.u32 %v957, 4294901760
        %1510 = vmatpush1.msra.mxu0 %v1509
        %1511 = vmatprep.subr.mxu0 0.0
        %v1512 = vand.u32 %v964, 4294901760
        %1513 = vmatpush1.msra.mxu0 %v1512
        %1514 = vmatprep.subr.mxu0 0.0
        %1515 = vmatpush1.msra.mxu0 0.0
        %1516 = vmatprep.subr.mxu0 0.0
        %1517 = vmatpush1.msra.mxu0 0.0
        %1518 = vmatprep.subr.mxu0 0.0
        %1519 = vmatpush1.msra.mxu0 0.0
        %1520 = vmatprep.subr.mxu0 0.0
        %1521 = vmatpush1.msra.mxu0 0.0
        %1522 = vmatprep.subr.mxu0 0.0
        %1523 = vmatpush1.msra.mxu0 0.0
        %1524 = vmatprep.subr.mxu0 0.0
        %1525 = vmatpush1.msra.mxu0 0.0
        %1526 = vmatprep.subr.mxu0 0.0
        %1527 = vmatpush1.msra.mxu0 0.0
        %1528 = vmatprep.subr.mxu0 0.0
        %1529 = vmatpush1.msra.mxu0 0.0
        %1530 = vmatprep.subr.mxu0 0.0
        %1531 = vmatpush1.msra.mxu0 0.0
        %1532 = vmatprep.subr.mxu0 0.0
        %1533 = vmatpush1.msra.mxu0 0.0
        %1534 = vmatprep.subr.mxu0 0.0
        %1535 = vmatpush1.msra.mxu0 0.0
        %1536 = vmatprep.subr.mxu0 0.0
        %1537 = vmatpush1.msra.mxu0 0.0
        %1538 = vmatprep.subr.mxu0 0.0
        %1539 = vmatpush1.msra.mxu0 0.0
        %1540 = vmatprep.subr.mxu0 0.0
        %1541 = vmatpush1.msra.mxu0 0.0
        %1542 = vmatprep.subr.mxu0 0.0
        %1543 = vmatpush1.msra.mxu0 0.0
        %1544 = vmatprep.subr.mxu0 0.0
        %1545 = vmatpush1.msra.mxu0 0.0
        %1546 = vmatprep.subr.mxu0 0.0
        %1547 = vmatpush1.msra.mxu0 0.0
        %1548 = vmatprep.subr.mxu0 0.0
        %1549 = vmatpush1.msra.mxu0 0.0
        %1550 = vmatprep.subr.mxu0 0.0
        %1551 = vmatpush1.msra.mxu0 0.0
        %1552 = vmatprep.subr.mxu0 0.0
        %1553 = vmatpush1.msra.mxu0 0.0
        %1554 = vmatprep.subr.mxu0 0.0
        %1555 = vmatpush1.msra.mxu0 0.0
        %1556 = vmatprep.subr.mxu0 0.0
        %1557 = vmatpush1.msra.mxu0 0.0
        %1558 = vmatprep.subr.mxu0 0.0
        %1559 = vmatpush1.msra.mxu0 0.0
        %1560 = vmatprep.subr.mxu0 0.0
        %1561 = vmatpush1.msra.mxu0 0.0
        %1562 = vmatprep.subr.mxu0 0.0
        %1563 = vmatpush1.msra.mxu0 0.0
        %1564 = vmatprep.subr.mxu0 0.0
        %1565 = vmatpush1.msra.mxu0 0.0
        %1566 = vmatprep.subr.mxu0 0.0
        %1567 = vmatpush1.msra.mxu0 0.0
        %1568 = vmatprep.subr.mxu0 0.0
        %1569 = vmatpush1.msra.mxu0 0.0
        %1570 = vmatprep.subr.mxu0 0.0
        %1571 = vmatpush1.msra.mxu0 0.0
        %1572 = vmatprep.subr.mxu0 0.0
        %1573 = vmatpush1.msra.mxu0 0.0
        %1574 = vmatprep.mubr.f32.mxu0 0.0
        %v1575 = vand.u32 %v1503, 4294901760
        %v1576 = vsub.f32 %v1503, %v1575
        %v1577 = vand.u32 %v1576, 4294901760
        %v1578 = vsub.f32 %v1576, %v1577
        %v1579 = vand.u32 %v1578, 4294901760
        %1580 = vmatmul.mubr.f32.gmra.mrb[0].mxu0 %v1579
        %v1581 = vpop.f32.mrb[0].mxu0
        %v1582 = vadd.f32 0.0, %v1581
        %v1583 = vpop.f32.mrb[0].mxu0
        %1584 = vmatprep.mubr.f32.mxu0 0.0
        %v1585 = vand.u32 %v1506, 4294901760
        %v1586 = vsub.f32 %v1506, %v1585
        %v1587 = vand.u32 %v1586, 4294901760
        %v1588 = vsub.f32 %v1586, %v1587
        %v1589 = vand.u32 %v1588, 4294901760
        %1590 = vmatmul.mubr.f32.gmra.mrb[0].mxu0 %v1589
        %v1591 = vpop.f32.mrb[0].mxu0
        %v1592 = vadd.f32 0.0, %v1591
        %v1593 = vpop.f32.mrb[0].mxu0
        %1594 = vdwg.mxu0
        %1595 = vmatprep.subr.mxu0 0.0
        %v1596 = vand.u32 %v957, 4294901760
        %v1597 = vsub.f32 %v957, %v1596
        %v1598 = vand.u32 %v1597, 4294901760
        %v1599 = vsub.f32 %v1597, %v1598
        %v1600 = vand.u32 %v1599, 4294901760
        %1601 = vmatpush1.msra.mxu0 %v1600
        %1602 = vmatprep.subr.mxu0 0.0
        %v1603 = vand.u32 %v964, 4294901760
        %v1604 = vsub.f32 %v964, %v1603
        %v1605 = vand.u32 %v1604, 4294901760
        %v1606 = vsub.f32 %v1604, %v1605
        %v1607 = vand.u32 %v1606, 4294901760
        %1608 = vmatpush1.msra.mxu0 %v1607
        %1609 = vmatprep.subr.mxu0 0.0
        %1610 = vmatpush1.msra.mxu0 0.0
        %1611 = vmatprep.subr.mxu0 0.0
        %1612 = vmatpush1.msra.mxu0 0.0
        %1613 = vmatprep.subr.mxu0 0.0
        %1614 = vmatpush1.msra.mxu0 0.0
        %1615 = vmatprep.subr.mxu0 0.0
        %1616 = vmatpush1.msra.mxu0 0.0
        %1617 = vmatprep.subr.mxu0 0.0
        %1618 = vmatpush1.msra.mxu0 0.0
        %1619 = vmatprep.subr.mxu0 0.0
        %1620 = vmatpush1.msra.mxu0 0.0
        %1621 = vmatprep.subr.mxu0 0.0
        %1622 = vmatpush1.msra.mxu0 0.0
        %1623 = vmatprep.subr.mxu0 0.0
        %1624 = vmatpush1.msra.mxu0 0.0
        %1625 = vmatprep.subr.mxu0 0.0
        %1626 = vmatpush1.msra.mxu0 0.0
        %1627 = vmatprep.subr.mxu0 0.0
        %1628 = vmatpush1.msra.mxu0 0.0
        %1629 = vmatprep.subr.mxu0 0.0
        %1630 = vmatpush1.msra.mxu0 0.0
        %1631 = vmatprep.subr.mxu0 0.0
        %1632 = vmatpush1.msra.mxu0 0.0
        %1633 = vmatprep.subr.mxu0 0.0
        %1634 = vmatpush1.msra.mxu0 0.0
        %1635 = vmatprep.subr.mxu0 0.0
        %1636 = vmatpush1.msra.mxu0 0.0
        %1637 = vmatprep.subr.mxu0 0.0
        %1638 = vmatpush1.msra.mxu0 0.0
        %1639 = vmatprep.subr.mxu0 0.0
        %1640 = vmatpush1.msra.mxu0 0.0
        %1641 = vmatprep.subr.mxu0 0.0
        %1642 = vmatpush1.msra.mxu0 0.0
        %1643 = vmatprep.subr.mxu0 0.0
        %1644 = vmatpush1.msra.mxu0 0.0
        %1645 = vmatprep.subr.mxu0 0.0
        %1646 = vmatpush1.msra.mxu0 0.0
        %1647 = vmatprep.subr.mxu0 0.0
        %1648 = vmatpush1.msra.mxu0 0.0
        %1649 = vmatprep.subr.mxu0 0.0
        %1650 = vmatpush1.msra.mxu0 0.0
        %1651 = vmatprep.subr.mxu0 0.0
        %1652 = vmatpush1.msra.mxu0 0.0
        %1653 = vmatprep.subr.mxu0 0.0
        %1654 = vmatpush1.msra.mxu0 0.0
        %1655 = vmatprep.subr.mxu0 0.0
        %1656 = vmatpush1.msra.mxu0 0.0
        %1657 = vmatprep.subr.mxu0 0.0
        %1658 = vmatpush1.msra.mxu0 0.0
        %1659 = vmatprep.subr.mxu0 0.0
        %1660 = vmatpush1.msra.mxu0 0.0
        %1661 = vmatprep.subr.mxu0 0.0
        %1662 = vmatpush1.msra.mxu0 0.0
        %1663 = vmatprep.subr.mxu0 0.0
        %1664 = vmatpush1.msra.mxu0 0.0
        %1665 = vmatprep.subr.mxu0 0.0
        %1666 = vmatpush1.msra.mxu0 0.0
        %1667 = vmatprep.subr.mxu0 0.0
        %1668 = vmatpush1.msra.mxu0 0.0
        %1669 = vmatprep.mubr.f32.mxu0 0.0
        %v1670 = vand.u32 %v1503, 4294901760
        %1671 = vmatmul.mubr.f32.gmra.mrb[0].mxu0 %v1670
        %v1672 = vpop.f32.mrb[0].mxu0
        %v1673 = vadd.f32 %v1582, %v1672
        %v1674 = vpop.f32.mrb[0].mxu0
        %1675 = vmatprep.mubr.f32.mxu0 0.0
        %v1676 = vand.u32 %v1506, 4294901760
        %1677 = vmatmul.mubr.f32.gmra.mrb[0].mxu0 %v1676
        %v1678 = vpop.f32.mrb[0].mxu0
        %v1679 = vadd.f32 %v1592, %v1678
        %v1680 = vpop.f32.mrb[0].mxu0
        %1681 = vdwg.mxu0
        %1682 = vmatprep.subr.mxu0 0.0
        %v1683 = vand.u32 %v957, 4294901760
        %v1684 = vsub.f32 %v957, %v1683
        %1685 = vmatpush1.msra.mxu0 %v1684
        %1686 = vmatprep.subr.mxu0 0.0
        %v1687 = vand.u32 %v964, 4294901760
        %v1688 = vsub.f32 %v964, %v1687
        %1689 = vmatpush1.msra.mxu0 %v1688
        %1690 = vmatprep.subr.mxu0 0.0
        %1691 = vmatpush1.msra.mxu0 0.0
        %1692 = vmatprep.subr.mxu0 0.0
        %1693 = vmatpush1.msra.mxu0 0.0
        %1694 = vmatprep.subr.mxu0 0.0
        %1695 = vmatpush1.msra.mxu0 0.0
        %1696 = vmatprep.subr.mxu0 0.0
        %1697 = vmatpush1.msra.mxu0 0.0
        %1698 = vmatprep.subr.mxu0 0.0
        %1699 = vmatpush1.msra.mxu0 0.0
        %1700 = vmatprep.subr.mxu0 0.0
        %1701 = vmatpush1.msra.mxu0 0.0
        %1702 = vmatprep.subr.mxu0 0.0
        %1703 = vmatpush1.msra.mxu0 0.0
        %1704 = vmatprep.subr.mxu0 0.0
        %1705 = vmatpush1.msra.mxu0 0.0
        %1706 = vmatprep.subr.mxu0 0.0
        %1707 = vmatpush1.msra.mxu0 0.0
        %1708 = vmatprep.subr.mxu0 0.0
        %1709 = vmatpush1.msra.mxu0 0.0
        %1710 = vmatprep.subr.mxu0 0.0
        %1711 = vmatpush1.msra.mxu0 0.0
        %1712 = vmatprep.subr.mxu0 0.0
        %1713 = vmatpush1.msra.mxu0 0.0
        %1714 = vmatprep.subr.mxu0 0.0
        %1715 = vmatpush1.msra.mxu0 0.0
        %1716 = vmatprep.subr.mxu0 0.0
        %1717 = vmatpush1.msra.mxu0 0.0
        %1718 = vmatprep.subr.mxu0 0.0
        %1719 = vmatpush1.msra.mxu0 0.0
        %1720 = vmatprep.subr.mxu0 0.0
        %1721 = vmatpush1.msra.mxu0 0.0
        %1722 = vmatprep.subr.mxu0 0.0
        %1723 = vmatpush1.msra.mxu0 0.0
        %1724 = vmatprep.subr.mxu0 0.0
        %1725 = vmatpush1.msra.mxu0 0.0
        %1726 = vmatprep.subr.mxu0 0.0
        %1727 = vmatpush1.msra.mxu0 0.0
        %1728 = vmatprep.subr.mxu0 0.0
        %1729 = vmatpush1.msra.mxu0 0.0
        %1730 = vmatprep.subr.mxu0 0.0
        %1731 = vmatpush1.msra.mxu0 0.0
        %1732 = vmatprep.subr.mxu0 0.0
        %1733 = vmatpush1.msra.mxu0 0.0
        %1734 = vmatprep.subr.mxu0 0.0
        %1735 = vmatpush1.msra.mxu0 0.0
        %1736 = vmatprep.subr.mxu0 0.0
        %1737 = vmatpush1.msra.mxu0 0.0
        %1738 = vmatprep.subr.mxu0 0.0
        %1739 = vmatpush1.msra.mxu0 0.0
        %1740 = vmatprep.subr.mxu0 0.0
        %1741 = vmatpush1.msra.mxu0 0.0
        %1742 = vmatprep.subr.mxu0 0.0
        %1743 = vmatpush1.msra.mxu0 0.0
        %1744 = vmatprep.subr.mxu0 0.0
        %1745 = vmatpush1.msra.mxu0 0.0
        %1746 = vmatprep.subr.mxu0 0.0
        %1747 = vmatpush1.msra.mxu0 0.0
        %1748 = vmatprep.subr.mxu0 0.0
        %1749 = vmatpush1.msra.mxu0 0.0
        %1750 = vmatprep.mubr.f32.mxu0 0.0
        %v1751 = vand.u32 %v1503, 4294901760
        %v1752 = vsub.f32 %v1503, %v1751
        %1753 = vmatmul.mubr.f32.gmra.mrb[0].mxu0 %v1752
        %v1754 = vpop.f32.mrb[0].mxu0
        %v1755 = vadd.f32 %v1673, %v1754
        %v1756 = vpop.f32.mrb[0].mxu0
        %1757 = vmatprep.mubr.f32.mxu0 0.0
        %v1758 = vand.u32 %v1506, 4294901760
        %v1759 = vsub.f32 %v1506, %v1758
        %1760 = vmatmul.mubr.f32.gmra.mrb[0].mxu0 %v1759
        %v1761 = vpop.f32.mrb[0].mxu0
        %v1762 = vadd.f32 %v1679, %v1761
        %v1763 = vpop.f32.mrb[0].mxu0
        %1764 = vdwg.mxu0
        %1765 = vmatprep.subr.mxu0 0.0
        %v1766 = vand.u32 %v957, 4294901760
        %1767 = vmatpush1.msra.mxu0 %v1766
        %1768 = vmatprep.subr.mxu0 0.0
        %v1769 = vand.u32 %v964, 4294901760
        %1770 = vmatpush1.msra.mxu0 %v1769
        %1771 = vmatprep.subr.mxu0 0.0
        %1772 = vmatpush1.msra.mxu0 0.0
        %1773 = vmatprep.subr.mxu0 0.0
        %1774 = vmatpush1.msra.mxu0 0.0
        %1775 = vmatprep.subr.mxu0 0.0
        %1776 = vmatpush1.msra.mxu0 0.0
        %1777 = vmatprep.subr.mxu0 0.0
        %1778 = vmatpush1.msra.mxu0 0.0
        %1779 = vmatprep.subr.mxu0 0.0
        %1780 = vmatpush1.msra.mxu0 0.0
        %1781 = vmatprep.subr.mxu0 0.0
        %1782 = vmatpush1.msra.mxu0 0.0
        %1783 = vmatprep.subr.mxu0 0.0
        %1784 = vmatpush1.msra.mxu0 0.0
        %1785 = vmatprep.subr.mxu0 0.0
        %1786 = vmatpush1.msra.mxu0 0.0
        %1787 = vmatprep.subr.mxu0 0.0
        %1788 = vmatpush1.msra.mxu0 0.0
        %1789 = vmatprep.subr.mxu0 0.0
        %1790 = vmatpush1.msra.mxu0 0.0
        %1791 = vmatprep.subr.mxu0 0.0
        %1792 = vmatpush1.msra.mxu0 0.0
        %1793 = vmatprep.subr.mxu0 0.0
        %1794 = vmatpush1.msra.mxu0 0.0
        %1795 = vmatprep.subr.mxu0 0.0
        %1796 = vmatpush1.msra.mxu0 0.0
        %1797 = vmatprep.subr.mxu0 0.0
        %1798 = vmatpush1.msra.mxu0 0.0
        %1799 = vmatprep.subr.mxu0 0.0
        %1800 = vmatpush1.msra.mxu0 0.0
        %1801 = vmatprep.subr.mxu0 0.0
        %1802 = vmatpush1.msra.mxu0 0.0
        %1803 = vmatprep.subr.mxu0 0.0
        %1804 = vmatpush1.msra.mxu0 0.0
        %1805 = vmatprep.subr.mxu0 0.0
        %1806 = vmatpush1.msra.mxu0 0.0
        %1807 = vmatprep.subr.mxu0 0.0
        %1808 = vmatpush1.msra.mxu0 0.0
        %1809 = vmatprep.subr.mxu0 0.0
        %1810 = vmatpush1.msra.mxu0 0.0
        %1811 = vmatprep.subr.mxu0 0.0
        %1812 = vmatpush1.msra.mxu0 0.0
        %1813 = vmatprep.subr.mxu0 0.0
        %1814 = vmatpush1.msra.mxu0 0.0
        %1815 = vmatprep.subr.mxu0 0.0
        %1816 = vmatpush1.msra.mxu0 0.0
        %1817 = vmatprep.subr.mxu0 0.0
        %1818 = vmatpush1.msra.mxu0 0.0
        %1819 = vmatprep.subr.mxu0 0.0
        %1820 = vmatpush1.msra.mxu0 0.0
        %1821 = vmatprep.subr.mxu0 0.0
        %1822 = vmatpush1.msra.mxu0 0.0
        %1823 = vmatprep.subr.mxu0 0.0
        %1824 = vmatpush1.msra.mxu0 0.0
        %1825 = vmatprep.subr.mxu0 0.0
        %1826 = vmatpush1.msra.mxu0 0.0
        %1827 = vmatprep.subr.mxu0 0.0
        %1828 = vmatpush1.msra.mxu0 0.0
        %1829 = vmatprep.subr.mxu0 0.0
        %1830 = vmatpush1.msra.mxu0 0.0
        %1831 = vmatprep.mubr.f32.mxu0 0.0
        %v1832 = vand.u32 %v1503, 4294901760
        %v1833 = vsub.f32 %v1503, %v1832
        %v1834 = vand.u32 %v1833, 4294901760
        %1835 = vmatmul.mubr.f32.gmra.mrb[0].mxu0 %v1834
        %v1836 = vpop.f32.mrb[0].mxu0
        %v1837 = vadd.f32 %v1755, %v1836
        %v1838 = vpop.f32.mrb[0].mxu0
        %1839 = vmatprep.mubr.f32.mxu0 0.0
        %v1840 = vand.u32 %v1506, 4294901760
        %v1841 = vsub.f32 %v1506, %v1840
        %v1842 = vand.u32 %v1841, 4294901760
        %1843 = vmatmul.mubr.f32.gmra.mrb[0].mxu0 %v1842
        %v1844 = vpop.f32.mrb[0].mxu0
        %v1845 = vadd.f32 %v1762, %v1844
        %v1846 = vpop.f32.mrb[0].mxu0
        %1847 = vdwg.mxu0
        %1848 = vmatprep.subr.mxu0 0.0
        %v1849 = vand.u32 %v957, 4294901760
        %v1850 = vsub.f32 %v957, %v1849
        %v1851 = vand.u32 %v1850, 4294901760
        %1852 = vmatpush1.msra.mxu0 %v1851
        %1853 = vmatprep.subr.mxu0 0.0
        %v1854 = vand.u32 %v964, 4294901760
        %v1855 = vsub.f32 %v964, %v1854
        %v1856 = vand.u32 %v1855, 4294901760
        %1857 = vmatpush1.msra.mxu0 %v1856
        %1858 = vmatprep.subr.mxu0 0.0
        %1859 = vmatpush1.msra.mxu0 0.0
        %1860 = vmatprep.subr.mxu0 0.0
        %1861 = vmatpush1.msra.mxu0 0.0
        %1862 = vmatprep.subr.mxu0 0.0
        %1863 = vmatpush1.msra.mxu0 0.0
        %1864 = vmatprep.subr.mxu0 0.0
        %1865 = vmatpush1.msra.mxu0 0.0
        %1866 = vmatprep.subr.mxu0 0.0
        %1867 = vmatpush1.msra.mxu0 0.0
        %1868 = vmatprep.subr.mxu0 0.0
        %1869 = vmatpush1.msra.mxu0 0.0
        %1870 = vmatprep.subr.mxu0 0.0
        %1871 = vmatpush1.msra.mxu0 0.0
        %1872 = vmatprep.subr.mxu0 0.0
        %1873 = vmatpush1.msra.mxu0 0.0
        %1874 = vmatprep.subr.mxu0 0.0
        %1875 = vmatpush1.msra.mxu0 0.0
        %1876 = vmatprep.subr.mxu0 0.0
        %1877 = vmatpush1.msra.mxu0 0.0
        %1878 = vmatprep.subr.mxu0 0.0
        %1879 = vmatpush1.msra.mxu0 0.0
        %1880 = vmatprep.subr.mxu0 0.0
        %1881 = vmatpush1.msra.mxu0 0.0
        %1882 = vmatprep.subr.mxu0 0.0
        %1883 = vmatpush1.msra.mxu0 0.0
        %1884 = vmatprep.subr.mxu0 0.0
        %1885 = vmatpush1.msra.mxu0 0.0
        %1886 = vmatprep.subr.mxu0 0.0
        %1887 = vmatpush1.msra.mxu0 0.0
        %1888 = vmatprep.subr.mxu0 0.0
        %1889 = vmatpush1.msra.mxu0 0.0
        %1890 = vmatprep.subr.mxu0 0.0
        %1891 = vmatpush1.msra.mxu0 0.0
        %1892 = vmatprep.subr.mxu0 0.0
        %1893 = vmatpush1.msra.mxu0 0.0
        %1894 = vmatprep.subr.mxu0 0.0
        %1895 = vmatpush1.msra.mxu0 0.0
        %1896 = vmatprep.subr.mxu0 0.0
        %1897 = vmatpush1.msra.mxu0 0.0
        %1898 = vmatprep.subr.mxu0 0.0
        %1899 = vmatpush1.msra.mxu0 0.0
        %1900 = vmatprep.subr.mxu0 0.0
        %1901 = vmatpush1.msra.mxu0 0.0
        %1902 = vmatprep.subr.mxu0 0.0
        %1903 = vmatpush1.msra.mxu0 0.0
        %1904 = vmatprep.subr.mxu0 0.0
        %1905 = vmatpush1.msra.mxu0 0.0
        %1906 = vmatprep.subr.mxu0 0.0
        %1907 = vmatpush1.msra.mxu0 0.0
        %1908 = vmatprep.subr.mxu0 0.0
        %1909 = vmatpush1.msra.mxu0 0.0
        %1910 = vmatprep.subr.mxu0 0.0
        %1911 = vmatpush1.msra.mxu0 0.0
        %1912 = vmatprep.subr.mxu0 0.0
        %1913 = vmatpush1.msra.mxu0 0.0
        %1914 = vmatprep.subr.mxu0 0.0
        %1915 = vmatpush1.msra.mxu0 0.0
        %1916 = vmatprep.subr.mxu0 0.0
        %1917 = vmatpush1.msra.mxu0 0.0
        %1918 = vmatprep.mubr.f32.mxu0 0.0
        %v1919 = vand.u32 %v1503, 4294901760
        %1920 = vmatmul.mubr.f32.gmra.mrb[0].mxu0 %v1919
        %v1921 = vpop.f32.mrb[0].mxu0
        %v1922 = vadd.f32 %v1837, %v1921
        %v1923 = vpop.f32.mrb[0].mxu0
        %1924 = vmatprep.mubr.f32.mxu0 0.0
        %v1925 = vand.u32 %v1506, 4294901760
        %1926 = vmatmul.mubr.f32.gmra.mrb[0].mxu0 %v1925
        %v1927 = vpop.f32.mrb[0].mxu0
        %v1928 = vadd.f32 %v1845, %v1927
        %v1929 = vpop.f32.mrb[0].mxu0
        %1930 = vdwg.mxu0
        %1931 = vmatprep.subr.mxu0 0.0
        %v1932 = vand.u32 %v957, 4294901760
        %1933 = vmatpush1.msra.mxu0 %v1932
        %1934 = vmatprep.subr.mxu0 0.0
        %v1935 = vand.u32 %v964, 4294901760
        %1936 = vmatpush1.msra.mxu0 %v1935
        %1937 = vmatprep.subr.mxu0 0.0
        %1938 = vmatpush1.msra.mxu0 0.0
        %1939 = vmatprep.subr.mxu0 0.0
        %1940 = vmatpush1.msra.mxu0 0.0
        %1941 = vmatprep.subr.mxu0 0.0
        %1942 = vmatpush1.msra.mxu0 0.0
        %1943 = vmatprep.subr.mxu0 0.0
        %1944 = vmatpush1.msra.mxu0 0.0
        %1945 = vmatprep.subr.mxu0 0.0
        %1946 = vmatpush1.msra.mxu0 0.0
        %1947 = vmatprep.subr.mxu0 0.0
        %1948 = vmatpush1.msra.mxu0 0.0
        %1949 = vmatprep.subr.mxu0 0.0
        %1950 = vmatpush1.msra.mxu0 0.0
        %1951 = vmatprep.subr.mxu0 0.0
        %1952 = vmatpush1.msra.mxu0 0.0
        %1953 = vmatprep.subr.mxu0 0.0
        %1954 = vmatpush1.msra.mxu0 0.0
        %1955 = vmatprep.subr.mxu0 0.0
        %1956 = vmatpush1.msra.mxu0 0.0
        %1957 = vmatprep.subr.mxu0 0.0
        %1958 = vmatpush1.msra.mxu0 0.0
        %1959 = vmatprep.subr.mxu0 0.0
        %1960 = vmatpush1.msra.mxu0 0.0
        %1961 = vmatprep.subr.mxu0 0.0
        %1962 = vmatpush1.msra.mxu0 0.0
        %1963 = vmatprep.subr.mxu0 0.0
        %1964 = vmatpush1.msra.mxu0 0.0
        %1965 = vmatprep.subr.mxu0 0.0
        %1966 = vmatpush1.msra.mxu0 0.0
        %1967 = vmatprep.subr.mxu0 0.0
        %1968 = vmatpush1.msra.mxu0 0.0
        %1969 = vmatprep.subr.mxu0 0.0
        %1970 = vmatpush1.msra.mxu0 0.0
        %1971 = vmatprep.subr.mxu0 0.0
        %1972 = vmatpush1.msra.mxu0 0.0
        %1973 = vmatprep.subr.mxu0 0.0
        %1974 = vmatpush1.msra.mxu0 0.0
        %1975 = vmatprep.subr.mxu0 0.0
        %1976 = vmatpush1.msra.mxu0 0.0
        %1977 = vmatprep.subr.mxu0 0.0
        %1978 = vmatpush1.msra.mxu0 0.0
        %1979 = vmatprep.subr.mxu0 0.0
        %1980 = vmatpush1.msra.mxu0 0.0
        %1981 = vmatprep.subr.mxu0 0.0
        %1982 = vmatpush1.msra.mxu0 0.0
        %1983 = vmatprep.subr.mxu0 0.0
        %1984 = vmatpush1.msra.mxu0 0.0
        %1985 = vmatprep.subr.mxu0 0.0
        %1986 = vmatpush1.msra.mxu0 0.0
        %1987 = vmatprep.subr.mxu0 0.0
        %1988 = vmatpush1.msra.mxu0 0.0
        %1989 = vmatprep.subr.mxu0 0.0
        %1990 = vmatpush1.msra.mxu0 0.0
        %1991 = vmatprep.subr.mxu0 0.0
        %1992 = vmatpush1.msra.mxu0 0.0
        %1993 = vmatprep.subr.mxu0 0.0
        %1994 = vmatpush1.msra.mxu0 0.0
        %1995 = vmatprep.subr.mxu0 0.0
        %1996 = vmatpush1.msra.mxu0 0.0
        %1997 = vmatprep.mubr.f32.mxu0 0.0
        %v1998 = vand.u32 %v1503, 4294901760
        %1999 = vmatmul.mubr.f32.gmra.mrb[0].mxu0 %v1998
        %v2000 = vpop.f32.mrb[0].mxu0
        %v2001 = vadd.f32 %v1922, %v2000
        %v2002 = vpop.f32.mrb[0].mxu0
        %2003 = vmatprep.mubr.f32.mxu0 0.0
        %v2004 = vand.u32 %v1506, 4294901760
        %2005 = vmatmul.mubr.f32.gmra.mrb[0].mxu0 %v2004
        %v2006 = vpop.f32.mrb[0].mxu0
        %v2007 = vadd.f32 %v1928, %v2006
        %v2008 = vpop.f32.mrb[0].mxu0
        %2009 = vdwg.mxu0
        %v2010 = vrcp.pop %v1498
        %v2011 = vmul.f32 %v2001, %v2010
        %v2012 = vrcp.pop %v1501
        %v2013 = vmul.f32 %v2007, %v2012
        %2014 = vrot.lane.b32.xlu0 %v955, 120
        %v2015 = vpop.permute.xlu0 %2014
        %2016 = vrot.lane.b32.xlu0 %v962, 120
        %v2017 = vpop.permute.xlu0 %2016
        %2018 = vrot.lane.b32.xlu0 %v955, 56
        %v2019 = vpop.permute.xlu0 %2018
        %2020 = vrot.lane.b32.xlu0 %v962, 56
        %v2021 = vpop.permute.xlu0 %2020
        %v2022 = vsel %vm972, %v2015, 0
        %v2024 = vsel %vm972, %v2017, 0
        %v2026 = vsel %vm972, %v2019, 0
        %v2028 = vsel %vm972, %v2021, 0
        %2030 = vmatprep.subr.mxu0 0.0
        %v2031 = vand.u32 %v2026, 4294901760
        %2032 = vmatpush1.xpose.msra.mxu0 %v2031
        %2033 = vmatprep.subr.mxu0 0.0
        %v2034 = vand.u32 %v2028, 4294901760
        %2035 = vmatpush1.xpose.msra.mxu0 %v2034
        %2036 = vmatprep.subr.mxu0 0.0
        %2037 = vmatpush1.xpose.msra.mxu0 0.0
        %2038 = vmatprep.subr.mxu0 0.0
        %2039 = vmatpush1.xpose.msra.mxu0 0.0
        %2040 = vmatprep.subr.mxu0 0.0
        %2041 = vmatpush1.xpose.msra.mxu0 0.0
        %2042 = vmatprep.subr.mxu0 0.0
        %2043 = vmatpush1.xpose.msra.mxu0 0.0
        %2044 = vmatprep.subr.mxu0 0.0
        %2045 = vmatpush1.xpose.msra.mxu0 0.0
        %2046 = vmatprep.subr.mxu0 0.0
        %2047 = vmatpush1.xpose.msra.mxu0 0.0
        %2048 = vmatprep.subr.mxu0 0.0
        %2049 = vmatpush1.xpose.msra.mxu0 0.0
        %2050 = vmatprep.subr.mxu0 0.0
        %2051 = vmatpush1.xpose.msra.mxu0 0.0
        %2052 = vmatprep.subr.mxu0 0.0
        %2053 = vmatpush1.xpose.msra.mxu0 0.0
        %2054 = vmatprep.subr.mxu0 0.0
        %2055 = vmatpush1.xpose.msra.mxu0 0.0
        %2056 = vmatprep.subr.mxu0 0.0
        %2057 = vmatpush1.xpose.msra.mxu0 0.0
        %2058 = vmatprep.subr.mxu0 0.0
        %2059 = vmatpush1.xpose.msra.mxu0 0.0
        %2060 = vmatprep.subr.mxu0 0.0
        %2061 = vmatpush1.xpose.msra.mxu0 0.0
        %2062 = vmatprep.subr.mxu0 0.0
        %2063 = vmatpush1.xpose.msra.mxu0 0.0
        %2064 = vmatprep.subr.mxu0 0.0
        %2065 = vmatpush1.xpose.msra.mxu0 0.0
        %2066 = vmatprep.subr.mxu0 0.0
        %2067 = vmatpush1.xpose.msra.mxu0 0.0
        %2068 = vmatprep.subr.mxu0 0.0
        %2069 = vmatpush1.xpose.msra.mxu0 0.0
        %2070 = vmatprep.subr.mxu0 0.0
        %2071 = vmatpush1.xpose.msra.mxu0 0.0
        %2072 = vmatprep.subr.mxu0 0.0
        %2073 = vmatpush1.xpose.msra.mxu0 0.0
        %2074 = vmatprep.subr.mxu0 0.0
        %2075 = vmatpush1.xpose.msra.mxu0 0.0
        %2076 = vmatprep.subr.mxu0 0.0
        %2077 = vmatpush1.xpose.msra.mxu0 0.0
        %2078 = vmatprep.subr.mxu0 0.0
        %2079 = vmatpush1.xpose.msra.mxu0 0.0
        %2080 = vmatprep.subr.mxu0 0.0
        %2081 = vmatpush1.xpose.msra.mxu0 0.0
        %2082 = vmatprep.subr.mxu0 0.0
        %2083 = vmatpush1.xpose.msra.mxu0 0.0
        %2084 = vmatprep.subr.mxu0 0.0
        %2085 = vmatpush1.xpose.msra.mxu0 0.0
        %2086 = vmatprep.subr.mxu0 0.0
        %2087 = vmatpush1.xpose.msra.mxu0 0.0
        %2088 = vmatprep.subr.mxu0 0.0
        %2089 = vmatpush1.xpose.msra.mxu0 0.0
        %2090 = vmatprep.subr.mxu0 0.0
        %2091 = vmatpush1.xpose.msra.mxu0 0.0
        %2092 = vmatprep.subr.mxu0 0.0
        %2093 = vmatpush1.xpose.msra.mxu0 0.0
        %2094 = vmatprep.subr.mxu0 0.0
        %2095 = vmatpush1.xpose.msra.mxu0 0.0
        %2096 = vmatprep.mubr.f32.mxu0 0.0
        %v2097 = vand.u32 %v2022, 4294901760
        %v2098 = vsub.f32 %v2022, %v2097
        %v2099 = vand.u32 %v2098, 4294901760
        %v2100 = vsub.f32 %v2098, %v2099
        %v2101 = vand.u32 %v2100, 4294901760
        %2102 = vmatmul.mubr.f32.gmra.mrb[0].mxu0 %v2101
        %v2103 = vpop.f32.mrb[0].mxu0
        %v2104 = vadd.f32 0.0, %v2103
        %v2105 = vpop.f32.mrb[0].mxu0
        %2106 = vmatprep.mubr.f32.mxu0 0.0
        %v2107 = vand.u32 %v2024, 4294901760
        %v2108 = vsub.f32 %v2024, %v2107
        %v2109 = vand.u32 %v2108, 4294901760
        %v2110 = vsub.f32 %v2108, %v2109
        %v2111 = vand.u32 %v2110, 4294901760
        %2112 = vmatmul.mubr.f32.gmra.mrb[0].mxu0 %v2111
        %v2113 = vpop.f32.mrb[0].mxu0
        %v2114 = vadd.f32 0.0, %v2113
        %v2115 = vpop.f32.mrb[0].mxu0
        %2116 = vdwg.mxu0
        %2117 = vmatprep.subr.mxu0 0.0
        %v2118 = vand.u32 %v2026, 4294901760
        %v2119 = vsub.f32 %v2026, %v2118
        %v2120 = vand.u32 %v2119, 4294901760
        %v2121 = vsub.f32 %v2119, %v2120
        %v2122 = vand.u32 %v2121, 4294901760
        %2123 = vmatpush1.xpose.msra.mxu0 %v2122
        %2124 = vmatprep.subr.mxu0 0.0
        %v2125 = vand.u32 %v2028, 4294901760
        %v2126 = vsub.f32 %v2028, %v2125
        %v2127 = vand.u32 %v2126, 4294901760
        %v2128 = vsub.f32 %v2126, %v2127
        %v2129 = vand.u32 %v2128, 4294901760
        %2130 = vmatpush1.xpose.msra.mxu0 %v2129
        %2131 = vmatprep.subr.mxu0 0.0
        %2132 = vmatpush1.xpose.msra.mxu0 0.0
        %2133 = vmatprep.subr.mxu0 0.0
        %2134 = vmatpush1.xpose.msra.mxu0 0.0
        %2135 = vmatprep.subr.mxu0 0.0
        %2136 = vmatpush1.xpose.msra.mxu0 0.0
        %2137 = vmatprep.subr.mxu0 0.0
        %2138 = vmatpush1.xpose.msra.mxu0 0.0
        %2139 = vmatprep.subr.mxu0 0.0
        %2140 = vmatpush1.xpose.msra.mxu0 0.0
        %2141 = vmatprep.subr.mxu0 0.0
        %2142 = vmatpush1.xpose.msra.mxu0 0.0
        %2143 = vmatprep.subr.mxu0 0.0
        %2144 = vmatpush1.xpose.msra.mxu0 0.0
        %2145 = vmatprep.subr.mxu0 0.0
        %2146 = vmatpush1.xpose.msra.mxu0 0.0
        %2147 = vmatprep.subr.mxu0 0.0
        %2148 = vmatpush1.xpose.msra.mxu0 0.0
        %2149 = vmatprep.subr.mxu0 0.0
        %2150 = vmatpush1.xpose.msra.mxu0 0.0
        %2151 = vmatprep.subr.mxu0 0.0
        %2152 = vmatpush1.xpose.msra.mxu0 0.0
        %2153 = vmatprep.subr.mxu0 0.0
        %2154 = vmatpush1.xpose.msra.mxu0 0.0
        %2155 = vmatprep.subr.mxu0 0.0
        %2156 = vmatpush1.xpose.msra.mxu0 0.0
        %2157 = vmatprep.subr.mxu0 0.0
        %2158 = vmatpush1.xpose.msra.mxu0 0.0
        %2159 = vmatprep.subr.mxu0 0.0
        %2160 = vmatpush1.xpose.msra.mxu0 0.0
        %2161 = vmatprep.subr.mxu0 0.0
        %2162 = vmatpush1.xpose.msra.mxu0 0.0
        %2163 = vmatprep.subr.mxu0 0.0
        %2164 = vmatpush1.xpose.msra.mxu0 0.0
        %2165 = vmatprep.subr.mxu0 0.0
        %2166 = vmatpush1.xpose.msra.mxu0 0.0
        %2167 = vmatprep.subr.mxu0 0.0
        %2168 = vmatpush1.xpose.msra.mxu0 0.0
        %2169 = vmatprep.subr.mxu0 0.0
        %2170 = vmatpush1.xpose.msra.mxu0 0.0
        %2171 = vmatprep.subr.mxu0 0.0
        %2172 = vmatpush1.xpose.msra.mxu0 0.0
        %2173 = vmatprep.subr.mxu0 0.0
        %2174 = vmatpush1.xpose.msra.mxu0 0.0
        %2175 = vmatprep.subr.mxu0 0.0
        %2176 = vmatpush1.xpose.msra.mxu0 0.0
        %2177 = vmatprep.subr.mxu0 0.0
        %2178 = vmatpush1.xpose.msra.mxu0 0.0
        %2179 = vmatprep.subr.mxu0 0.0
        %2180 = vmatpush1.xpose.msra.mxu0 0.0
        %2181 = vmatprep.subr.mxu0 0.0
        %2182 = vmatpush1.xpose.msra.mxu0 0.0
        %2183 = vmatprep.subr.mxu0 0.0
        %2184 = vmatpush1.xpose.msra.mxu0 0.0
        %2185 = vmatprep.subr.mxu0 0.0
        %2186 = vmatpush1.xpose.msra.mxu0 0.0
        %2187 = vmatprep.subr.mxu0 0.0
        %2188 = vmatpush1.xpose.msra.mxu0 0.0
        %2189 = vmatprep.subr.mxu0 0.0
        %2190 = vmatpush1.xpose.msra.mxu0 0.0
        %2191 = vmatprep.mubr.f32.mxu0 0.0
        %v2192 = vand.u32 %v2022, 4294901760
        %2193 = vmatmul.mubr.f32.gmra.mrb[0].mxu0 %v2192
        %v2194 = vpop.f32.mrb[0].mxu0
        %v2195 = vadd.f32 %v2104, %v2194
        %v2196 = vpop.f32.mrb[0].mxu0
        %2197 = vmatprep.mubr.f32.mxu0 0.0
        %v2198 = vand.u32 %v2024, 4294901760
        %2199 = vmatmul.mubr.f32.gmra.mrb[0].mxu0 %v2198
        %v2200 = vpop.f32.mrb[0].mxu0
        %v2201 = vadd.f32 %v2114, %v2200
        %v2202 = vpop.f32.mrb[0].mxu0
        %2203 = vdwg.mxu0
        %2204 = vmatprep.subr.mxu0 0.0
        %v2205 = vand.u32 %v2026, 4294901760
        %v2206 = vsub.f32 %v2026, %v2205
        %2207 = vmatpush1.xpose.msra.mxu0 %v2206
        %2208 = vmatprep.subr.mxu0 0.0
        %v2209 = vand.u32 %v2028, 4294901760
        %v2210 = vsub.f32 %v2028, %v2209
        %2211 = vmatpush1.xpose.msra.mxu0 %v2210
        %2212 = vmatprep.subr.mxu0 0.0
        %2213 = vmatpush1.xpose.msra.mxu0 0.0
        %2214 = vmatprep.subr.mxu0 0.0
        %2215 = vmatpush1.xpose.msra.mxu0 0.0
        %2216 = vmatprep.subr.mxu0 0.0
        %2217 = vmatpush1.xpose.msra.mxu0 0.0
        %2218 = vmatprep.subr.mxu0 0.0
        %2219 = vmatpush1.xpose.msra.mxu0 0.0
        %2220 = vmatprep.subr.mxu0 0.0
        %2221 = vmatpush1.xpose.msra.mxu0 0.0
        %2222 = vmatprep.subr.mxu0 0.0
        %2223 = vmatpush1.xpose.msra.mxu0 0.0
        %2224 = vmatprep.subr.mxu0 0.0
        %2225 = vmatpush1.xpose.msra.mxu0 0.0
        %2226 = vmatprep.subr.mxu0 0.0
        %2227 = vmatpush1.xpose.msra.mxu0 0.0
        %2228 = vmatprep.subr.mxu0 0.0
        %2229 = vmatpush1.xpose.msra.mxu0 0.0
        %2230 = vmatprep.subr.mxu0 0.0
        %2231 = vmatpush1.xpose.msra.mxu0 0.0
        %2232 = vmatprep.subr.mxu0 0.0
        %2233 = vmatpush1.xpose.msra.mxu0 0.0
        %2234 = vmatprep.subr.mxu0 0.0
        %2235 = vmatpush1.xpose.msra.mxu0 0.0
        %2236 = vmatprep.subr.mxu0 0.0
        %2237 = vmatpush1.xpose.msra.mxu0 0.0
        %2238 = vmatprep.subr.mxu0 0.0
        %2239 = vmatpush1.xpose.msra.mxu0 0.0
        %2240 = vmatprep.subr.mxu0 0.0
        %2241 = vmatpush1.xpose.msra.mxu0 0.0
        %2242 = vmatprep.subr.mxu0 0.0
        %2243 = vmatpush1.xpose.msra.mxu0 0.0
        %2244 = vmatprep.subr.mxu0 0.0
        %2245 = vmatpush1.xpose.msra.mxu0 0.0
        %2246 = vmatprep.subr.mxu0 0.0
        %2247 = vmatpush1.xpose.msra.mxu0 0.0
        %2248 = vmatprep.subr.mxu0 0.0
        %2249 = vmatpush1.xpose.msra.mxu0 0.0
        %2250 = vmatprep.subr.mxu0 0.0
        %2251 = vmatpush1.xpose.msra.mxu0 0.0
        %2252 = vmatprep.subr.mxu0 0.0
        %2253 = vmatpush1.xpose.msra.mxu0 0.0
        %2254 = vmatprep.subr.mxu0 0.0
        %2255 = vmatpush1.xpose.msra.mxu0 0.0
        %2256 = vmatprep.subr.mxu0 0.0
        %2257 = vmatpush1.xpose.msra.mxu0 0.0
        %2258 = vmatprep.subr.mxu0 0.0
        %2259 = vmatpush1.xpose.msra.mxu0 0.0
        %2260 = vmatprep.subr.mxu0 0.0
        %2261 = vmatpush1.xpose.msra.mxu0 0.0
        %2262 = vmatprep.subr.mxu0 0.0
        %2263 = vmatpush1.xpose.msra.mxu0 0.0
        %2264 = vmatprep.subr.mxu0 0.0
        %2265 = vmatpush1.xpose.msra.mxu0 0.0
        %2266 = vmatprep.subr.mxu0 0.0
        %2267 = vmatpush1.xpose.msra.mxu0 0.0
        %2268 = vmatprep.subr.mxu0 0.0
        %2269 = vmatpush1.xpose.msra.mxu0 0.0
        %2270 = vmatprep.subr.mxu0 0.0
        %2271 = vmatpush1.xpose.msra.mxu0 0.0
        %2272 = vmatprep.mubr.f32.mxu0 0.0
        %v2273 = vand.u32 %v2022, 4294901760
        %v2274 = vsub.f32 %v2022, %v2273
        %2275 = vmatmul.mubr.f32.gmra.mrb[0].mxu0 %v2274
        %v2276 = vpop.f32.mrb[0].mxu0
        %v2277 = vadd.f32 %v2195, %v2276
        %v2278 = vpop.f32.mrb[0].mxu0
        %2279 = vmatprep.mubr.f32.mxu0 0.0
        %v2280 = vand.u32 %v2024, 4294901760
        %v2281 = vsub.f32 %v2024, %v2280
        %2282 = vmatmul.mubr.f32.gmra.mrb[0].mxu0 %v2281
        %v2283 = vpop.f32.mrb[0].mxu0
        %v2284 = vadd.f32 %v2201, %v2283
        %v2285 = vpop.f32.mrb[0].mxu0
        %2286 = vdwg.mxu0
        %2287 = vmatprep.subr.mxu0 0.0
        %v2288 = vand.u32 %v2026, 4294901760
        %2289 = vmatpush1.xpose.msra.mxu0 %v2288
        %2290 = vmatprep.subr.mxu0 0.0
        %v2291 = vand.u32 %v2028, 4294901760
        %2292 = vmatpush1.xpose.msra.mxu0 %v2291
        %2293 = vmatprep.subr.mxu0 0.0
        %2294 = vmatpush1.xpose.msra.mxu0 0.0
        %2295 = vmatprep.subr.mxu0 0.0
        %2296 = vmatpush1.xpose.msra.mxu0 0.0
        %2297 = vmatprep.subr.mxu0 0.0
        %2298 = vmatpush1.xpose.msra.mxu0 0.0
        %2299 = vmatprep.subr.mxu0 0.0
        %2300 = vmatpush1.xpose.msra.mxu0 0.0
        %2301 = vmatprep.subr.mxu0 0.0
        %2302 = vmatpush1.xpose.msra.mxu0 0.0
        %2303 = vmatprep.subr.mxu0 0.0
        %2304 = vmatpush1.xpose.msra.mxu0 0.0
        %2305 = vmatprep.subr.mxu0 0.0
        %2306 = vmatpush1.xpose.msra.mxu0 0.0
        %2307 = vmatprep.subr.mxu0 0.0
        %2308 = vmatpush1.xpose.msra.mxu0 0.0
        %2309 = vmatprep.subr.mxu0 0.0
        %2310 = vmatpush1.xpose.msra.mxu0 0.0
        %2311 = vmatprep.subr.mxu0 0.0
        %2312 = vmatpush1.xpose.msra.mxu0 0.0
        %2313 = vmatprep.subr.mxu0 0.0
        %2314 = vmatpush1.xpose.msra.mxu0 0.0
        %2315 = vmatprep.subr.mxu0 0.0
        %2316 = vmatpush1.xpose.msra.mxu0 0.0
        %2317 = vmatprep.subr.mxu0 0.0
        %2318 = vmatpush1.xpose.msra.mxu0 0.0
        %2319 = vmatprep.subr.mxu0 0.0
        %2320 = vmatpush1.xpose.msra.mxu0 0.0
        %2321 = vmatprep.subr.mxu0 0.0
        %2322 = vmatpush1.xpose.msra.mxu0 0.0
        %2323 = vmatprep.subr.mxu0 0.0
        %2324 = vmatpush1.xpose.msra.mxu0 0.0
        %2325 = vmatprep.subr.mxu0 0.0
        %2326 = vmatpush1.xpose.msra.mxu0 0.0
        %2327 = vmatprep.subr.mxu0 0.0
        %2328 = vmatpush1.xpose.msra.mxu0 0.0
        %2329 = vmatprep.subr.mxu0 0.0
        %2330 = vmatpush1.xpose.msra.mxu0 0.0
        %2331 = vmatprep.subr.mxu0 0.0
        %2332 = vmatpush1.xpose.msra.mxu0 0.0
        %2333 = vmatprep.subr.mxu0 0.0
        %2334 = vmatpush1.xpose.msra.mxu0 0.0
        %2335 = vmatprep.subr.mxu0 0.0
        %2336 = vmatpush1.xpose.msra.mxu0 0.0
        %2337 = vmatprep.subr.mxu0 0.0
        %2338 = vmatpush1.xpose.msra.mxu0 0.0
        %2339 = vmatprep.subr.mxu0 0.0
        %2340 = vmatpush1.xpose.msra.mxu0 0.0
        %2341 = vmatprep.subr.mxu0 0.0
        %2342 = vmatpush1.xpose.msra.mxu0 0.0
        %2343 = vmatprep.subr.mxu0 0.0
        %2344 = vmatpush1.xpose.msra.mxu0 0.0
        %2345 = vmatprep.subr.mxu0 0.0
        %2346 = vmatpush1.xpose.msra.mxu0 0.0
        %2347 = vmatprep.subr.mxu0 0.0
        %2348 = vmatpush1.xpose.msra.mxu0 0.0
        %2349 = vmatprep.subr.mxu0 0.0
        %2350 = vmatpush1.xpose.msra.mxu0 0.0
        %2351 = vmatprep.subr.mxu0 0.0
        %2352 = vmatpush1.xpose.msra.mxu0 0.0
        %2353 = vmatprep.mubr.f32.mxu0 0.0
        %v2354 = vand.u32 %v2022, 4294901760
        %v2355 = vsub.f32 %v2022, %v2354
        %v2356 = vand.u32 %v2355, 4294901760
        %2357 = vmatmul.mubr.f32.gmra.mrb[0].mxu0 %v2356
        %v2358 = vpop.f32.mrb[0].mxu0
        %v2359 = vadd.f32 %v2277, %v2358
        %v2360 = vpop.f32.mrb[0].mxu0
        %2361 = vmatprep.mubr.f32.mxu0 0.0
        %v2362 = vand.u32 %v2024, 4294901760
        %v2363 = vsub.f32 %v2024, %v2362
        %v2364 = vand.u32 %v2363, 4294901760
        %2365 = vmatmul.mubr.f32.gmra.mrb[0].mxu0 %v2364
        %v2366 = vpop.f32.mrb[0].mxu0
        %v2367 = vadd.f32 %v2284, %v2366
        %v2368 = vpop.f32.mrb[0].mxu0
        %2369 = vdwg.mxu0
        %2370 = vmatprep.subr.mxu0 0.0
        %v2371 = vand.u32 %v2026, 4294901760
        %v2372 = vsub.f32 %v2026, %v2371
        %v2373 = vand.u32 %v2372, 4294901760
        %2374 = vmatpush1.xpose.msra.mxu0 %v2373
        %2375 = vmatprep.subr.mxu0 0.0
        %v2376 = vand.u32 %v2028, 4294901760
        %v2377 = vsub.f32 %v2028, %v2376
        %v2378 = vand.u32 %v2377, 4294901760
        %2379 = vmatpush1.xpose.msra.mxu0 %v2378
        %2380 = vmatprep.subr.mxu0 0.0
        %2381 = vmatpush1.xpose.msra.mxu0 0.0
        %2382 = vmatprep.subr.mxu0 0.0
        %2383 = vmatpush1.xpose.msra.mxu0 0.0
        %2384 = vmatprep.subr.mxu0 0.0
        %2385 = vmatpush1.xpose.msra.mxu0 0.0
        %2386 = vmatprep.subr.mxu0 0.0
        %2387 = vmatpush1.xpose.msra.mxu0 0.0
        %2388 = vmatprep.subr.mxu0 0.0
        %2389 = vmatpush1.xpose.msra.mxu0 0.0
        %2390 = vmatprep.subr.mxu0 0.0
        %2391 = vmatpush1.xpose.msra.mxu0 0.0
        %2392 = vmatprep.subr.mxu0 0.0
        %2393 = vmatpush1.xpose.msra.mxu0 0.0
        %2394 = vmatprep.subr.mxu0 0.0
        %2395 = vmatpush1.xpose.msra.mxu0 0.0
        %2396 = vmatprep.subr.mxu0 0.0
        %2397 = vmatpush1.xpose.msra.mxu0 0.0
        %2398 = vmatprep.subr.mxu0 0.0
        %2399 = vmatpush1.xpose.msra.mxu0 0.0
        %2400 = vmatprep.subr.mxu0 0.0
        %2401 = vmatpush1.xpose.msra.mxu0 0.0
        %2402 = vmatprep.subr.mxu0 0.0
        %2403 = vmatpush1.xpose.msra.mxu0 0.0
        %2404 = vmatprep.subr.mxu0 0.0
        %2405 = vmatpush1.xpose.msra.mxu0 0.0
        %2406 = vmatprep.subr.mxu0 0.0
        %2407 = vmatpush1.xpose.msra.mxu0 0.0
        %2408 = vmatprep.subr.mxu0 0.0
        %2409 = vmatpush1.xpose.msra.mxu0 0.0
        %2410 = vmatprep.subr.mxu0 0.0
        %2411 = vmatpush1.xpose.msra.mxu0 0.0
        %2412 = vmatprep.subr.mxu0 0.0
        %2413 = vmatpush1.xpose.msra.mxu0 0.0
        %2414 = vmatprep.subr.mxu0 0.0
        %2415 = vmatpush1.xpose.msra.mxu0 0.0
        %2416 = vmatprep.subr.mxu0 0.0
        %2417 = vmatpush1.xpose.msra.mxu0 0.0
        %2418 = vmatprep.subr.mxu0 0.0
        %2419 = vmatpush1.xpose.msra.mxu0 0.0
        %2420 = vmatprep.subr.mxu0 0.0
        %2421 = vmatpush1.xpose.msra.mxu0 0.0
        %2422 = vmatprep.subr.mxu0 0.0
        %2423 = vmatpush1.xpose.msra.mxu0 0.0
        %2424 = vmatprep.subr.mxu0 0.0
        %2425 = vmatpush1.xpose.msra.mxu0 0.0
        %2426 = vmatprep.subr.mxu0 0.0
        %2427 = vmatpush1.xpose.msra.mxu0 0.0
        %2428 = vmatprep.subr.mxu0 0.0
        %2429 = vmatpush1.xpose.msra.mxu0 0.0
        %2430 = vmatprep.subr.mxu0 0.0
        %2431 = vmatpush1.xpose.msra.mxu0 0.0
        %2432 = vmatprep.subr.mxu0 0.0
        %2433 = vmatpush1.xpose.msra.mxu0 0.0
        %2434 = vmatprep.subr.mxu0 0.0
        %2435 = vmatpush1.xpose.msra.mxu0 0.0
        %2436 = vmatprep.subr.mxu0 0.0
        %2437 = vmatpush1.xpose.msra.mxu0 0.0
        %2438 = vmatprep.subr.mxu0 0.0
        %2439 = vmatpush1.xpose.msra.mxu0 0.0
        %2440 = vmatprep.mubr.f32.mxu0 0.0
        %v2441 = vand.u32 %v2022, 4294901760
        %2442 = vmatmul.mubr.f32.gmra.mrb[0].mxu0 %v2441
        %v2443 = vpop.f32.mrb[0].mxu0
        %v2444 = vadd.f32 %v2359, %v2443
        %v2445 = vpop.f32.mrb[0].mxu0
        %2446 = vmatprep.mubr.f32.mxu0 0.0
        %v2447 = vand.u32 %v2024, 4294901760
        %2448 = vmatmul.mubr.f32.gmra.mrb[0].mxu0 %v2447
        %v2449 = vpop.f32.mrb[0].mxu0
        %v2450 = vadd.f32 %v2367, %v2449
        %v2451 = vpop.f32.mrb[0].mxu0
        %2452 = vdwg.mxu0
        %2453 = vmatprep.subr.mxu0 0.0
        %v2454 = vand.u32 %v2026, 4294901760
        %2455 = vmatpush1.xpose.msra.mxu0 %v2454
        %2456 = vmatprep.subr.mxu0 0.0
        %v2457 = vand.u32 %v2028, 4294901760
        %2458 = vmatpush1.xpose.msra.mxu0 %v2457
        %2459 = vmatprep.subr.mxu0 0.0
        %2460 = vmatpush1.xpose.msra.mxu0 0.0
        %2461 = vmatprep.subr.mxu0 0.0
        %2462 = vmatpush1.xpose.msra.mxu0 0.0
        %2463 = vmatprep.subr.mxu0 0.0
        %2464 = vmatpush1.xpose.msra.mxu0 0.0
        %2465 = vmatprep.subr.mxu0 0.0
        %2466 = vmatpush1.xpose.msra.mxu0 0.0
        %2467 = vmatprep.subr.mxu0 0.0
        %2468 = vmatpush1.xpose.msra.mxu0 0.0
        %2469 = vmatprep.subr.mxu0 0.0
        %2470 = vmatpush1.xpose.msra.mxu0 0.0
        %2471 = vmatprep.subr.mxu0 0.0
        %2472 = vmatpush1.xpose.msra.mxu0 0.0
        %2473 = vmatprep.subr.mxu0 0.0
        %2474 = vmatpush1.xpose.msra.mxu0 0.0
        %2475 = vmatprep.subr.mxu0 0.0
        %2476 = vmatpush1.xpose.msra.mxu0 0.0
        %2477 = vmatprep.subr.mxu0 0.0
        %2478 = vmatpush1.xpose.msra.mxu0 0.0
        %2479 = vmatprep.subr.mxu0 0.0
        %2480 = vmatpush1.xpose.msra.mxu0 0.0
        %2481 = vmatprep.subr.mxu0 0.0
        %2482 = vmatpush1.xpose.msra.mxu0 0.0
        %2483 = vmatprep.subr.mxu0 0.0
        %2484 = vmatpush1.xpose.msra.mxu0 0.0
        %2485 = vmatprep.subr.mxu0 0.0
        %2486 = vmatpush1.xpose.msra.mxu0 0.0
        %2487 = vmatprep.subr.mxu0 0.0
        %2488 = vmatpush1.xpose.msra.mxu0 0.0
        %2489 = vmatprep.subr.mxu0 0.0
        %2490 = vmatpush1.xpose.msra.mxu0 0.0
        %2491 = vmatprep.subr.mxu0 0.0
        %2492 = vmatpush1.xpose.msra.mxu0 0.0
        %2493 = vmatprep.subr.mxu0 0.0
        %2494 = vmatpush1.xpose.msra.mxu0 0.0
        %2495 = vmatprep.subr.mxu0 0.0
        %2496 = vmatpush1.xpose.msra.mxu0 0.0
        %2497 = vmatprep.subr.mxu0 0.0
        %2498 = vmatpush1.xpose.msra.mxu0 0.0
        %2499 = vmatprep.subr.mxu0 0.0
        %2500 = vmatpush1.xpose.msra.mxu0 0.0
        %2501 = vmatprep.subr.mxu0 0.0
        %2502 = vmatpush1.xpose.msra.mxu0 0.0
        %2503 = vmatprep.subr.mxu0 0.0
        %2504 = vmatpush1.xpose.msra.mxu0 0.0
        %2505 = vmatprep.subr.mxu0 0.0
        %2506 = vmatpush1.xpose.msra.mxu0 0.0
        %2507 = vmatprep.subr.mxu0 0.0
        %2508 = vmatpush1.xpose.msra.mxu0 0.0
        %2509 = vmatprep.subr.mxu0 0.0
        %2510 = vmatpush1.xpose.msra.mxu0 0.0
        %2511 = vmatprep.subr.mxu0 0.0
        %2512 = vmatpush1.xpose.msra.mxu0 0.0
        %2513 = vmatprep.subr.mxu0 0.0
        %2514 = vmatpush1.xpose.msra.mxu0 0.0
        %2515 = vmatprep.subr.mxu0 0.0
        %2516 = vmatpush1.xpose.msra.mxu0 0.0
        %2517 = vmatprep.subr.mxu0 0.0
        %2518 = vmatpush1.xpose.msra.mxu0 0.0
        %2519 = vmatprep.mubr.f32.mxu0 0.0
        %v2520 = vand.u32 %v2022, 4294901760
        %2521 = vmatmul.mubr.f32.gmra.mrb[0].mxu0 %v2520
        %v2522 = vpop.f32.mrb[0].mxu0
        %v2523 = vadd.f32 %v2444, %v2522
        %v2524 = vpop.f32.mrb[0].mxu0
        %2525 = vmatprep.mubr.f32.mxu0 0.0
        %v2526 = vand.u32 %v2024, 4294901760
        %2527 = vmatmul.mubr.f32.gmra.mrb[0].mxu0 %v2526
        %v2528 = vpop.f32.mrb[0].mxu0
        %v2529 = vadd.f32 %v2450, %v2528
        %v2530 = vpop.f32.mrb[0].mxu0
        %2531 = vdwg.mxu0
        %v2532 = vsel %vm1483, %v2523, -inf
        %2533 = vmax.xlane.f32.xlu0 %v2532
        %v2534 = vpop.xlane.xlu0 %2533
        %v2535 = vsel %vm1483, %v2529, -inf
        %2536 = vmax.xlane.f32.xlu0 %v2535
        %v2537 = vpop.xlane.xlu0 %2536
        %v2538 = vsub.f32 %v2523, %v2534
        %v2539 = vsub.f32 %v2529, %v2537
        %v2540 = vmul.f32 %v2538, 1.442695
        %v2541 = vpow.pop %v2540
        %v2542 = vmul.f32 %v2539, 1.442695
        %v2543 = vpow.pop %v2542
        %v2544 = vsel %vm1483, %v2541, 0.0
        %2545 = vadd.xlane.f32.xlu0 %v2544
        %v2546 = vpop.xlane.xlu0 %2545
        %v2547 = vsel %vm1483, %v2543, 0.0
        %2548 = vadd.xlane.f32.xlu0 %v2547
        %v2549 = vpop.xlane.xlu0 %2548
        %2552 = vrot.lane.b32.xlu0 %v957, 120
        %v2553 = vpop.permute.xlu0 %2552
        %2554 = vrot.lane.b32.xlu0 %v964, 120
        %v2555 = vpop.permute.xlu0 %2554
        %v2559 = vsel %vm1483, %v2541, 0
        %v2562 = vsel %vm1483, %v2543, 0
        %2564 = vmatprep.subr.mxu0 0.0
        %v2565 = vand.u32 %v2553, 4294901760
        %2566 = vmatpush1.msra.mxu0 %v2565
        %2567 = vmatprep.subr.mxu0 0.0
        %v2568 = vand.u32 %v2555, 4294901760
        %2569 = vmatpush1.msra.mxu0 %v2568
        %2570 = vmatprep.subr.mxu0 0.0
        %2571 = vmatpush1.msra.mxu0 0.0
        %2572 = vmatprep.subr.mxu0 0.0
        %2573 = vmatpush1.msra.mxu0 0.0
        %2574 = vmatprep.subr.mxu0 0.0
        %2575 = vmatpush1.msra.mxu0 0.0
        %2576 = vmatprep.subr.mxu0 0.0
        %2577 = vmatpush1.msra.mxu0 0.0
        %2578 = vmatprep.subr.mxu0 0.0
        %2579 = vmatpush1.msra.mxu0 0.0
        %2580 = vmatprep.subr.mxu0 0.0
        %2581 = vmatpush1.msra.mxu0 0.0
        %2582 = vmatprep.subr.mxu0 0.0
        %2583 = vmatpush1.msra.mxu0 0.0
        %2584 = vmatprep.subr.mxu0 0.0
        %2585 = vmatpush1.msra.mxu0 0.0
        %2586 = vmatprep.subr.mxu0 0.0
        %2587 = vmatpush1.msra.mxu0 0.0
        %2588 = vmatprep.subr.mxu0 0.0
        %2589 = vmatpush1.msra.mxu0 0.0
        %2590 = vmatprep.subr.mxu0 0.0
        %2591 = vmatpush1.msra.mxu0 0.0
        %2592 = vmatprep.subr.mxu0 0.0
        %2593 = vmatpush1.msra.mxu0 0.0
        %2594 = vmatprep.subr.mxu0 0.0
        %2595 = vmatpush1.msra.mxu0 0.0
        %2596 = vmatprep.subr.mxu0 0.0
        %2597 = vmatpush1.msra.mxu0 0.0
        %2598 = vmatprep.subr.mxu0 0.0
        %2599 = vmatpush1.msra.mxu0 0.0
        %2600 = vmatprep.subr.mxu0 0.0
        %2601 = vmatpush1.msra.mxu0 0.0
        %2602 = vmatprep.subr.mxu0 0.0
        %2603 = vmatpush1.msra.mxu0 0.0
        %2604 = vmatprep.subr.mxu0 0.0
        %2605 = vmatpush1.msra.mxu0 0.0
        %2606 = vmatprep.subr.mxu0 0.0
        %2607 = vmatpush1.msra.mxu0 0.0
        %2608 = vmatprep.subr.mxu0 0.0
        %2609 = vmatpush1.msra.mxu0 0.0
        %2610 = vmatprep.subr.mxu0 0.0
        %2611 = vmatpush1.msra.mxu0 0.0
        %2612 = vmatprep.subr.mxu0 0.0
        %2613 = vmatpush1.msra.mxu0 0.0
        %2614 = vmatprep.subr.mxu0 0.0
        %2615 = vmatpush1.msra.mxu0 0.0
        %2616 = vmatprep.subr.mxu0 0.0
        %2617 = vmatpush1.msra.mxu0 0.0
        %2618 = vmatprep.subr.mxu0 0.0
        %2619 = vmatpush1.msra.mxu0 0.0
        %2620 = vmatprep.subr.mxu0 0.0
        %2621 = vmatpush1.msra.mxu0 0.0
        %2622 = vmatprep.subr.mxu0 0.0
        %2623 = vmatpush1.msra.mxu0 0.0
        %2624 = vmatprep.subr.mxu0 0.0
        %2625 = vmatpush1.msra.mxu0 0.0
        %2626 = vmatprep.subr.mxu0 0.0
        %2627 = vmatpush1.msra.mxu0 0.0
        %2628 = vmatprep.subr.mxu0 0.0
        %2629 = vmatpush1.msra.mxu0 0.0
        %2630 = vmatprep.mubr.f32.mxu0 0.0
        %v2631 = vand.u32 %v2559, 4294901760
        %v2632 = vsub.f32 %v2559, %v2631
        %v2633 = vand.u32 %v2632, 4294901760
        %v2634 = vsub.f32 %v2632, %v2633
        %v2635 = vand.u32 %v2634, 4294901760
        %2636 = vmatmul.mubr.f32.gmra.mrb[0].mxu0 %v2635
        %v2637 = vpop.f32.mrb[0].mxu0
        %v2638 = vadd.f32 0.0, %v2637
        %v2639 = vpop.f32.mrb[0].mxu0
        %2640 = vmatprep.mubr.f32.mxu0 0.0
        %v2641 = vand.u32 %v2562, 4294901760
        %v2642 = vsub.f32 %v2562, %v2641
        %v2643 = vand.u32 %v2642, 4294901760
        %v2644 = vsub.f32 %v2642, %v2643
        %v2645 = vand.u32 %v2644, 4294901760
        %2646 = vmatmul.mubr.f32.gmra.mrb[0].mxu0 %v2645
        %v2647 = vpop.f32.mrb[0].mxu0
        %v2648 = vadd.f32 0.0, %v2647
        %v2649 = vpop.f32.mrb[0].mxu0
        %2650 = vdwg.mxu0
        %2651 = vmatprep.subr.mxu0 0.0
        %v2652 = vand.u32 %v2553, 4294901760
        %v2653 = vsub.f32 %v2553, %v2652
        %v2654 = vand.u32 %v2653, 4294901760
        %v2655 = vsub.f32 %v2653, %v2654
        %v2656 = vand.u32 %v2655, 4294901760
        %2657 = vmatpush1.msra.mxu0 %v2656
        %2658 = vmatprep.subr.mxu0 0.0
        %v2659 = vand.u32 %v2555, 4294901760
        %v2660 = vsub.f32 %v2555, %v2659
        %v2661 = vand.u32 %v2660, 4294901760
        %v2662 = vsub.f32 %v2660, %v2661
        %v2663 = vand.u32 %v2662, 4294901760
        %2664 = vmatpush1.msra.mxu0 %v2663
        %2665 = vmatprep.subr.mxu0 0.0
        %2666 = vmatpush1.msra.mxu0 0.0
        %2667 = vmatprep.subr.mxu0 0.0
        %2668 = vmatpush1.msra.mxu0 0.0
        %2669 = vmatprep.subr.mxu0 0.0
        %2670 = vmatpush1.msra.mxu0 0.0
        %2671 = vmatprep.subr.mxu0 0.0
        %2672 = vmatpush1.msra.mxu0 0.0
        %2673 = vmatprep.subr.mxu0 0.0
        %2674 = vmatpush1.msra.mxu0 0.0
        %2675 = vmatprep.subr.mxu0 0.0
        %2676 = vmatpush1.msra.mxu0 0.0
        %2677 = vmatprep.subr.mxu0 0.0
        %2678 = vmatpush1.msra.mxu0 0.0
        %2679 = vmatprep.subr.mxu0 0.0
        %2680 = vmatpush1.msra.mxu0 0.0
        %2681 = vmatprep.subr.mxu0 0.0
        %2682 = vmatpush1.msra.mxu0 0.0
        %2683 = vmatprep.subr.mxu0 0.0
        %2684 = vmatpush1.msra.mxu0 0.0
        %2685 = vmatprep.subr.mxu0 0.0
        %2686 = vmatpush1.msra.mxu0 0.0
        %2687 = vmatprep.subr.mxu0 0.0
        %2688 = vmatpush1.msra.mxu0 0.0
        %2689 = vmatprep.subr.mxu0 0.0
        %2690 = vmatpush1.msra.mxu0 0.0
        %2691 = vmatprep.subr.mxu0 0.0
        %2692 = vmatpush1.msra.mxu0 0.0
        %2693 = vmatprep.subr.mxu0 0.0
        %2694 = vmatpush1.msra.mxu0 0.0
        %2695 = vmatprep.subr.mxu0 0.0
        %2696 = vmatpush1.msra.mxu0 0.0
        %2697 = vmatprep.subr.mxu0 0.0
        %2698 = vmatpush1.msra.mxu0 0.0
        %2699 = vmatprep.subr.mxu0 0.0
        %2700 = vmatpush1.msra.mxu0 0.0
        %2701 = vmatprep.subr.mxu0 0.0
        %2702 = vmatpush1.msra.mxu0 0.0
        %2703 = vmatprep.subr.mxu0 0.0
        %2704 = vmatpush1.msra.mxu0 0.0
        %2705 = vmatprep.subr.mxu0 0.0
        %2706 = vmatpush1.msra.mxu0 0.0
        %2707 = vmatprep.subr.mxu0 0.0
        %2708 = vmatpush1.msra.mxu0 0.0
        %2709 = vmatprep.subr.mxu0 0.0
        %2710 = vmatpush1.msra.mxu0 0.0
        %2711 = vmatprep.subr.mxu0 0.0
        %2712 = vmatpush1.msra.mxu0 0.0
        %2713 = vmatprep.subr.mxu0 0.0
        %2714 = vmatpush1.msra.mxu0 0.0
        %2715 = vmatprep.subr.mxu0 0.0
        %2716 = vmatpush1.msra.mxu0 0.0
        %2717 = vmatprep.subr.mxu0 0.0
        %2718 = vmatpush1.msra.mxu0 0.0
        %2719 = vmatprep.subr.mxu0 0.0
        %2720 = vmatpush1.msra.mxu0 0.0
        %2721 = vmatprep.subr.mxu0 0.0
        %2722 = vmatpush1.msra.mxu0 0.0
        %2723 = vmatprep.subr.mxu0 0.0
        %2724 = vmatpush1.msra.mxu0 0.0
        %2725 = vmatprep.mubr.f32.mxu0 0.0
        %v2726 = vand.u32 %v2559, 4294901760
        %2727 = vmatmul.mubr.f32.gmra.mrb[0].mxu0 %v2726
        %v2728 = vpop.f32.mrb[0].mxu0
        %v2729 = vadd.f32 %v2638, %v2728
        %v2730 = vpop.f32.mrb[0].mxu0
        %2731 = vmatprep.mubr.f32.mxu0 0.0
        %v2732 = vand.u32 %v2562, 4294901760
        %2733 = vmatmul.mubr.f32.gmra.mrb[0].mxu0 %v2732
        %v2734 = vpop.f32.mrb[0].mxu0
        %v2735 = vadd.f32 %v2648, %v2734
        %v2736 = vpop.f32.mrb[0].mxu0
        %2737 = vdwg.mxu0
        %2738 = vmatprep.subr.mxu0 0.0
        %v2739 = vand.u32 %v2553, 4294901760
        %v2740 = vsub.f32 %v2553, %v2739
        %2741 = vmatpush1.msra.mxu0 %v2740
        %2742 = vmatprep.subr.mxu0 0.0
        %v2743 = vand.u32 %v2555, 4294901760
        %v2744 = vsub.f32 %v2555, %v2743
        %2745 = vmatpush1.msra.mxu0 %v2744
        %2746 = vmatprep.subr.mxu0 0.0
        %2747 = vmatpush1.msra.mxu0 0.0
        %2748 = vmatprep.subr.mxu0 0.0
        %2749 = vmatpush1.msra.mxu0 0.0
        %2750 = vmatprep.subr.mxu0 0.0
        %2751 = vmatpush1.msra.mxu0 0.0
        %2752 = vmatprep.subr.mxu0 0.0
        %2753 = vmatpush1.msra.mxu0 0.0
        %2754 = vmatprep.subr.mxu0 0.0
        %2755 = vmatpush1.msra.mxu0 0.0
        %2756 = vmatprep.subr.mxu0 0.0
        %2757 = vmatpush1.msra.mxu0 0.0
        %2758 = vmatprep.subr.mxu0 0.0
        %2759 = vmatpush1.msra.mxu0 0.0
        %2760 = vmatprep.subr.mxu0 0.0
        %2761 = vmatpush1.msra.mxu0 0.0
        %2762 = vmatprep.subr.mxu0 0.0
        %2763 = vmatpush1.msra.mxu0 0.0
        %2764 = vmatprep.subr.mxu0 0.0
        %2765 = vmatpush1.msra.mxu0 0.0
        %2766 = vmatprep.subr.mxu0 0.0
        %2767 = vmatpush1.msra.mxu0 0.0
        %2768 = vmatprep.subr.mxu0 0.0
        %2769 = vmatpush1.msra.mxu0 0.0
        %2770 = vmatprep.subr.mxu0 0.0
        %2771 = vmatpush1.msra.mxu0 0.0
        %2772 = vmatprep.subr.mxu0 0.0
        %2773 = vmatpush1.msra.mxu0 0.0
        %2774 = vmatprep.subr.mxu0 0.0
        %2775 = vmatpush1.msra.mxu0 0.0
        %2776 = vmatprep.subr.mxu0 0.0
        %2777 = vmatpush1.msra.mxu0 0.0
        %2778 = vmatprep.subr.mxu0 0.0
        %2779 = vmatpush1.msra.mxu0 0.0
        %2780 = vmatprep.subr.mxu0 0.0
        %2781 = vmatpush1.msra.mxu0 0.0
        %2782 = vmatprep.subr.mxu0 0.0
        %2783 = vmatpush1.msra.mxu0 0.0
        %2784 = vmatprep.subr.mxu0 0.0
        %2785 = vmatpush1.msra.mxu0 0.0
        %2786 = vmatprep.subr.mxu0 0.0
        %2787 = vmatpush1.msra.mxu0 0.0
        %2788 = vmatprep.subr.mxu0 0.0
        %2789 = vmatpush1.msra.mxu0 0.0
        %2790 = vmatprep.subr.mxu0 0.0
        %2791 = vmatpush1.msra.mxu0 0.0
        %2792 = vmatprep.subr.mxu0 0.0
        %2793 = vmatpush1.msra.mxu0 0.0
        %2794 = vmatprep.subr.mxu0 0.0
        %2795 = vmatpush1.msra.mxu0 0.0
        %2796 = vmatprep.subr.mxu0 0.0
        %2797 = vmatpush1.msra.mxu0 0.0
        %2798 = vmatprep.subr.mxu0 0.0
        %2799 = vmatpush1.msra.mxu0 0.0
        %2800 = vmatprep.subr.mxu0 0.0
        %2801 = vmatpush1.msra.mxu0 0.0
        %2802 = vmatprep.subr.mxu0 0.0
        %2803 = vmatpush1.msra.mxu0 0.0
        %2804 = vmatprep.subr.mxu0 0.0
        %2805 = vmatpush1.msra.mxu0 0.0
        %2806 = vmatprep.mubr.f32.mxu0 0.0
        %v2807 = vand.u32 %v2559, 4294901760
        %v2808 = vsub.f32 %v2559, %v2807
        %2809 = vmatmul.mubr.f32.gmra.mrb[0].mxu0 %v2808
        %v2810 = vpop.f32.mrb[0].mxu0
        %v2811 = vadd.f32 %v2729, %v2810
        %v2812 = vpop.f32.mrb[0].mxu0
        %2813 = vmatprep.mubr.f32.mxu0 0.0
        %v2814 = vand.u32 %v2562, 4294901760
        %v2815 = vsub.f32 %v2562, %v2814
        %2816 = vmatmul.mubr.f32.gmra.mrb[0].mxu0 %v2815
        %v2817 = vpop.f32.mrb[0].mxu0
        %v2818 = vadd.f32 %v2735, %v2817
        %v2819 = vpop.f32.mrb[0].mxu0
        %2820 = vdwg.mxu0
        %2821 = vmatprep.subr.mxu0 0.0
        %v2822 = vand.u32 %v2553, 4294901760
        %2823 = vmatpush1.msra.mxu0 %v2822
        %2824 = vmatprep.subr.mxu0 0.0
        %v2825 = vand.u32 %v2555, 4294901760
        %2826 = vmatpush1.msra.mxu0 %v2825
        %2827 = vmatprep.subr.mxu0 0.0
        %2828 = vmatpush1.msra.mxu0 0.0
        %2829 = vmatprep.subr.mxu0 0.0
        %2830 = vmatpush1.msra.mxu0 0.0
        %2831 = vmatprep.subr.mxu0 0.0
        %2832 = vmatpush1.msra.mxu0 0.0
        %2833 = vmatprep.subr.mxu0 0.0
        %2834 = vmatpush1.msra.mxu0 0.0
        %2835 = vmatprep.subr.mxu0 0.0
        %2836 = vmatpush1.msra.mxu0 0.0
        %2837 = vmatprep.subr.mxu0 0.0
        %2838 = vmatpush1.msra.mxu0 0.0
        %2839 = vmatprep.subr.mxu0 0.0
        %2840 = vmatpush1.msra.mxu0 0.0
        %2841 = vmatprep.subr.mxu0 0.0
        %2842 = vmatpush1.msra.mxu0 0.0
        %2843 = vmatprep.subr.mxu0 0.0
        %2844 = vmatpush1.msra.mxu0 0.0
        %2845 = vmatprep.subr.mxu0 0.0
        %2846 = vmatpush1.msra.mxu0 0.0
        %2847 = vmatprep.subr.mxu0 0.0
        %2848 = vmatpush1.msra.mxu0 0.0
        %2849 = vmatprep.subr.mxu0 0.0
        %2850 = vmatpush1.msra.mxu0 0.0
        %2851 = vmatprep.subr.mxu0 0.0
        %2852 = vmatpush1.msra.mxu0 0.0
        %2853 = vmatprep.subr.mxu0 0.0
        %2854 = vmatpush1.msra.mxu0 0.0
        %2855 = vmatprep.subr.mxu0 0.0
        %2856 = vmatpush1.msra.mxu0 0.0
        %2857 = vmatprep.subr.mxu0 0.0
        %2858 = vmatpush1.msra.mxu0 0.0
        %2859 = vmatprep.subr.mxu0 0.0
        %2860 = vmatpush1.msra.mxu0 0.0
        %2861 = vmatprep.subr.mxu0 0.0
        %2862 = vmatpush1.msra.mxu0 0.0
        %2863 = vmatprep.subr.mxu0 0.0
        %2864 = vmatpush1.msra.mxu0 0.0
        %2865 = vmatprep.subr.mxu0 0.0
        %2866 = vmatpush1.msra.mxu0 0.0
        %2867 = vmatprep.subr.mxu0 0.0
        %2868 = vmatpush1.msra.mxu0 0.0
        %2869 = vmatprep.subr.mxu0 0.0
        %2870 = vmatpush1.msra.mxu0 0.0
        %2871 = vmatprep.subr.mxu0 0.0
        %2872 = vmatpush1.msra.mxu0 0.0
        %2873 = vmatprep.subr.mxu0 0.0
        %2874 = vmatpush1.msra.mxu0 0.0
        %2875 = vmatprep.subr.mxu0 0.0
        %2876 = vmatpush1.msra.mxu0 0.0
        %2877 = vmatprep.subr.mxu0 0.0
        %2878 = vmatpush1.msra.mxu0 0.0
        %2879 = vmatprep.subr.mxu0 0.0
        %2880 = vmatpush1.msra.mxu0 0.0
        %2881 = vmatprep.subr.mxu0 0.0
        %2882 = vmatpush1.msra.mxu0 0.0
        %2883 = vmatprep.subr.mxu0 0.0
        %2884 = vmatpush1.msra.mxu0 0.0
        %2885 = vmatprep.subr.mxu0 0.0
        %2886 = vmatpush1.msra.mxu0 0.0
        %2887 = vmatprep.mubr.f32.mxu0 0.0
        %v2888 = vand.u32 %v2559, 4294901760
        %v2889 = vsub.f32 %v2559, %v2888
        %v2890 = vand.u32 %v2889, 4294901760
        %2891 = vmatmul.mubr.f32.gmra.mrb[0].mxu0 %v2890
        %v2892 = vpop.f32.mrb[0].mxu0
        %v2893 = vadd.f32 %v2811, %v2892
        %v2894 = vpop.f32.mrb[0].mxu0
        %2895 = vmatprep.mubr.f32.mxu0 0.0
        %v2896 = vand.u32 %v2562, 4294901760
        %v2897 = vsub.f32 %v2562, %v2896
        %v2898 = vand.u32 %v2897, 4294901760
        %2899 = vmatmul.mubr.f32.gmra.mrb[0].mxu0 %v2898
        %v2900 = vpop.f32.mrb[0].mxu0
        %v2901 = vadd.f32 %v2818, %v2900
        %v2902 = vpop.f32.mrb[0].mxu0
        %2903 = vdwg.mxu0
        %2904 = vmatprep.subr.mxu0 0.0
        %v2905 = vand.u32 %v2553, 4294901760
        %v2906 = vsub.f32 %v2553, %v2905
        %v2907 = vand.u32 %v2906, 4294901760
        %2908 = vmatpush1.msra.mxu0 %v2907
        %2909 = vmatprep.subr.mxu0 0.0
        %v2910 = vand.u32 %v2555, 4294901760
        %v2911 = vsub.f32 %v2555, %v2910
        %v2912 = vand.u32 %v2911, 4294901760
        %2913 = vmatpush1.msra.mxu0 %v2912
        %2914 = vmatprep.subr.mxu0 0.0
        %2915 = vmatpush1.msra.mxu0 0.0
        %2916 = vmatprep.subr.mxu0 0.0
        %2917 = vmatpush1.msra.mxu0 0.0
        %2918 = vmatprep.subr.mxu0 0.0
        %2919 = vmatpush1.msra.mxu0 0.0
        %2920 = vmatprep.subr.mxu0 0.0
        %2921 = vmatpush1.msra.mxu0 0.0
        %2922 = vmatprep.subr.mxu0 0.0
        %2923 = vmatpush1.msra.mxu0 0.0
        %2924 = vmatprep.subr.mxu0 0.0
        %2925 = vmatpush1.msra.mxu0 0.0
        %2926 = vmatprep.subr.mxu0 0.0
        %2927 = vmatpush1.msra.mxu0 0.0
        %2928 = vmatprep.subr.mxu0 0.0
        %2929 = vmatpush1.msra.mxu0 0.0
        %2930 = vmatprep.subr.mxu0 0.0
        %2931 = vmatpush1.msra.mxu0 0.0
        %2932 = vmatprep.subr.mxu0 0.0
        %2933 = vmatpush1.msra.mxu0 0.0
        %2934 = vmatprep.subr.mxu0 0.0
        %2935 = vmatpush1.msra.mxu0 0.0
        %2936 = vmatprep.subr.mxu0 0.0
        %2937 = vmatpush1.msra.mxu0 0.0
        %2938 = vmatprep.subr.mxu0 0.0
        %2939 = vmatpush1.msra.mxu0 0.0
        %2940 = vmatprep.subr.mxu0 0.0
        %2941 = vmatpush1.msra.mxu0 0.0
        %2942 = vmatprep.subr.mxu0 0.0
        %2943 = vmatpush1.msra.mxu0 0.0
        %2944 = vmatprep.subr.mxu0 0.0
        %2945 = vmatpush1.msra.mxu0 0.0
        %2946 = vmatprep.subr.mxu0 0.0
        %2947 = vmatpush1.msra.mxu0 0.0
        %2948 = vmatprep.subr.mxu0 0.0
        %2949 = vmatpush1.msra.mxu0 0.0
        %2950 = vmatprep.subr.mxu0 0.0
        %2951 = vmatpush1.msra.mxu0 0.0
        %2952 = vmatprep.subr.mxu0 0.0
        %2953 = vmatpush1.msra.mxu0 0.0
        %2954 = vmatprep.subr.mxu0 0.0
        %2955 = vmatpush1.msra.mxu0 0.0
        %2956 = vmatprep.subr.mxu0 0.0
        %2957 = vmatpush1.msra.mxu0 0.0
        %2958 = vmatprep.subr.mxu0 0.0
        %2959 = vmatpush1.msra.mxu0 0.0
        %2960 = vmatprep.subr.mxu0 0.0
        %2961 = vmatpush1.msra.mxu0 0.0
        %2962 = vmatprep.subr.mxu0 0.0
        %2963 = vmatpush1.msra.mxu0 0.0
        %2964 = vmatprep.subr.mxu0 0.0
        %2965 = vmatpush1.msra.mxu0 0.0
        %2966 = vmatprep.subr.mxu0 0.0
        %2967 = vmatpush1.msra.mxu0 0.0
        %2968 = vmatprep.subr.mxu0 0.0
        %2969 = vmatpush1.msra.mxu0 0.0
        %2970 = vmatprep.subr.mxu0 0.0
        %2971 = vmatpush1.msra.mxu0 0.0
        %2972 = vmatprep.subr.mxu0 0.0
        %2973 = vmatpush1.msra.mxu0 0.0
        %2974 = vmatprep.mubr.f32.mxu0 0.0
        %v2975 = vand.u32 %v2559, 4294901760
        %2976 = vmatmul.mubr.f32.gmra.mrb[0].mxu0 %v2975
        %v2977 = vpop.f32.mrb[0].mxu0
        %v2978 = vadd.f32 %v2893, %v2977
        %v2979 = vpop.f32.mrb[0].mxu0
        %2980 = vmatprep.mubr.f32.mxu0 0.0
        %v2981 = vand.u32 %v2562, 4294901760
        %2982 = vmatmul.mubr.f32.gmra.mrb[0].mxu0 %v2981
        %v2983 = vpop.f32.mrb[0].mxu0
        %v2984 = vadd.f32 %v2901, %v2983
        %v2985 = vpop.f32.mrb[0].mxu0
        %2986 = vdwg.mxu0
        %2987 = vmatprep.subr.mxu0 0.0
        %v2988 = vand.u32 %v2553, 4294901760
        %2989 = vmatpush1.msra.mxu0 %v2988
        %2990 = vmatprep.subr.mxu0 0.0
        %v2991 = vand.u32 %v2555, 4294901760
        %2992 = vmatpush1.msra.mxu0 %v2991
        %2993 = vmatprep.subr.mxu0 0.0
        %2994 = vmatpush1.msra.mxu0 0.0
        %2995 = vmatprep.subr.mxu0 0.0
        %2996 = vmatpush1.msra.mxu0 0.0
        %2997 = vmatprep.subr.mxu0 0.0
        %2998 = vmatpush1.msra.mxu0 0.0
        %2999 = vmatprep.subr.mxu0 0.0
        %3000 = vmatpush1.msra.mxu0 0.0
        %3001 = vmatprep.subr.mxu0 0.0
        %3002 = vmatpush1.msra.mxu0 0.0
        %3003 = vmatprep.subr.mxu0 0.0
        %3004 = vmatpush1.msra.mxu0 0.0
        %3005 = vmatprep.subr.mxu0 0.0
        %3006 = vmatpush1.msra.mxu0 0.0
        %3007 = vmatprep.subr.mxu0 0.0
        %3008 = vmatpush1.msra.mxu0 0.0
        %3009 = vmatprep.subr.mxu0 0.0
        %3010 = vmatpush1.msra.mxu0 0.0
        %3011 = vmatprep.subr.mxu0 0.0
        %3012 = vmatpush1.msra.mxu0 0.0
        %3013 = vmatprep.subr.mxu0 0.0
        %3014 = vmatpush1.msra.mxu0 0.0
        %3015 = vmatprep.subr.mxu0 0.0
        %3016 = vmatpush1.msra.mxu0 0.0
        %3017 = vmatprep.subr.mxu0 0.0
        %3018 = vmatpush1.msra.mxu0 0.0
        %3019 = vmatprep.subr.mxu0 0.0
        %3020 = vmatpush1.msra.mxu0 0.0
        %3021 = vmatprep.subr.mxu0 0.0
        %3022 = vmatpush1.msra.mxu0 0.0
        %3023 = vmatprep.subr.mxu0 0.0
        %3024 = vmatpush1.msra.mxu0 0.0
        %3025 = vmatprep.subr.mxu0 0.0
        %3026 = vmatpush1.msra.mxu0 0.0
        %3027 = vmatprep.subr.mxu0 0.0
        %3028 = vmatpush1.msra.mxu0 0.0
        %3029 = vmatprep.subr.mxu0 0.0
        %3030 = vmatpush1.msra.mxu0 0.0
        %3031 = vmatprep.subr.mxu0 0.0
        %3032 = vmatpush1.msra.mxu0 0.0
        %3033 = vmatprep.subr.mxu0 0.0
        %3034 = vmatpush1.msra.mxu0 0.0
        %3035 = vmatprep.subr.mxu0 0.0
        %3036 = vmatpush1.msra.mxu0 0.0
        %3037 = vmatprep.subr.mxu0 0.0
        %3038 = vmatpush1.msra.mxu0 0.0
        %3039 = vmatprep.subr.mxu0 0.0
        %3040 = vmatpush1.msra.mxu0 0.0
        %3041 = vmatprep.subr.mxu0 0.0
        %3042 = vmatpush1.msra.mxu0 0.0
        %3043 = vmatprep.subr.mxu0 0.0
        %3044 = vmatpush1.msra.mxu0 0.0
        %3045 = vmatprep.subr.mxu0 0.0
        %3046 = vmatpush1.msra.mxu0 0.0
        %3047 = vmatprep.subr.mxu0 0.0
        %3048 = vmatpush1.msra.mxu0 0.0
        %3049 = vmatprep.subr.mxu0 0.0
        %3050 = vmatpush1.msra.mxu0 0.0
        %3051 = vmatprep.subr.mxu0 0.0
        %3052 = vmatpush1.msra.mxu0 0.0
        %3053 = vmatprep.mubr.f32.mxu0 0.0
        %v3054 = vand.u32 %v2559, 4294901760
        %3055 = vmatmul.mubr.f32.gmra.mrb[0].mxu0 %v3054
        %v3056 = vpop.f32.mrb[0].mxu0
        %v3057 = vadd.f32 %v2978, %v3056
        %v3058 = vpop.f32.mrb[0].mxu0
        %3059 = vmatprep.mubr.f32.mxu0 0.0
        %v3060 = vand.u32 %v2562, 4294901760
        %3061 = vmatmul.mubr.f32.gmra.mrb[0].mxu0 %v3060
        %v3062 = vpop.f32.mrb[0].mxu0
        %v3063 = vadd.f32 %v2984, %v3062
        %v3064 = vpop.f32.mrb[0].mxu0
        %3065 = vdwg.mxu0
        %v3066 = vrcp.pop %v2546
        %v3067 = vmul.f32 %v3057, %v3066
        %v3068 = vrcp.pop %v2549
        %v3069 = vmul.f32 %v3063, %v3068
        %3070 = vrot.lane.b32.xlu0 %v955, 112
        %v3071 = vpop.permute.xlu0 %3070
        %3072 = vrot.lane.b32.xlu0 %v962, 112
        %v3073 = vpop.permute.xlu0 %3072
        %3074 = vrot.lane.b32.xlu0 %v955, 48
        %v3075 = vpop.permute.xlu0 %3074
        %3076 = vrot.lane.b32.xlu0 %v962, 48
        %v3077 = vpop.permute.xlu0 %3076
        %v3078 = vsel %vm972, %v3071, 0
        %v3080 = vsel %vm972, %v3073, 0
        %v3082 = vsel %vm972, %v3075, 0
        %v3084 = vsel %vm972, %v3077, 0
        %3086 = vmatprep.subr.mxu0 0.0
        %v3087 = vand.u32 %v3082, 4294901760
        %3088 = vmatpush1.xpose.msra.mxu0 %v3087
        %3089 = vmatprep.subr.mxu0 0.0
        %v3090 = vand.u32 %v3084, 4294901760
        %3091 = vmatpush1.xpose.msra.mxu0 %v3090
        %3092 = vmatprep.subr.mxu0 0.0
        %3093 = vmatpush1.xpose.msra.mxu0 0.0
        %3094 = vmatprep.subr.mxu0 0.0
        %3095 = vmatpush1.xpose.msra.mxu0 0.0
        %3096 = vmatprep.subr.mxu0 0.0
        %3097 = vmatpush1.xpose.msra.mxu0 0.0
        %3098 = vmatprep.subr.mxu0 0.0
        %3099 = vmatpush1.xpose.msra.mxu0 0.0
        %3100 = vmatprep.subr.mxu0 0.0
        %3101 = vmatpush1.xpose.msra.mxu0 0.0
        %3102 = vmatprep.subr.mxu0 0.0
        %3103 = vmatpush1.xpose.msra.mxu0 0.0
        %3104 = vmatprep.subr.mxu0 0.0
        %3105 = vmatpush1.xpose.msra.mxu0 0.0
        %3106 = vmatprep.subr.mxu0 0.0
        %3107 = vmatpush1.xpose.msra.mxu0 0.0
        %3108 = vmatprep.subr.mxu0 0.0
        %3109 = vmatpush1.xpose.msra.mxu0 0.0
        %3110 = vmatprep.subr.mxu0 0.0
        %3111 = vmatpush1.xpose.msra.mxu0 0.0
        %3112 = vmatprep.subr.mxu0 0.0
        %3113 = vmatpush1.xpose.msra.mxu0 0.0
        %3114 = vmatprep.subr.mxu0 0.0
        %3115 = vmatpush1.xpose.msra.mxu0 0.0
        %3116 = vmatprep.subr.mxu0 0.0
        %3117 = vmatpush1.xpose.msra.mxu0 0.0
        %3118 = vmatprep.subr.mxu0 0.0
        %3119 = vmatpush1.xpose.msra.mxu0 0.0
        %3120 = vmatprep.subr.mxu0 0.0
        %3121 = vmatpush1.xpose.msra.mxu0 0.0
        %3122 = vmatprep.subr.mxu0 0.0
        %3123 = vmatpush1.xpose.msra.mxu0 0.0
        %3124 = vmatprep.subr.mxu0 0.0
        %3125 = vmatpush1.xpose.msra.mxu0 0.0
        %3126 = vmatprep.subr.mxu0 0.0
        %3127 = vmatpush1.xpose.msra.mxu0 0.0
        %3128 = vmatprep.subr.mxu0 0.0
        %3129 = vmatpush1.xpose.msra.mxu0 0.0
        %3130 = vmatprep.subr.mxu0 0.0
        %3131 = vmatpush1.xpose.msra.mxu0 0.0
        %3132 = vmatprep.subr.mxu0 0.0
        %3133 = vmatpush1.xpose.msra.mxu0 0.0
        %3134 = vmatprep.subr.mxu0 0.0
        %3135 = vmatpush1.xpose.msra.mxu0 0.0
        %3136 = vmatprep.subr.mxu0 0.0
        %3137 = vmatpush1.xpose.msra.mxu0 0.0
        %3138 = vmatprep.subr.mxu0 0.0
        %3139 = vmatpush1.xpose.msra.mxu0 0.0
        %3140 = vmatprep.subr.mxu0 0.0
        %3141 = vmatpush1.xpose.msra.mxu0 0.0
        %3142 = vmatprep.subr.mxu0 0.0
        %3143 = vmatpush1.xpose.msra.mxu0 0.0
        %3144 = vmatprep.subr.mxu0 0.0
        %3145 = vmatpush1.xpose.msra.mxu0 0.0
        %3146 = vmatprep.subr.mxu0 0.0
        %3147 = vmatpush1.xpose.msra.mxu0 0.0
        %3148 = vmatprep.subr.mxu0 0.0
        %3149 = vmatpush1.xpose.msra.mxu0 0.0
        %3150 = vmatprep.subr.mxu0 0.0
        %3151 = vmatpush1.xpose.msra.mxu0 0.0
        %3152 = vmatprep.mubr.f32.mxu0 0.0
        %v3153 = vand.u32 %v3078, 4294901760
        %v3154 = vsub.f32 %v3078, %v3153
        %v3155 = vand.u32 %v3154, 4294901760
        %v3156 = vsub.f32 %v3154, %v3155
        %v3157 = vand.u32 %v3156, 4294901760
        %3158 = vmatmul.mubr.f32.gmra.mrb[0].mxu0 %v3157
        %v3159 = vpop.f32.mrb[0].mxu0
        %v3160 = vadd.f32 0.0, %v3159
        %v3161 = vpop.f32.mrb[0].mxu0
        %3162 = vmatprep.mubr.f32.mxu0 0.0
        %v3163 = vand.u32 %v3080, 4294901760
        %v3164 = vsub.f32 %v3080, %v3163
        %v3165 = vand.u32 %v3164, 4294901760
        %v3166 = vsub.f32 %v3164, %v3165
        %v3167 = vand.u32 %v3166, 4294901760
        %3168 = vmatmul.mubr.f32.gmra.mrb[0].mxu0 %v3167
        %v3169 = vpop.f32.mrb[0].mxu0
        %v3170 = vadd.f32 0.0, %v3169
        %v3171 = vpop.f32.mrb[0].mxu0
        %3172 = vdwg.mxu0
        %3173 = vmatprep.subr.mxu0 0.0
        %v3174 = vand.u32 %v3082, 4294901760
        %v3175 = vsub.f32 %v3082, %v3174
        %v3176 = vand.u32 %v3175, 4294901760
        %v3177 = vsub.f32 %v3175, %v3176
        %v3178 = vand.u32 %v3177, 4294901760
        %3179 = vmatpush1.xpose.msra.mxu0 %v3178
        %3180 = vmatprep.subr.mxu0 0.0
        %v3181 = vand.u32 %v3084, 4294901760
        %v3182 = vsub.f32 %v3084, %v3181
        %v3183 = vand.u32 %v3182, 4294901760
        %v3184 = vsub.f32 %v3182, %v3183
        %v3185 = vand.u32 %v3184, 4294901760
        %3186 = vmatpush1.xpose.msra.mxu0 %v3185
        %3187 = vmatprep.subr.mxu0 0.0
        %3188 = vmatpush1.xpose.msra.mxu0 0.0
        %3189 = vmatprep.subr.mxu0 0.0
        %3190 = vmatpush1.xpose.msra.mxu0 0.0
        %3191 = vmatprep.subr.mxu0 0.0
        %3192 = vmatpush1.xpose.msra.mxu0 0.0
        %3193 = vmatprep.subr.mxu0 0.0
        %3194 = vmatpush1.xpose.msra.mxu0 0.0
        %3195 = vmatprep.subr.mxu0 0.0
        %3196 = vmatpush1.xpose.msra.mxu0 0.0
        %3197 = vmatprep.subr.mxu0 0.0
        %3198 = vmatpush1.xpose.msra.mxu0 0.0
        %3199 = vmatprep.subr.mxu0 0.0
        %3200 = vmatpush1.xpose.msra.mxu0 0.0
        %3201 = vmatprep.subr.mxu0 0.0
        %3202 = vmatpush1.xpose.msra.mxu0 0.0
        %3203 = vmatprep.subr.mxu0 0.0
        %3204 = vmatpush1.xpose.msra.mxu0 0.0
        %3205 = vmatprep.subr.mxu0 0.0
        %3206 = vmatpush1.xpose.msra.mxu0 0.0
        %3207 = vmatprep.subr.mxu0 0.0
        %3208 = vmatpush1.xpose.msra.mxu0 0.0
        %3209 = vmatprep.subr.mxu0 0.0
        %3210 = vmatpush1.xpose.msra.mxu0 0.0
        %3211 = vmatprep.subr.mxu0 0.0
        %3212 = vmatpush1.xpose.msra.mxu0 0.0
        %3213 = vmatprep.subr.mxu0 0.0
        %3214 = vmatpush1.xpose.msra.mxu0 0.0
        %3215 = vmatprep.subr.mxu0 0.0
        %3216 = vmatpush1.xpose.msra.mxu0 0.0
        %3217 = vmatprep.subr.mxu0 0.0
        %3218 = vmatpush1.xpose.msra.mxu0 0.0
        %3219 = vmatprep.subr.mxu0 0.0
        %3220 = vmatpush1.xpose.msra.mxu0 0.0
        %3221 = vmatprep.subr.mxu0 0.0
        %3222 = vmatpush1.xpose.msra.mxu0 0.0
        %3223 = vmatprep.subr.mxu0 0.0
        %3224 = vmatpush1.xpose.msra.mxu0 0.0
        %3225 = vmatprep.subr.mxu0 0.0
        %3226 = vmatpush1.xpose.msra.mxu0 0.0
        %3227 = vmatprep.subr.mxu0 0.0
        %3228 = vmatpush1.xpose.msra.mxu0 0.0
        %3229 = vmatprep.subr.mxu0 0.0
        %3230 = vmatpush1.xpose.msra.mxu0 0.0
        %3231 = vmatprep.subr.mxu0 0.0
        %3232 = vmatpush1.xpose.msra.mxu0 0.0
        %3233 = vmatprep.subr.mxu0 0.0
        %3234 = vmatpush1.xpose.msra.mxu0 0.0
        %3235 = vmatprep.subr.mxu0 0.0
        %3236 = vmatpush1.xpose.msra.mxu0 0.0
        %3237 = vmatprep.subr.mxu0 0.0
        %3238 = vmatpush1.xpose.msra.mxu0 0.0
        %3239 = vmatprep.subr.mxu0 0.0
        %3240 = vmatpush1.xpose.msra.mxu0 0.0
        %3241 = vmatprep.subr.mxu0 0.0
        %3242 = vmatpush1.xpose.msra.mxu0 0.0
        %3243 = vmatprep.subr.mxu0 0.0
        %3244 = vmatpush1.xpose.msra.mxu0 0.0
        %3245 = vmatprep.subr.mxu0 0.0
        %3246 = vmatpush1.xpose.msra.mxu0 0.0
        %3247 = vmatprep.mubr.f32.mxu0 0.0
        %v3248 = vand.u32 %v3078, 4294901760
        %3249 = vmatmul.mubr.f32.gmra.mrb[0].mxu0 %v3248
        %v3250 = vpop.f32.mrb[0].mxu0
        %v3251 = vadd.f32 %v3160, %v3250
        %v3252 = vpop.f32.mrb[0].mxu0
        %3253 = vmatprep.mubr.f32.mxu0 0.0
        %v3254 = vand.u32 %v3080, 4294901760
        %3255 = vmatmul.mubr.f32.gmra.mrb[0].mxu0 %v3254
        %v3256 = vpop.f32.mrb[0].mxu0
        %v3257 = vadd.f32 %v3170, %v3256
        %v3258 = vpop.f32.mrb[0].mxu0
        %3259 = vdwg.mxu0
        %3260 = vmatprep.subr.mxu0 0.0
        %v3261 = vand.u32 %v3082, 4294901760
        %v3262 = vsub.f32 %v3082, %v3261
        %3263 = vmatpush1.xpose.msra.mxu0 %v3262
        %3264 = vmatprep.subr.mxu0 0.0
        %v3265 = vand.u32 %v3084, 4294901760
        %v3266 = vsub.f32 %v3084, %v3265
        %3267 = vmatpush1.xpose.msra.mxu0 %v3266
        %3268 = vmatprep.subr.mxu0 0.0
        %3269 = vmatpush1.xpose.msra.mxu0 0.0
        %3270 = vmatprep.subr.mxu0 0.0
        %3271 = vmatpush1.xpose.msra.mxu0 0.0
        %3272 = vmatprep.subr.mxu0 0.0
        %3273 = vmatpush1.xpose.msra.mxu0 0.0
        %3274 = vmatprep.subr.mxu0 0.0
        %3275 = vmatpush1.xpose.msra.mxu0 0.0
        %3276 = vmatprep.subr.mxu0 0.0
        %3277 = vmatpush1.xpose.msra.mxu0 0.0
        %3278 = vmatprep.subr.mxu0 0.0
        %3279 = vmatpush1.xpose.msra.mxu0 0.0
        %3280 = vmatprep.subr.mxu0 0.0
        %3281 = vmatpush1.xpose.msra.mxu0 0.0
        %3282 = vmatprep.subr.mxu0 0.0
        %3283 = vmatpush1.xpose.msra.mxu0 0.0
        %3284 = vmatprep.subr.mxu0 0.0
        %3285 = vmatpush1.xpose.msra.mxu0 0.0
        %3286 = vmatprep.subr.mxu0 0.0
        %3287 = vmatpush1.xpose.msra.mxu0 0.0
        %3288 = vmatprep.subr.mxu0 0.0
        %3289 = vmatpush1.xpose.msra.mxu0 0.0
        %3290 = vmatprep.subr.mxu0 0.0
        %3291 = vmatpush1.xpose.msra.mxu0 0.0
        %3292 = vmatprep.subr.mxu0 0.0
        %3293 = vmatpush1.xpose.msra.mxu0 0.0
        %3294 = vmatprep.subr.mxu0 0.0
        %3295 = vmatpush1.xpose.msra.mxu0 0.0
        %3296 = vmatprep.subr.mxu0 0.0
        %3297 = vmatpush1.xpose.msra.mxu0 0.0
        %3298 = vmatprep.subr.mxu0 0.0
        %3299 = vmatpush1.xpose.msra.mxu0 0.0
        %3300 = vmatprep.subr.mxu0 0.0
        %3301 = vmatpush1.xpose.msra.mxu0 0.0
        %3302 = vmatprep.subr.mxu0 0.0
        %3303 = vmatpush1.xpose.msra.mxu0 0.0
        %3304 = vmatprep.subr.mxu0 0.0
        %3305 = vmatpush1.xpose.msra.mxu0 0.0
        %3306 = vmatprep.subr.mxu0 0.0
        %3307 = vmatpush1.xpose.msra.mxu0 0.0
        %3308 = vmatprep.subr.mxu0 0.0
        %3309 = vmatpush1.xpose.msra.mxu0 0.0
        %3310 = vmatprep.subr.mxu0 0.0
        %3311 = vmatpush1.xpose.msra.mxu0 0.0
        %3312 = vmatprep.subr.mxu0 0.0
        %3313 = vmatpush1.xpose.msra.mxu0 0.0
        %3314 = vmatprep.subr.mxu0 0.0
        %3315 = vmatpush1.xpose.msra.mxu0 0.0
        %3316 = vmatprep.subr.mxu0 0.0
        %3317 = vmatpush1.xpose.msra.mxu0 0.0
        %3318 = vmatprep.subr.mxu0 0.0
        %3319 = vmatpush1.xpose.msra.mxu0 0.0
        %3320 = vmatprep.subr.mxu0 0.0
        %3321 = vmatpush1.xpose.msra.mxu0 0.0
        %3322 = vmatprep.subr.mxu0 0.0
        %3323 = vmatpush1.xpose.msra.mxu0 0.0
        %3324 = vmatprep.subr.mxu0 0.0
        %3325 = vmatpush1.xpose.msra.mxu0 0.0
        %3326 = vmatprep.subr.mxu0 0.0
        %3327 = vmatpush1.xpose.msra.mxu0 0.0
        %3328 = vmatprep.mubr.f32.mxu0 0.0
        %v3329 = vand.u32 %v3078, 4294901760
        %v3330 = vsub.f32 %v3078, %v3329
        %3331 = vmatmul.mubr.f32.gmra.mrb[0].mxu0 %v3330
        %v3332 = vpop.f32.mrb[0].mxu0
        %v3333 = vadd.f32 %v3251, %v3332
        %v3334 = vpop.f32.mrb[0].mxu0
        %3335 = vmatprep.mubr.f32.mxu0 0.0
        %v3336 = vand.u32 %v3080, 4294901760
        %v3337 = vsub.f32 %v3080, %v3336
        %3338 = vmatmul.mubr.f32.gmra.mrb[0].mxu0 %v3337
        %v3339 = vpop.f32.mrb[0].mxu0
        %v3340 = vadd.f32 %v3257, %v3339
        %v3341 = vpop.f32.mrb[0].mxu0
        %3342 = vdwg.mxu0
        %3343 = vmatprep.subr.mxu0 0.0
        %v3344 = vand.u32 %v3082, 4294901760
        %3345 = vmatpush1.xpose.msra.mxu0 %v3344
        %3346 = vmatprep.subr.mxu0 0.0
        %v3347 = vand.u32 %v3084, 4294901760
        %3348 = vmatpush1.xpose.msra.mxu0 %v3347
        %3349 = vmatprep.subr.mxu0 0.0
        %3350 = vmatpush1.xpose.msra.mxu0 0.0
        %3351 = vmatprep.subr.mxu0 0.0
        %3352 = vmatpush1.xpose.msra.mxu0 0.0
        %3353 = vmatprep.subr.mxu0 0.0
        %3354 = vmatpush1.xpose.msra.mxu0 0.0
        %3355 = vmatprep.subr.mxu0 0.0
        %3356 = vmatpush1.xpose.msra.mxu0 0.0
        %3357 = vmatprep.subr.mxu0 0.0
        %3358 = vmatpush1.xpose.msra.mxu0 0.0
        %3359 = vmatprep.subr.mxu0 0.0
        %3360 = vmatpush1.xpose.msra.mxu0 0.0
        %3361 = vmatprep.subr.mxu0 0.0
        %3362 = vmatpush1.xpose.msra.mxu0 0.0
        %3363 = vmatprep.subr.mxu0 0.0
        %3364 = vmatpush1.xpose.msra.mxu0 0.0
        %3365 = vmatprep.subr.mxu0 0.0
        %3366 = vmatpush1.xpose.msra.mxu0 0.0
        %3367 = vmatprep.subr.mxu0 0.0
        %3368 = vmatpush1.xpose.msra.mxu0 0.0
        %3369 = vmatprep.subr.mxu0 0.0
        %3370 = vmatpush1.xpose.msra.mxu0 0.0
        %3371 = vmatprep.subr.mxu0 0.0
        %3372 = vmatpush1.xpose.msra.mxu0 0.0
        %3373 = vmatprep.subr.mxu0 0.0
        %3374 = vmatpush1.xpose.msra.mxu0 0.0
        %3375 = vmatprep.subr.mxu0 0.0
        %3376 = vmatpush1.xpose.msra.mxu0 0.0
        %3377 = vmatprep.subr.mxu0 0.0
        %3378 = vmatpush1.xpose.msra.mxu0 0.0
        %3379 = vmatprep.subr.mxu0 0.0
        %3380 = vmatpush1.xpose.msra.mxu0 0.0
        %3381 = vmatprep.subr.mxu0 0.0
        %3382 = vmatpush1.xpose.msra.mxu0 0.0
        %3383 = vmatprep.subr.mxu0 0.0
        %3384 = vmatpush1.xpose.msra.mxu0 0.0
        %3385 = vmatprep.subr.mxu0 0.0
        %3386 = vmatpush1.xpose.msra.mxu0 0.0
        %3387 = vmatprep.subr.mxu0 0.0
        %3388 = vmatpush1.xpose.msra.mxu0 0.0
        %3389 = vmatprep.subr.mxu0 0.0
        %3390 = vmatpush1.xpose.msra.mxu0 0.0
        %3391 = vmatprep.subr.mxu0 0.0
        %3392 = vmatpush1.xpose.msra.mxu0 0.0
        %3393 = vmatprep.subr.mxu0 0.0
        %3394 = vmatpush1.xpose.msra.mxu0 0.0
        %3395 = vmatprep.subr.mxu0 0.0
        %3396 = vmatpush1.xpose.msra.mxu0 0.0
        %3397 = vmatprep.subr.mxu0 0.0
        %3398 = vmatpush1.xpose.msra.mxu0 0.0
        %3399 = vmatprep.subr.mxu0 0.0
        %3400 = vmatpush1.xpose.msra.mxu0 0.0
        %3401 = vmatprep.subr.mxu0 0.0
        %3402 = vmatpush1.xpose.msra.mxu0 0.0
        %3403 = vmatprep.subr.mxu0 0.0
        %3404 = vmatpush1.xpose.msra.mxu0 0.0
        %3405 = vmatprep.subr.mxu0 0.0
        %3406 = vmatpush1.xpose.msra.mxu0 0.0
        %3407 = vmatprep.subr.mxu0 0.0
        %3408 = vmatpush1.xpose.msra.mxu0 0.0
        %3409 = vmatprep.mubr.f32.mxu0 0.0
        %v3410 = vand.u32 %v3078, 4294901760
        %v3411 = vsub.f32 %v3078, %v3410
        %v3412 = vand.u32 %v3411, 4294901760
        %3413 = vmatmul.mubr.f32.gmra.mrb[0].mxu0 %v3412
        %v3414 = vpop.f32.mrb[0].mxu0
        %v3415 = vadd.f32 %v3333, %v3414
        %v3416 = vpop.f32.mrb[0].mxu0
        %3417 = vmatprep.mubr.f32.mxu0 0.0
        %v3418 = vand.u32 %v3080, 4294901760
        %v3419 = vsub.f32 %v3080, %v3418
        %v3420 = vand.u32 %v3419, 4294901760
        %3421 = vmatmul.mubr.f32.gmra.mrb[0].mxu0 %v3420
        %v3422 = vpop.f32.mrb[0].mxu0
        %v3423 = vadd.f32 %v3340, %v3422
        %v3424 = vpop.f32.mrb[0].mxu0
        %3425 = vdwg.mxu0
        %3426 = vmatprep.subr.mxu0 0.0
        %v3427 = vand.u32 %v3082, 4294901760
        %v3428 = vsub.f32 %v3082, %v3427
        %v3429 = vand.u32 %v3428, 4294901760
        %3430 = vmatpush1.xpose.msra.mxu0 %v3429
        %3431 = vmatprep.subr.mxu0 0.0
        %v3432 = vand.u32 %v3084, 4294901760
        %v3433 = vsub.f32 %v3084, %v3432
        %v3434 = vand.u32 %v3433, 4294901760
        %3435 = vmatpush1.xpose.msra.mxu0 %v3434
        %3436 = vmatprep.subr.mxu0 0.0
        %3437 = vmatpush1.xpose.msra.mxu0 0.0
        %3438 = vmatprep.subr.mxu0 0.0
        %3439 = vmatpush1.xpose.msra.mxu0 0.0
        %3440 = vmatprep.subr.mxu0 0.0
        %3441 = vmatpush1.xpose.msra.mxu0 0.0
        %3442 = vmatprep.subr.mxu0 0.0
        %3443 = vmatpush1.xpose.msra.mxu0 0.0
        %3444 = vmatprep.subr.mxu0 0.0
        %3445 = vmatpush1.xpose.msra.mxu0 0.0
        %3446 = vmatprep.subr.mxu0 0.0
        %3447 = vmatpush1.xpose.msra.mxu0 0.0
        %3448 = vmatprep.subr.mxu0 0.0
        %3449 = vmatpush1.xpose.msra.mxu0 0.0
        %3450 = vmatprep.subr.mxu0 0.0
        %3451 = vmatpush1.xpose.msra.mxu0 0.0
        %3452 = vmatprep.subr.mxu0 0.0
        %3453 = vmatpush1.xpose.msra.mxu0 0.0
        %3454 = vmatprep.subr.mxu0 0.0
        %3455 = vmatpush1.xpose.msra.mxu0 0.0
        %3456 = vmatprep.subr.mxu0 0.0
        %3457 = vmatpush1.xpose.msra.mxu0 0.0
        %3458 = vmatprep.subr.mxu0 0.0
        %3459 = vmatpush1.xpose.msra.mxu0 0.0
        %3460 = vmatprep.subr.mxu0 0.0
        %3461 = vmatpush1.xpose.msra.mxu0 0.0
        %3462 = vmatprep.subr.mxu0 0.0
        %3463 = vmatpush1.xpose.msra.mxu0 0.0
        %3464 = vmatprep.subr.mxu0 0.0
        %3465 = vmatpush1.xpose.msra.mxu0 0.0
        %3466 = vmatprep.subr.mxu0 0.0
        %3467 = vmatpush1.xpose.msra.mxu0 0.0
        %3468 = vmatprep.subr.mxu0 0.0
        %3469 = vmatpush1.xpose.msra.mxu0 0.0
        %3470 = vmatprep.subr.mxu0 0.0
        %3471 = vmatpush1.xpose.msra.mxu0 0.0
        %3472 = vmatprep.subr.mxu0 0.0
        %3473 = vmatpush1.xpose.msra.mxu0 0.0
        %3474 = vmatprep.subr.mxu0 0.0
        %3475 = vmatpush1.xpose.msra.mxu0 0.0
        %3476 = vmatprep.subr.mxu0 0.0
        %3477 = vmatpush1.xpose.msra.mxu0 0.0
        %3478 = vmatprep.subr.mxu0 0.0
        %3479 = vmatpush1.xpose.msra.mxu0 0.0
        %3480 = vmatprep.subr.mxu0 0.0
        %3481 = vmatpush1.xpose.msra.mxu0 0.0
        %3482 = vmatprep.subr.mxu0 0.0
        %3483 = vmatpush1.xpose.msra.mxu0 0.0
        %3484 = vmatprep.subr.mxu0 0.0
        %3485 = vmatpush1.xpose.msra.mxu0 0.0
        %3486 = vmatprep.subr.mxu0 0.0
        %3487 = vmatpush1.xpose.msra.mxu0 0.0
        %3488 = vmatprep.subr.mxu0 0.0
        %3489 = vmatpush1.xpose.msra.mxu0 0.0
        %3490 = vmatprep.subr.mxu0 0.0
        %3491 = vmatpush1.xpose.msra.mxu0 0.0
        %3492 = vmatprep.subr.mxu0 0.0
        %3493 = vmatpush1.xpose.msra.mxu0 0.0
        %3494 = vmatprep.subr.mxu0 0.0
        %3495 = vmatpush1.xpose.msra.mxu0 0.0
        %3496 = vmatprep.mubr.f32.mxu0 0.0
        %v3497 = vand.u32 %v3078, 4294901760
        %3498 = vmatmul.mubr.f32.gmra.mrb[0].mxu0 %v3497
        %v3499 = vpop.f32.mrb[0].mxu0
        %v3500 = vadd.f32 %v3415, %v3499
        %v3501 = vpop.f32.mrb[0].mxu0
        %3502 = vmatprep.mubr.f32.mxu0 0.0
        %v3503 = vand.u32 %v3080, 4294901760
        %3504 = vmatmul.mubr.f32.gmra.mrb[0].mxu0 %v3503
        %v3505 = vpop.f32.mrb[0].mxu0
        %v3506 = vadd.f32 %v3423, %v3505
        %v3507 = vpop.f32.mrb[0].mxu0
        %3508 = vdwg.mxu0
        %3509 = vmatprep.subr.mxu0 0.0
        %v3510 = vand.u32 %v3082, 4294901760
        %3511 = vmatpush1.xpose.msra.mxu0 %v3510
        %3512 = vmatprep.subr.mxu0 0.0
        %v3513 = vand.u32 %v3084, 4294901760
        %3514 = vmatpush1.xpose.msra.mxu0 %v3513
        %3515 = vmatprep.subr.mxu0 0.0
        %3516 = vmatpush1.xpose.msra.mxu0 0.0
        %3517 = vmatprep.subr.mxu0 0.0
        %3518 = vmatpush1.xpose.msra.mxu0 0.0
        %3519 = vmatprep.subr.mxu0 0.0
        %3520 = vmatpush1.xpose.msra.mxu0 0.0
        %3521 = vmatprep.subr.mxu0 0.0
        %3522 = vmatpush1.xpose.msra.mxu0 0.0
        %3523 = vmatprep.subr.mxu0 0.0
        %3524 = vmatpush1.xpose.msra.mxu0 0.0
        %3525 = vmatprep.subr.mxu0 0.0
        %3526 = vmatpush1.xpose.msra.mxu0 0.0
        %3527 = vmatprep.subr.mxu0 0.0
        %3528 = vmatpush1.xpose.msra.mxu0 0.0
        %3529 = vmatprep.subr.mxu0 0.0
        %3530 = vmatpush1.xpose.msra.mxu0 0.0
        %3531 = vmatprep.subr.mxu0 0.0
        %3532 = vmatpush1.xpose.msra.mxu0 0.0
        %3533 = vmatprep.subr.mxu0 0.0
        %3534 = vmatpush1.xpose.msra.mxu0 0.0
        %3535 = vmatprep.subr.mxu0 0.0
        %3536 = vmatpush1.xpose.msra.mxu0 0.0
        %3537 = vmatprep.subr.mxu0 0.0
        %3538 = vmatpush1.xpose.msra.mxu0 0.0
        %3539 = vmatprep.subr.mxu0 0.0
        %3540 = vmatpush1.xpose.msra.mxu0 0.0
        %3541 = vmatprep.subr.mxu0 0.0
        %3542 = vmatpush1.xpose.msra.mxu0 0.0
        %3543 = vmatprep.subr.mxu0 0.0
        %3544 = vmatpush1.xpose.msra.mxu0 0.0
        %3545 = vmatprep.subr.mxu0 0.0
        %3546 = vmatpush1.xpose.msra.mxu0 0.0
        %3547 = vmatprep.subr.mxu0 0.0
        %3548 = vmatpush1.xpose.msra.mxu0 0.0
        %3549 = vmatprep.subr.mxu0 0.0
        %3550 = vmatpush1.xpose.msra.mxu0 0.0
        %3551 = vmatprep.subr.mxu0 0.0
        %3552 = vmatpush1.xpose.msra.mxu0 0.0
        %3553 = vmatprep.subr.mxu0 0.0
        %3554 = vmatpush1.xpose.msra.mxu0 0.0
        %3555 = vmatprep.subr.mxu0 0.0
        %3556 = vmatpush1.xpose.msra.mxu0 0.0
        %3557 = vmatprep.subr.mxu0 0.0
        %3558 = vmatpush1.xpose.msra.mxu0 0.0
        %3559 = vmatprep.subr.mxu0 0.0
        %3560 = vmatpush1.xpose.msra.mxu0 0.0
        %3561 = vmatprep.subr.mxu0 0.0
        %3562 = vmatpush1.xpose.msra.mxu0 0.0
        %3563 = vmatprep.subr.mxu0 0.0
        %3564 = vmatpush1.xpose.msra.mxu0 0.0
        %3565 = vmatprep.subr.mxu0 0.0
        %3566 = vmatpush1.xpose.msra.mxu0 0.0
        %3567 = vmatprep.subr.mxu0 0.0
        %3568 = vmatpush1.xpose.msra.mxu0 0.0
        %3569 = vmatprep.subr.mxu0 0.0
        %3570 = vmatpush1.xpose.msra.mxu0 0.0
        %3571 = vmatprep.subr.mxu0 0.0
        %3572 = vmatpush1.xpose.msra.mxu0 0.0
        %3573 = vmatprep.subr.mxu0 0.0
        %3574 = vmatpush1.xpose.msra.mxu0 0.0
        %3575 = vmatprep.mubr.f32.mxu0 0.0
        %v3576 = vand.u32 %v3078, 4294901760
        %3577 = vmatmul.mubr.f32.gmra.mrb[0].mxu0 %v3576
        %v3578 = vpop.f32.mrb[0].mxu0
        %v3579 = vadd.f32 %v3500, %v3578
        %v3580 = vpop.f32.mrb[0].mxu0
        %3581 = vmatprep.mubr.f32.mxu0 0.0
        %v3582 = vand.u32 %v3080, 4294901760
        %3583 = vmatmul.mubr.f32.gmra.mrb[0].mxu0 %v3582
        %v3584 = vpop.f32.mrb[0].mxu0
        %v3585 = vadd.f32 %v3506, %v3584
        %v3586 = vpop.f32.mrb[0].mxu0
        %3587 = vdwg.mxu0
        %v3588 = vsel %vm1483, %v3579, -inf
        %3589 = vmax.xlane.f32.xlu0 %v3588
        %v3590 = vpop.xlane.xlu0 %3589
        %v3591 = vsel %vm1483, %v3585, -inf
        %3592 = vmax.xlane.f32.xlu0 %v3591
        %v3593 = vpop.xlane.xlu0 %3592
        %v3594 = vsub.f32 %v3579, %v3590
        %v3595 = vsub.f32 %v3585, %v3593
        %v3596 = vmul.f32 %v3594, 1.442695
        %v3597 = vpow.pop %v3596
        %v3598 = vmul.f32 %v3595, 1.442695
        %v3599 = vpow.pop %v3598
        %v3600 = vsel %vm1483, %v3597, 0.0
        %3601 = vadd.xlane.f32.xlu0 %v3600
        %v3602 = vpop.xlane.xlu0 %3601
        %v3603 = vsel %vm1483, %v3599, 0.0
        %3604 = vadd.xlane.f32.xlu0 %v3603
        %v3605 = vpop.xlane.xlu0 %3604
        %3606 = vrot.lane.b32.xlu0 %v957, 112
        %v3607 = vpop.permute.xlu0 %3606
        %3608 = vrot.lane.b32.xlu0 %v964, 112
        %v3609 = vpop.permute.xlu0 %3608
        %v3613 = vsel %vm1483, %v3597, 0
        %v3616 = vsel %vm1483, %v3599, 0
        %3618 = vmatprep.subr.mxu0 0.0
        %v3619 = vand.u32 %v3607, 4294901760
        %3620 = vmatpush1.msra.mxu0 %v3619
        %3621 = vmatprep.subr.mxu0 0.0
        %v3622 = vand.u32 %v3609, 4294901760
        %3623 = vmatpush1.msra.mxu0 %v3622
        %3624 = vmatprep.subr.mxu0 0.0
        %3625 = vmatpush1.msra.mxu0 0.0
        %3626 = vmatprep.subr.mxu0 0.0
        %3627 = vmatpush1.msra.mxu0 0.0
        %3628 = vmatprep.subr.mxu0 0.0
        %3629 = vmatpush1.msra.mxu0 0.0
        %3630 = vmatprep.subr.mxu0 0.0
        %3631 = vmatpush1.msra.mxu0 0.0
        %3632 = vmatprep.subr.mxu0 0.0
        %3633 = vmatpush1.msra.mxu0 0.0
        %3634 = vmatprep.subr.mxu0 0.0
        %3635 = vmatpush1.msra.mxu0 0.0
        %3636 = vmatprep.subr.mxu0 0.0
        %3637 = vmatpush1.msra.mxu0 0.0
        %3638 = vmatprep.subr.mxu0 0.0
        %3639 = vmatpush1.msra.mxu0 0.0
        %3640 = vmatprep.subr.mxu0 0.0
        %3641 = vmatpush1.msra.mxu0 0.0
        %3642 = vmatprep.subr.mxu0 0.0
        %3643 = vmatpush1.msra.mxu0 0.0
        %3644 = vmatprep.subr.mxu0 0.0
        %3645 = vmatpush1.msra.mxu0 0.0
        %3646 = vmatprep.subr.mxu0 0.0
        %3647 = vmatpush1.msra.mxu0 0.0
        %3648 = vmatprep.subr.mxu0 0.0
        %3649 = vmatpush1.msra.mxu0 0.0
        %3650 = vmatprep.subr.mxu0 0.0
        %3651 = vmatpush1.msra.mxu0 0.0
        %3652 = vmatprep.subr.mxu0 0.0
        %3653 = vmatpush1.msra.mxu0 0.0
        %3654 = vmatprep.subr.mxu0 0.0
        %3655 = vmatpush1.msra.mxu0 0.0
        %3656 = vmatprep.subr.mxu0 0.0
        %3657 = vmatpush1.msra.mxu0 0.0
        %3658 = vmatprep.subr.mxu0 0.0
        %3659 = vmatpush1.msra.mxu0 0.0
        %3660 = vmatprep.subr.mxu0 0.0
        %3661 = vmatpush1.msra.mxu0 0.0
        %3662 = vmatprep.subr.mxu0 0.0
        %3663 = vmatpush1.msra.mxu0 0.0
        %3664 = vmatprep.subr.mxu0 0.0
        %3665 = vmatpush1.msra.mxu0 0.0
        %3666 = vmatprep.subr.mxu0 0.0
        %3667 = vmatpush1.msra.mxu0 0.0
        %3668 = vmatprep.subr.mxu0 0.0
        %3669 = vmatpush1.msra.mxu0 0.0
        %3670 = vmatprep.subr.mxu0 0.0
        %3671 = vmatpush1.msra.mxu0 0.0
        %3672 = vmatprep.subr.mxu0 0.0
        %3673 = vmatpush1.msra.mxu0 0.0
        %3674 = vmatprep.subr.mxu0 0.0
        %3675 = vmatpush1.msra.mxu0 0.0
        %3676 = vmatprep.subr.mxu0 0.0
        %3677 = vmatpush1.msra.mxu0 0.0
        %3678 = vmatprep.subr.mxu0 0.0
        %3679 = vmatpush1.msra.mxu0 0.0
        %3680 = vmatprep.subr.mxu0 0.0
        %3681 = vmatpush1.msra.mxu0 0.0
        %3682 = vmatprep.subr.mxu0 0.0
        %3683 = vmatpush1.msra.mxu0 0.0
        %3684 = vmatprep.mubr.f32.mxu0 0.0
        %v3685 = vand.u32 %v3613, 4294901760
        %v3686 = vsub.f32 %v3613, %v3685
        %v3687 = vand.u32 %v3686, 4294901760
        %v3688 = vsub.f32 %v3686, %v3687
        %v3689 = vand.u32 %v3688, 4294901760
        %3690 = vmatmul.mubr.f32.gmra.mrb[0].mxu0 %v3689
        %v3691 = vpop.f32.mrb[0].mxu0
        %v3692 = vadd.f32 0.0, %v3691
        %v3693 = vpop.f32.mrb[0].mxu0
        %3694 = vmatprep.mubr.f32.mxu0 0.0
        %v3695 = vand.u32 %v3616, 4294901760
        %v3696 = vsub.f32 %v3616, %v3695
        %v3697 = vand.u32 %v3696, 4294901760
        %v3698 = vsub.f32 %v3696, %v3697
        %v3699 = vand.u32 %v3698, 4294901760
        %3700 = vmatmul.mubr.f32.gmra.mrb[0].mxu0 %v3699
        %v3701 = vpop.f32.mrb[0].mxu0
        %v3702 = vadd.f32 0.0, %v3701
        %v3703 = vpop.f32.mrb[0].mxu0
        %3704 = vdwg.mxu0
        %3705 = vmatprep.subr.mxu0 0.0
        %v3706 = vand.u32 %v3607, 4294901760
        %v3707 = vsub.f32 %v3607, %v3706
        %v3708 = vand.u32 %v3707, 4294901760
        %v3709 = vsub.f32 %v3707, %v3708
        %v3710 = vand.u32 %v3709, 4294901760
        %3711 = vmatpush1.msra.mxu0 %v3710
        %3712 = vmatprep.subr.mxu0 0.0
        %v3713 = vand.u32 %v3609, 4294901760
        %v3714 = vsub.f32 %v3609, %v3713
        %v3715 = vand.u32 %v3714, 4294901760
        %v3716 = vsub.f32 %v3714, %v3715
        %v3717 = vand.u32 %v3716, 4294901760
        %3718 = vmatpush1.msra.mxu0 %v3717
        %3719 = vmatprep.subr.mxu0 0.0
        %3720 = vmatpush1.msra.mxu0 0.0
        %3721 = vmatprep.subr.mxu0 0.0
        %3722 = vmatpush1.msra.mxu0 0.0
        %3723 = vmatprep.subr.mxu0 0.0
        %3724 = vmatpush1.msra.mxu0 0.0
        %3725 = vmatprep.subr.mxu0 0.0
        %3726 = vmatpush1.msra.mxu0 0.0
        %3727 = vmatprep.subr.mxu0 0.0
        %3728 = vmatpush1.msra.mxu0 0.0
        %3729 = vmatprep.subr.mxu0 0.0
        %3730 = vmatpush1.msra.mxu0 0.0
        %3731 = vmatprep.subr.mxu0 0.0
        %3732 = vmatpush1.msra.mxu0 0.0
        %3733 = vmatprep.subr.mxu0 0.0
        %3734 = vmatpush1.msra.mxu0 0.0
        %3735 = vmatprep.subr.mxu0 0.0
        %3736 = vmatpush1.msra.mxu0 0.0
        %3737 = vmatprep.subr.mxu0 0.0
        %3738 = vmatpush1.msra.mxu0 0.0
        %3739 = vmatprep.subr.mxu0 0.0
        %3740 = vmatpush1.msra.mxu0 0.0
        %3741 = vmatprep.subr.mxu0 0.0
        %3742 = vmatpush1.msra.mxu0 0.0
        %3743 = vmatprep.subr.mxu0 0.0
        %3744 = vmatpush1.msra.mxu0 0.0
        %3745 = vmatprep.subr.mxu0 0.0
        %3746 = vmatpush1.msra.mxu0 0.0
        %3747 = vmatprep.subr.mxu0 0.0
        %3748 = vmatpush1.msra.mxu0 0.0
        %3749 = vmatprep.subr.mxu0 0.0
        %3750 = vmatpush1.msra.mxu0 0.0
        %3751 = vmatprep.subr.mxu0 0.0
        %3752 = vmatpush1.msra.mxu0 0.0
        %3753 = vmatprep.subr.mxu0 0.0
        %3754 = vmatpush1.msra.mxu0 0.0
        %3755 = vmatprep.subr.mxu0 0.0
        %3756 = vmatpush1.msra.mxu0 0.0
        %3757 = vmatprep.subr.mxu0 0.0
        %3758 = vmatpush1.msra.mxu0 0.0
        %3759 = vmatprep.subr.mxu0 0.0
        %3760 = vmatpush1.msra.mxu0 0.0
        %3761 = vmatprep.subr.mxu0 0.0
        %3762 = vmatpush1.msra.mxu0 0.0
        %3763 = vmatprep.subr.mxu0 0.0
        %3764 = vmatpush1.msra.mxu0 0.0
        %3765 = vmatprep.subr.mxu0 0.0
        %3766 = vmatpush1.msra.mxu0 0.0
        %3767 = vmatprep.subr.mxu0 0.0
        %3768 = vmatpush1.msra.mxu0 0.0
        %3769 = vmatprep.subr.mxu0 0.0
        %3770 = vmatpush1.msra.mxu0 0.0
        %3771 = vmatprep.subr.mxu0 0.0
        %3772 = vmatpush1.msra.mxu0 0.0
        %3773 = vmatprep.subr.mxu0 0.0
        %3774 = vmatpush1.msra.mxu0 0.0
        %3775 = vmatprep.subr.mxu0 0.0
        %3776 = vmatpush1.msra.mxu0 0.0
        %3777 = vmatprep.subr.mxu0 0.0
        %3778 = vmatpush1.msra.mxu0 0.0
        %3779 = vmatprep.mubr.f32.mxu0 0.0
        %v3780 = vand.u32 %v3613, 4294901760
        %3781 = vmatmul.mubr.f32.gmra.mrb[0].mxu0 %v3780
        %v3782 = vpop.f32.mrb[0].mxu0
        %v3783 = vadd.f32 %v3692, %v3782
        %v3784 = vpop.f32.mrb[0].mxu0
        %3785 = vmatprep.mubr.f32.mxu0 0.0
        %v3786 = vand.u32 %v3616, 4294901760
        %3787 = vmatmul.mubr.f32.gmra.mrb[0].mxu0 %v3786
        %v3788 = vpop.f32.mrb[0].mxu0
        %v3789 = vadd.f32 %v3702, %v3788
        %v3790 = vpop.f32.mrb[0].mxu0
        %3791 = vdwg.mxu0
        %3792 = vmatprep.subr.mxu0 0.0
        %v3793 = vand.u32 %v3607, 4294901760
        %v3794 = vsub.f32 %v3607, %v3793
        %3795 = vmatpush1.msra.mxu0 %v3794
        %3796 = vmatprep.subr.mxu0 0.0
        %v3797 = vand.u32 %v3609, 4294901760
        %v3798 = vsub.f32 %v3609, %v3797
        %3799 = vmatpush1.msra.mxu0 %v3798
        %3800 = vmatprep.subr.mxu0 0.0
        %3801 = vmatpush1.msra.mxu0 0.0
        %3802 = vmatprep.subr.mxu0 0.0
        %3803 = vmatpush1.msra.mxu0 0.0
        %3804 = vmatprep.subr.mxu0 0.0
        %3805 = vmatpush1.msra.mxu0 0.0
        %3806 = vmatprep.subr.mxu0 0.0
        %3807 = vmatpush1.msra.mxu0 0.0
        %3808 = vmatprep.subr.mxu0 0.0
        %3809 = vmatpush1.msra.mxu0 0.0
        %3810 = vmatprep.subr.mxu0 0.0
        %3811 = vmatpush1.msra.mxu0 0.0
        %3812 = vmatprep.subr.mxu0 0.0
        %3813 = vmatpush1.msra.mxu0 0.0
        %3814 = vmatprep.subr.mxu0 0.0
        %3815 = vmatpush1.msra.mxu0 0.0
        %3816 = vmatprep.subr.mxu0 0.0
        %3817 = vmatpush1.msra.mxu0 0.0
        %3818 = vmatprep.subr.mxu0 0.0
        %3819 = vmatpush1.msra.mxu0 0.0
        %3820 = vmatprep.subr.mxu0 0.0
        %3821 = vmatpush1.msra.mxu0 0.0
        %3822 = vmatprep.subr.mxu0 0.0
        %3823 = vmatpush1.msra.mxu0 0.0
        %3824 = vmatprep.subr.mxu0 0.0
        %3825 = vmatpush1.msra.mxu0 0.0
        %3826 = vmatprep.subr.mxu0 0.0
        %3827 = vmatpush1.msra.mxu0 0.0
        %3828 = vmatprep.subr.mxu0 0.0
        %3829 = vmatpush1.msra.mxu0 0.0
        %3830 = vmatprep.subr.mxu0 0.0
        %3831 = vmatpush1.msra.mxu0 0.0
        %3832 = vmatprep.subr.mxu0 0.0
        %3833 = vmatpush1.msra.mxu0 0.0
        %3834 = vmatprep.subr.mxu0 0.0
        %3835 = vmatpush1.msra.mxu0 0.0
        %3836 = vmatprep.subr.mxu0 0.0
        %3837 = vmatpush1.msra.mxu0 0.0
        %3838 = vmatprep.subr.mxu0 0.0
        %3839 = vmatpush1.msra.mxu0 0.0
        %3840 = vmatprep.subr.mxu0 0.0
        %3841 = vmatpush1.msra.mxu0 0.0
        %3842 = vmatprep.subr.mxu0 0.0
        %3843 = vmatpush1.msra.mxu0 0.0
        %3844 = vmatprep.subr.mxu0 0.0
        %3845 = vmatpush1.msra.mxu0 0.0
        %3846 = vmatprep.subr.mxu0 0.0
        %3847 = vmatpush1.msra.mxu0 0.0
        %3848 = vmatprep.subr.mxu0 0.0
        %3849 = vmatpush1.msra.mxu0 0.0
        %3850 = vmatprep.subr.mxu0 0.0
        %3851 = vmatpush1.msra.mxu0 0.0
        %3852 = vmatprep.subr.mxu0 0.0
        %3853 = vmatpush1.msra.mxu0 0.0
        %3854 = vmatprep.subr.mxu0 0.0
        %3855 = vmatpush1.msra.mxu0 0.0
        %3856 = vmatprep.subr.mxu0 0.0
        %3857 = vmatpush1.msra.mxu0 0.0
        %3858 = vmatprep.subr.mxu0 0.0
        %3859 = vmatpush1.msra.mxu0 0.0
        %3860 = vmatprep.mubr.f32.mxu0 0.0
        %v3861 = vand.u32 %v3613, 4294901760
        %v3862 = vsub.f32 %v3613, %v3861
        %3863 = vmatmul.mubr.f32.gmra.mrb[0].mxu0 %v3862
        %v3864 = vpop.f32.mrb[0].mxu0
        %v3865 = vadd.f32 %v3783, %v3864
        %v3866 = vpop.f32.mrb[0].mxu0
        %3867 = vmatprep.mubr.f32.mxu0 0.0
        %v3868 = vand.u32 %v3616, 4294901760
        %v3869 = vsub.f32 %v3616, %v3868
        %3870 = vmatmul.mubr.f32.gmra.mrb[0].mxu0 %v3869
        %v3871 = vpop.f32.mrb[0].mxu0
        %v3872 = vadd.f32 %v3789, %v3871
        %v3873 = vpop.f32.mrb[0].mxu0
        %3874 = vdwg.mxu0
        %3875 = vmatprep.subr.mxu0 0.0
        %v3876 = vand.u32 %v3607, 4294901760
        %3877 = vmatpush1.msra.mxu0 %v3876
        %3878 = vmatprep.subr.mxu0 0.0
        %v3879 = vand.u32 %v3609, 4294901760
        %3880 = vmatpush1.msra.mxu0 %v3879
        %3881 = vmatprep.subr.mxu0 0.0
        %3882 = vmatpush1.msra.mxu0 0.0
        %3883 = vmatprep.subr.mxu0 0.0
        %3884 = vmatpush1.msra.mxu0 0.0
        %3885 = vmatprep.subr.mxu0 0.0
        %3886 = vmatpush1.msra.mxu0 0.0
        %3887 = vmatprep.subr.mxu0 0.0
        %3888 = vmatpush1.msra.mxu0 0.0
        %3889 = vmatprep.subr.mxu0 0.0
        %3890 = vmatpush1.msra.mxu0 0.0
        %3891 = vmatprep.subr.mxu0 0.0
        %3892 = vmatpush1.msra.mxu0 0.0
        %3893 = vmatprep.subr.mxu0 0.0
        %3894 = vmatpush1.msra.mxu0 0.0
        %3895 = vmatprep.subr.mxu0 0.0
        %3896 = vmatpush1.msra.mxu0 0.0
        %3897 = vmatprep.subr.mxu0 0.0
        %3898 = vmatpush1.msra.mxu0 0.0
        %3899 = vmatprep.subr.mxu0 0.0
        %3900 = vmatpush1.msra.mxu0 0.0
        %3901 = vmatprep.subr.mxu0 0.0
        %3902 = vmatpush1.msra.mxu0 0.0
        %3903 = vmatprep.subr.mxu0 0.0
        %3904 = vmatpush1.msra.mxu0 0.0
        %3905 = vmatprep.subr.mxu0 0.0
        %3906 = vmatpush1.msra.mxu0 0.0
        %3907 = vmatprep.subr.mxu0 0.0
        %3908 = vmatpush1.msra.mxu0 0.0
        %3909 = vmatprep.subr.mxu0 0.0
        %3910 = vmatpush1.msra.mxu0 0.0
        %3911 = vmatprep.subr.mxu0 0.0
        %3912 = vmatpush1.msra.mxu0 0.0
        %3913 = vmatprep.subr.mxu0 0.0
        %3914 = vmatpush1.msra.mxu0 0.0
        %3915 = vmatprep.subr.mxu0 0.0
        %3916 = vmatpush1.msra.mxu0 0.0
        %3917 = vmatprep.subr.mxu0 0.0
        %3918 = vmatpush1.msra.mxu0 0.0
        %3919 = vmatprep.subr.mxu0 0.0
        %3920 = vmatpush1.msra.mxu0 0.0
        %3921 = vmatprep.subr.mxu0 0.0
        %3922 = vmatpush1.msra.mxu0 0.0
        %3923 = vmatprep.subr.mxu0 0.0
        %3924 = vmatpush1.msra.mxu0 0.0
        %3925 = vmatprep.subr.mxu0 0.0
        %3926 = vmatpush1.msra.mxu0 0.0
        %3927 = vmatprep.subr.mxu0 0.0
        %3928 = vmatpush1.msra.mxu0 0.0
        %3929 = vmatprep.subr.mxu0 0.0
        %3930 = vmatpush1.msra.mxu0 0.0
        %3931 = vmatprep.subr.mxu0 0.0
        %3932 = vmatpush1.msra.mxu0 0.0
        %3933 = vmatprep.subr.mxu0 0.0
        %3934 = vmatpush1.msra.mxu0 0.0
        %3935 = vmatprep.subr.mxu0 0.0
        %3936 = vmatpush1.msra.mxu0 0.0
        %3937 = vmatprep.subr.mxu0 0.0
        %3938 = vmatpush1.msra.mxu0 0.0
        %3939 = vmatprep.subr.mxu0 0.0
        %3940 = vmatpush1.msra.mxu0 0.0
        %3941 = vmatprep.mubr.f32.mxu0 0.0
        %v3942 = vand.u32 %v3613, 4294901760
        %v3943 = vsub.f32 %v3613, %v3942
        %v3944 = vand.u32 %v3943, 4294901760
        %3945 = vmatmul.mubr.f32.gmra.mrb[0].mxu0 %v3944
        %v3946 = vpop.f32.mrb[0].mxu0
        %v3947 = vadd.f32 %v3865, %v3946
        %v3948 = vpop.f32.mrb[0].mxu0
        %3949 = vmatprep.mubr.f32.mxu0 0.0
        %v3950 = vand.u32 %v3616, 4294901760
        %v3951 = vsub.f32 %v3616, %v3950
        %v3952 = vand.u32 %v3951, 4294901760
        %3953 = vmatmul.mubr.f32.gmra.mrb[0].mxu0 %v3952
        %v3954 = vpop.f32.mrb[0].mxu0
        %v3955 = vadd.f32 %v3872, %v3954
        %v3956 = vpop.f32.mrb[0].mxu0
        %3957 = vdwg.mxu0
        %3958 = vmatprep.subr.mxu0 0.0
        %v3959 = vand.u32 %v3607, 4294901760
        %v3960 = vsub.f32 %v3607, %v3959
        %v3961 = vand.u32 %v3960, 4294901760
        %3962 = vmatpush1.msra.mxu0 %v3961
        %3963 = vmatprep.subr.mxu0 0.0
        %v3964 = vand.u32 %v3609, 4294901760
        %v3965 = vsub.f32 %v3609, %v3964
        %v3966 = vand.u32 %v3965, 4294901760
        %3967 = vmatpush1.msra.mxu0 %v3966
        %3968 = vmatprep.subr.mxu0 0.0
        %3969 = vmatpush1.msra.mxu0 0.0
        %3970 = vmatprep.subr.mxu0 0.0
        %3971 = vmatpush1.msra.mxu0 0.0
        %3972 = vmatprep.subr.mxu0 0.0
        %3973 = vmatpush1.msra.mxu0 0.0
        %3974 = vmatprep.subr.mxu0 0.0
        %3975 = vmatpush1.msra.mxu0 0.0
        %3976 = vmatprep.subr.mxu0 0.0
        %3977 = vmatpush1.msra.mxu0 0.0
        %3978 = vmatprep.subr.mxu0 0.0
        %3979 = vmatpush1.msra.mxu0 0.0
        %3980 = vmatprep.subr.mxu0 0.0
        %3981 = vmatpush1.msra.mxu0 0.0
        %3982 = vmatprep.subr.mxu0 0.0
        %3983 = vmatpush1.msra.mxu0 0.0
        %3984 = vmatprep.subr.mxu0 0.0
        %3985 = vmatpush1.msra.mxu0 0.0
        %3986 = vmatprep.subr.mxu0 0.0
        %3987 = vmatpush1.msra.mxu0 0.0
        %3988 = vmatprep.subr.mxu0 0.0
        %3989 = vmatpush1.msra.mxu0 0.0
        %3990 = vmatprep.subr.mxu0 0.0
        %3991 = vmatpush1.msra.mxu0 0.0
        %3992 = vmatprep.subr.mxu0 0.0
        %3993 = vmatpush1.msra.mxu0 0.0
        %3994 = vmatprep.subr.mxu0 0.0
        %3995 = vmatpush1.msra.mxu0 0.0
        %3996 = vmatprep.subr.mxu0 0.0
        %3997 = vmatpush1.msra.mxu0 0.0
        %3998 = vmatprep.subr.mxu0 0.0
        %3999 = vmatpush1.msra.mxu0 0.0
        %4000 = vmatprep.subr.mxu0 0.0
        %4001 = vmatpush1.msra.mxu0 0.0
        %4002 = vmatprep.subr.mxu0 0.0
        %4003 = vmatpush1.msra.mxu0 0.0
        %4004 = vmatprep.subr.mxu0 0.0
        %4005 = vmatpush1.msra.mxu0 0.0
        %4006 = vmatprep.subr.mxu0 0.0
        %4007 = vmatpush1.msra.mxu0 0.0
        %4008 = vmatprep.subr.mxu0 0.0
        %4009 = vmatpush1.msra.mxu0 0.0
        %4010 = vmatprep.subr.mxu0 0.0
        %4011 = vmatpush1.msra.mxu0 0.0
        %4012 = vmatprep.subr.mxu0 0.0
        %4013 = vmatpush1.msra.mxu0 0.0
        %4014 = vmatprep.subr.mxu0 0.0
        %4015 = vmatpush1.msra.mxu0 0.0
        %4016 = vmatprep.subr.mxu0 0.0
        %4017 = vmatpush1.msra.mxu0 0.0
        %4018 = vmatprep.subr.mxu0 0.0
        %4019 = vmatpush1.msra.mxu0 0.0
        %4020 = vmatprep.subr.mxu0 0.0
        %4021 = vmatpush1.msra.mxu0 0.0
        %4022 = vmatprep.subr.mxu0 0.0
        %4023 = vmatpush1.msra.mxu0 0.0
        %4024 = vmatprep.subr.mxu0 0.0
        %4025 = vmatpush1.msra.mxu0 0.0
        %4026 = vmatprep.subr.mxu0 0.0
        %4027 = vmatpush1.msra.mxu0 0.0
        %4028 = vmatprep.mubr.f32.mxu0 0.0
        %v4029 = vand.u32 %v3613, 4294901760
        %4030 = vmatmul.mubr.f32.gmra.mrb[0].mxu0 %v4029
        %v4031 = vpop.f32.mrb[0].mxu0
        %v4032 = vadd.f32 %v3947, %v4031
        %v4033 = vpop.f32.mrb[0].mxu0
        %4034 = vmatprep.mubr.f32.mxu0 0.0
        %v4035 = vand.u32 %v3616, 4294901760
        %4036 = vmatmul.mubr.f32.gmra.mrb[0].mxu0 %v4035
        %v4037 = vpop.f32.mrb[0].mxu0
        %v4038 = vadd.f32 %v3955, %v4037
        %v4039 = vpop.f32.mrb[0].mxu0
        %4040 = vdwg.mxu0
        %4041 = vmatprep.subr.mxu0 0.0
        %v4042 = vand.u32 %v3607, 4294901760
        %4043 = vmatpush1.msra.mxu0 %v4042
        %4044 = vmatprep.subr.mxu0 0.0
        %v4045 = vand.u32 %v3609, 4294901760
        %4046 = vmatpush1.msra.mxu0 %v4045
        %4047 = vmatprep.subr.mxu0 0.0
        %4048 = vmatpush1.msra.mxu0 0.0
        %4049 = vmatprep.subr.mxu0 0.0
        %4050 = vmatpush1.msra.mxu0 0.0
        %4051 = vmatprep.subr.mxu0 0.0
        %4052 = vmatpush1.msra.mxu0 0.0
        %4053 = vmatprep.subr.mxu0 0.0
        %4054 = vmatpush1.msra.mxu0 0.0
        %4055 = vmatprep.subr.mxu0 0.0
        %4056 = vmatpush1.msra.mxu0 0.0
        %4057 = vmatprep.subr.mxu0 0.0
        %4058 = vmatpush1.msra.mxu0 0.0
        %4059 = vmatprep.subr.mxu0 0.0
        %4060 = vmatpush1.msra.mxu0 0.0
        %4061 = vmatprep.subr.mxu0 0.0
        %4062 = vmatpush1.msra.mxu0 0.0
        %4063 = vmatprep.subr.mxu0 0.0
        %4064 = vmatpush1.msra.mxu0 0.0
        %4065 = vmatprep.subr.mxu0 0.0
        %4066 = vmatpush1.msra.mxu0 0.0
        %4067 = vmatprep.subr.mxu0 0.0
        %4068 = vmatpush1.msra.mxu0 0.0
        %4069 = vmatprep.subr.mxu0 0.0
        %4070 = vmatpush1.msra.mxu0 0.0
        %4071 = vmatprep.subr.mxu0 0.0
        %4072 = vmatpush1.msra.mxu0 0.0
        %4073 = vmatprep.subr.mxu0 0.0
        %4074 = vmatpush1.msra.mxu0 0.0
        %4075 = vmatprep.subr.mxu0 0.0
        %4076 = vmatpush1.msra.mxu0 0.0
        %4077 = vmatprep.subr.mxu0 0.0
        %4078 = vmatpush1.msra.mxu0 0.0
        %4079 = vmatprep.subr.mxu0 0.0
        %4080 = vmatpush1.msra.mxu0 0.0
        %4081 = vmatprep.subr.mxu0 0.0
        %4082 = vmatpush1.msra.mxu0 0.0
        %4083 = vmatprep.subr.mxu0 0.0
        %4084 = vmatpush1.msra.mxu0 0.0
        %4085 = vmatprep.subr.mxu0 0.0
        %4086 = vmatpush1.msra.mxu0 0.0
        %4087 = vmatprep.subr.mxu0 0.0
        %4088 = vmatpush1.msra.mxu0 0.0
        %4089 = vmatprep.subr.mxu0 0.0
        %4090 = vmatpush1.msra.mxu0 0.0
        %4091 = vmatprep.subr.mxu0 0.0
        %4092 = vmatpush1.msra.mxu0 0.0
        %4093 = vmatprep.subr.mxu0 0.0
        %4094 = vmatpush1.msra.mxu0 0.0
        %4095 = vmatprep.subr.mxu0 0.0
        %4096 = vmatpush1.msra.mxu0 0.0
        %4097 = vmatprep.subr.mxu0 0.0
        %4098 = vmatpush1.msra.mxu0 0.0
        %4099 = vmatprep.subr.mxu0 0.0
        %4100 = vmatpush1.msra.mxu0 0.0
        %4101 = vmatprep.subr.mxu0 0.0
        %4102 = vmatpush1.msra.mxu0 0.0
        %4103 = vmatprep.subr.mxu0 0.0
        %4104 = vmatpush1.msra.mxu0 0.0
        %4105 = vmatprep.subr.mxu0 0.0
        %4106 = vmatpush1.msra.mxu0 0.0
        %4107 = vmatprep.mubr.f32.mxu0 0.0
        %v4108 = vand.u32 %v3613, 4294901760
        %4109 = vmatmul.mubr.f32.gmra.mrb[0].mxu0 %v4108
        %v4110 = vpop.f32.mrb[0].mxu0
        %v4111 = vadd.f32 %v4032, %v4110
        %v4112 = vpop.f32.mrb[0].mxu0
        %4113 = vmatprep.mubr.f32.mxu0 0.0
        %v4114 = vand.u32 %v3616, 4294901760
        %4115 = vmatmul.mubr.f32.gmra.mrb[0].mxu0 %v4114
        %v4116 = vpop.f32.mrb[0].mxu0
        %v4117 = vadd.f32 %v4038, %v4116
        %v4118 = vpop.f32.mrb[0].mxu0
        %4119 = vdwg.mxu0
        %v4120 = vrcp.pop %v3602
        %v4121 = vmul.f32 %v4111, %v4120
        %v4122 = vrcp.pop %v3605
        %v4123 = vmul.f32 %v4117, %v4122
        %4124 = vrot.lane.b32.xlu0 %v955, 104
        %v4125 = vpop.permute.xlu0 %4124
        %4126 = vrot.lane.b32.xlu0 %v962, 104
        %v4127 = vpop.permute.xlu0 %4126
        %4128 = vrot.lane.b32.xlu0 %v955, 40
        %v4129 = vpop.permute.xlu0 %4128
        %4130 = vrot.lane.b32.xlu0 %v962, 40
        %v4131 = vpop.permute.xlu0 %4130
        %v4132 = vsel %vm972, %v4125, 0
        %v4134 = vsel %vm972, %v4127, 0
        %v4136 = vsel %vm972, %v4129, 0
        %v4138 = vsel %vm972, %v4131, 0
        %4140 = vmatprep.subr.mxu0 0.0
        %v4141 = vand.u32 %v4136, 4294901760
        %4142 = vmatpush1.xpose.msra.mxu0 %v4141
        %4143 = vmatprep.subr.mxu0 0.0
        %v4144 = vand.u32 %v4138, 4294901760
        %4145 = vmatpush1.xpose.msra.mxu0 %v4144
        %4146 = vmatprep.subr.mxu0 0.0
        %4147 = vmatpush1.xpose.msra.mxu0 0.0
        %4148 = vmatprep.subr.mxu0 0.0
        %4149 = vmatpush1.xpose.msra.mxu0 0.0
        %4150 = vmatprep.subr.mxu0 0.0
        %4151 = vmatpush1.xpose.msra.mxu0 0.0
        %4152 = vmatprep.subr.mxu0 0.0
        %4153 = vmatpush1.xpose.msra.mxu0 0.0
        %4154 = vmatprep.subr.mxu0 0.0
        %4155 = vmatpush1.xpose.msra.mxu0 0.0
        %4156 = vmatprep.subr.mxu0 0.0
        %4157 = vmatpush1.xpose.msra.mxu0 0.0
        %4158 = vmatprep.subr.mxu0 0.0
        %4159 = vmatpush1.xpose.msra.mxu0 0.0
        %4160 = vmatprep.subr.mxu0 0.0
        %4161 = vmatpush1.xpose.msra.mxu0 0.0
        %4162 = vmatprep.subr.mxu0 0.0
        %4163 = vmatpush1.xpose.msra.mxu0 0.0
        %4164 = vmatprep.subr.mxu0 0.0
        %4165 = vmatpush1.xpose.msra.mxu0 0.0
        %4166 = vmatprep.subr.mxu0 0.0
        %4167 = vmatpush1.xpose.msra.mxu0 0.0
        %4168 = vmatprep.subr.mxu0 0.0
        %4169 = vmatpush1.xpose.msra.mxu0 0.0
        %4170 = vmatprep.subr.mxu0 0.0
        %4171 = vmatpush1.xpose.msra.mxu0 0.0
        %4172 = vmatprep.subr.mxu0 0.0
        %4173 = vmatpush1.xpose.msra.mxu0 0.0
        %4174 = vmatprep.subr.mxu0 0.0
        %4175 = vmatpush1.xpose.msra.mxu0 0.0
        %4176 = vmatprep.subr.mxu0 0.0
        %4177 = vmatpush1.xpose.msra.mxu0 0.0
        %4178 = vmatprep.subr.mxu0 0.0
        %4179 = vmatpush1.xpose.msra.mxu0 0.0
        %4180 = vmatprep.subr.mxu0 0.0
        %4181 = vmatpush1.xpose.msra.mxu0 0.0
        %4182 = vmatprep.subr.mxu0 0.0
        %4183 = vmatpush1.xpose.msra.mxu0 0.0
        %4184 = vmatprep.subr.mxu0 0.0
        %4185 = vmatpush1.xpose.msra.mxu0 0.0
        %4186 = vmatprep.subr.mxu0 0.0
        %4187 = vmatpush1.xpose.msra.mxu0 0.0
        %4188 = vmatprep.subr.mxu0 0.0
        %4189 = vmatpush1.xpose.msra.mxu0 0.0
        %4190 = vmatprep.subr.mxu0 0.0
        %4191 = vmatpush1.xpose.msra.mxu0 0.0
        %4192 = vmatprep.subr.mxu0 0.0
        %4193 = vmatpush1.xpose.msra.mxu0 0.0
        %4194 = vmatprep.subr.mxu0 0.0
        %4195 = vmatpush1.xpose.msra.mxu0 0.0
        %4196 = vmatprep.subr.mxu0 0.0
        %4197 = vmatpush1.xpose.msra.mxu0 0.0
        %4198 = vmatprep.subr.mxu0 0.0
        %4199 = vmatpush1.xpose.msra.mxu0 0.0
        %4200 = vmatprep.subr.mxu0 0.0
        %4201 = vmatpush1.xpose.msra.mxu0 0.0
        %4202 = vmatprep.subr.mxu0 0.0
        %4203 = vmatpush1.xpose.msra.mxu0 0.0
        %4204 = vmatprep.subr.mxu0 0.0
        %4205 = vmatpush1.xpose.msra.mxu0 0.0
        %4206 = vmatprep.mubr.f32.mxu0 0.0
        %v4207 = vand.u32 %v4132, 4294901760
        %v4208 = vsub.f32 %v4132, %v4207
        %v4209 = vand.u32 %v4208, 4294901760
        %v4210 = vsub.f32 %v4208, %v4209
        %v4211 = vand.u32 %v4210, 4294901760
        %4212 = vmatmul.mubr.f32.gmra.mrb[0].mxu0 %v4211
        %v4213 = vpop.f32.mrb[0].mxu0
        %v4214 = vadd.f32 0.0, %v4213
        %v4215 = vpop.f32.mrb[0].mxu0
        %4216 = vmatprep.mubr.f32.mxu0 0.0
        %v4217 = vand.u32 %v4134, 4294901760
        %v4218 = vsub.f32 %v4134, %v4217
        %v4219 = vand.u32 %v4218, 4294901760
        %v4220 = vsub.f32 %v4218, %v4219
        %v4221 = vand.u32 %v4220, 4294901760
        %4222 = vmatmul.mubr.f32.gmra.mrb[0].mxu0 %v4221
        %v4223 = vpop.f32.mrb[0].mxu0
        %v4224 = vadd.f32 0.0, %v4223
        %v4225 = vpop.f32.mrb[0].mxu0
        %4226 = vdwg.mxu0
        %4227 = vmatprep.subr.mxu0 0.0
        %v4228 = vand.u32 %v4136, 4294901760
        %v4229 = vsub.f32 %v4136, %v4228
        %v4230 = vand.u32 %v4229, 4294901760
        %v4231 = vsub.f32 %v4229, %v4230
        %v4232 = vand.u32 %v4231, 4294901760
        %4233 = vmatpush1.xpose.msra.mxu0 %v4232
        %4234 = vmatprep.subr.mxu0 0.0
        %v4235 = vand.u32 %v4138, 4294901760
        %v4236 = vsub.f32 %v4138, %v4235
        %v4237 = vand.u32 %v4236, 4294901760
        %v4238 = vsub.f32 %v4236, %v4237
        %v4239 = vand.u32 %v4238, 4294901760
        %4240 = vmatpush1.xpose.msra.mxu0 %v4239
        %4241 = vmatprep.subr.mxu0 0.0
        %4242 = vmatpush1.xpose.msra.mxu0 0.0
        %4243 = vmatprep.subr.mxu0 0.0
        %4244 = vmatpush1.xpose.msra.mxu0 0.0
        %4245 = vmatprep.subr.mxu0 0.0
        %4246 = vmatpush1.xpose.msra.mxu0 0.0
        %4247 = vmatprep.subr.mxu0 0.0
        %4248 = vmatpush1.xpose.msra.mxu0 0.0
        %4249 = vmatprep.subr.mxu0 0.0
        %4250 = vmatpush1.xpose.msra.mxu0 0.0
        %4251 = vmatprep.subr.mxu0 0.0
        %4252 = vmatpush1.xpose.msra.mxu0 0.0
        %4253 = vmatprep.subr.mxu0 0.0
        %4254 = vmatpush1.xpose.msra.mxu0 0.0
        %4255 = vmatprep.subr.mxu0 0.0
        %4256 = vmatpush1.xpose.msra.mxu0 0.0
        %4257 = vmatprep.subr.mxu0 0.0
        %4258 = vmatpush1.xpose.msra.mxu0 0.0
        %4259 = vmatprep.subr.mxu0 0.0
        %4260 = vmatpush1.xpose.msra.mxu0 0.0
        %4261 = vmatprep.subr.mxu0 0.0
        %4262 = vmatpush1.xpose.msra.mxu0 0.0
        %4263 = vmatprep.subr.mxu0 0.0
        %4264 = vmatpush1.xpose.msra.mxu0 0.0
        %4265 = vmatprep.subr.mxu0 0.0
        %4266 = vmatpush1.xpose.msra.mxu0 0.0
        %4267 = vmatprep.subr.mxu0 0.0
        %4268 = vmatpush1.xpose.msra.mxu0 0.0
        %4269 = vmatprep.subr.mxu0 0.0
        %4270 = vmatpush1.xpose.msra.mxu0 0.0
        %4271 = vmatprep.subr.mxu0 0.0
        %4272 = vmatpush1.xpose.msra.mxu0 0.0
        %4273 = vmatprep.subr.mxu0 0.0
        %4274 = vmatpush1.xpose.msra.mxu0 0.0
        %4275 = vmatprep.subr.mxu0 0.0
        %4276 = vmatpush1.xpose.msra.mxu0 0.0
        %4277 = vmatprep.subr.mxu0 0.0
        %4278 = vmatpush1.xpose.msra.mxu0 0.0
        %4279 = vmatprep.subr.mxu0 0.0
        %4280 = vmatpush1.xpose.msra.mxu0 0.0
        %4281 = vmatprep.subr.mxu0 0.0
        %4282 = vmatpush1.xpose.msra.mxu0 0.0
        %4283 = vmatprep.subr.mxu0 0.0
        %4284 = vmatpush1.xpose.msra.mxu0 0.0
        %4285 = vmatprep.subr.mxu0 0.0
        %4286 = vmatpush1.xpose.msra.mxu0 0.0
        %4287 = vmatprep.subr.mxu0 0.0
        %4288 = vmatpush1.xpose.msra.mxu0 0.0
        %4289 = vmatprep.subr.mxu0 0.0
        %4290 = vmatpush1.xpose.msra.mxu0 0.0
        %4291 = vmatprep.subr.mxu0 0.0
        %4292 = vmatpush1.xpose.msra.mxu0 0.0
        %4293 = vmatprep.subr.mxu0 0.0
        %4294 = vmatpush1.xpose.msra.mxu0 0.0
        %4295 = vmatprep.subr.mxu0 0.0
        %4296 = vmatpush1.xpose.msra.mxu0 0.0
        %4297 = vmatprep.subr.mxu0 0.0
        %4298 = vmatpush1.xpose.msra.mxu0 0.0
        %4299 = vmatprep.subr.mxu0 0.0
        %4300 = vmatpush1.xpose.msra.mxu0 0.0
        %4301 = vmatprep.mubr.f32.mxu0 0.0
        %v4302 = vand.u32 %v4132, 4294901760
        %4303 = vmatmul.mubr.f32.gmra.mrb[0].mxu0 %v4302
        %v4304 = vpop.f32.mrb[0].mxu0
        %v4305 = vadd.f32 %v4214, %v4304
        %v4306 = vpop.f32.mrb[0].mxu0
        %4307 = vmatprep.mubr.f32.mxu0 0.0
        %v4308 = vand.u32 %v4134, 4294901760
        %4309 = vmatmul.mubr.f32.gmra.mrb[0].mxu0 %v4308
        %v4310 = vpop.f32.mrb[0].mxu0
        %v4311 = vadd.f32 %v4224, %v4310
        %v4312 = vpop.f32.mrb[0].mxu0
        %4313 = vdwg.mxu0
        %4314 = vmatprep.subr.mxu0 0.0
        %v4315 = vand.u32 %v4136, 4294901760
        %v4316 = vsub.f32 %v4136, %v4315
        %4317 = vmatpush1.xpose.msra.mxu0 %v4316
        %4318 = vmatprep.subr.mxu0 0.0
        %v4319 = vand.u32 %v4138, 4294901760
        %v4320 = vsub.f32 %v4138, %v4319
        %4321 = vmatpush1.xpose.msra.mxu0 %v4320
        %4322 = vmatprep.subr.mxu0 0.0
        %4323 = vmatpush1.xpose.msra.mxu0 0.0
        %4324 = vmatprep.subr.mxu0 0.0
        %4325 = vmatpush1.xpose.msra.mxu0 0.0
        %4326 = vmatprep.subr.mxu0 0.0
        %4327 = vmatpush1.xpose.msra.mxu0 0.0
        %4328 = vmatprep.subr.mxu0 0.0
        %4329 = vmatpush1.xpose.msra.mxu0 0.0
        %4330 = vmatprep.subr.mxu0 0.0
        %4331 = vmatpush1.xpose.msra.mxu0 0.0
        %4332 = vmatprep.subr.mxu0 0.0
        %4333 = vmatpush1.xpose.msra.mxu0 0.0
        %4334 = vmatprep.subr.mxu0 0.0
        %4335 = vmatpush1.xpose.msra.mxu0 0.0
        %4336 = vmatprep.subr.mxu0 0.0
        %4337 = vmatpush1.xpose.msra.mxu0 0.0
        %4338 = vmatprep.subr.mxu0 0.0
        %4339 = vmatpush1.xpose.msra.mxu0 0.0
        %4340 = vmatprep.subr.mxu0 0.0
        %4341 = vmatpush1.xpose.msra.mxu0 0.0
        %4342 = vmatprep.subr.mxu0 0.0
        %4343 = vmatpush1.xpose.msra.mxu0 0.0
        %4344 = vmatprep.subr.mxu0 0.0
        %4345 = vmatpush1.xpose.msra.mxu0 0.0
        %4346 = vmatprep.subr.mxu0 0.0
        %4347 = vmatpush1.xpose.msra.mxu0 0.0
        %4348 = vmatprep.subr.mxu0 0.0
        %4349 = vmatpush1.xpose.msra.mxu0 0.0
        %4350 = vmatprep.subr.mxu0 0.0
        %4351 = vmatpush1.xpose.msra.mxu0 0.0
        %4352 = vmatprep.subr.mxu0 0.0
        %4353 = vmatpush1.xpose.msra.mxu0 0.0
        %4354 = vmatprep.subr.mxu0 0.0
        %4355 = vmatpush1.xpose.msra.mxu0 0.0
        %4356 = vmatprep.subr.mxu0 0.0
        %4357 = vmatpush1.xpose.msra.mxu0 0.0
        %4358 = vmatprep.subr.mxu0 0.0
        %4359 = vmatpush1.xpose.msra.mxu0 0.0
        %4360 = vmatprep.subr.mxu0 0.0
        %4361 = vmatpush1.xpose.msra.mxu0 0.0
        %4362 = vmatprep.subr.mxu0 0.0
        %4363 = vmatpush1.xpose.msra.mxu0 0.0
        %4364 = vmatprep.subr.mxu0 0.0
        %4365 = vmatpush1.xpose.msra.mxu0 0.0
        %4366 = vmatprep.subr.mxu0 0.0
        %4367 = vmatpush1.xpose.msra.mxu0 0.0
        %4368 = vmatprep.subr.mxu0 0.0
        %4369 = vmatpush1.xpose.msra.mxu0 0.0
        %4370 = vmatprep.subr.mxu0 0.0
        %4371 = vmatpush1.xpose.msra.mxu0 0.0
        %4372 = vmatprep.subr.mxu0 0.0
        %4373 = vmatpush1.xpose.msra.mxu0 0.0
        %4374 = vmatprep.subr.mxu0 0.0
        %4375 = vmatpush1.xpose.msra.mxu0 0.0
        %4376 = vmatprep.subr.mxu0 0.0
        %4377 = vmatpush1.xpose.msra.mxu0 0.0
        %4378 = vmatprep.subr.mxu0 0.0
        %4379 = vmatpush1.xpose.msra.mxu0 0.0
        %4380 = vmatprep.subr.mxu0 0.0
        %4381 = vmatpush1.xpose.msra.mxu0 0.0
        %4382 = vmatprep.mubr.f32.mxu0 0.0
        %v4383 = vand.u32 %v4132, 4294901760
        %v4384 = vsub.f32 %v4132, %v4383
        %4385 = vmatmul.mubr.f32.gmra.mrb[0].mxu0 %v4384
        %v4386 = vpop.f32.mrb[0].mxu0
        %v4387 = vadd.f32 %v4305, %v4386
        %v4388 = vpop.f32.mrb[0].mxu0
        %4389 = vmatprep.mubr.f32.mxu0 0.0
        %v4390 = vand.u32 %v4134, 4294901760
        %v4391 = vsub.f32 %v4134, %v4390
        %4392 = vmatmul.mubr.f32.gmra.mrb[0].mxu0 %v4391
        %v4393 = vpop.f32.mrb[0].mxu0
        %v4394 = vadd.f32 %v4311, %v4393
        %v4395 = vpop.f32.mrb[0].mxu0
        %4396 = vdwg.mxu0
        %4397 = vmatprep.subr.mxu0 0.0
        %v4398 = vand.u32 %v4136, 4294901760
        %4399 = vmatpush1.xpose.msra.mxu0 %v4398
        %4400 = vmatprep.subr.mxu0 0.0
        %v4401 = vand.u32 %v4138, 4294901760
        %4402 = vmatpush1.xpose.msra.mxu0 %v4401
        %4403 = vmatprep.subr.mxu0 0.0
        %4404 = vmatpush1.xpose.msra.mxu0 0.0
        %4405 = vmatprep.subr.mxu0 0.0
        %4406 = vmatpush1.xpose.msra.mxu0 0.0
        %4407 = vmatprep.subr.mxu0 0.0
        %4408 = vmatpush1.xpose.msra.mxu0 0.0
        %4409 = vmatprep.subr.mxu0 0.0
        %4410 = vmatpush1.xpose.msra.mxu0 0.0
        %4411 = vmatprep.subr.mxu0 0.0
        %4412 = vmatpush1.xpose.msra.mxu0 0.0
        %4413 = vmatprep.subr.mxu0 0.0
        %4414 = vmatpush1.xpose.msra.mxu0 0.0
        %4415 = vmatprep.subr.mxu0 0.0
        %4416 = vmatpush1.xpose.msra.mxu0 0.0
        %4417 = vmatprep.subr.mxu0 0.0
        %4418 = vmatpush1.xpose.msra.mxu0 0.0
        %4419 = vmatprep.subr.mxu0 0.0
        %4420 = vmatpush1.xpose.msra.mxu0 0.0
        %4421 = vmatprep.subr.mxu0 0.0
        %4422 = vmatpush1.xpose.msra.mxu0 0.0
        %4423 = vmatprep.subr.mxu0 0.0
        %4424 = vmatpush1.xpose.msra.mxu0 0.0
        %4425 = vmatprep.subr.mxu0 0.0
        %4426 = vmatpush1.xpose.msra.mxu0 0.0
        %4427 = vmatprep.subr.mxu0 0.0
        %4428 = vmatpush1.xpose.msra.mxu0 0.0
        %4429 = vmatprep.subr.mxu0 0.0
        %4430 = vmatpush1.xpose.msra.mxu0 0.0
        %4431 = vmatprep.subr.mxu0 0.0
        %4432 = vmatpush1.xpose.msra.mxu0 0.0
        %4433 = vmatprep.subr.mxu0 0.0
        %4434 = vmatpush1.xpose.msra.mxu0 0.0
        %4435 = vmatprep.subr.mxu0 0.0
        %4436 = vmatpush1.xpose.msra.mxu0 0.0
        %4437 = vmatprep.subr.mxu0 0.0
        %4438 = vmatpush1.xpose.msra.mxu0 0.0
        %4439 = vmatprep.subr.mxu0 0.0
        %4440 = vmatpush1.xpose.msra.mxu0 0.0
        %4441 = vmatprep.subr.mxu0 0.0
        %4442 = vmatpush1.xpose.msra.mxu0 0.0
        %4443 = vmatprep.subr.mxu0 0.0
        %4444 = vmatpush1.xpose.msra.mxu0 0.0
        %4445 = vmatprep.subr.mxu0 0.0
        %4446 = vmatpush1.xpose.msra.mxu0 0.0
        %4447 = vmatprep.subr.mxu0 0.0
        %4448 = vmatpush1.xpose.msra.mxu0 0.0
        %4449 = vmatprep.subr.mxu0 0.0
        %4450 = vmatpush1.xpose.msra.mxu0 0.0
        %4451 = vmatprep.subr.mxu0 0.0
        %4452 = vmatpush1.xpose.msra.mxu0 0.0
        %4453 = vmatprep.subr.mxu0 0.0
        %4454 = vmatpush1.xpose.msra.mxu0 0.0
        %4455 = vmatprep.subr.mxu0 0.0
        %4456 = vmatpush1.xpose.msra.mxu0 0.0
        %4457 = vmatprep.subr.mxu0 0.0
        %4458 = vmatpush1.xpose.msra.mxu0 0.0
        %4459 = vmatprep.subr.mxu0 0.0
        %4460 = vmatpush1.xpose.msra.mxu0 0.0
        %4461 = vmatprep.subr.mxu0 0.0
        %4462 = vmatpush1.xpose.msra.mxu0 0.0
        %4463 = vmatprep.mubr.f32.mxu0 0.0
        %v4464 = vand.u32 %v4132, 4294901760
        %v4465 = vsub.f32 %v4132, %v4464
        %v4466 = vand.u32 %v4465, 4294901760
        %4467 = vmatmul.mubr.f32.gmra.mrb[0].mxu0 %v4466
        %v4468 = vpop.f32.mrb[0].mxu0
        %v4469 = vadd.f32 %v4387, %v4468
        %v4470 = vpop.f32.mrb[0].mxu0
        %4471 = vmatprep.mubr.f32.mxu0 0.0
        %v4472 = vand.u32 %v4134, 4294901760
        %v4473 = vsub.f32 %v4134, %v4472
        %v4474 = vand.u32 %v4473, 4294901760
        %4475 = vmatmul.mubr.f32.gmra.mrb[0].mxu0 %v4474
        %v4476 = vpop.f32.mrb[0].mxu0
        %v4477 = vadd.f32 %v4394, %v4476
        %v4478 = vpop.f32.mrb[0].mxu0
        %4479 = vdwg.mxu0
        %4480 = vmatprep.subr.mxu0 0.0
        %v4481 = vand.u32 %v4136, 4294901760
        %v4482 = vsub.f32 %v4136, %v4481
        %v4483 = vand.u32 %v4482, 4294901760
        %4484 = vmatpush1.xpose.msra.mxu0 %v4483
        %4485 = vmatprep.subr.mxu0 0.0
        %v4486 = vand.u32 %v4138, 4294901760
        %v4487 = vsub.f32 %v4138, %v4486
        %v4488 = vand.u32 %v4487, 4294901760
        %4489 = vmatpush1.xpose.msra.mxu0 %v4488
        %4490 = vmatprep.subr.mxu0 0.0
        %4491 = vmatpush1.xpose.msra.mxu0 0.0
        %4492 = vmatprep.subr.mxu0 0.0
        %4493 = vmatpush1.xpose.msra.mxu0 0.0
        %4494 = vmatprep.subr.mxu0 0.0
        %4495 = vmatpush1.xpose.msra.mxu0 0.0
        %4496 = vmatprep.subr.mxu0 0.0
        %4497 = vmatpush1.xpose.msra.mxu0 0.0
        %4498 = vmatprep.subr.mxu0 0.0
        %4499 = vmatpush1.xpose.msra.mxu0 0.0
        %4500 = vmatprep.subr.mxu0 0.0
        %4501 = vmatpush1.xpose.msra.mxu0 0.0
        %4502 = vmatprep.subr.mxu0 0.0
        %4503 = vmatpush1.xpose.msra.mxu0 0.0
        %4504 = vmatprep.subr.mxu0 0.0
        %4505 = vmatpush1.xpose.msra.mxu0 0.0
        %4506 = vmatprep.subr.mxu0 0.0
        %4507 = vmatpush1.xpose.msra.mxu0 0.0
        %4508 = vmatprep.subr.mxu0 0.0
        %4509 = vmatpush1.xpose.msra.mxu0 0.0
        %4510 = vmatprep.subr.mxu0 0.0
        %4511 = vmatpush1.xpose.msra.mxu0 0.0
        %4512 = vmatprep.subr.mxu0 0.0
        %4513 = vmatpush1.xpose.msra.mxu0 0.0
        %4514 = vmatprep.subr.mxu0 0.0
        %4515 = vmatpush1.xpose.msra.mxu0 0.0
        %4516 = vmatprep.subr.mxu0 0.0
        %4517 = vmatpush1.xpose.msra.mxu0 0.0
        %4518 = vmatprep.subr.mxu0 0.0
        %4519 = vmatpush1.xpose.msra.mxu0 0.0
        %4520 = vmatprep.subr.mxu0 0.0
        %4521 = vmatpush1.xpose.msra.mxu0 0.0
        %4522 = vmatprep.subr.mxu0 0.0
        %4523 = vmatpush1.xpose.msra.mxu0 0.0
        %4524 = vmatprep.subr.mxu0 0.0
        %4525 = vmatpush1.xpose.msra.mxu0 0.0
        %4526 = vmatprep.subr.mxu0 0.0
        %4527 = vmatpush1.xpose.msra.mxu0 0.0
        %4528 = vmatprep.subr.mxu0 0.0
        %4529 = vmatpush1.xpose.msra.mxu0 0.0
        %4530 = vmatprep.subr.mxu0 0.0
        %4531 = vmatpush1.xpose.msra.mxu0 0.0
        %4532 = vmatprep.subr.mxu0 0.0
        %4533 = vmatpush1.xpose.msra.mxu0 0.0
        %4534 = vmatprep.subr.mxu0 0.0
        %4535 = vmatpush1.xpose.msra.mxu0 0.0
        %4536 = vmatprep.subr.mxu0 0.0
        %4537 = vmatpush1.xpose.msra.mxu0 0.0
        %4538 = vmatprep.subr.mxu0 0.0
        %4539 = vmatpush1.xpose.msra.mxu0 0.0
        %4540 = vmatprep.subr.mxu0 0.0
        %4541 = vmatpush1.xpose.msra.mxu0 0.0
        %4542 = vmatprep.subr.mxu0 0.0
        %4543 = vmatpush1.xpose.msra.mxu0 0.0
        %4544 = vmatprep.subr.mxu0 0.0
        %4545 = vmatpush1.xpose.msra.mxu0 0.0
        %4546 = vmatprep.subr.mxu0 0.0
        %4547 = vmatpush1.xpose.msra.mxu0 0.0
        %4548 = vmatprep.subr.mxu0 0.0
        %4549 = vmatpush1.xpose.msra.mxu0 0.0
        %4550 = vmatprep.mubr.f32.mxu0 0.0
        %v4551 = vand.u32 %v4132, 4294901760
        %4552 = vmatmul.mubr.f32.gmra.mrb[0].mxu0 %v4551
        %v4553 = vpop.f32.mrb[0].mxu0
        %v4554 = vadd.f32 %v4469, %v4553
        %v4555 = vpop.f32.mrb[0].mxu0
        %4556 = vmatprep.mubr.f32.mxu0 0.0
        %v4557 = vand.u32 %v4134, 4294901760
        %4558 = vmatmul.mubr.f32.gmra.mrb[0].mxu0 %v4557
        %v4559 = vpop.f32.mrb[0].mxu0
        %v4560 = vadd.f32 %v4477, %v4559
        %v4561 = vpop.f32.mrb[0].mxu0
        %4562 = vdwg.mxu0
        %4563 = vmatprep.subr.mxu0 0.0
        %v4564 = vand.u32 %v4136, 4294901760
        %4565 = vmatpush1.xpose.msra.mxu0 %v4564
        %4566 = vmatprep.subr.mxu0 0.0
        %v4567 = vand.u32 %v4138, 4294901760
        %4568 = vmatpush1.xpose.msra.mxu0 %v4567
        %4569 = vmatprep.subr.mxu0 0.0
        %4570 = vmatpush1.xpose.msra.mxu0 0.0
        %4571 = vmatprep.subr.mxu0 0.0
        %4572 = vmatpush1.xpose.msra.mxu0 0.0
        %4573 = vmatprep.subr.mxu0 0.0
        %4574 = vmatpush1.xpose.msra.mxu0 0.0
        %4575 = vmatprep.subr.mxu0 0.0
        %4576 = vmatpush1.xpose.msra.mxu0 0.0
        %4577 = vmatprep.subr.mxu0 0.0
        %4578 = vmatpush1.xpose.msra.mxu0 0.0
        %4579 = vmatprep.subr.mxu0 0.0
        %4580 = vmatpush1.xpose.msra.mxu0 0.0
        %4581 = vmatprep.subr.mxu0 0.0
        %4582 = vmatpush1.xpose.msra.mxu0 0.0
        %4583 = vmatprep.subr.mxu0 0.0
        %4584 = vmatpush1.xpose.msra.mxu0 0.0
        %4585 = vmatprep.subr.mxu0 0.0
        %4586 = vmatpush1.xpose.msra.mxu0 0.0
        %4587 = vmatprep.subr.mxu0 0.0
        %4588 = vmatpush1.xpose.msra.mxu0 0.0
        %4589 = vmatprep.subr.mxu0 0.0
        %4590 = vmatpush1.xpose.msra.mxu0 0.0
        %4591 = vmatprep.subr.mxu0 0.0
        %4592 = vmatpush1.xpose.msra.mxu0 0.0
        %4593 = vmatprep.subr.mxu0 0.0
        %4594 = vmatpush1.xpose.msra.mxu0 0.0
        %4595 = vmatprep.subr.mxu0 0.0
        %4596 = vmatpush1.xpose.msra.mxu0 0.0
        %4597 = vmatprep.subr.mxu0 0.0
        %4598 = vmatpush1.xpose.msra.mxu0 0.0
        %4599 = vmatprep.subr.mxu0 0.0
        %4600 = vmatpush1.xpose.msra.mxu0 0.0
        %4601 = vmatprep.subr.mxu0 0.0
        %4602 = vmatpush1.xpose.msra.mxu0 0.0
        %4603 = vmatprep.subr.mxu0 0.0
        %4604 = vmatpush1.xpose.msra.mxu0 0.0
        %4605 = vmatprep.subr.mxu0 0.0
        %4606 = vmatpush1.xpose.msra.mxu0 0.0
        %4607 = vmatprep.subr.mxu0 0.0
        %4608 = vmatpush1.xpose.msra.mxu0 0.0
        %4609 = vmatprep.subr.mxu0 0.0
        %4610 = vmatpush1.xpose.msra.mxu0 0.0
        %4611 = vmatprep.subr.mxu0 0.0
        %4612 = vmatpush1.xpose.msra.mxu0 0.0
        %4613 = vmatprep.subr.mxu0 0.0
        %4614 = vmatpush1.xpose.msra.mxu0 0.0
        %4615 = vmatprep.subr.mxu0 0.0
        %4616 = vmatpush1.xpose.msra.mxu0 0.0
        %4617 = vmatprep.subr.mxu0 0.0
        %4618 = vmatpush1.xpose.msra.mxu0 0.0
        %4619 = vmatprep.subr.mxu0 0.0
        %4620 = vmatpush1.xpose.msra.mxu0 0.0
        %4621 = vmatprep.subr.mxu0 0.0
        %4622 = vmatpush1.xpose.msra.mxu0 0.0
        %4623 = vmatprep.subr.mxu0 0.0
        %4624 = vmatpush1.xpose.msra.mxu0 0.0
        %4625 = vmatprep.subr.mxu0 0.0
        %4626 = vmatpush1.xpose.msra.mxu0 0.0
        %4627 = vmatprep.subr.mxu0 0.0
        %4628 = vmatpush1.xpose.msra.mxu0 0.0
        %4629 = vmatprep.mubr.f32.mxu0 0.0
        %v4630 = vand.u32 %v4132, 4294901760
        %4631 = vmatmul.mubr.f32.gmra.mrb[0].mxu0 %v4630
        %v4632 = vpop.f32.mrb[0].mxu0
        %v4633 = vadd.f32 %v4554, %v4632
        %v4634 = vpop.f32.mrb[0].mxu0
        %4635 = vmatprep.mubr.f32.mxu0 0.0
        %v4636 = vand.u32 %v4134, 4294901760
        %4637 = vmatmul.mubr.f32.gmra.mrb[0].mxu0 %v4636
        %v4638 = vpop.f32.mrb[0].mxu0
        %v4639 = vadd.f32 %v4560, %v4638
        %v4640 = vpop.f32.mrb[0].mxu0
        %4641 = vdwg.mxu0
        %v4642 = vsel %vm1483, %v4633, -inf
        %4643 = vmax.xlane.f32.xlu0 %v4642
        %v4644 = vpop.xlane.xlu0 %4643
        %v4645 = vsel %vm1483, %v4639, -inf
        %4646 = vmax.xlane.f32.xlu0 %v4645
        %v4647 = vpop.xlane.xlu0 %4646
        %v4648 = vsub.f32 %v4633, %v4644
        %v4649 = vsub.f32 %v4639, %v4647
        %v4650 = vmul.f32 %v4648, 1.442695
        %v4651 = vpow.pop %v4650
        %v4652 = vmul.f32 %v4649, 1.442695
        %v4653 = vpow.pop %v4652
        %v4654 = vsel %vm1483, %v4651, 0.0
        %4655 = vadd.xlane.f32.xlu0 %v4654
        %v4656 = vpop.xlane.xlu0 %4655
        %v4657 = vsel %vm1483, %v4653, 0.0
        %4658 = vadd.xlane.f32.xlu0 %v4657
        %v4659 = vpop.xlane.xlu0 %4658
        %4660 = vrot.lane.b32.xlu0 %v957, 104
        %v4661 = vpop.permute.xlu0 %4660
        %4662 = vrot.lane.b32.xlu0 %v964, 104
        %v4663 = vpop.permute.xlu0 %4662
        %v4667 = vsel %vm1483, %v4651, 0
        %v4670 = vsel %vm1483, %v4653, 0
        %4672 = vmatprep.subr.mxu0 0.0
        %v4673 = vand.u32 %v4661, 4294901760
        %4674 = vmatpush1.msra.mxu0 %v4673
        %4675 = vmatprep.subr.mxu0 0.0
        %v4676 = vand.u32 %v4663, 4294901760
        %4677 = vmatpush1.msra.mxu0 %v4676
        %4678 = vmatprep.subr.mxu0 0.0
        %4679 = vmatpush1.msra.mxu0 0.0
        %4680 = vmatprep.subr.mxu0 0.0
        %4681 = vmatpush1.msra.mxu0 0.0
        %4682 = vmatprep.subr.mxu0 0.0
        %4683 = vmatpush1.msra.mxu0 0.0
        %4684 = vmatprep.subr.mxu0 0.0
        %4685 = vmatpush1.msra.mxu0 0.0
        %4686 = vmatprep.subr.mxu0 0.0
        %4687 = vmatpush1.msra.mxu0 0.0
        %4688 = vmatprep.subr.mxu0 0.0
        %4689 = vmatpush1.msra.mxu0 0.0
        %4690 = vmatprep.subr.mxu0 0.0
        %4691 = vmatpush1.msra.mxu0 0.0
        %4692 = vmatprep.subr.mxu0 0.0
        %4693 = vmatpush1.msra.mxu0 0.0
        %4694 = vmatprep.subr.mxu0 0.0
        %4695 = vmatpush1.msra.mxu0 0.0
        %4696 = vmatprep.subr.mxu0 0.0
        %4697 = vmatpush1.msra.mxu0 0.0
        %4698 = vmatprep.subr.mxu0 0.0
        %4699 = vmatpush1.msra.mxu0 0.0
        %4700 = vmatprep.subr.mxu0 0.0
        %4701 = vmatpush1.msra.mxu0 0.0
        %4702 = vmatprep.subr.mxu0 0.0
        %4703 = vmatpush1.msra.mxu0 0.0
        %4704 = vmatprep.subr.mxu0 0.0
        %4705 = vmatpush1.msra.mxu0 0.0
        %4706 = vmatprep.subr.mxu0 0.0
        %4707 = vmatpush1.msra.mxu0 0.0
        %4708 = vmatprep.subr.mxu0 0.0
        %4709 = vmatpush1.msra.mxu0 0.0
        %4710 = vmatprep.subr.mxu0 0.0
        %4711 = vmatpush1.msra.mxu0 0.0
        %4712 = vmatprep.subr.mxu0 0.0
        %4713 = vmatpush1.msra.mxu0 0.0
        %4714 = vmatprep.subr.mxu0 0.0
        %4715 = vmatpush1.msra.mxu0 0.0
        %4716 = vmatprep.subr.mxu0 0.0
        %4717 = vmatpush1.msra.mxu0 0.0
        %4718 = vmatprep.subr.mxu0 0.0
        %4719 = vmatpush1.msra.mxu0 0.0
        %4720 = vmatprep.subr.mxu0 0.0
        %4721 = vmatpush1.msra.mxu0 0.0
        %4722 = vmatprep.subr.mxu0 0.0
        %4723 = vmatpush1.msra.mxu0 0.0
        %4724 = vmatprep.subr.mxu0 0.0
        %4725 = vmatpush1.msra.mxu0 0.0
        %4726 = vmatprep.subr.mxu0 0.0
        %4727 = vmatpush1.msra.mxu0 0.0
        %4728 = vmatprep.subr.mxu0 0.0
        %4729 = vmatpush1.msra.mxu0 0.0
        %4730 = vmatprep.subr.mxu0 0.0
        %4731 = vmatpush1.msra.mxu0 0.0
        %4732 = vmatprep.subr.mxu0 0.0
        %4733 = vmatpush1.msra.mxu0 0.0
        %4734 = vmatprep.subr.mxu0 0.0
        %4735 = vmatpush1.msra.mxu0 0.0
        %4736 = vmatprep.subr.mxu0 0.0
        %4737 = vmatpush1.msra.mxu0 0.0
        %4738 = vmatprep.mubr.f32.mxu0 0.0
        %v4739 = vand.u32 %v4667, 4294901760
        %v4740 = vsub.f32 %v4667, %v4739
        %v4741 = vand.u32 %v4740, 4294901760
        %v4742 = vsub.f32 %v4740, %v4741
        %v4743 = vand.u32 %v4742, 4294901760
        %4744 = vmatmul.mubr.f32.gmra.mrb[0].mxu0 %v4743
        %v4745 = vpop.f32.mrb[0].mxu0
        %v4746 = vadd.f32 0.0, %v4745
        %v4747 = vpop.f32.mrb[0].mxu0
        %4748 = vmatprep.mubr.f32.mxu0 0.0
        %v4749 = vand.u32 %v4670, 4294901760
        %v4750 = vsub.f32 %v4670, %v4749
        %v4751 = vand.u32 %v4750, 4294901760
        %v4752 = vsub.f32 %v4750, %v4751
        %v4753 = vand.u32 %v4752, 4294901760
        %4754 = vmatmul.mubr.f32.gmra.mrb[0].mxu0 %v4753
        %v4755 = vpop.f32.mrb[0].mxu0
        %v4756 = vadd.f32 0.0, %v4755
        %v4757 = vpop.f32.mrb[0].mxu0
        %4758 = vdwg.mxu0
        %4759 = vmatprep.subr.mxu0 0.0
        %v4760 = vand.u32 %v4661, 4294901760
        %v4761 = vsub.f32 %v4661, %v4760
        %v4762 = vand.u32 %v4761, 4294901760
        %v4763 = vsub.f32 %v4761, %v4762
        %v4764 = vand.u32 %v4763, 4294901760
        %4765 = vmatpush1.msra.mxu0 %v4764
        %4766 = vmatprep.subr.mxu0 0.0
        %v4767 = vand.u32 %v4663, 4294901760
        %v4768 = vsub.f32 %v4663, %v4767
        %v4769 = vand.u32 %v4768, 4294901760
        %v4770 = vsub.f32 %v4768, %v4769
        %v4771 = vand.u32 %v4770, 4294901760
        %4772 = vmatpush1.msra.mxu0 %v4771
        %4773 = vmatprep.subr.mxu0 0.0
        %4774 = vmatpush1.msra.mxu0 0.0
        %4775 = vmatprep.subr.mxu0 0.0
        %4776 = vmatpush1.msra.mxu0 0.0
        %4777 = vmatprep.subr.mxu0 0.0
        %4778 = vmatpush1.msra.mxu0 0.0
        %4779 = vmatprep.subr.mxu0 0.0
        %4780 = vmatpush1.msra.mxu0 0.0
        %4781 = vmatprep.subr.mxu0 0.0
        %4782 = vmatpush1.msra.mxu0 0.0
        %4783 = vmatprep.subr.mxu0 0.0
        %4784 = vmatpush1.msra.mxu0 0.0
        %4785 = vmatprep.subr.mxu0 0.0
        %4786 = vmatpush1.msra.mxu0 0.0
        %4787 = vmatprep.subr.mxu0 0.0
        %4788 = vmatpush1.msra.mxu0 0.0
        %4789 = vmatprep.subr.mxu0 0.0
        %4790 = vmatpush1.msra.mxu0 0.0
        %4791 = vmatprep.subr.mxu0 0.0
        %4792 = vmatpush1.msra.mxu0 0.0
        %4793 = vmatprep.subr.mxu0 0.0
        %4794 = vmatpush1.msra.mxu0 0.0
        %4795 = vmatprep.subr.mxu0 0.0
        %4796 = vmatpush1.msra.mxu0 0.0
        %4797 = vmatprep.subr.mxu0 0.0
        %4798 = vmatpush1.msra.mxu0 0.0
        %4799 = vmatprep.subr.mxu0 0.0
        %4800 = vmatpush1.msra.mxu0 0.0
        %4801 = vmatprep.subr.mxu0 0.0
        %4802 = vmatpush1.msra.mxu0 0.0
        %4803 = vmatprep.subr.mxu0 0.0
        %4804 = vmatpush1.msra.mxu0 0.0
        %4805 = vmatprep.subr.mxu0 0.0
        %4806 = vmatpush1.msra.mxu0 0.0
        %4807 = vmatprep.subr.mxu0 0.0
        %4808 = vmatpush1.msra.mxu0 0.0
        %4809 = vmatprep.subr.mxu0 0.0
        %4810 = vmatpush1.msra.mxu0 0.0
        %4811 = vmatprep.subr.mxu0 0.0
        %4812 = vmatpush1.msra.mxu0 0.0
        %4813 = vmatprep.subr.mxu0 0.0
        %4814 = vmatpush1.msra.mxu0 0.0
        %4815 = vmatprep.subr.mxu0 0.0
        %4816 = vmatpush1.msra.mxu0 0.0
        %4817 = vmatprep.subr.mxu0 0.0
        %4818 = vmatpush1.msra.mxu0 0.0
        %4819 = vmatprep.subr.mxu0 0.0
        %4820 = vmatpush1.msra.mxu0 0.0
        %4821 = vmatprep.subr.mxu0 0.0
        %4822 = vmatpush1.msra.mxu0 0.0
        %4823 = vmatprep.subr.mxu0 0.0
        %4824 = vmatpush1.msra.mxu0 0.0
        %4825 = vmatprep.subr.mxu0 0.0
        %4826 = vmatpush1.msra.mxu0 0.0
        %4827 = vmatprep.subr.mxu0 0.0
        %4828 = vmatpush1.msra.mxu0 0.0
        %4829 = vmatprep.subr.mxu0 0.0
        %4830 = vmatpush1.msra.mxu0 0.0
        %4831 = vmatprep.subr.mxu0 0.0
        %4832 = vmatpush1.msra.mxu0 0.0
        %4833 = vmatprep.mubr.f32.mxu0 0.0
        %v4834 = vand.u32 %v4667, 4294901760
        %4835 = vmatmul.mubr.f32.gmra.mrb[0].mxu0 %v4834
        %v4836 = vpop.f32.mrb[0].mxu0
        %v4837 = vadd.f32 %v4746, %v4836
        %v4838 = vpop.f32.mrb[0].mxu0
        %4839 = vmatprep.mubr.f32.mxu0 0.0
        %v4840 = vand.u32 %v4670, 4294901760
        %4841 = vmatmul.mubr.f32.gmra.mrb[0].mxu0 %v4840
        %v4842 = vpop.f32.mrb[0].mxu0
        %v4843 = vadd.f32 %v4756, %v4842
        %v4844 = vpop.f32.mrb[0].mxu0
        %4845 = vdwg.mxu0
        %4846 = vmatprep.subr.mxu0 0.0
        %v4847 = vand.u32 %v4661, 4294901760
        %v4848 = vsub.f32 %v4661, %v4847
        %4849 = vmatpush1.msra.mxu0 %v4848
        %4850 = vmatprep.subr.mxu0 0.0
        %v4851 = vand.u32 %v4663, 4294901760
        %v4852 = vsub.f32 %v4663, %v4851
        %4853 = vmatpush1.msra.mxu0 %v4852
        %4854 = vmatprep.subr.mxu0 0.0
        %4855 = vmatpush1.msra.mxu0 0.0
        %4856 = vmatprep.subr.mxu0 0.0
        %4857 = vmatpush1.msra.mxu0 0.0
        %4858 = vmatprep.subr.mxu0 0.0
        %4859 = vmatpush1.msra.mxu0 0.0
        %4860 = vmatprep.subr.mxu0 0.0
        %4861 = vmatpush1.msra.mxu0 0.0
        %4862 = vmatprep.subr.mxu0 0.0
        %4863 = vmatpush1.msra.mxu0 0.0
        %4864 = vmatprep.subr.mxu0 0.0
        %4865 = vmatpush1.msra.mxu0 0.0
        %4866 = vmatprep.subr.mxu0 0.0
        %4867 = vmatpush1.msra.mxu0 0.0
        %4868 = vmatprep.subr.mxu0 0.0
        %4869 = vmatpush1.msra.mxu0 0.0
        %4870 = vmatprep.subr.mxu0 0.0
        %4871 = vmatpush1.msra.mxu0 0.0
        %4872 = vmatprep.subr.mxu0 0.0
        %4873 = vmatpush1.msra.mxu0 0.0
        %4874 = vmatprep.subr.mxu0 0.0
        %4875 = vmatpush1.msra.mxu0 0.0
        %4876 = vmatprep.subr.mxu0 0.0
        %4877 = vmatpush1.msra.mxu0 0.0
        %4878 = vmatprep.subr.mxu0 0.0
        %4879 = vmatpush1.msra.mxu0 0.0
        %4880 = vmatprep.subr.mxu0 0.0
        %4881 = vmatpush1.msra.mxu0 0.0
        %4882 = vmatprep.subr.mxu0 0.0
        %4883 = vmatpush1.msra.mxu0 0.0
        %4884 = vmatprep.subr.mxu0 0.0
        %4885 = vmatpush1.msra.mxu0 0.0
        %4886 = vmatprep.subr.mxu0 0.0
        %4887 = vmatpush1.msra.mxu0 0.0
        %4888 = vmatprep.subr.mxu0 0.0
        %4889 = vmatpush1.msra.mxu0 0.0
        %4890 = vmatprep.subr.mxu0 0.0
        %4891 = vmatpush1.msra.mxu0 0.0
        %4892 = vmatprep.subr.mxu0 0.0
        %4893 = vmatpush1.msra.mxu0 0.0
        %4894 = vmatprep.subr.mxu0 0.0
        %4895 = vmatpush1.msra.mxu0 0.0
        %4896 = vmatprep.subr.mxu0 0.0
        %4897 = vmatpush1.msra.mxu0 0.0
        %4898 = vmatprep.subr.mxu0 0.0
        %4899 = vmatpush1.msra.mxu0 0.0
        %4900 = vmatprep.subr.mxu0 0.0
        %4901 = vmatpush1.msra.mxu0 0.0
        %4902 = vmatprep.subr.mxu0 0.0
        %4903 = vmatpush1.msra.mxu0 0.0
        %4904 = vmatprep.subr.mxu0 0.0
        %4905 = vmatpush1.msra.mxu0 0.0
        %4906 = vmatprep.subr.mxu0 0.0
        %4907 = vmatpush1.msra.mxu0 0.0
        %4908 = vmatprep.subr.mxu0 0.0
        %4909 = vmatpush1.msra.mxu0 0.0
        %4910 = vmatprep.subr.mxu0 0.0
        %4911 = vmatpush1.msra.mxu0 0.0
        %4912 = vmatprep.subr.mxu0 0.0
        %4913 = vmatpush1.msra.mxu0 0.0
        %4914 = vmatprep.mubr.f32.mxu0 0.0
        %v4915 = vand.u32 %v4667, 4294901760
        %v4916 = vsub.f32 %v4667, %v4915
        %4917 = vmatmul.mubr.f32.gmra.mrb[0].mxu0 %v4916
        %v4918 = vpop.f32.mrb[0].mxu0
        %v4919 = vadd.f32 %v4837, %v4918
        %v4920 = vpop.f32.mrb[0].mxu0
        %4921 = vmatprep.mubr.f32.mxu0 0.0
        %v4922 = vand.u32 %v4670, 4294901760
        %v4923 = vsub.f32 %v4670, %v4922
        %4924 = vmatmul.mubr.f32.gmra.mrb[0].mxu0 %v4923
        %v4925 = vpop.f32.mrb[0].mxu0
        %v4926 = vadd.f32 %v4843, %v4925
        %v4927 = vpop.f32.mrb[0].mxu0
        %4928 = vdwg.mxu0
        %4929 = vmatprep.subr.mxu0 0.0
        %v4930 = vand.u32 %v4661, 4294901760
        %4931 = vmatpush1.msra.mxu0 %v4930
        %4932 = vmatprep.subr.mxu0 0.0
        %v4933 = vand.u32 %v4663, 4294901760
        %4934 = vmatpush1.msra.mxu0 %v4933
        %4935 = vmatprep.subr.mxu0 0.0
        %4936 = vmatpush1.msra.mxu0 0.0
        %4937 = vmatprep.subr.mxu0 0.0
        %4938 = vmatpush1.msra.mxu0 0.0
        %4939 = vmatprep.subr.mxu0 0.0
        %4940 = vmatpush1.msra.mxu0 0.0
        %4941 = vmatprep.subr.mxu0 0.0
        %4942 = vmatpush1.msra.mxu0 0.0
        %4943 = vmatprep.subr.mxu0 0.0
        %4944 = vmatpush1.msra.mxu0 0.0
        %4945 = vmatprep.subr.mxu0 0.0
        %4946 = vmatpush1.msra.mxu0 0.0
        %4947 = vmatprep.subr.mxu0 0.0
        %4948 = vmatpush1.msra.mxu0 0.0
        %4949 = vmatprep.subr.mxu0 0.0
        %4950 = vmatpush1.msra.mxu0 0.0
        %4951 = vmatprep.subr.mxu0 0.0
        %4952 = vmatpush1.msra.mxu0 0.0
        %4953 = vmatprep.subr.mxu0 0.0
        %4954 = vmatpush1.msra.mxu0 0.0
        %4955 = vmatprep.subr.mxu0 0.0
        %4956 = vmatpush1.msra.mxu0 0.0
        %4957 = vmatprep.subr.mxu0 0.0
        %4958 = vmatpush1.msra.mxu0 0.0
        %4959 = vmatprep.subr.mxu0 0.0
        %4960 = vmatpush1.msra.mxu0 0.0
        %4961 = vmatprep.subr.mxu0 0.0
        %4962 = vmatpush1.msra.mxu0 0.0
        %4963 = vmatprep.subr.mxu0 0.0
        %4964 = vmatpush1.msra.mxu0 0.0
        %4965 = vmatprep.subr.mxu0 0.0
        %4966 = vmatpush1.msra.mxu0 0.0
        %4967 = vmatprep.subr.mxu0 0.0
        %4968 = vmatpush1.msra.mxu0 0.0
        %4969 = vmatprep.subr.mxu0 0.0
        %4970 = vmatpush1.msra.mxu0 0.0
        %4971 = vmatprep.subr.mxu0 0.0
        %4972 = vmatpush1.msra.mxu0 0.0
        %4973 = vmatprep.subr.mxu0 0.0
        %4974 = vmatpush1.msra.mxu0 0.0
        %4975 = vmatprep.subr.mxu0 0.0
        %4976 = vmatpush1.msra.mxu0 0.0
        %4977 = vmatprep.subr.mxu0 0.0
        %4978 = vmatpush1.msra.mxu0 0.0
        %4979 = vmatprep.subr.mxu0 0.0
        %4980 = vmatpush1.msra.mxu0 0.0
        %4981 = vmatprep.subr.mxu0 0.0
        %4982 = vmatpush1.msra.mxu0 0.0
        %4983 = vmatprep.subr.mxu0 0.0
        %4984 = vmatpush1.msra.mxu0 0.0
        %4985 = vmatprep.subr.mxu0 0.0
        %4986 = vmatpush1.msra.mxu0 0.0
        %4987 = vmatprep.subr.mxu0 0.0
        %4988 = vmatpush1.msra.mxu0 0.0
        %4989 = vmatprep.subr.mxu0 0.0
        %4990 = vmatpush1.msra.mxu0 0.0
        %4991 = vmatprep.subr.mxu0 0.0
        %4992 = vmatpush1.msra.mxu0 0.0
        %4993 = vmatprep.subr.mxu0 0.0
        %4994 = vmatpush1.msra.mxu0 0.0
        %4995 = vmatprep.mubr.f32.mxu0 0.0
        %v4996 = vand.u32 %v4667, 4294901760
        %v4997 = vsub.f32 %v4667, %v4996
        %v4998 = vand.u32 %v4997, 4294901760
        %4999 = vmatmul.mubr.f32.gmra.mrb[0].mxu0 %v4998
        %v5000 = vpop.f32.mrb[0].mxu0
        %v5001 = vadd.f32 %v4919, %v5000
        %v5002 = vpop.f32.mrb[0].mxu0
        %5003 = vmatprep.mubr.f32.mxu0 0.0
        %v5004 = vand.u32 %v4670, 4294901760
        %v5005 = vsub.f32 %v4670, %v5004
        %v5006 = vand.u32 %v5005, 4294901760
        %5007 = vmatmul.mubr.f32.gmra.mrb[0].mxu0 %v5006
        %v5008 = vpop.f32.mrb[0].mxu0
        %v5009 = vadd.f32 %v4926, %v5008
        %v5010 = vpop.f32.mrb[0].mxu0
        %5011 = vdwg.mxu0
        %5012 = vmatprep.subr.mxu0 0.0
        %v5013 = vand.u32 %v4661, 4294901760
        %v5014 = vsub.f32 %v4661, %v5013
        %v5015 = vand.u32 %v5014, 4294901760
        %5016 = vmatpush1.msra.mxu0 %v5015
        %5017 = vmatprep.subr.mxu0 0.0
        %v5018 = vand.u32 %v4663, 4294901760
        %v5019 = vsub.f32 %v4663, %v5018
        %v5020 = vand.u32 %v5019, 4294901760
        %5021 = vmatpush1.msra.mxu0 %v5020
        %5022 = vmatprep.subr.mxu0 0.0
        %5023 = vmatpush1.msra.mxu0 0.0
        %5024 = vmatprep.subr.mxu0 0.0
        %5025 = vmatpush1.msra.mxu0 0.0
        %5026 = vmatprep.subr.mxu0 0.0
        %5027 = vmatpush1.msra.mxu0 0.0
        %5028 = vmatprep.subr.mxu0 0.0
        %5029 = vmatpush1.msra.mxu0 0.0
        %5030 = vmatprep.subr.mxu0 0.0
        %5031 = vmatpush1.msra.mxu0 0.0
        %5032 = vmatprep.subr.mxu0 0.0
        %5033 = vmatpush1.msra.mxu0 0.0
        %5034 = vmatprep.subr.mxu0 0.0
        %5035 = vmatpush1.msra.mxu0 0.0
        %5036 = vmatprep.subr.mxu0 0.0
        %5037 = vmatpush1.msra.mxu0 0.0
        %5038 = vmatprep.subr.mxu0 0.0
        %5039 = vmatpush1.msra.mxu0 0.0
        %5040 = vmatprep.subr.mxu0 0.0
        %5041 = vmatpush1.msra.mxu0 0.0
        %5042 = vmatprep.subr.mxu0 0.0
        %5043 = vmatpush1.msra.mxu0 0.0
        %5044 = vmatprep.subr.mxu0 0.0
        %5045 = vmatpush1.msra.mxu0 0.0
        %5046 = vmatprep.subr.mxu0 0.0
        %5047 = vmatpush1.msra.mxu0 0.0
        %5048 = vmatprep.subr.mxu0 0.0
        %5049 = vmatpush1.msra.mxu0 0.0
        %5050 = vmatprep.subr.mxu0 0.0
        %5051 = vmatpush1.msra.mxu0 0.0
        %5052 = vmatprep.subr.mxu0 0.0
        %5053 = vmatpush1.msra.mxu0 0.0
        %5054 = vmatprep.subr.mxu0 0.0
        %5055 = vmatpush1.msra.mxu0 0.0
        %5056 = vmatprep.subr.mxu0 0.0
        %5057 = vmatpush1.msra.mxu0 0.0
        %5058 = vmatprep.subr.mxu0 0.0
        %5059 = vmatpush1.msra.mxu0 0.0
        %5060 = vmatprep.subr.mxu0 0.0
        %5061 = vmatpush1.msra.mxu0 0.0
        %5062 = vmatprep.subr.mxu0 0.0
        %5063 = vmatpush1.msra.mxu0 0.0
        %5064 = vmatprep.subr.mxu0 0.0
        %5065 = vmatpush1.msra.mxu0 0.0
        %5066 = vmatprep.subr.mxu0 0.0
        %5067 = vmatpush1.msra.mxu0 0.0
        %5068 = vmatprep.subr.mxu0 0.0
        %5069 = vmatpush1.msra.mxu0 0.0
        %5070 = vmatprep.subr.mxu0 0.0
        %5071 = vmatpush1.msra.mxu0 0.0
        %5072 = vmatprep.subr.mxu0 0.0
        %5073 = vmatpush1.msra.mxu0 0.0
        %5074 = vmatprep.subr.mxu0 0.0
        %5075 = vmatpush1.msra.mxu0 0.0
        %5076 = vmatprep.subr.mxu0 0.0
        %5077 = vmatpush1.msra.mxu0 0.0
        %5078 = vmatprep.subr.mxu0 0.0
        %5079 = vmatpush1.msra.mxu0 0.0
        %5080 = vmatprep.subr.mxu0 0.0
        %5081 = vmatpush1.msra.mxu0 0.0
        %5082 = vmatprep.mubr.f32.mxu0 0.0
        %v5083 = vand.u32 %v4667, 4294901760
        %5084 = vmatmul.mubr.f32.gmra.mrb[0].mxu0 %v5083
        %v5085 = vpop.f32.mrb[0].mxu0
        %v5086 = vadd.f32 %v5001, %v5085
        %v5087 = vpop.f32.mrb[0].mxu0
        %5088 = vmatprep.mubr.f32.mxu0 0.0
        %v5089 = vand.u32 %v4670, 4294901760
        %5090 = vmatmul.mubr.f32.gmra.mrb[0].mxu0 %v5089
        %v5091 = vpop.f32.mrb[0].mxu0
        %v5092 = vadd.f32 %v5009, %v5091
        %v5093 = vpop.f32.mrb[0].mxu0
        %5094 = vdwg.mxu0
        %5095 = vmatprep.subr.mxu0 0.0
        %v5096 = vand.u32 %v4661, 4294901760
        %5097 = vmatpush1.msra.mxu0 %v5096
        %5098 = vmatprep.subr.mxu0 0.0
        %v5099 = vand.u32 %v4663, 4294901760
        %5100 = vmatpush1.msra.mxu0 %v5099
        %5101 = vmatprep.subr.mxu0 0.0
        %5102 = vmatpush1.msra.mxu0 0.0
        %5103 = vmatprep.subr.mxu0 0.0
        %5104 = vmatpush1.msra.mxu0 0.0
        %5105 = vmatprep.subr.mxu0 0.0
        %5106 = vmatpush1.msra.mxu0 0.0
        %5107 = vmatprep.subr.mxu0 0.0
        %5108 = vmatpush1.msra.mxu0 0.0
        %5109 = vmatprep.subr.mxu0 0.0
        %5110 = vmatpush1.msra.mxu0 0.0
        %5111 = vmatprep.subr.mxu0 0.0
        %5112 = vmatpush1.msra.mxu0 0.0
        %5113 = vmatprep.subr.mxu0 0.0
        %5114 = vmatpush1.msra.mxu0 0.0
        %5115 = vmatprep.subr.mxu0 0.0
        %5116 = vmatpush1.msra.mxu0 0.0
        %5117 = vmatprep.subr.mxu0 0.0
        %5118 = vmatpush1.msra.mxu0 0.0
        %5119 = vmatprep.subr.mxu0 0.0
        %5120 = vmatpush1.msra.mxu0 0.0
        %5121 = vmatprep.subr.mxu0 0.0
        %5122 = vmatpush1.msra.mxu0 0.0
        %5123 = vmatprep.subr.mxu0 0.0
        %5124 = vmatpush1.msra.mxu0 0.0
        %5125 = vmatprep.subr.mxu0 0.0
        %5126 = vmatpush1.msra.mxu0 0.0
        %5127 = vmatprep.subr.mxu0 0.0
        %5128 = vmatpush1.msra.mxu0 0.0
        %5129 = vmatprep.subr.mxu0 0.0
        %5130 = vmatpush1.msra.mxu0 0.0
        %5131 = vmatprep.subr.mxu0 0.0
        %5132 = vmatpush1.msra.mxu0 0.0
        %5133 = vmatprep.subr.mxu0 0.0
        %5134 = vmatpush1.msra.mxu0 0.0
        %5135 = vmatprep.subr.mxu0 0.0
        %5136 = vmatpush1.msra.mxu0 0.0
        %5137 = vmatprep.subr.mxu0 0.0
        %5138 = vmatpush1.msra.mxu0 0.0
        %5139 = vmatprep.subr.mxu0 0.0
        %5140 = vmatpush1.msra.mxu0 0.0
        %5141 = vmatprep.subr.mxu0 0.0
        %5142 = vmatpush1.msra.mxu0 0.0
        %5143 = vmatprep.subr.mxu0 0.0
        %5144 = vmatpush1.msra.mxu0 0.0
        %5145 = vmatprep.subr.mxu0 0.0
        %5146 = vmatpush1.msra.mxu0 0.0
        %5147 = vmatprep.subr.mxu0 0.0
        %5148 = vmatpush1.msra.mxu0 0.0
        %5149 = vmatprep.subr.mxu0 0.0
        %5150 = vmatpush1.msra.mxu0 0.0
        %5151 = vmatprep.subr.mxu0 0.0
        %5152 = vmatpush1.msra.mxu0 0.0
        %5153 = vmatprep.subr.mxu0 0.0
        %5154 = vmatpush1.msra.mxu0 0.0
        %5155 = vmatprep.subr.mxu0 0.0
        %5156 = vmatpush1.msra.mxu0 0.0
        %5157 = vmatprep.subr.mxu0 0.0
        %5158 = vmatpush1.msra.mxu0 0.0
        %5159 = vmatprep.subr.mxu0 0.0
        %5160 = vmatpush1.msra.mxu0 0.0
        %5161 = vmatprep.mubr.f32.mxu0 0.0
        %v5162 = vand.u32 %v4667, 4294901760
        %5163 = vmatmul.mubr.f32.gmra.mrb[0].mxu0 %v5162
        %v5164 = vpop.f32.mrb[0].mxu0
        %v5165 = vadd.f32 %v5086, %v5164
        %v5166 = vpop.f32.mrb[0].mxu0
        %5167 = vmatprep.mubr.f32.mxu0 0.0
        %v5168 = vand.u32 %v4670, 4294901760
        %5169 = vmatmul.mubr.f32.gmra.mrb[0].mxu0 %v5168
        %v5170 = vpop.f32.mrb[0].mxu0
        %v5171 = vadd.f32 %v5092, %v5170
        %v5172 = vpop.f32.mrb[0].mxu0
        %5173 = vdwg.mxu0
        %v5174 = vrcp.pop %v4656
        %v5175 = vmul.f32 %v5165, %v5174
        %v5176 = vrcp.pop %v4659
        %v5177 = vmul.f32 %v5171, %v5176
        %5178 = vrot.lane.b32.xlu0 %v955, 96
        %v5179 = vpop.permute.xlu0 %5178
        %5180 = vrot.lane.b32.xlu0 %v962, 96
        %v5181 = vpop.permute.xlu0 %5180
        %5182 = vrot.lane.b32.xlu0 %v955, 32
        %v5183 = vpop.permute.xlu0 %5182
        %5184 = vrot.lane.b32.xlu0 %v962, 32
        %v5185 = vpop.permute.xlu0 %5184
        %v5186 = vsel %vm972, %v5179, 0
        %v5188 = vsel %vm972, %v5181, 0
        %v5190 = vsel %vm972, %v5183, 0
        %v5192 = vsel %vm972, %v5185, 0
        %5194 = vmatprep.subr.mxu0 0.0
        %v5195 = vand.u32 %v5190, 4294901760
        %5196 = vmatpush1.xpose.msra.mxu0 %v5195
        %5197 = vmatprep.subr.mxu0 0.0
        %v5198 = vand.u32 %v5192, 4294901760
        %5199 = vmatpush1.xpose.msra.mxu0 %v5198
        %5200 = vmatprep.subr.mxu0 0.0
        %5201 = vmatpush1.xpose.msra.mxu0 0.0
        %5202 = vmatprep.subr.mxu0 0.0
        %5203 = vmatpush1.xpose.msra.mxu0 0.0
        %5204 = vmatprep.subr.mxu0 0.0
        %5205 = vmatpush1.xpose.msra.mxu0 0.0
        %5206 = vmatprep.subr.mxu0 0.0
        %5207 = vmatpush1.xpose.msra.mxu0 0.0
        %5208 = vmatprep.subr.mxu0 0.0
        %5209 = vmatpush1.xpose.msra.mxu0 0.0
        %5210 = vmatprep.subr.mxu0 0.0
        %5211 = vmatpush1.xpose.msra.mxu0 0.0
        %5212 = vmatprep.subr.mxu0 0.0
        %5213 = vmatpush1.xpose.msra.mxu0 0.0
        %5214 = vmatprep.subr.mxu0 0.0
        %5215 = vmatpush1.xpose.msra.mxu0 0.0
        %5216 = vmatprep.subr.mxu0 0.0
        %5217 = vmatpush1.xpose.msra.mxu0 0.0
        %5218 = vmatprep.subr.mxu0 0.0
        %5219 = vmatpush1.xpose.msra.mxu0 0.0
        %5220 = vmatprep.subr.mxu0 0.0
        %5221 = vmatpush1.xpose.msra.mxu0 0.0
        %5222 = vmatprep.subr.mxu0 0.0
        %5223 = vmatpush1.xpose.msra.mxu0 0.0
        %5224 = vmatprep.subr.mxu0 0.0
        %5225 = vmatpush1.xpose.msra.mxu0 0.0
        %5226 = vmatprep.subr.mxu0 0.0
        %5227 = vmatpush1.xpose.msra.mxu0 0.0
        %5228 = vmatprep.subr.mxu0 0.0
        %5229 = vmatpush1.xpose.msra.mxu0 0.0
        %5230 = vmatprep.subr.mxu0 0.0
        %5231 = vmatpush1.xpose.msra.mxu0 0.0
        %5232 = vmatprep.subr.mxu0 0.0
        %5233 = vmatpush1.xpose.msra.mxu0 0.0
        %5234 = vmatprep.subr.mxu0 0.0
        %5235 = vmatpush1.xpose.msra.mxu0 0.0
        %5236 = vmatprep.subr.mxu0 0.0
        %5237 = vmatpush1.xpose.msra.mxu0 0.0
        %5238 = vmatprep.subr.mxu0 0.0
        %5239 = vmatpush1.xpose.msra.mxu0 0.0
        %5240 = vmatprep.subr.mxu0 0.0
        %5241 = vmatpush1.xpose.msra.mxu0 0.0
        %5242 = vmatprep.subr.mxu0 0.0
        %5243 = vmatpush1.xpose.msra.mxu0 0.0
        %5244 = vmatprep.subr.mxu0 0.0
        %5245 = vmatpush1.xpose.msra.mxu0 0.0
        %5246 = vmatprep.subr.mxu0 0.0
        %5247 = vmatpush1.xpose.msra.mxu0 0.0
        %5248 = vmatprep.subr.mxu0 0.0
        %5249 = vmatpush1.xpose.msra.mxu0 0.0
        %5250 = vmatprep.subr.mxu0 0.0
        %5251 = vmatpush1.xpose.msra.mxu0 0.0
        %5252 = vmatprep.subr.mxu0 0.0
        %5253 = vmatpush1.xpose.msra.mxu0 0.0
        %5254 = vmatprep.subr.mxu0 0.0
        %5255 = vmatpush1.xpose.msra.mxu0 0.0
        %5256 = vmatprep.subr.mxu0 0.0
        %5257 = vmatpush1.xpose.msra.mxu0 0.0
        %5258 = vmatprep.subr.mxu0 0.0
        %5259 = vmatpush1.xpose.msra.mxu0 0.0
        %5260 = vmatprep.mubr.f32.mxu0 0.0
        %v5261 = vand.u32 %v5186, 4294901760
        %v5262 = vsub.f32 %v5186, %v5261
        %v5263 = vand.u32 %v5262, 4294901760
        %v5264 = vsub.f32 %v5262, %v5263
        %v5265 = vand.u32 %v5264, 4294901760
        %5266 = vmatmul.mubr.f32.gmra.mrb[0].mxu0 %v5265
        %v5267 = vpop.f32.mrb[0].mxu0
        %v5268 = vadd.f32 0.0, %v5267
        %v5269 = vpop.f32.mrb[0].mxu0
        %5270 = vmatprep.mubr.f32.mxu0 0.0
        %v5271 = vand.u32 %v5188, 4294901760
        %v5272 = vsub.f32 %v5188, %v5271
        %v5273 = vand.u32 %v5272, 4294901760
        %v5274 = vsub.f32 %v5272, %v5273
        %v5275 = vand.u32 %v5274, 4294901760
        %5276 = vmatmul.mubr.f32.gmra.mrb[0].mxu0 %v5275
        %v5277 = vpop.f32.mrb[0].mxu0
        %v5278 = vadd.f32 0.0, %v5277
        %v5279 = vpop.f32.mrb[0].mxu0
        %5280 = vdwg.mxu0
        %5281 = vmatprep.subr.mxu0 0.0
        %v5282 = vand.u32 %v5190, 4294901760
        %v5283 = vsub.f32 %v5190, %v5282
        %v5284 = vand.u32 %v5283, 4294901760
        %v5285 = vsub.f32 %v5283, %v5284
        %v5286 = vand.u32 %v5285, 4294901760
        %5287 = vmatpush1.xpose.msra.mxu0 %v5286
        %5288 = vmatprep.subr.mxu0 0.0
        %v5289 = vand.u32 %v5192, 4294901760
        %v5290 = vsub.f32 %v5192, %v5289
        %v5291 = vand.u32 %v5290, 4294901760
        %v5292 = vsub.f32 %v5290, %v5291
        %v5293 = vand.u32 %v5292, 4294901760
        %5294 = vmatpush1.xpose.msra.mxu0 %v5293
        %5295 = vmatprep.subr.mxu0 0.0
        %5296 = vmatpush1.xpose.msra.mxu0 0.0
        %5297 = vmatprep.subr.mxu0 0.0
        %5298 = vmatpush1.xpose.msra.mxu0 0.0
        %5299 = vmatprep.subr.mxu0 0.0
        %5300 = vmatpush1.xpose.msra.mxu0 0.0
        %5301 = vmatprep.subr.mxu0 0.0
        %5302 = vmatpush1.xpose.msra.mxu0 0.0
        %5303 = vmatprep.subr.mxu0 0.0
        %5304 = vmatpush1.xpose.msra.mxu0 0.0
        %5305 = vmatprep.subr.mxu0 0.0
        %5306 = vmatpush1.xpose.msra.mxu0 0.0
        %5307 = vmatprep.subr.mxu0 0.0
        %5308 = vmatpush1.xpose.msra.mxu0 0.0
        %5309 = vmatprep.subr.mxu0 0.0
        %5310 = vmatpush1.xpose.msra.mxu0 0.0
        %5311 = vmatprep.subr.mxu0 0.0
        %5312 = vmatpush1.xpose.msra.mxu0 0.0
        %5313 = vmatprep.subr.mxu0 0.0
        %5314 = vmatpush1.xpose.msra.mxu0 0.0
        %5315 = vmatprep.subr.mxu0 0.0
        %5316 = vmatpush1.xpose.msra.mxu0 0.0
        %5317 = vmatprep.subr.mxu0 0.0
        %5318 = vmatpush1.xpose.msra.mxu0 0.0
        %5319 = vmatprep.subr.mxu0 0.0
        %5320 = vmatpush1.xpose.msra.mxu0 0.0
        %5321 = vmatprep.subr.mxu0 0.0
        %5322 = vmatpush1.xpose.msra.mxu0 0.0
        %5323 = vmatprep.subr.mxu0 0.0
        %5324 = vmatpush1.xpose.msra.mxu0 0.0
        %5325 = vmatprep.subr.mxu0 0.0
        %5326 = vmatpush1.xpose.msra.mxu0 0.0
        %5327 = vmatprep.subr.mxu0 0.0
        %5328 = vmatpush1.xpose.msra.mxu0 0.0
        %5329 = vmatprep.subr.mxu0 0.0
        %5330 = vmatpush1.xpose.msra.mxu0 0.0
        %5331 = vmatprep.subr.mxu0 0.0
        %5332 = vmatpush1.xpose.msra.mxu0 0.0
        %5333 = vmatprep.subr.mxu0 0.0
        %5334 = vmatpush1.xpose.msra.mxu0 0.0
        %5335 = vmatprep.subr.mxu0 0.0
        %5336 = vmatpush1.xpose.msra.mxu0 0.0
        %5337 = vmatprep.subr.mxu0 0.0
        %5338 = vmatpush1.xpose.msra.mxu0 0.0
        %5339 = vmatprep.subr.mxu0 0.0
        %5340 = vmatpush1.xpose.msra.mxu0 0.0
        %5341 = vmatprep.subr.mxu0 0.0
        %5342 = vmatpush1.xpose.msra.mxu0 0.0
        %5343 = vmatprep.subr.mxu0 0.0
        %5344 = vmatpush1.xpose.msra.mxu0 0.0
        %5345 = vmatprep.subr.mxu0 0.0
        %5346 = vmatpush1.xpose.msra.mxu0 0.0
        %5347 = vmatprep.subr.mxu0 0.0
        %5348 = vmatpush1.xpose.msra.mxu0 0.0
        %5349 = vmatprep.subr.mxu0 0.0
        %5350 = vmatpush1.xpose.msra.mxu0 0.0
        %5351 = vmatprep.subr.mxu0 0.0
        %5352 = vmatpush1.xpose.msra.mxu0 0.0
        %5353 = vmatprep.subr.mxu0 0.0
        %5354 = vmatpush1.xpose.msra.mxu0 0.0
        %5355 = vmatprep.mubr.f32.mxu0 0.0
        %v5356 = vand.u32 %v5186, 4294901760
        %5357 = vmatmul.mubr.f32.gmra.mrb[0].mxu0 %v5356
        %v5358 = vpop.f32.mrb[0].mxu0
        %v5359 = vadd.f32 %v5268, %v5358
        %v5360 = vpop.f32.mrb[0].mxu0
        %5361 = vmatprep.mubr.f32.mxu0 0.0
        %v5362 = vand.u32 %v5188, 4294901760
        %5363 = vmatmul.mubr.f32.gmra.mrb[0].mxu0 %v5362
        %v5364 = vpop.f32.mrb[0].mxu0
        %v5365 = vadd.f32 %v5278, %v5364
        %v5366 = vpop.f32.mrb[0].mxu0
        %5367 = vdwg.mxu0
        %5368 = vmatprep.subr.mxu0 0.0
        %v5369 = vand.u32 %v5190, 4294901760
        %v5370 = vsub.f32 %v5190, %v5369
        %5371 = vmatpush1.xpose.msra.mxu0 %v5370
        %5372 = vmatprep.subr.mxu0 0.0
        %v5373 = vand.u32 %v5192, 4294901760
        %v5374 = vsub.f32 %v5192, %v5373
        %5375 = vmatpush1.xpose.msra.mxu0 %v5374
        %5376 = vmatprep.subr.mxu0 0.0
        %5377 = vmatpush1.xpose.msra.mxu0 0.0
        %5378 = vmatprep.subr.mxu0 0.0
        %5379 = vmatpush1.xpose.msra.mxu0 0.0
        %5380 = vmatprep.subr.mxu0 0.0
        %5381 = vmatpush1.xpose.msra.mxu0 0.0
        %5382 = vmatprep.subr.mxu0 0.0
        %5383 = vmatpush1.xpose.msra.mxu0 0.0
        %5384 = vmatprep.subr.mxu0 0.0
        %5385 = vmatpush1.xpose.msra.mxu0 0.0
        %5386 = vmatprep.subr.mxu0 0.0
        %5387 = vmatpush1.xpose.msra.mxu0 0.0
        %5388 = vmatprep.subr.mxu0 0.0
        %5389 = vmatpush1.xpose.msra.mxu0 0.0
        %5390 = vmatprep.subr.mxu0 0.0
        %5391 = vmatpush1.xpose.msra.mxu0 0.0
        %5392 = vmatprep.subr.mxu0 0.0
        %5393 = vmatpush1.xpose.msra.mxu0 0.0
        %5394 = vmatprep.subr.mxu0 0.0
        %5395 = vmatpush1.xpose.msra.mxu0 0.0
        %5396 = vmatprep.subr.mxu0 0.0
        %5397 = vmatpush1.xpose.msra.mxu0 0.0
        %5398 = vmatprep.subr.mxu0 0.0
        %5399 = vmatpush1.xpose.msra.mxu0 0.0
        %5400 = vmatprep.subr.mxu0 0.0
        %5401 = vmatpush1.xpose.msra.mxu0 0.0
        %5402 = vmatprep.subr.mxu0 0.0
        %5403 = vmatpush1.xpose.msra.mxu0 0.0
        %5404 = vmatprep.subr.mxu0 0.0
        %5405 = vmatpush1.xpose.msra.mxu0 0.0
        %5406 = vmatprep.subr.mxu0 0.0
        %5407 = vmatpush1.xpose.msra.mxu0 0.0
        %5408 = vmatprep.subr.mxu0 0.0
        %5409 = vmatpush1.xpose.msra.mxu0 0.0
        %5410 = vmatprep.subr.mxu0 0.0
        %5411 = vmatpush1.xpose.msra.mxu0 0.0
        %5412 = vmatprep.subr.mxu0 0.0
        %5413 = vmatpush1.xpose.msra.mxu0 0.0
        %5414 = vmatprep.subr.mxu0 0.0
        %5415 = vmatpush1.xpose.msra.mxu0 0.0
        %5416 = vmatprep.subr.mxu0 0.0
        %5417 = vmatpush1.xpose.msra.mxu0 0.0
        %5418 = vmatprep.subr.mxu0 0.0
        %5419 = vmatpush1.xpose.msra.mxu0 0.0
        %5420 = vmatprep.subr.mxu0 0.0
        %5421 = vmatpush1.xpose.msra.mxu0 0.0
        %5422 = vmatprep.subr.mxu0 0.0
        %5423 = vmatpush1.xpose.msra.mxu0 0.0
        %5424 = vmatprep.subr.mxu0 0.0
        %5425 = vmatpush1.xpose.msra.mxu0 0.0
        %5426 = vmatprep.subr.mxu0 0.0
        %5427 = vmatpush1.xpose.msra.mxu0 0.0
        %5428 = vmatprep.subr.mxu0 0.0
        %5429 = vmatpush1.xpose.msra.mxu0 0.0
        %5430 = vmatprep.subr.mxu0 0.0
        %5431 = vmatpush1.xpose.msra.mxu0 0.0
        %5432 = vmatprep.subr.mxu0 0.0
        %5433 = vmatpush1.xpose.msra.mxu0 0.0
        %5434 = vmatprep.subr.mxu0 0.0
        %5435 = vmatpush1.xpose.msra.mxu0 0.0
        %5436 = vmatprep.mubr.f32.mxu0 0.0
        %v5437 = vand.u32 %v5186, 4294901760
        %v5438 = vsub.f32 %v5186, %v5437
        %5439 = vmatmul.mubr.f32.gmra.mrb[0].mxu0 %v5438
        %v5440 = vpop.f32.mrb[0].mxu0
        %v5441 = vadd.f32 %v5359, %v5440
        %v5442 = vpop.f32.mrb[0].mxu0
        %5443 = vmatprep.mubr.f32.mxu0 0.0
        %v5444 = vand.u32 %v5188, 4294901760
        %v5445 = vsub.f32 %v5188, %v5444
        %5446 = vmatmul.mubr.f32.gmra.mrb[0].mxu0 %v5445
        %v5447 = vpop.f32.mrb[0].mxu0
        %v5448 = vadd.f32 %v5365, %v5447
        %v5449 = vpop.f32.mrb[0].mxu0
        %5450 = vdwg.mxu0
        %5451 = vmatprep.subr.mxu0 0.0
        %v5452 = vand.u32 %v5190, 4294901760
        %5453 = vmatpush1.xpose.msra.mxu0 %v5452
        %5454 = vmatprep.subr.mxu0 0.0
        %v5455 = vand.u32 %v5192, 4294901760
        %5456 = vmatpush1.xpose.msra.mxu0 %v5455
        %5457 = vmatprep.subr.mxu0 0.0
        %5458 = vmatpush1.xpose.msra.mxu0 0.0
        %5459 = vmatprep.subr.mxu0 0.0
        %5460 = vmatpush1.xpose.msra.mxu0 0.0
        %5461 = vmatprep.subr.mxu0 0.0
        %5462 = vmatpush1.xpose.msra.mxu0 0.0
        %5463 = vmatprep.subr.mxu0 0.0
        %5464 = vmatpush1.xpose.msra.mxu0 0.0
        %5465 = vmatprep.subr.mxu0 0.0
        %5466 = vmatpush1.xpose.msra.mxu0 0.0
        %5467 = vmatprep.subr.mxu0 0.0
        %5468 = vmatpush1.xpose.msra.mxu0 0.0
        %5469 = vmatprep.subr.mxu0 0.0
        %5470 = vmatpush1.xpose.msra.mxu0 0.0
        %5471 = vmatprep.subr.mxu0 0.0
        %5472 = vmatpush1.xpose.msra.mxu0 0.0
        %5473 = vmatprep.subr.mxu0 0.0
        %5474 = vmatpush1.xpose.msra.mxu0 0.0
        %5475 = vmatprep.subr.mxu0 0.0
        %5476 = vmatpush1.xpose.msra.mxu0 0.0
        %5477 = vmatprep.subr.mxu0 0.0
        %5478 = vmatpush1.xpose.msra.mxu0 0.0
        %5479 = vmatprep.subr.mxu0 0.0
        %5480 = vmatpush1.xpose.msra.mxu0 0.0
        %5481 = vmatprep.subr.mxu0 0.0
        %5482 = vmatpush1.xpose.msra.mxu0 0.0
        %5483 = vmatprep.subr.mxu0 0.0
        %5484 = vmatpush1.xpose.msra.mxu0 0.0
        %5485 = vmatprep.subr.mxu0 0.0
        %5486 = vmatpush1.xpose.msra.mxu0 0.0
        %5487 = vmatprep.subr.mxu0 0.0
        %5488 = vmatpush1.xpose.msra.mxu0 0.0
        %5489 = vmatprep.subr.mxu0 0.0
        %5490 = vmatpush1.xpose.msra.mxu0 0.0
        %5491 = vmatprep.subr.mxu0 0.0
        %5492 = vmatpush1.xpose.msra.mxu0 0.0
        %5493 = vmatprep.subr.mxu0 0.0
        %5494 = vmatpush1.xpose.msra.mxu0 0.0
        %5495 = vmatprep.subr.mxu0 0.0
        %5496 = vmatpush1.xpose.msra.mxu0 0.0
        %5497 = vmatprep.subr.mxu0 0.0
        %5498 = vmatpush1.xpose.msra.mxu0 0.0
        %5499 = vmatprep.subr.mxu0 0.0
        %5500 = vmatpush1.xpose.msra.mxu0 0.0
        %5501 = vmatprep.subr.mxu0 0.0
        %5502 = vmatpush1.xpose.msra.mxu0 0.0
        %5503 = vmatprep.subr.mxu0 0.0
        %5504 = vmatpush1.xpose.msra.mxu0 0.0
        %5505 = vmatprep.subr.mxu0 0.0
        %5506 = vmatpush1.xpose.msra.mxu0 0.0
        %5507 = vmatprep.subr.mxu0 0.0
        %5508 = vmatpush1.xpose.msra.mxu0 0.0
        %5509 = vmatprep.subr.mxu0 0.0
        %5510 = vmatpush1.xpose.msra.mxu0 0.0
        %5511 = vmatprep.subr.mxu0 0.0
        %5512 = vmatpush1.xpose.msra.mxu0 0.0
        %5513 = vmatprep.subr.mxu0 0.0
        %5514 = vmatpush1.xpose.msra.mxu0 0.0
        %5515 = vmatprep.subr.mxu0 0.0
        %5516 = vmatpush1.xpose.msra.mxu0 0.0
        %5517 = vmatprep.mubr.f32.mxu0 0.0
        %v5518 = vand.u32 %v5186, 4294901760
        %v5519 = vsub.f32 %v5186, %v5518
        %v5520 = vand.u32 %v5519, 4294901760
        %5521 = vmatmul.mubr.f32.gmra.mrb[0].mxu0 %v5520
        %v5522 = vpop.f32.mrb[0].mxu0
        %v5523 = vadd.f32 %v5441, %v5522
        %v5524 = vpop.f32.mrb[0].mxu0
        %5525 = vmatprep.mubr.f32.mxu0 0.0
        %v5526 = vand.u32 %v5188, 4294901760
        %v5527 = vsub.f32 %v5188, %v5526
        %v5528 = vand.u32 %v5527, 4294901760
        %5529 = vmatmul.mubr.f32.gmra.mrb[0].mxu0 %v5528
        %v5530 = vpop.f32.mrb[0].mxu0
        %v5531 = vadd.f32 %v5448, %v5530
        %v5532 = vpop.f32.mrb[0].mxu0
        %5533 = vdwg.mxu0
        %5534 = vmatprep.subr.mxu0 0.0
        %v5535 = vand.u32 %v5190, 4294901760
        %v5536 = vsub.f32 %v5190, %v5535
        %v5537 = vand.u32 %v5536, 4294901760
        %5538 = vmatpush1.xpose.msra.mxu0 %v5537
        %5539 = vmatprep.subr.mxu0 0.0
        %v5540 = vand.u32 %v5192, 4294901760
        %v5541 = vsub.f32 %v5192, %v5540
        %v5542 = vand.u32 %v5541, 4294901760
        %5543 = vmatpush1.xpose.msra.mxu0 %v5542
        %5544 = vmatprep.subr.mxu0 0.0
        %5545 = vmatpush1.xpose.msra.mxu0 0.0
        %5546 = vmatprep.subr.mxu0 0.0
        %5547 = vmatpush1.xpose.msra.mxu0 0.0
        %5548 = vmatprep.subr.mxu0 0.0
        %5549 = vmatpush1.xpose.msra.mxu0 0.0
        %5550 = vmatprep.subr.mxu0 0.0
        %5551 = vmatpush1.xpose.msra.mxu0 0.0
        %5552 = vmatprep.subr.mxu0 0.0
        %5553 = vmatpush1.xpose.msra.mxu0 0.0
        %5554 = vmatprep.subr.mxu0 0.0
        %5555 = vmatpush1.xpose.msra.mxu0 0.0
        %5556 = vmatprep.subr.mxu0 0.0
        %5557 = vmatpush1.xpose.msra.mxu0 0.0
        %5558 = vmatprep.subr.mxu0 0.0
        %5559 = vmatpush1.xpose.msra.mxu0 0.0
        %5560 = vmatprep.subr.mxu0 0.0
        %5561 = vmatpush1.xpose.msra.mxu0 0.0
        %5562 = vmatprep.subr.mxu0 0.0
        %5563 = vmatpush1.xpose.msra.mxu0 0.0
        %5564 = vmatprep.subr.mxu0 0.0
        %5565 = vmatpush1.xpose.msra.mxu0 0.0
        %5566 = vmatprep.subr.mxu0 0.0
        %5567 = vmatpush1.xpose.msra.mxu0 0.0
        %5568 = vmatprep.subr.mxu0 0.0
        %5569 = vmatpush1.xpose.msra.mxu0 0.0
        %5570 = vmatprep.subr.mxu0 0.0
        %5571 = vmatpush1.xpose.msra.mxu0 0.0
        %5572 = vmatprep.subr.mxu0 0.0
        %5573 = vmatpush1.xpose.msra.mxu0 0.0
        %5574 = vmatprep.subr.mxu0 0.0
        %5575 = vmatpush1.xpose.msra.mxu0 0.0
        %5576 = vmatprep.subr.mxu0 0.0
        %5577 = vmatpush1.xpose.msra.mxu0 0.0
        %5578 = vmatprep.subr.mxu0 0.0
        %5579 = vmatpush1.xpose.msra.mxu0 0.0
        %5580 = vmatprep.subr.mxu0 0.0
        %5581 = vmatpush1.xpose.msra.mxu0 0.0
        %5582 = vmatprep.subr.mxu0 0.0
        %5583 = vmatpush1.xpose.msra.mxu0 0.0
        %5584 = vmatprep.subr.mxu0 0.0
        %5585 = vmatpush1.xpose.msra.mxu0 0.0
        %5586 = vmatprep.subr.mxu0 0.0
        %5587 = vmatpush1.xpose.msra.mxu0 0.0
        %5588 = vmatprep.subr.mxu0 0.0
        %5589 = vmatpush1.xpose.msra.mxu0 0.0
        %5590 = vmatprep.subr.mxu0 0.0
        %5591 = vmatpush1.xpose.msra.mxu0 0.0
        %5592 = vmatprep.subr.mxu0 0.0
        %5593 = vmatpush1.xpose.msra.mxu0 0.0
        %5594 = vmatprep.subr.mxu0 0.0
        %5595 = vmatpush1.xpose.msra.mxu0 0.0
        %5596 = vmatprep.subr.mxu0 0.0
        %5597 = vmatpush1.xpose.msra.mxu0 0.0
        %5598 = vmatprep.subr.mxu0 0.0
        %5599 = vmatpush1.xpose.msra.mxu0 0.0
        %5600 = vmatprep.subr.mxu0 0.0
        %5601 = vmatpush1.xpose.msra.mxu0 0.0
        %5602 = vmatprep.subr.mxu0 0.0
        %5603 = vmatpush1.xpose.msra.mxu0 0.0
        %5604 = vmatprep.mubr.f32.mxu0 0.0
        %v5605 = vand.u32 %v5186, 4294901760
        %5606 = vmatmul.mubr.f32.gmra.mrb[0].mxu0 %v5605
        %v5607 = vpop.f32.mrb[0].mxu0
        %v5608 = vadd.f32 %v5523, %v5607
        %v5609 = vpop.f32.mrb[0].mxu0
        %5610 = vmatprep.mubr.f32.mxu0 0.0
        %v5611 = vand.u32 %v5188, 4294901760
        %5612 = vmatmul.mubr.f32.gmra.mrb[0].mxu0 %v5611
        %v5613 = vpop.f32.mrb[0].mxu0
        %v5614 = vadd.f32 %v5531, %v5613
        %v5615 = vpop.f32.mrb[0].mxu0
        %5616 = vdwg.mxu0
        %5617 = vmatprep.subr.mxu0 0.0
        %v5618 = vand.u32 %v5190, 4294901760
        %5619 = vmatpush1.xpose.msra.mxu0 %v5618
        %5620 = vmatprep.subr.mxu0 0.0
        %v5621 = vand.u32 %v5192, 4294901760
        %5622 = vmatpush1.xpose.msra.mxu0 %v5621
        %5623 = vmatprep.subr.mxu0 0.0
        %5624 = vmatpush1.xpose.msra.mxu0 0.0
        %5625 = vmatprep.subr.mxu0 0.0
        %5626 = vmatpush1.xpose.msra.mxu0 0.0
        %5627 = vmatprep.subr.mxu0 0.0
        %5628 = vmatpush1.xpose.msra.mxu0 0.0
        %5629 = vmatprep.subr.mxu0 0.0
        %5630 = vmatpush1.xpose.msra.mxu0 0.0
        %5631 = vmatprep.subr.mxu0 0.0
        %5632 = vmatpush1.xpose.msra.mxu0 0.0
        %5633 = vmatprep.subr.mxu0 0.0
        %5634 = vmatpush1.xpose.msra.mxu0 0.0
        %5635 = vmatprep.subr.mxu0 0.0
        %5636 = vmatpush1.xpose.msra.mxu0 0.0
        %5637 = vmatprep.subr.mxu0 0.0
        %5638 = vmatpush1.xpose.msra.mxu0 0.0
        %5639 = vmatprep.subr.mxu0 0.0
        %5640 = vmatpush1.xpose.msra.mxu0 0.0
        %5641 = vmatprep.subr.mxu0 0.0
        %5642 = vmatpush1.xpose.msra.mxu0 0.0
        %5643 = vmatprep.subr.mxu0 0.0
        %5644 = vmatpush1.xpose.msra.mxu0 0.0
        %5645 = vmatprep.subr.mxu0 0.0
        %5646 = vmatpush1.xpose.msra.mxu0 0.0
        %5647 = vmatprep.subr.mxu0 0.0
        %5648 = vmatpush1.xpose.msra.mxu0 0.0
        %5649 = vmatprep.subr.mxu0 0.0
        %5650 = vmatpush1.xpose.msra.mxu0 0.0
        %5651 = vmatprep.subr.mxu0 0.0
        %5652 = vmatpush1.xpose.msra.mxu0 0.0
        %5653 = vmatprep.subr.mxu0 0.0
        %5654 = vmatpush1.xpose.msra.mxu0 0.0
        %5655 = vmatprep.subr.mxu0 0.0
        %5656 = vmatpush1.xpose.msra.mxu0 0.0
        %5657 = vmatprep.subr.mxu0 0.0
        %5658 = vmatpush1.xpose.msra.mxu0 0.0
        %5659 = vmatprep.subr.mxu0 0.0
        %5660 = vmatpush1.xpose.msra.mxu0 0.0
        %5661 = vmatprep.subr.mxu0 0.0
        %5662 = vmatpush1.xpose.msra.mxu0 0.0
        %5663 = vmatprep.subr.mxu0 0.0
        %5664 = vmatpush1.xpose.msra.mxu0 0.0
        %5665 = vmatprep.subr.mxu0 0.0
        %5666 = vmatpush1.xpose.msra.mxu0 0.0
        %5667 = vmatprep.subr.mxu0 0.0
        %5668 = vmatpush1.xpose.msra.mxu0 0.0
        %5669 = vmatprep.subr.mxu0 0.0
        %5670 = vmatpush1.xpose.msra.mxu0 0.0
        %5671 = vmatprep.subr.mxu0 0.0
        %5672 = vmatpush1.xpose.msra.mxu0 0.0
        %5673 = vmatprep.subr.mxu0 0.0
        %5674 = vmatpush1.xpose.msra.mxu0 0.0
        %5675 = vmatprep.subr.mxu0 0.0
        %5676 = vmatpush1.xpose.msra.mxu0 0.0
        %5677 = vmatprep.subr.mxu0 0.0
        %5678 = vmatpush1.xpose.msra.mxu0 0.0
        %5679 = vmatprep.subr.mxu0 0.0
        %5680 = vmatpush1.xpose.msra.mxu0 0.0
        %5681 = vmatprep.subr.mxu0 0.0
        %5682 = vmatpush1.xpose.msra.mxu0 0.0
        %5683 = vmatprep.mubr.f32.mxu0 0.0
        %v5684 = vand.u32 %v5186, 4294901760
        %5685 = vmatmul.mubr.f32.gmra.mrb[0].mxu0 %v5684
        %v5686 = vpop.f32.mrb[0].mxu0
        %v5687 = vadd.f32 %v5608, %v5686
        %v5688 = vpop.f32.mrb[0].mxu0
        %5689 = vmatprep.mubr.f32.mxu0 0.0
        %v5690 = vand.u32 %v5188, 4294901760
        %5691 = vmatmul.mubr.f32.gmra.mrb[0].mxu0 %v5690
        %v5692 = vpop.f32.mrb[0].mxu0
        %v5693 = vadd.f32 %v5614, %v5692
        %v5694 = vpop.f32.mrb[0].mxu0
        %5695 = vdwg.mxu0
        %v5696 = vsel %vm1483, %v5687, -inf
        %5697 = vmax.xlane.f32.xlu0 %v5696
        %v5698 = vpop.xlane.xlu0 %5697
        %v5699 = vsel %vm1483, %v5693, -inf
        %5700 = vmax.xlane.f32.xlu0 %v5699
        %v5701 = vpop.xlane.xlu0 %5700
        %v5702 = vsub.f32 %v5687, %v5698
        %v5703 = vsub.f32 %v5693, %v5701
        %v5704 = vmul.f32 %v5702, 1.442695
        %v5705 = vpow.pop %v5704
        %v5706 = vmul.f32 %v5703, 1.442695
        %v5707 = vpow.pop %v5706
        %v5708 = vsel %vm1483, %v5705, 0.0
        %5709 = vadd.xlane.f32.xlu0 %v5708
        %v5710 = vpop.xlane.xlu0 %5709
        %v5711 = vsel %vm1483, %v5707, 0.0
        %5712 = vadd.xlane.f32.xlu0 %v5711
        %v5713 = vpop.xlane.xlu0 %5712
        %5714 = vrot.lane.b32.xlu0 %v957, 96
        %v5715 = vpop.permute.xlu0 %5714
        %5716 = vrot.lane.b32.xlu0 %v964, 96
        %v5717 = vpop.permute.xlu0 %5716
        %v5721 = vsel %vm1483, %v5705, 0
        %v5724 = vsel %vm1483, %v5707, 0
        %5726 = vmatprep.subr.mxu0 0.0
        %v5727 = vand.u32 %v5715, 4294901760
        %5728 = vmatpush1.msra.mxu0 %v5727
        %5729 = vmatprep.subr.mxu0 0.0
        %v5730 = vand.u32 %v5717, 4294901760
        %5731 = vmatpush1.msra.mxu0 %v5730
        %5732 = vmatprep.subr.mxu0 0.0
        %5733 = vmatpush1.msra.mxu0 0.0
        %5734 = vmatprep.subr.mxu0 0.0
        %5735 = vmatpush1.msra.mxu0 0.0
        %5736 = vmatprep.subr.mxu0 0.0
        %5737 = vmatpush1.msra.mxu0 0.0
        %5738 = vmatprep.subr.mxu0 0.0
        %5739 = vmatpush1.msra.mxu0 0.0
        %5740 = vmatprep.subr.mxu0 0.0
        %5741 = vmatpush1.msra.mxu0 0.0
        %5742 = vmatprep.subr.mxu0 0.0
        %5743 = vmatpush1.msra.mxu0 0.0
        %5744 = vmatprep.subr.mxu0 0.0
        %5745 = vmatpush1.msra.mxu0 0.0
        %5746 = vmatprep.subr.mxu0 0.0
        %5747 = vmatpush1.msra.mxu0 0.0
        %5748 = vmatprep.subr.mxu0 0.0
        %5749 = vmatpush1.msra.mxu0 0.0
        %5750 = vmatprep.subr.mxu0 0.0
        %5751 = vmatpush1.msra.mxu0 0.0
        %5752 = vmatprep.subr.mxu0 0.0
        %5753 = vmatpush1.msra.mxu0 0.0
        %5754 = vmatprep.subr.mxu0 0.0
        %5755 = vmatpush1.msra.mxu0 0.0
        %5756 = vmatprep.subr.mxu0 0.0
        %5757 = vmatpush1.msra.mxu0 0.0
        %5758 = vmatprep.subr.mxu0 0.0
        %5759 = vmatpush1.msra.mxu0 0.0
        %5760 = vmatprep.subr.mxu0 0.0
        %5761 = vmatpush1.msra.mxu0 0.0
        %5762 = vmatprep.subr.mxu0 0.0
        %5763 = vmatpush1.msra.mxu0 0.0
        %5764 = vmatprep.subr.mxu0 0.0
        %5765 = vmatpush1.msra.mxu0 0.0
        %5766 = vmatprep.subr.mxu0 0.0
        %5767 = vmatpush1.msra.mxu0 0.0
        %5768 = vmatprep.subr.mxu0 0.0
        %5769 = vmatpush1.msra.mxu0 0.0
        %5770 = vmatprep.subr.mxu0 0.0
        %5771 = vmatpush1.msra.mxu0 0.0
        %5772 = vmatprep.subr.mxu0 0.0
        %5773 = vmatpush1.msra.mxu0 0.0
        %5774 = vmatprep.subr.mxu0 0.0
        %5775 = vmatpush1.msra.mxu0 0.0
        %5776 = vmatprep.subr.mxu0 0.0
        %5777 = vmatpush1.msra.mxu0 0.0
        %5778 = vmatprep.subr.mxu0 0.0
        %5779 = vmatpush1.msra.mxu0 0.0
        %5780 = vmatprep.subr.mxu0 0.0
        %5781 = vmatpush1.msra.mxu0 0.0
        %5782 = vmatprep.subr.mxu0 0.0
        %5783 = vmatpush1.msra.mxu0 0.0
        %5784 = vmatprep.subr.mxu0 0.0
        %5785 = vmatpush1.msra.mxu0 0.0
        %5786 = vmatprep.subr.mxu0 0.0
        %5787 = vmatpush1.msra.mxu0 0.0
        %5788 = vmatprep.subr.mxu0 0.0
        %5789 = vmatpush1.msra.mxu0 0.0
        %5790 = vmatprep.subr.mxu0 0.0
        %5791 = vmatpush1.msra.mxu0 0.0
        %5792 = vmatprep.mubr.f32.mxu0 0.0
        %v5793 = vand.u32 %v5721, 4294901760
        %v5794 = vsub.f32 %v5721, %v5793
        %v5795 = vand.u32 %v5794, 4294901760
        %v5796 = vsub.f32 %v5794, %v5795
        %v5797 = vand.u32 %v5796, 4294901760
        %5798 = vmatmul.mubr.f32.gmra.mrb[0].mxu0 %v5797
        %v5799 = vpop.f32.mrb[0].mxu0
        %v5800 = vadd.f32 0.0, %v5799
        %v5801 = vpop.f32.mrb[0].mxu0
        %5802 = vmatprep.mubr.f32.mxu0 0.0
        %v5803 = vand.u32 %v5724, 4294901760
        %v5804 = vsub.f32 %v5724, %v5803
        %v5805 = vand.u32 %v5804, 4294901760
        %v5806 = vsub.f32 %v5804, %v5805
        %v5807 = vand.u32 %v5806, 4294901760
        %5808 = vmatmul.mubr.f32.gmra.mrb[0].mxu0 %v5807
        %v5809 = vpop.f32.mrb[0].mxu0
        %v5810 = vadd.f32 0.0, %v5809
        %v5811 = vpop.f32.mrb[0].mxu0
        %5812 = vdwg.mxu0
        %5813 = vmatprep.subr.mxu0 0.0
        %v5814 = vand.u32 %v5715, 4294901760
        %v5815 = vsub.f32 %v5715, %v5814
        %v5816 = vand.u32 %v5815, 4294901760
        %v5817 = vsub.f32 %v5815, %v5816
        %v5818 = vand.u32 %v5817, 4294901760
        %5819 = vmatpush1.msra.mxu0 %v5818
        %5820 = vmatprep.subr.mxu0 0.0
        %v5821 = vand.u32 %v5717, 4294901760
        %v5822 = vsub.f32 %v5717, %v5821
        %v5823 = vand.u32 %v5822, 4294901760
        %v5824 = vsub.f32 %v5822, %v5823
        %v5825 = vand.u32 %v5824, 4294901760
        %5826 = vmatpush1.msra.mxu0 %v5825
        %5827 = vmatprep.subr.mxu0 0.0
        %5828 = vmatpush1.msra.mxu0 0.0
        %5829 = vmatprep.subr.mxu0 0.0
        %5830 = vmatpush1.msra.mxu0 0.0
        %5831 = vmatprep.subr.mxu0 0.0
        %5832 = vmatpush1.msra.mxu0 0.0
        %5833 = vmatprep.subr.mxu0 0.0
        %5834 = vmatpush1.msra.mxu0 0.0
        %5835 = vmatprep.subr.mxu0 0.0
        %5836 = vmatpush1.msra.mxu0 0.0
        %5837 = vmatprep.subr.mxu0 0.0
        %5838 = vmatpush1.msra.mxu0 0.0
        %5839 = vmatprep.subr.mxu0 0.0
        %5840 = vmatpush1.msra.mxu0 0.0
        %5841 = vmatprep.subr.mxu0 0.0
        %5842 = vmatpush1.msra.mxu0 0.0
        %5843 = vmatprep.subr.mxu0 0.0
        %5844 = vmatpush1.msra.mxu0 0.0
        %5845 = vmatprep.subr.mxu0 0.0
        %5846 = vmatpush1.msra.mxu0 0.0
        %5847 = vmatprep.subr.mxu0 0.0
        %5848 = vmatpush1.msra.mxu0 0.0
        %5849 = vmatprep.subr.mxu0 0.0
        %5850 = vmatpush1.msra.mxu0 0.0
        %5851 = vmatprep.subr.mxu0 0.0
        %5852 = vmatpush1.msra.mxu0 0.0
        %5853 = vmatprep.subr.mxu0 0.0
        %5854 = vmatpush1.msra.mxu0 0.0
        %5855 = vmatprep.subr.mxu0 0.0
        %5856 = vmatpush1.msra.mxu0 0.0
        %5857 = vmatprep.subr.mxu0 0.0
        %5858 = vmatpush1.msra.mxu0 0.0
        %5859 = vmatprep.subr.mxu0 0.0
        %5860 = vmatpush1.msra.mxu0 0.0
        %5861 = vmatprep.subr.mxu0 0.0
        %5862 = vmatpush1.msra.mxu0 0.0
        %5863 = vmatprep.subr.mxu0 0.0
        %5864 = vmatpush1.msra.mxu0 0.0
        %5865 = vmatprep.subr.mxu0 0.0
        %5866 = vmatpush1.msra.mxu0 0.0
        %5867 = vmatprep.subr.mxu0 0.0
        %5868 = vmatpush1.msra.mxu0 0.0
        %5869 = vmatprep.subr.mxu0 0.0
        %5870 = vmatpush1.msra.mxu0 0.0
        %5871 = vmatprep.subr.mxu0 0.0
        %5872 = vmatpush1.msra.mxu0 0.0
        %5873 = vmatprep.subr.mxu0 0.0
        %5874 = vmatpush1.msra.mxu0 0.0
        %5875 = vmatprep.subr.mxu0 0.0
        %5876 = vmatpush1.msra.mxu0 0.0
        %5877 = vmatprep.subr.mxu0 0.0
        %5878 = vmatpush1.msra.mxu0 0.0
        %5879 = vmatprep.subr.mxu0 0.0
        %5880 = vmatpush1.msra.mxu0 0.0
        %5881 = vmatprep.subr.mxu0 0.0
        %5882 = vmatpush1.msra.mxu0 0.0
        %5883 = vmatprep.subr.mxu0 0.0
        %5884 = vmatpush1.msra.mxu0 0.0
        %5885 = vmatprep.subr.mxu0 0.0
        %5886 = vmatpush1.msra.mxu0 0.0
        %5887 = vmatprep.mubr.f32.mxu0 0.0
        %v5888 = vand.u32 %v5721, 4294901760
        %5889 = vmatmul.mubr.f32.gmra.mrb[0].mxu0 %v5888
        %v5890 = vpop.f32.mrb[0].mxu0
        %v5891 = vadd.f32 %v5800, %v5890
        %v5892 = vpop.f32.mrb[0].mxu0
        %5893 = vmatprep.mubr.f32.mxu0 0.0
        %v5894 = vand.u32 %v5724, 4294901760
        %5895 = vmatmul.mubr.f32.gmra.mrb[0].mxu0 %v5894
        %v5896 = vpop.f32.mrb[0].mxu0
        %v5897 = vadd.f32 %v5810, %v5896
        %v5898 = vpop.f32.mrb[0].mxu0
        %5899 = vdwg.mxu0
        %5900 = vmatprep.subr.mxu0 0.0
        %v5901 = vand.u32 %v5715, 4294901760
        %v5902 = vsub.f32 %v5715, %v5901
        %5903 = vmatpush1.msra.mxu0 %v5902
        %5904 = vmatprep.subr.mxu0 0.0
        %v5905 = vand.u32 %v5717, 4294901760
        %v5906 = vsub.f32 %v5717, %v5905
        %5907 = vmatpush1.msra.mxu0 %v5906
        %5908 = vmatprep.subr.mxu0 0.0
        %5909 = vmatpush1.msra.mxu0 0.0
        %5910 = vmatprep.subr.mxu0 0.0
        %5911 = vmatpush1.msra.mxu0 0.0
        %5912 = vmatprep.subr.mxu0 0.0
        %5913 = vmatpush1.msra.mxu0 0.0
        %5914 = vmatprep.subr.mxu0 0.0
        %5915 = vmatpush1.msra.mxu0 0.0
        %5916 = vmatprep.subr.mxu0 0.0
        %5917 = vmatpush1.msra.mxu0 0.0
        %5918 = vmatprep.subr.mxu0 0.0
        %5919 = vmatpush1.msra.mxu0 0.0
        %5920 = vmatprep.subr.mxu0 0.0
        %5921 = vmatpush1.msra.mxu0 0.0
        %5922 = vmatprep.subr.mxu0 0.0
        %5923 = vmatpush1.msra.mxu0 0.0
        %5924 = vmatprep.subr.mxu0 0.0
        %5925 = vmatpush1.msra.mxu0 0.0
        %5926 = vmatprep.subr.mxu0 0.0
        %5927 = vmatpush1.msra.mxu0 0.0
        %5928 = vmatprep.subr.mxu0 0.0
        %5929 = vmatpush1.msra.mxu0 0.0
        %5930 = vmatprep.subr.mxu0 0.0
        %5931 = vmatpush1.msra.mxu0 0.0
        %5932 = vmatprep.subr.mxu0 0.0
        %5933 = vmatpush1.msra.mxu0 0.0
        %5934 = vmatprep.subr.mxu0 0.0
        %5935 = vmatpush1.msra.mxu0 0.0
        %5936 = vmatprep.subr.mxu0 0.0
        %5937 = vmatpush1.msra.mxu0 0.0
        %5938 = vmatprep.subr.mxu0 0.0
        %5939 = vmatpush1.msra.mxu0 0.0
        %5940 = vmatprep.subr.mxu0 0.0
        %5941 = vmatpush1.msra.mxu0 0.0
        %5942 = vmatprep.subr.mxu0 0.0
        %5943 = vmatpush1.msra.mxu0 0.0
        %5944 = vmatprep.subr.mxu0 0.0
        %5945 = vmatpush1.msra.mxu0 0.0
        %5946 = vmatprep.subr.mxu0 0.0
        %5947 = vmatpush1.msra.mxu0 0.0
        %5948 = vmatprep.subr.mxu0 0.0
        %5949 = vmatpush1.msra.mxu0 0.0
        %5950 = vmatprep.subr.mxu0 0.0
        %5951 = vmatpush1.msra.mxu0 0.0
        %5952 = vmatprep.subr.mxu0 0.0
        %5953 = vmatpush1.msra.mxu0 0.0
        %5954 = vmatprep.subr.mxu0 0.0
        %5955 = vmatpush1.msra.mxu0 0.0
        %5956 = vmatprep.subr.mxu0 0.0
        %5957 = vmatpush1.msra.mxu0 0.0
        %5958 = vmatprep.subr.mxu0 0.0
        %5959 = vmatpush1.msra.mxu0 0.0
        %5960 = vmatprep.subr.mxu0 0.0
        %5961 = vmatpush1.msra.mxu0 0.0
        %5962 = vmatprep.subr.mxu0 0.0
        %5963 = vmatpush1.msra.mxu0 0.0
        %5964 = vmatprep.subr.mxu0 0.0
        %5965 = vmatpush1.msra.mxu0 0.0
        %5966 = vmatprep.subr.mxu0 0.0
        %5967 = vmatpush1.msra.mxu0 0.0
        %5968 = vmatprep.mubr.f32.mxu0 0.0
        %v5969 = vand.u32 %v5721, 4294901760
        %v5970 = vsub.f32 %v5721, %v5969
        %5971 = vmatmul.mubr.f32.gmra.mrb[0].mxu0 %v5970
        %v5972 = vpop.f32.mrb[0].mxu0
        %v5973 = vadd.f32 %v5891, %v5972
        %v5974 = vpop.f32.mrb[0].mxu0
        %5975 = vmatprep.mubr.f32.mxu0 0.0
        %v5976 = vand.u32 %v5724, 4294901760
        %v5977 = vsub.f32 %v5724, %v5976
        %5978 = vmatmul.mubr.f32.gmra.mrb[0].mxu0 %v5977
        %v5979 = vpop.f32.mrb[0].mxu0
        %v5980 = vadd.f32 %v5897, %v5979
        %v5981 = vpop.f32.mrb[0].mxu0
        %5982 = vdwg.mxu0
        %5983 = vmatprep.subr.mxu0 0.0
        %v5984 = vand.u32 %v5715, 4294901760
        %5985 = vmatpush1.msra.mxu0 %v5984
        %5986 = vmatprep.subr.mxu0 0.0
        %v5987 = vand.u32 %v5717, 4294901760
        %5988 = vmatpush1.msra.mxu0 %v5987
        %5989 = vmatprep.subr.mxu0 0.0
        %5990 = vmatpush1.msra.mxu0 0.0
        %5991 = vmatprep.subr.mxu0 0.0
        %5992 = vmatpush1.msra.mxu0 0.0
        %5993 = vmatprep.subr.mxu0 0.0
        %5994 = vmatpush1.msra.mxu0 0.0
        %5995 = vmatprep.subr.mxu0 0.0
        %5996 = vmatpush1.msra.mxu0 0.0
        %5997 = vmatprep.subr.mxu0 0.0
        %5998 = vmatpush1.msra.mxu0 0.0
        %5999 = vmatprep.subr.mxu0 0.0
        %6000 = vmatpush1.msra.mxu0 0.0
        %6001 = vmatprep.subr.mxu0 0.0
        %6002 = vmatpush1.msra.mxu0 0.0
        %6003 = vmatprep.subr.mxu0 0.0
        %6004 = vmatpush1.msra.mxu0 0.0
        %6005 = vmatprep.subr.mxu0 0.0
        %6006 = vmatpush1.msra.mxu0 0.0
        %6007 = vmatprep.subr.mxu0 0.0
        %6008 = vmatpush1.msra.mxu0 0.0
        %6009 = vmatprep.subr.mxu0 0.0
        %6010 = vmatpush1.msra.mxu0 0.0
        %6011 = vmatprep.subr.mxu0 0.0
        %6012 = vmatpush1.msra.mxu0 0.0
        %6013 = vmatprep.subr.mxu0 0.0
        %6014 = vmatpush1.msra.mxu0 0.0
        %6015 = vmatprep.subr.mxu0 0.0
        %6016 = vmatpush1.msra.mxu0 0.0
        %6017 = vmatprep.subr.mxu0 0.0
        %6018 = vmatpush1.msra.mxu0 0.0
        %6019 = vmatprep.subr.mxu0 0.0
        %6020 = vmatpush1.msra.mxu0 0.0
        %6021 = vmatprep.subr.mxu0 0.0
        %6022 = vmatpush1.msra.mxu0 0.0
        %6023 = vmatprep.subr.mxu0 0.0
        %6024 = vmatpush1.msra.mxu0 0.0
        %6025 = vmatprep.subr.mxu0 0.0
        %6026 = vmatpush1.msra.mxu0 0.0
        %6027 = vmatprep.subr.mxu0 0.0
        %6028 = vmatpush1.msra.mxu0 0.0
        %6029 = vmatprep.subr.mxu0 0.0
        %6030 = vmatpush1.msra.mxu0 0.0
        %6031 = vmatprep.subr.mxu0 0.0
        %6032 = vmatpush1.msra.mxu0 0.0
        %6033 = vmatprep.subr.mxu0 0.0
        %6034 = vmatpush1.msra.mxu0 0.0
        %6035 = vmatprep.subr.mxu0 0.0
        %6036 = vmatpush1.msra.mxu0 0.0
        %6037 = vmatprep.subr.mxu0 0.0
        %6038 = vmatpush1.msra.mxu0 0.0
        %6039 = vmatprep.subr.mxu0 0.0
        %6040 = vmatpush1.msra.mxu0 0.0
        %6041 = vmatprep.subr.mxu0 0.0
        %6042 = vmatpush1.msra.mxu0 0.0
        %6043 = vmatprep.subr.mxu0 0.0
        %6044 = vmatpush1.msra.mxu0 0.0
        %6045 = vmatprep.subr.mxu0 0.0
        %6046 = vmatpush1.msra.mxu0 0.0
        %6047 = vmatprep.subr.mxu0 0.0
        %6048 = vmatpush1.msra.mxu0 0.0
        %6049 = vmatprep.mubr.f32.mxu0 0.0
        %v6050 = vand.u32 %v5721, 4294901760
        %v6051 = vsub.f32 %v5721, %v6050
        %v6052 = vand.u32 %v6051, 4294901760
        %6053 = vmatmul.mubr.f32.gmra.mrb[0].mxu0 %v6052
        %v6054 = vpop.f32.mrb[0].mxu0
        %v6055 = vadd.f32 %v5973, %v6054
        %v6056 = vpop.f32.mrb[0].mxu0
        %6057 = vmatprep.mubr.f32.mxu0 0.0
        %v6058 = vand.u32 %v5724, 4294901760
        %v6059 = vsub.f32 %v5724, %v6058
        %v6060 = vand.u32 %v6059, 4294901760
        %6061 = vmatmul.mubr.f32.gmra.mrb[0].mxu0 %v6060
        %v6062 = vpop.f32.mrb[0].mxu0
        %v6063 = vadd.f32 %v5980, %v6062
        %v6064 = vpop.f32.mrb[0].mxu0
        %6065 = vdwg.mxu0
        %6066 = vmatprep.subr.mxu0 0.0
        %v6067 = vand.u32 %v5715, 4294901760
        %v6068 = vsub.f32 %v5715, %v6067
        %v6069 = vand.u32 %v6068, 4294901760
        %6070 = vmatpush1.msra.mxu0 %v6069
        %6071 = vmatprep.subr.mxu0 0.0
        %v6072 = vand.u32 %v5717, 4294901760
        %v6073 = vsub.f32 %v5717, %v6072
        %v6074 = vand.u32 %v6073, 4294901760
        %6075 = vmatpush1.msra.mxu0 %v6074
        %6076 = vmatprep.subr.mxu0 0.0
        %6077 = vmatpush1.msra.mxu0 0.0
        %6078 = vmatprep.subr.mxu0 0.0
        %6079 = vmatpush1.msra.mxu0 0.0
        %6080 = vmatprep.subr.mxu0 0.0
        %6081 = vmatpush1.msra.mxu0 0.0
        %6082 = vmatprep.subr.mxu0 0.0
        %6083 = vmatpush1.msra.mxu0 0.0
        %6084 = vmatprep.subr.mxu0 0.0
        %6085 = vmatpush1.msra.mxu0 0.0
        %6086 = vmatprep.subr.mxu0 0.0
        %6087 = vmatpush1.msra.mxu0 0.0
        %6088 = vmatprep.subr.mxu0 0.0
        %6089 = vmatpush1.msra.mxu0 0.0
        %6090 = vmatprep.subr.mxu0 0.0
        %6091 = vmatpush1.msra.mxu0 0.0
        %6092 = vmatprep.subr.mxu0 0.0
        %6093 = vmatpush1.msra.mxu0 0.0
        %6094 = vmatprep.subr.mxu0 0.0
        %6095 = vmatpush1.msra.mxu0 0.0
        %6096 = vmatprep.subr.mxu0 0.0
        %6097 = vmatpush1.msra.mxu0 0.0
        %6098 = vmatprep.subr.mxu0 0.0
        %6099 = vmatpush1.msra.mxu0 0.0
        %6100 = vmatprep.subr.mxu0 0.0
        %6101 = vmatpush1.msra.mxu0 0.0
        %6102 = vmatprep.subr.mxu0 0.0
        %6103 = vmatpush1.msra.mxu0 0.0
        %6104 = vmatprep.subr.mxu0 0.0
        %6105 = vmatpush1.msra.mxu0 0.0
        %6106 = vmatprep.subr.mxu0 0.0
        %6107 = vmatpush1.msra.mxu0 0.0
        %6108 = vmatprep.subr.mxu0 0.0
        %6109 = vmatpush1.msra.mxu0 0.0
        %6110 = vmatprep.subr.mxu0 0.0
        %6111 = vmatpush1.msra.mxu0 0.0
        %6112 = vmatprep.subr.mxu0 0.0
        %6113 = vmatpush1.msra.mxu0 0.0
        %6114 = vmatprep.subr.mxu0 0.0
        %6115 = vmatpush1.msra.mxu0 0.0
        %6116 = vmatprep.subr.mxu0 0.0
        %6117 = vmatpush1.msra.mxu0 0.0
        %6118 = vmatprep.subr.mxu0 0.0
        %6119 = vmatpush1.msra.mxu0 0.0
        %6120 = vmatprep.subr.mxu0 0.0
        %6121 = vmatpush1.msra.mxu0 0.0
        %6122 = vmatprep.subr.mxu0 0.0
        %6123 = vmatpush1.msra.mxu0 0.0
        %6124 = vmatprep.subr.mxu0 0.0
        %6125 = vmatpush1.msra.mxu0 0.0
        %6126 = vmatprep.subr.mxu0 0.0
        %6127 = vmatpush1.msra.mxu0 0.0
        %6128 = vmatprep.subr.mxu0 0.0
        %6129 = vmatpush1.msra.mxu0 0.0
        %6130 = vmatprep.subr.mxu0 0.0
        %6131 = vmatpush1.msra.mxu0 0.0
        %6132 = vmatprep.subr.mxu0 0.0
        %6133 = vmatpush1.msra.mxu0 0.0
        %6134 = vmatprep.subr.mxu0 0.0
        %6135 = vmatpush1.msra.mxu0 0.0
        %6136 = vmatprep.mubr.f32.mxu0 0.0
        %v6137 = vand.u32 %v5721, 4294901760
        %6138 = vmatmul.mubr.f32.gmra.mrb[0].mxu0 %v6137
        %v6139 = vpop.f32.mrb[0].mxu0
        %v6140 = vadd.f32 %v6055, %v6139
        %v6141 = vpop.f32.mrb[0].mxu0
        %6142 = vmatprep.mubr.f32.mxu0 0.0
        %v6143 = vand.u32 %v5724, 4294901760
        %6144 = vmatmul.mubr.f32.gmra.mrb[0].mxu0 %v6143
        %v6145 = vpop.f32.mrb[0].mxu0
        %v6146 = vadd.f32 %v6063, %v6145
        %v6147 = vpop.f32.mrb[0].mxu0
        %6148 = vdwg.mxu0
        %6149 = vmatprep.subr.mxu0 0.0
        %v6150 = vand.u32 %v5715, 4294901760
        %6151 = vmatpush1.msra.mxu0 %v6150
        %6152 = vmatprep.subr.mxu0 0.0
        %v6153 = vand.u32 %v5717, 4294901760
        %6154 = vmatpush1.msra.mxu0 %v6153
        %6155 = vmatprep.subr.mxu0 0.0
        %6156 = vmatpush1.msra.mxu0 0.0
        %6157 = vmatprep.subr.mxu0 0.0
        %6158 = vmatpush1.msra.mxu0 0.0
        %6159 = vmatprep.subr.mxu0 0.0
        %6160 = vmatpush1.msra.mxu0 0.0
        %6161 = vmatprep.subr.mxu0 0.0
        %6162 = vmatpush1.msra.mxu0 0.0
        %6163 = vmatprep.subr.mxu0 0.0
        %6164 = vmatpush1.msra.mxu0 0.0
        %6165 = vmatprep.subr.mxu0 0.0
        %6166 = vmatpush1.msra.mxu0 0.0
        %6167 = vmatprep.subr.mxu0 0.0
        %6168 = vmatpush1.msra.mxu0 0.0
        %6169 = vmatprep.subr.mxu0 0.0
        %6170 = vmatpush1.msra.mxu0 0.0
        %6171 = vmatprep.subr.mxu0 0.0
        %6172 = vmatpush1.msra.mxu0 0.0
        %6173 = vmatprep.subr.mxu0 0.0
        %6174 = vmatpush1.msra.mxu0 0.0
        %6175 = vmatprep.subr.mxu0 0.0
        %6176 = vmatpush1.msra.mxu0 0.0
        %6177 = vmatprep.subr.mxu0 0.0
        %6178 = vmatpush1.msra.mxu0 0.0
        %6179 = vmatprep.subr.mxu0 0.0
        %6180 = vmatpush1.msra.mxu0 0.0
        %6181 = vmatprep.subr.mxu0 0.0
        %6182 = vmatpush1.msra.mxu0 0.0
        %6183 = vmatprep.subr.mxu0 0.0
        %6184 = vmatpush1.msra.mxu0 0.0
        %6185 = vmatprep.subr.mxu0 0.0
        %6186 = vmatpush1.msra.mxu0 0.0
        %6187 = vmatprep.subr.mxu0 0.0
        %6188 = vmatpush1.msra.mxu0 0.0
        %6189 = vmatprep.subr.mxu0 0.0
        %6190 = vmatpush1.msra.mxu0 0.0
        %6191 = vmatprep.subr.mxu0 0.0
        %6192 = vmatpush1.msra.mxu0 0.0
        %6193 = vmatprep.subr.mxu0 0.0
        %6194 = vmatpush1.msra.mxu0 0.0
        %6195 = vmatprep.subr.mxu0 0.0
        %6196 = vmatpush1.msra.mxu0 0.0
        %6197 = vmatprep.subr.mxu0 0.0
        %6198 = vmatpush1.msra.mxu0 0.0
        %6199 = vmatprep.subr.mxu0 0.0
        %6200 = vmatpush1.msra.mxu0 0.0
        %6201 = vmatprep.subr.mxu0 0.0
        %6202 = vmatpush1.msra.mxu0 0.0
        %6203 = vmatprep.subr.mxu0 0.0
        %6204 = vmatpush1.msra.mxu0 0.0
        %6205 = vmatprep.subr.mxu0 0.0
        %6206 = vmatpush1.msra.mxu0 0.0
        %6207 = vmatprep.subr.mxu0 0.0
        %6208 = vmatpush1.msra.mxu0 0.0
        %6209 = vmatprep.subr.mxu0 0.0
        %6210 = vmatpush1.msra.mxu0 0.0
        %6211 = vmatprep.subr.mxu0 0.0
        %6212 = vmatpush1.msra.mxu0 0.0
        %6213 = vmatprep.subr.mxu0 0.0
        %6214 = vmatpush1.msra.mxu0 0.0
        %6215 = vmatprep.mubr.f32.mxu0 0.0
        %v6216 = vand.u32 %v5721, 4294901760
        %6217 = vmatmul.mubr.f32.gmra.mrb[0].mxu0 %v6216
        %v6218 = vpop.f32.mrb[0].mxu0
        %v6219 = vadd.f32 %v6140, %v6218
        %v6220 = vpop.f32.mrb[0].mxu0
        %6221 = vmatprep.mubr.f32.mxu0 0.0
        %v6222 = vand.u32 %v5724, 4294901760
        %6223 = vmatmul.mubr.f32.gmra.mrb[0].mxu0 %v6222
        %v6224 = vpop.f32.mrb[0].mxu0
        %v6225 = vadd.f32 %v6146, %v6224
        %v6226 = vpop.f32.mrb[0].mxu0
        %6227 = vdwg.mxu0
        %v6228 = vrcp.pop %v5710
        %v6229 = vmul.f32 %v6219, %v6228
        %v6230 = vrcp.pop %v5713
        %v6231 = vmul.f32 %v6225, %v6230
        %6232 = vrot.lane.b32.xlu0 %v955, 88
        %v6233 = vpop.permute.xlu0 %6232
        %6234 = vrot.lane.b32.xlu0 %v962, 88
        %v6235 = vpop.permute.xlu0 %6234
        %6236 = vrot.lane.b32.xlu0 %v955, 24
        %v6237 = vpop.permute.xlu0 %6236
        %6238 = vrot.lane.b32.xlu0 %v962, 24
        %v6239 = vpop.permute.xlu0 %6238
        %v6240 = vsel %vm972, %v6233, 0
        %v6242 = vsel %vm972, %v6235, 0
        %v6244 = vsel %vm972, %v6237, 0
        %v6246 = vsel %vm972, %v6239, 0
        %6248 = vmatprep.subr.mxu0 0.0
        %v6249 = vand.u32 %v6244, 4294901760
        %6250 = vmatpush1.xpose.msra.mxu0 %v6249
        %6251 = vmatprep.subr.mxu0 0.0
        %v6252 = vand.u32 %v6246, 4294901760
        %6253 = vmatpush1.xpose.msra.mxu0 %v6252
        %6254 = vmatprep.subr.mxu0 0.0
        %6255 = vmatpush1.xpose.msra.mxu0 0.0
        %6256 = vmatprep.subr.mxu0 0.0
        %6257 = vmatpush1.xpose.msra.mxu0 0.0
        %6258 = vmatprep.subr.mxu0 0.0
        %6259 = vmatpush1.xpose.msra.mxu0 0.0
        %6260 = vmatprep.subr.mxu0 0.0
        %6261 = vmatpush1.xpose.msra.mxu0 0.0
        %6262 = vmatprep.subr.mxu0 0.0
        %6263 = vmatpush1.xpose.msra.mxu0 0.0
        %6264 = vmatprep.subr.mxu0 0.0
        %6265 = vmatpush1.xpose.msra.mxu0 0.0
        %6266 = vmatprep.subr.mxu0 0.0
        %6267 = vmatpush1.xpose.msra.mxu0 0.0
        %6268 = vmatprep.subr.mxu0 0.0
        %6269 = vmatpush1.xpose.msra.mxu0 0.0
        %6270 = vmatprep.subr.mxu0 0.0
        %6271 = vmatpush1.xpose.msra.mxu0 0.0
        %6272 = vmatprep.subr.mxu0 0.0
        %6273 = vmatpush1.xpose.msra.mxu0 0.0
        %6274 = vmatprep.subr.mxu0 0.0
        %6275 = vmatpush1.xpose.msra.mxu0 0.0
        %6276 = vmatprep.subr.mxu0 0.0
        %6277 = vmatpush1.xpose.msra.mxu0 0.0
        %6278 = vmatprep.subr.mxu0 0.0
        %6279 = vmatpush1.xpose.msra.mxu0 0.0
        %6280 = vmatprep.subr.mxu0 0.0
        %6281 = vmatpush1.xpose.msra.mxu0 0.0
        %6282 = vmatprep.subr.mxu0 0.0
        %6283 = vmatpush1.xpose.msra.mxu0 0.0
        %6284 = vmatprep.subr.mxu0 0.0
        %6285 = vmatpush1.xpose.msra.mxu0 0.0
        %6286 = vmatprep.subr.mxu0 0.0
        %6287 = vmatpush1.xpose.msra.mxu0 0.0
        %6288 = vmatprep.subr.mxu0 0.0
        %6289 = vmatpush1.xpose.msra.mxu0 0.0
        %6290 = vmatprep.subr.mxu0 0.0
        %6291 = vmatpush1.xpose.msra.mxu0 0.0
        %6292 = vmatprep.subr.mxu0 0.0
        %6293 = vmatpush1.xpose.msra.mxu0 0.0
        %6294 = vmatprep.subr.mxu0 0.0
        %6295 = vmatpush1.xpose.msra.mxu0 0.0
        %6296 = vmatprep.subr.mxu0 0.0
        %6297 = vmatpush1.xpose.msra.mxu0 0.0
        %6298 = vmatprep.subr.mxu0 0.0
        %6299 = vmatpush1.xpose.msra.mxu0 0.0
        %6300 = vmatprep.subr.mxu0 0.0
        %6301 = vmatpush1.xpose.msra.mxu0 0.0
        %6302 = vmatprep.subr.mxu0 0.0
        %6303 = vmatpush1.xpose.msra.mxu0 0.0
        %6304 = vmatprep.subr.mxu0 0.0
        %6305 = vmatpush1.xpose.msra.mxu0 0.0
        %6306 = vmatprep.subr.mxu0 0.0
        %6307 = vmatpush1.xpose.msra.mxu0 0.0
        %6308 = vmatprep.subr.mxu0 0.0
        %6309 = vmatpush1.xpose.msra.mxu0 0.0
        %6310 = vmatprep.subr.mxu0 0.0
        %6311 = vmatpush1.xpose.msra.mxu0 0.0
        %6312 = vmatprep.subr.mxu0 0.0
        %6313 = vmatpush1.xpose.msra.mxu0 0.0
        %6314 = vmatprep.mubr.f32.mxu0 0.0
        %v6315 = vand.u32 %v6240, 4294901760
        %v6316 = vsub.f32 %v6240, %v6315
        %v6317 = vand.u32 %v6316, 4294901760
        %v6318 = vsub.f32 %v6316, %v6317
        %v6319 = vand.u32 %v6318, 4294901760
        %6320 = vmatmul.mubr.f32.gmra.mrb[0].mxu0 %v6319
        %v6321 = vpop.f32.mrb[0].mxu0
        %v6322 = vadd.f32 0.0, %v6321
        %v6323 = vpop.f32.mrb[0].mxu0
        %6324 = vmatprep.mubr.f32.mxu0 0.0
        %v6325 = vand.u32 %v6242, 4294901760
        %v6326 = vsub.f32 %v6242, %v6325
        %v6327 = vand.u32 %v6326, 4294901760
        %v6328 = vsub.f32 %v6326, %v6327
        %v6329 = vand.u32 %v6328, 4294901760
        %6330 = vmatmul.mubr.f32.gmra.mrb[0].mxu0 %v6329
        %v6331 = vpop.f32.mrb[0].mxu0
        %v6332 = vadd.f32 0.0, %v6331
        %v6333 = vpop.f32.mrb[0].mxu0
        %6334 = vdwg.mxu0
        %6335 = vmatprep.subr.mxu0 0.0
        %v6336 = vand.u32 %v6244, 4294901760
        %v6337 = vsub.f32 %v6244, %v6336
        %v6338 = vand.u32 %v6337, 4294901760
        %v6339 = vsub.f32 %v6337, %v6338
        %v6340 = vand.u32 %v6339, 4294901760
        %6341 = vmatpush1.xpose.msra.mxu0 %v6340
        %6342 = vmatprep.subr.mxu0 0.0
        %v6343 = vand.u32 %v6246, 4294901760
        %v6344 = vsub.f32 %v6246, %v6343
        %v6345 = vand.u32 %v6344, 4294901760
        %v6346 = vsub.f32 %v6344, %v6345
        %v6347 = vand.u32 %v6346, 4294901760
        %6348 = vmatpush1.xpose.msra.mxu0 %v6347
        %6349 = vmatprep.subr.mxu0 0.0
        %6350 = vmatpush1.xpose.msra.mxu0 0.0
        %6351 = vmatprep.subr.mxu0 0.0
        %6352 = vmatpush1.xpose.msra.mxu0 0.0
        %6353 = vmatprep.subr.mxu0 0.0
        %6354 = vmatpush1.xpose.msra.mxu0 0.0
        %6355 = vmatprep.subr.mxu0 0.0
        %6356 = vmatpush1.xpose.msra.mxu0 0.0
        %6357 = vmatprep.subr.mxu0 0.0
        %6358 = vmatpush1.xpose.msra.mxu0 0.0
        %6359 = vmatprep.subr.mxu0 0.0
        %6360 = vmatpush1.xpose.msra.mxu0 0.0
        %6361 = vmatprep.subr.mxu0 0.0
        %6362 = vmatpush1.xpose.msra.mxu0 0.0
        %6363 = vmatprep.subr.mxu0 0.0
        %6364 = vmatpush1.xpose.msra.mxu0 0.0
        %6365 = vmatprep.subr.mxu0 0.0
        %6366 = vmatpush1.xpose.msra.mxu0 0.0
        %6367 = vmatprep.subr.mxu0 0.0
        %6368 = vmatpush1.xpose.msra.mxu0 0.0
        %6369 = vmatprep.subr.mxu0 0.0
        %6370 = vmatpush1.xpose.msra.mxu0 0.0
        %6371 = vmatprep.subr.mxu0 0.0
        %6372 = vmatpush1.xpose.msra.mxu0 0.0
        %6373 = vmatprep.subr.mxu0 0.0
        %6374 = vmatpush1.xpose.msra.mxu0 0.0
        %6375 = vmatprep.subr.mxu0 0.0
        %6376 = vmatpush1.xpose.msra.mxu0 0.0
        %6377 = vmatprep.subr.mxu0 0.0
        %6378 = vmatpush1.xpose.msra.mxu0 0.0
        %6379 = vmatprep.subr.mxu0 0.0
        %6380 = vmatpush1.xpose.msra.mxu0 0.0
        %6381 = vmatprep.subr.mxu0 0.0
        %6382 = vmatpush1.xpose.msra.mxu0 0.0
        %6383 = vmatprep.subr.mxu0 0.0
        %6384 = vmatpush1.xpose.msra.mxu0 0.0
        %6385 = vmatprep.subr.mxu0 0.0
        %6386 = vmatpush1.xpose.msra.mxu0 0.0
        %6387 = vmatprep.subr.mxu0 0.0
        %6388 = vmatpush1.xpose.msra.mxu0 0.0
        %6389 = vmatprep.subr.mxu0 0.0
        %6390 = vmatpush1.xpose.msra.mxu0 0.0
        %6391 = vmatprep.subr.mxu0 0.0
        %6392 = vmatpush1.xpose.msra.mxu0 0.0
        %6393 = vmatprep.subr.mxu0 0.0
        %6394 = vmatpush1.xpose.msra.mxu0 0.0
        %6395 = vmatprep.subr.mxu0 0.0
        %6396 = vmatpush1.xpose.msra.mxu0 0.0
        %6397 = vmatprep.subr.mxu0 0.0
        %6398 = vmatpush1.xpose.msra.mxu0 0.0
        %6399 = vmatprep.subr.mxu0 0.0
        %6400 = vmatpush1.xpose.msra.mxu0 0.0
        %6401 = vmatprep.subr.mxu0 0.0
        %6402 = vmatpush1.xpose.msra.mxu0 0.0
        %6403 = vmatprep.subr.mxu0 0.0
        %6404 = vmatpush1.xpose.msra.mxu0 0.0
        %6405 = vmatprep.subr.mxu0 0.0
        %6406 = vmatpush1.xpose.msra.mxu0 0.0
        %6407 = vmatprep.subr.mxu0 0.0
        %6408 = vmatpush1.xpose.msra.mxu0 0.0
        %6409 = vmatprep.mubr.f32.mxu0 0.0
        %v6410 = vand.u32 %v6240, 4294901760
        %6411 = vmatmul.mubr.f32.gmra.mrb[0].mxu0 %v6410
        %v6412 = vpop.f32.mrb[0].mxu0
        %v6413 = vadd.f32 %v6322, %v6412
        %v6414 = vpop.f32.mrb[0].mxu0
        %6415 = vmatprep.mubr.f32.mxu0 0.0
        %v6416 = vand.u32 %v6242, 4294901760
        %6417 = vmatmul.mubr.f32.gmra.mrb[0].mxu0 %v6416
        %v6418 = vpop.f32.mrb[0].mxu0
        %v6419 = vadd.f32 %v6332, %v6418
        %v6420 = vpop.f32.mrb[0].mxu0
        %6421 = vdwg.mxu0
        %6422 = vmatprep.subr.mxu0 0.0
        %v6423 = vand.u32 %v6244, 4294901760
        %v6424 = vsub.f32 %v6244, %v6423
        %6425 = vmatpush1.xpose.msra.mxu0 %v6424
        %6426 = vmatprep.subr.mxu0 0.0
        %v6427 = vand.u32 %v6246, 4294901760
        %v6428 = vsub.f32 %v6246, %v6427
        %6429 = vmatpush1.xpose.msra.mxu0 %v6428
        %6430 = vmatprep.subr.mxu0 0.0
        %6431 = vmatpush1.xpose.msra.mxu0 0.0
        %6432 = vmatprep.subr.mxu0 0.0
        %6433 = vmatpush1.xpose.msra.mxu0 0.0
        %6434 = vmatprep.subr.mxu0 0.0
        %6435 = vmatpush1.xpose.msra.mxu0 0.0
        %6436 = vmatprep.subr.mxu0 0.0
        %6437 = vmatpush1.xpose.msra.mxu0 0.0
        %6438 = vmatprep.subr.mxu0 0.0
        %6439 = vmatpush1.xpose.msra.mxu0 0.0
        %6440 = vmatprep.subr.mxu0 0.0
        %6441 = vmatpush1.xpose.msra.mxu0 0.0
        %6442 = vmatprep.subr.mxu0 0.0
        %6443 = vmatpush1.xpose.msra.mxu0 0.0
        %6444 = vmatprep.subr.mxu0 0.0
        %6445 = vmatpush1.xpose.msra.mxu0 0.0
        %6446 = vmatprep.subr.mxu0 0.0
        %6447 = vmatpush1.xpose.msra.mxu0 0.0
        %6448 = vmatprep.subr.mxu0 0.0
        %6449 = vmatpush1.xpose.msra.mxu0 0.0
        %6450 = vmatprep.subr.mxu0 0.0
        %6451 = vmatpush1.xpose.msra.mxu0 0.0
        %6452 = vmatprep.subr.mxu0 0.0
        %6453 = vmatpush1.xpose.msra.mxu0 0.0
        %6454 = vmatprep.subr.mxu0 0.0
        %6455 = vmatpush1.xpose.msra.mxu0 0.0
        %6456 = vmatprep.subr.mxu0 0.0
        %6457 = vmatpush1.xpose.msra.mxu0 0.0
        %6458 = vmatprep.subr.mxu0 0.0
        %6459 = vmatpush1.xpose.msra.mxu0 0.0
        %6460 = vmatprep.subr.mxu0 0.0
        %6461 = vmatpush1.xpose.msra.mxu0 0.0
        %6462 = vmatprep.subr.mxu0 0.0
        %6463 = vmatpush1.xpose.msra.mxu0 0.0
        %6464 = vmatprep.subr.mxu0 0.0
        %6465 = vmatpush1.xpose.msra.mxu0 0.0
        %6466 = vmatprep.subr.mxu0 0.0
        %6467 = vmatpush1.xpose.msra.mxu0 0.0
        %6468 = vmatprep.subr.mxu0 0.0
        %6469 = vmatpush1.xpose.msra.mxu0 0.0
        %6470 = vmatprep.subr.mxu0 0.0
        %6471 = vmatpush1.xpose.msra.mxu0 0.0
        %6472 = vmatprep.subr.mxu0 0.0
        %6473 = vmatpush1.xpose.msra.mxu0 0.0
        %6474 = vmatprep.subr.mxu0 0.0
        %6475 = vmatpush1.xpose.msra.mxu0 0.0
        %6476 = vmatprep.subr.mxu0 0.0
        %6477 = vmatpush1.xpose.msra.mxu0 0.0
        %6478 = vmatprep.subr.mxu0 0.0
        %6479 = vmatpush1.xpose.msra.mxu0 0.0
        %6480 = vmatprep.subr.mxu0 0.0
        %6481 = vmatpush1.xpose.msra.mxu0 0.0
        %6482 = vmatprep.subr.mxu0 0.0
        %6483 = vmatpush1.xpose.msra.mxu0 0.0
        %6484 = vmatprep.subr.mxu0 0.0
        %6485 = vmatpush1.xpose.msra.mxu0 0.0
        %6486 = vmatprep.subr.mxu0 0.0
        %6487 = vmatpush1.xpose.msra.mxu0 0.0
        %6488 = vmatprep.subr.mxu0 0.0
        %6489 = vmatpush1.xpose.msra.mxu0 0.0
        %6490 = vmatprep.mubr.f32.mxu0 0.0
        %v6491 = vand.u32 %v6240, 4294901760
        %v6492 = vsub.f32 %v6240, %v6491
        %6493 = vmatmul.mubr.f32.gmra.mrb[0].mxu0 %v6492
        %v6494 = vpop.f32.mrb[0].mxu0
        %v6495 = vadd.f32 %v6413, %v6494
        %v6496 = vpop.f32.mrb[0].mxu0
        %6497 = vmatprep.mubr.f32.mxu0 0.0
        %v6498 = vand.u32 %v6242, 4294901760
        %v6499 = vsub.f32 %v6242, %v6498
        %6500 = vmatmul.mubr.f32.gmra.mrb[0].mxu0 %v6499
        %v6501 = vpop.f32.mrb[0].mxu0
        %v6502 = vadd.f32 %v6419, %v6501
        %v6503 = vpop.f32.mrb[0].mxu0
        %6504 = vdwg.mxu0
        %6505 = vmatprep.subr.mxu0 0.0
        %v6506 = vand.u32 %v6244, 4294901760
        %6507 = vmatpush1.xpose.msra.mxu0 %v6506
        %6508 = vmatprep.subr.mxu0 0.0
        %v6509 = vand.u32 %v6246, 4294901760
        %6510 = vmatpush1.xpose.msra.mxu0 %v6509
        %6511 = vmatprep.subr.mxu0 0.0
        %6512 = vmatpush1.xpose.msra.mxu0 0.0
        %6513 = vmatprep.subr.mxu0 0.0
        %6514 = vmatpush1.xpose.msra.mxu0 0.0
        %6515 = vmatprep.subr.mxu0 0.0
        %6516 = vmatpush1.xpose.msra.mxu0 0.0
        %6517 = vmatprep.subr.mxu0 0.0
        %6518 = vmatpush1.xpose.msra.mxu0 0.0
        %6519 = vmatprep.subr.mxu0 0.0
        %6520 = vmatpush1.xpose.msra.mxu0 0.0
        %6521 = vmatprep.subr.mxu0 0.0
        %6522 = vmatpush1.xpose.msra.mxu0 0.0
        %6523 = vmatprep.subr.mxu0 0.0
        %6524 = vmatpush1.xpose.msra.mxu0 0.0
        %6525 = vmatprep.subr.mxu0 0.0
        %6526 = vmatpush1.xpose.msra.mxu0 0.0
        %6527 = vmatprep.subr.mxu0 0.0
        %6528 = vmatpush1.xpose.msra.mxu0 0.0
        %6529 = vmatprep.subr.mxu0 0.0
        %6530 = vmatpush1.xpose.msra.mxu0 0.0
        %6531 = vmatprep.subr.mxu0 0.0
        %6532 = vmatpush1.xpose.msra.mxu0 0.0
        %6533 = vmatprep.subr.mxu0 0.0
        %6534 = vmatpush1.xpose.msra.mxu0 0.0
        %6535 = vmatprep.subr.mxu0 0.0
        %6536 = vmatpush1.xpose.msra.mxu0 0.0
        %6537 = vmatprep.subr.mxu0 0.0
        %6538 = vmatpush1.xpose.msra.mxu0 0.0
        %6539 = vmatprep.subr.mxu0 0.0
        %6540 = vmatpush1.xpose.msra.mxu0 0.0
        %6541 = vmatprep.subr.mxu0 0.0
        %6542 = vmatpush1.xpose.msra.mxu0 0.0
        %6543 = vmatprep.subr.mxu0 0.0
        %6544 = vmatpush1.xpose.msra.mxu0 0.0
        %6545 = vmatprep.subr.mxu0 0.0
        %6546 = vmatpush1.xpose.msra.mxu0 0.0
        %6547 = vmatprep.subr.mxu0 0.0
        %6548 = vmatpush1.xpose.msra.mxu0 0.0
        %6549 = vmatprep.subr.mxu0 0.0
        %6550 = vmatpush1.xpose.msra.mxu0 0.0
        %6551 = vmatprep.subr.mxu0 0.0
        %6552 = vmatpush1.xpose.msra.mxu0 0.0
        %6553 = vmatprep.subr.mxu0 0.0
        %6554 = vmatpush1.xpose.msra.mxu0 0.0
        %6555 = vmatprep.subr.mxu0 0.0
        %6556 = vmatpush1.xpose.msra.mxu0 0.0
        %6557 = vmatprep.subr.mxu0 0.0
        %6558 = vmatpush1.xpose.msra.mxu0 0.0
        %6559 = vmatprep.subr.mxu0 0.0
        %6560 = vmatpush1.xpose.msra.mxu0 0.0
        %6561 = vmatprep.subr.mxu0 0.0
        %6562 = vmatpush1.xpose.msra.mxu0 0.0
        %6563 = vmatprep.subr.mxu0 0.0
        %6564 = vmatpush1.xpose.msra.mxu0 0.0
        %6565 = vmatprep.subr.mxu0 0.0
        %6566 = vmatpush1.xpose.msra.mxu0 0.0
        %6567 = vmatprep.subr.mxu0 0.0
        %6568 = vmatpush1.xpose.msra.mxu0 0.0
        %6569 = vmatprep.subr.mxu0 0.0
        %6570 = vmatpush1.xpose.msra.mxu0 0.0
        %6571 = vmatprep.mubr.f32.mxu0 0.0
        %v6572 = vand.u32 %v6240, 4294901760
        %v6573 = vsub.f32 %v6240, %v6572
        %v6574 = vand.u32 %v6573, 4294901760
        %6575 = vmatmul.mubr.f32.gmra.mrb[0].mxu0 %v6574
        %v6576 = vpop.f32.mrb[0].mxu0
        %v6577 = vadd.f32 %v6495, %v6576
        %v6578 = vpop.f32.mrb[0].mxu0
        %6579 = vmatprep.mubr.f32.mxu0 0.0
        %v6580 = vand.u32 %v6242, 4294901760
        %v6581 = vsub.f32 %v6242, %v6580
        %v6582 = vand.u32 %v6581, 4294901760
        %6583 = vmatmul.mubr.f32.gmra.mrb[0].mxu0 %v6582
        %v6584 = vpop.f32.mrb[0].mxu0
        %v6585 = vadd.f32 %v6502, %v6584
        %v6586 = vpop.f32.mrb[0].mxu0
        %6587 = vdwg.mxu0
        %6588 = vmatprep.subr.mxu0 0.0
        %v6589 = vand.u32 %v6244, 4294901760
        %v6590 = vsub.f32 %v6244, %v6589
        %v6591 = vand.u32 %v6590, 4294901760
        %6592 = vmatpush1.xpose.msra.mxu0 %v6591
        %6593 = vmatprep.subr.mxu0 0.0
        %v6594 = vand.u32 %v6246, 4294901760
        %v6595 = vsub.f32 %v6246, %v6594
        %v6596 = vand.u32 %v6595, 4294901760
        %6597 = vmatpush1.xpose.msra.mxu0 %v6596
        %6598 = vmatprep.subr.mxu0 0.0
        %6599 = vmatpush1.xpose.msra.mxu0 0.0
        %6600 = vmatprep.subr.mxu0 0.0
        %6601 = vmatpush1.xpose.msra.mxu0 0.0
        %6602 = vmatprep.subr.mxu0 0.0
        %6603 = vmatpush1.xpose.msra.mxu0 0.0
        %6604 = vmatprep.subr.mxu0 0.0
        %6605 = vmatpush1.xpose.msra.mxu0 0.0
        %6606 = vmatprep.subr.mxu0 0.0
        %6607 = vmatpush1.xpose.msra.mxu0 0.0
        %6608 = vmatprep.subr.mxu0 0.0
        %6609 = vmatpush1.xpose.msra.mxu0 0.0
        %6610 = vmatprep.subr.mxu0 0.0
        %6611 = vmatpush1.xpose.msra.mxu0 0.0
        %6612 = vmatprep.subr.mxu0 0.0
        %6613 = vmatpush1.xpose.msra.mxu0 0.0
        %6614 = vmatprep.subr.mxu0 0.0
        %6615 = vmatpush1.xpose.msra.mxu0 0.0
        %6616 = vmatprep.subr.mxu0 0.0
        %6617 = vmatpush1.xpose.msra.mxu0 0.0
        %6618 = vmatprep.subr.mxu0 0.0
        %6619 = vmatpush1.xpose.msra.mxu0 0.0
        %6620 = vmatprep.subr.mxu0 0.0
        %6621 = vmatpush1.xpose.msra.mxu0 0.0
        %6622 = vmatprep.subr.mxu0 0.0
        %6623 = vmatpush1.xpose.msra.mxu0 0.0
        %6624 = vmatprep.subr.mxu0 0.0
        %6625 = vmatpush1.xpose.msra.mxu0 0.0
        %6626 = vmatprep.subr.mxu0 0.0
        %6627 = vmatpush1.xpose.msra.mxu0 0.0
        %6628 = vmatprep.subr.mxu0 0.0
        %6629 = vmatpush1.xpose.msra.mxu0 0.0
        %6630 = vmatprep.subr.mxu0 0.0
        %6631 = vmatpush1.xpose.msra.mxu0 0.0
        %6632 = vmatprep.subr.mxu0 0.0
        %6633 = vmatpush1.xpose.msra.mxu0 0.0
        %6634 = vmatprep.subr.mxu0 0.0
        %6635 = vmatpush1.xpose.msra.mxu0 0.0
        %6636 = vmatprep.subr.mxu0 0.0
        %6637 = vmatpush1.xpose.msra.mxu0 0.0
        %6638 = vmatprep.subr.mxu0 0.0
        %6639 = vmatpush1.xpose.msra.mxu0 0.0
        %6640 = vmatprep.subr.mxu0 0.0
        %6641 = vmatpush1.xpose.msra.mxu0 0.0
        %6642 = vmatprep.subr.mxu0 0.0
        %6643 = vmatpush1.xpose.msra.mxu0 0.0
        %6644 = vmatprep.subr.mxu0 0.0
        %6645 = vmatpush1.xpose.msra.mxu0 0.0
        %6646 = vmatprep.subr.mxu0 0.0
        %6647 = vmatpush1.xpose.msra.mxu0 0.0
        %6648 = vmatprep.subr.mxu0 0.0
        %6649 = vmatpush1.xpose.msra.mxu0 0.0
        %6650 = vmatprep.subr.mxu0 0.0
        %6651 = vmatpush1.xpose.msra.mxu0 0.0
        %6652 = vmatprep.subr.mxu0 0.0
        %6653 = vmatpush1.xpose.msra.mxu0 0.0
        %6654 = vmatprep.subr.mxu0 0.0
        %6655 = vmatpush1.xpose.msra.mxu0 0.0
        %6656 = vmatprep.subr.mxu0 0.0
        %6657 = vmatpush1.xpose.msra.mxu0 0.0
        %6658 = vmatprep.mubr.f32.mxu0 0.0
        %v6659 = vand.u32 %v6240, 4294901760
        %6660 = vmatmul.mubr.f32.gmra.mrb[0].mxu0 %v6659
        %v6661 = vpop.f32.mrb[0].mxu0
        %v6662 = vadd.f32 %v6577, %v6661
        %v6663 = vpop.f32.mrb[0].mxu0
        %6664 = vmatprep.mubr.f32.mxu0 0.0
        %v6665 = vand.u32 %v6242, 4294901760
        %6666 = vmatmul.mubr.f32.gmra.mrb[0].mxu0 %v6665
        %v6667 = vpop.f32.mrb[0].mxu0
        %v6668 = vadd.f32 %v6585, %v6667
        %v6669 = vpop.f32.mrb[0].mxu0
        %6670 = vdwg.mxu0
        %6671 = vmatprep.subr.mxu0 0.0
        %v6672 = vand.u32 %v6244, 4294901760
        %6673 = vmatpush1.xpose.msra.mxu0 %v6672
        %6674 = vmatprep.subr.mxu0 0.0
        %v6675 = vand.u32 %v6246, 4294901760
        %6676 = vmatpush1.xpose.msra.mxu0 %v6675
        %6677 = vmatprep.subr.mxu0 0.0
        %6678 = vmatpush1.xpose.msra.mxu0 0.0
        %6679 = vmatprep.subr.mxu0 0.0
        %6680 = vmatpush1.xpose.msra.mxu0 0.0
        %6681 = vmatprep.subr.mxu0 0.0
        %6682 = vmatpush1.xpose.msra.mxu0 0.0
        %6683 = vmatprep.subr.mxu0 0.0
        %6684 = vmatpush1.xpose.msra.mxu0 0.0
        %6685 = vmatprep.subr.mxu0 0.0
        %6686 = vmatpush1.xpose.msra.mxu0 0.0
        %6687 = vmatprep.subr.mxu0 0.0
        %6688 = vmatpush1.xpose.msra.mxu0 0.0
        %6689 = vmatprep.subr.mxu0 0.0
        %6690 = vmatpush1.xpose.msra.mxu0 0.0
        %6691 = vmatprep.subr.mxu0 0.0
        %6692 = vmatpush1.xpose.msra.mxu0 0.0
        %6693 = vmatprep.subr.mxu0 0.0
        %6694 = vmatpush1.xpose.msra.mxu0 0.0
        %6695 = vmatprep.subr.mxu0 0.0
        %6696 = vmatpush1.xpose.msra.mxu0 0.0
        %6697 = vmatprep.subr.mxu0 0.0
        %6698 = vmatpush1.xpose.msra.mxu0 0.0
        %6699 = vmatprep.subr.mxu0 0.0
        %6700 = vmatpush1.xpose.msra.mxu0 0.0
        %6701 = vmatprep.subr.mxu0 0.0
        %6702 = vmatpush1.xpose.msra.mxu0 0.0
        %6703 = vmatprep.subr.mxu0 0.0
        %6704 = vmatpush1.xpose.msra.mxu0 0.0
        %6705 = vmatprep.subr.mxu0 0.0
        %6706 = vmatpush1.xpose.msra.mxu0 0.0
        %6707 = vmatprep.subr.mxu0 0.0
        %6708 = vmatpush1.xpose.msra.mxu0 0.0
        %6709 = vmatprep.subr.mxu0 0.0
        %6710 = vmatpush1.xpose.msra.mxu0 0.0
        %6711 = vmatprep.subr.mxu0 0.0
        %6712 = vmatpush1.xpose.msra.mxu0 0.0
        %6713 = vmatprep.subr.mxu0 0.0
        %6714 = vmatpush1.xpose.msra.mxu0 0.0
        %6715 = vmatprep.subr.mxu0 0.0
        %6716 = vmatpush1.xpose.msra.mxu0 0.0
        %6717 = vmatprep.subr.mxu0 0.0
        %6718 = vmatpush1.xpose.msra.mxu0 0.0
        %6719 = vmatprep.subr.mxu0 0.0
        %6720 = vmatpush1.xpose.msra.mxu0 0.0
        %6721 = vmatprep.subr.mxu0 0.0
        %6722 = vmatpush1.xpose.msra.mxu0 0.0
        %6723 = vmatprep.subr.mxu0 0.0
        %6724 = vmatpush1.xpose.msra.mxu0 0.0
        %6725 = vmatprep.subr.mxu0 0.0
        %6726 = vmatpush1.xpose.msra.mxu0 0.0
        %6727 = vmatprep.subr.mxu0 0.0
        %6728 = vmatpush1.xpose.msra.mxu0 0.0
        %6729 = vmatprep.subr.mxu0 0.0
        %6730 = vmatpush1.xpose.msra.mxu0 0.0
        %6731 = vmatprep.subr.mxu0 0.0
        %6732 = vmatpush1.xpose.msra.mxu0 0.0
        %6733 = vmatprep.subr.mxu0 0.0
        %6734 = vmatpush1.xpose.msra.mxu0 0.0
        %6735 = vmatprep.subr.mxu0 0.0
        %6736 = vmatpush1.xpose.msra.mxu0 0.0
        %6737 = vmatprep.mubr.f32.mxu0 0.0
        %v6738 = vand.u32 %v6240, 4294901760
        %6739 = vmatmul.mubr.f32.gmra.mrb[0].mxu0 %v6738
        %v6740 = vpop.f32.mrb[0].mxu0
        %v6741 = vadd.f32 %v6662, %v6740
        %v6742 = vpop.f32.mrb[0].mxu0
        %6743 = vmatprep.mubr.f32.mxu0 0.0
        %v6744 = vand.u32 %v6242, 4294901760
        %6745 = vmatmul.mubr.f32.gmra.mrb[0].mxu0 %v6744
        %v6746 = vpop.f32.mrb[0].mxu0
        %v6747 = vadd.f32 %v6668, %v6746
        %v6748 = vpop.f32.mrb[0].mxu0
        %6749 = vdwg.mxu0
        %v6750 = vsel %vm1483, %v6741, -inf
        %6751 = vmax.xlane.f32.xlu0 %v6750
        %v6752 = vpop.xlane.xlu0 %6751
        %v6753 = vsel %vm1483, %v6747, -inf
        %6754 = vmax.xlane.f32.xlu0 %v6753
        %v6755 = vpop.xlane.xlu0 %6754
        %v6756 = vsub.f32 %v6741, %v6752
        %v6757 = vsub.f32 %v6747, %v6755
        %v6758 = vmul.f32 %v6756, 1.442695
        %v6759 = vpow.pop %v6758
        %v6760 = vmul.f32 %v6757, 1.442695
        %v6761 = vpow.pop %v6760
        %v6762 = vsel %vm1483, %v6759, 0.0
        %6763 = vadd.xlane.f32.xlu0 %v6762
        %v6764 = vpop.xlane.xlu0 %6763
        %v6765 = vsel %vm1483, %v6761, 0.0
        %6766 = vadd.xlane.f32.xlu0 %v6765
        %v6767 = vpop.xlane.xlu0 %6766
        %6768 = vrot.lane.b32.xlu0 %v957, 88
        %v6769 = vpop.permute.xlu0 %6768
        %6770 = vrot.lane.b32.xlu0 %v964, 88
        %v6771 = vpop.permute.xlu0 %6770
        %v6775 = vsel %vm1483, %v6759, 0
        %v6778 = vsel %vm1483, %v6761, 0
        %6780 = vmatprep.subr.mxu0 0.0
        %v6781 = vand.u32 %v6769, 4294901760
        %6782 = vmatpush1.msra.mxu0 %v6781
        %6783 = vmatprep.subr.mxu0 0.0
        %v6784 = vand.u32 %v6771, 4294901760
        %6785 = vmatpush1.msra.mxu0 %v6784
        %6786 = vmatprep.subr.mxu0 0.0
        %6787 = vmatpush1.msra.mxu0 0.0
        %6788 = vmatprep.subr.mxu0 0.0
        %6789 = vmatpush1.msra.mxu0 0.0
        %6790 = vmatprep.subr.mxu0 0.0
        %6791 = vmatpush1.msra.mxu0 0.0
        %6792 = vmatprep.subr.mxu0 0.0
        %6793 = vmatpush1.msra.mxu0 0.0
        %6794 = vmatprep.subr.mxu0 0.0
        %6795 = vmatpush1.msra.mxu0 0.0
        %6796 = vmatprep.subr.mxu0 0.0
        %6797 = vmatpush1.msra.mxu0 0.0
        %6798 = vmatprep.subr.mxu0 0.0
        %6799 = vmatpush1.msra.mxu0 0.0
        %6800 = vmatprep.subr.mxu0 0.0
        %6801 = vmatpush1.msra.mxu0 0.0
        %6802 = vmatprep.subr.mxu0 0.0
        %6803 = vmatpush1.msra.mxu0 0.0
        %6804 = vmatprep.subr.mxu0 0.0
        %6805 = vmatpush1.msra.mxu0 0.0
        %6806 = vmatprep.subr.mxu0 0.0
        %6807 = vmatpush1.msra.mxu0 0.0
        %6808 = vmatprep.subr.mxu0 0.0
        %6809 = vmatpush1.msra.mxu0 0.0
        %6810 = vmatprep.subr.mxu0 0.0
        %6811 = vmatpush1.msra.mxu0 0.0
        %6812 = vmatprep.subr.mxu0 0.0
        %6813 = vmatpush1.msra.mxu0 0.0
        %6814 = vmatprep.subr.mxu0 0.0
        %6815 = vmatpush1.msra.mxu0 0.0
        %6816 = vmatprep.subr.mxu0 0.0
        %6817 = vmatpush1.msra.mxu0 0.0
        %6818 = vmatprep.subr.mxu0 0.0
        %6819 = vmatpush1.msra.mxu0 0.0
        %6820 = vmatprep.subr.mxu0 0.0
        %6821 = vmatpush1.msra.mxu0 0.0
        %6822 = vmatprep.subr.mxu0 0.0
        %6823 = vmatpush1.msra.mxu0 0.0
        %6824 = vmatprep.subr.mxu0 0.0
        %6825 = vmatpush1.msra.mxu0 0.0
        %6826 = vmatprep.subr.mxu0 0.0
        %6827 = vmatpush1.msra.mxu0 0.0
        %6828 = vmatprep.subr.mxu0 0.0
        %6829 = vmatpush1.msra.mxu0 0.0
        %6830 = vmatprep.subr.mxu0 0.0
        %6831 = vmatpush1.msra.mxu0 0.0
        %6832 = vmatprep.subr.mxu0 0.0
        %6833 = vmatpush1.msra.mxu0 0.0
        %6834 = vmatprep.subr.mxu0 0.0
        %6835 = vmatpush1.msra.mxu0 0.0
        %6836 = vmatprep.subr.mxu0 0.0
        %6837 = vmatpush1.msra.mxu0 0.0
        %6838 = vmatprep.subr.mxu0 0.0
        %6839 = vmatpush1.msra.mxu0 0.0
        %6840 = vmatprep.subr.mxu0 0.0
        %6841 = vmatpush1.msra.mxu0 0.0
        %6842 = vmatprep.subr.mxu0 0.0
        %6843 = vmatpush1.msra.mxu0 0.0
        %6844 = vmatprep.subr.mxu0 0.0
        %6845 = vmatpush1.msra.mxu0 0.0
        %6846 = vmatprep.mubr.f32.mxu0 0.0
        %v6847 = vand.u32 %v6775, 4294901760
        %v6848 = vsub.f32 %v6775, %v6847
        %v6849 = vand.u32 %v6848, 4294901760
        %v6850 = vsub.f32 %v6848, %v6849
        %v6851 = vand.u32 %v6850, 4294901760
        %6852 = vmatmul.mubr.f32.gmra.mrb[0].mxu0 %v6851
        %v6853 = vpop.f32.mrb[0].mxu0
        %v6854 = vadd.f32 0.0, %v6853
        %v6855 = vpop.f32.mrb[0].mxu0
        %6856 = vmatprep.mubr.f32.mxu0 0.0
        %v6857 = vand.u32 %v6778, 4294901760
        %v6858 = vsub.f32 %v6778, %v6857
        %v6859 = vand.u32 %v6858, 4294901760
        %v6860 = vsub.f32 %v6858, %v6859
        %v6861 = vand.u32 %v6860, 4294901760
        %6862 = vmatmul.mubr.f32.gmra.mrb[0].mxu0 %v6861
        %v6863 = vpop.f32.mrb[0].mxu0
        %v6864 = vadd.f32 0.0, %v6863
        %v6865 = vpop.f32.mrb[0].mxu0
        %6866 = vdwg.mxu0
        %6867 = vmatprep.subr.mxu0 0.0
        %v6868 = vand.u32 %v6769, 4294901760
        %v6869 = vsub.f32 %v6769, %v6868
        %v6870 = vand.u32 %v6869, 4294901760
        %v6871 = vsub.f32 %v6869, %v6870
        %v6872 = vand.u32 %v6871, 4294901760
        %6873 = vmatpush1.msra.mxu0 %v6872
        %6874 = vmatprep.subr.mxu0 0.0
        %v6875 = vand.u32 %v6771, 4294901760
        %v6876 = vsub.f32 %v6771, %v6875
        %v6877 = vand.u32 %v6876, 4294901760
        %v6878 = vsub.f32 %v6876, %v6877
        %v6879 = vand.u32 %v6878, 4294901760
        %6880 = vmatpush1.msra.mxu0 %v6879
        %6881 = vmatprep.subr.mxu0 0.0
        %6882 = vmatpush1.msra.mxu0 0.0
        %6883 = vmatprep.subr.mxu0 0.0
        %6884 = vmatpush1.msra.mxu0 0.0
        %6885 = vmatprep.subr.mxu0 0.0
        %6886 = vmatpush1.msra.mxu0 0.0
        %6887 = vmatprep.subr.mxu0 0.0
        %6888 = vmatpush1.msra.mxu0 0.0
        %6889 = vmatprep.subr.mxu0 0.0
        %6890 = vmatpush1.msra.mxu0 0.0
        %6891 = vmatprep.subr.mxu0 0.0
        %6892 = vmatpush1.msra.mxu0 0.0
        %6893 = vmatprep.subr.mxu0 0.0
        %6894 = vmatpush1.msra.mxu0 0.0
        %6895 = vmatprep.subr.mxu0 0.0
        %6896 = vmatpush1.msra.mxu0 0.0
        %6897 = vmatprep.subr.mxu0 0.0
        %6898 = vmatpush1.msra.mxu0 0.0
        %6899 = vmatprep.subr.mxu0 0.0
        %6900 = vmatpush1.msra.mxu0 0.0
        %6901 = vmatprep.subr.mxu0 0.0
        %6902 = vmatpush1.msra.mxu0 0.0
        %6903 = vmatprep.subr.mxu0 0.0
        %6904 = vmatpush1.msra.mxu0 0.0
        %6905 = vmatprep.subr.mxu0 0.0
        %6906 = vmatpush1.msra.mxu0 0.0
        %6907 = vmatprep.subr.mxu0 0.0
        %6908 = vmatpush1.msra.mxu0 0.0
        %6909 = vmatprep.subr.mxu0 0.0
        %6910 = vmatpush1.msra.mxu0 0.0
        %6911 = vmatprep.subr.mxu0 0.0
        %6912 = vmatpush1.msra.mxu0 0.0
        %6913 = vmatprep.subr.mxu0 0.0
        %6914 = vmatpush1.msra.mxu0 0.0
        %6915 = vmatprep.subr.mxu0 0.0
        %6916 = vmatpush1.msra.mxu0 0.0
        %6917 = vmatprep.subr.mxu0 0.0
        %6918 = vmatpush1.msra.mxu0 0.0
        %6919 = vmatprep.subr.mxu0 0.0
        %6920 = vmatpush1.msra.mxu0 0.0
        %6921 = vmatprep.subr.mxu0 0.0
        %6922 = vmatpush1.msra.mxu0 0.0
        %6923 = vmatprep.subr.mxu0 0.0
        %6924 = vmatpush1.msra.mxu0 0.0
        %6925 = vmatprep.subr.mxu0 0.0
        %6926 = vmatpush1.msra.mxu0 0.0
        %6927 = vmatprep.subr.mxu0 0.0
        %6928 = vmatpush1.msra.mxu0 0.0
        %6929 = vmatprep.subr.mxu0 0.0
        %6930 = vmatpush1.msra.mxu0 0.0
        %6931 = vmatprep.subr.mxu0 0.0
        %6932 = vmatpush1.msra.mxu0 0.0
        %6933 = vmatprep.subr.mxu0 0.0
        %6934 = vmatpush1.msra.mxu0 0.0
        %6935 = vmatprep.subr.mxu0 0.0
        %6936 = vmatpush1.msra.mxu0 0.0
        %6937 = vmatprep.subr.mxu0 0.0
        %6938 = vmatpush1.msra.mxu0 0.0
        %6939 = vmatprep.subr.mxu0 0.0
        %6940 = vmatpush1.msra.mxu0 0.0
        %6941 = vmatprep.mubr.f32.mxu0 0.0
        %v6942 = vand.u32 %v6775, 4294901760
        %6943 = vmatmul.mubr.f32.gmra.mrb[0].mxu0 %v6942
        %v6944 = vpop.f32.mrb[0].mxu0
        %v6945 = vadd.f32 %v6854, %v6944
        %v6946 = vpop.f32.mrb[0].mxu0
        %6947 = vmatprep.mubr.f32.mxu0 0.0
        %v6948 = vand.u32 %v6778, 4294901760
        %6949 = vmatmul.mubr.f32.gmra.mrb[0].mxu0 %v6948
        %v6950 = vpop.f32.mrb[0].mxu0
        %v6951 = vadd.f32 %v6864, %v6950
        %v6952 = vpop.f32.mrb[0].mxu0
        %6953 = vdwg.mxu0
        %6954 = vmatprep.subr.mxu0 0.0
        %v6955 = vand.u32 %v6769, 4294901760
        %v6956 = vsub.f32 %v6769, %v6955
        %6957 = vmatpush1.msra.mxu0 %v6956
        %6958 = vmatprep.subr.mxu0 0.0
        %v6959 = vand.u32 %v6771, 4294901760
        %v6960 = vsub.f32 %v6771, %v6959
        %6961 = vmatpush1.msra.mxu0 %v6960
        %6962 = vmatprep.subr.mxu0 0.0
        %6963 = vmatpush1.msra.mxu0 0.0
        %6964 = vmatprep.subr.mxu0 0.0
        %6965 = vmatpush1.msra.mxu0 0.0
        %6966 = vmatprep.subr.mxu0 0.0
        %6967 = vmatpush1.msra.mxu0 0.0
        %6968 = vmatprep.subr.mxu0 0.0
        %6969 = vmatpush1.msra.mxu0 0.0
        %6970 = vmatprep.subr.mxu0 0.0
        %6971 = vmatpush1.msra.mxu0 0.0
        %6972 = vmatprep.subr.mxu0 0.0
        %6973 = vmatpush1.msra.mxu0 0.0
        %6974 = vmatprep.subr.mxu0 0.0
        %6975 = vmatpush1.msra.mxu0 0.0
        %6976 = vmatprep.subr.mxu0 0.0
        %6977 = vmatpush1.msra.mxu0 0.0
        %6978 = vmatprep.subr.mxu0 0.0
        %6979 = vmatpush1.msra.mxu0 0.0
        %6980 = vmatprep.subr.mxu0 0.0
        %6981 = vmatpush1.msra.mxu0 0.0
        %6982 = vmatprep.subr.mxu0 0.0
        %6983 = vmatpush1.msra.mxu0 0.0
        %6984 = vmatprep.subr.mxu0 0.0
        %6985 = vmatpush1.msra.mxu0 0.0
        %6986 = vmatprep.subr.mxu0 0.0
        %6987 = vmatpush1.msra.mxu0 0.0
        %6988 = vmatprep.subr.mxu0 0.0
        %6989 = vmatpush1.msra.mxu0 0.0
        %6990 = vmatprep.subr.mxu0 0.0
        %6991 = vmatpush1.msra.mxu0 0.0
        %6992 = vmatprep.subr.mxu0 0.0
        %6993 = vmatpush1.msra.mxu0 0.0
        %6994 = vmatprep.subr.mxu0 0.0
        %6995 = vmatpush1.msra.mxu0 0.0
        %6996 = vmatprep.subr.mxu0 0.0
        %6997 = vmatpush1.msra.mxu0 0.0
        %6998 = vmatprep.subr.mxu0 0.0
        %6999 = vmatpush1.msra.mxu0 0.0
        %7000 = vmatprep.subr.mxu0 0.0
        %7001 = vmatpush1.msra.mxu0 0.0
        %7002 = vmatprep.subr.mxu0 0.0
        %7003 = vmatpush1.msra.mxu0 0.0
        %7004 = vmatprep.subr.mxu0 0.0
        %7005 = vmatpush1.msra.mxu0 0.0
        %7006 = vmatprep.subr.mxu0 0.0
        %7007 = vmatpush1.msra.mxu0 0.0
        %7008 = vmatprep.subr.mxu0 0.0
        %7009 = vmatpush1.msra.mxu0 0.0
        %7010 = vmatprep.subr.mxu0 0.0
        %7011 = vmatpush1.msra.mxu0 0.0
        %7012 = vmatprep.subr.mxu0 0.0
        %7013 = vmatpush1.msra.mxu0 0.0
        %7014 = vmatprep.subr.mxu0 0.0
        %7015 = vmatpush1.msra.mxu0 0.0
        %7016 = vmatprep.subr.mxu0 0.0
        %7017 = vmatpush1.msra.mxu0 0.0
        %7018 = vmatprep.subr.mxu0 0.0
        %7019 = vmatpush1.msra.mxu0 0.0
        %7020 = vmatprep.subr.mxu0 0.0
        %7021 = vmatpush1.msra.mxu0 0.0
        %7022 = vmatprep.mubr.f32.mxu0 0.0
        %v7023 = vand.u32 %v6775, 4294901760
        %v7024 = vsub.f32 %v6775, %v7023
        %7025 = vmatmul.mubr.f32.gmra.mrb[0].mxu0 %v7024
        %v7026 = vpop.f32.mrb[0].mxu0
        %v7027 = vadd.f32 %v6945, %v7026
        %v7028 = vpop.f32.mrb[0].mxu0
        %7029 = vmatprep.mubr.f32.mxu0 0.0
        %v7030 = vand.u32 %v6778, 4294901760
        %v7031 = vsub.f32 %v6778, %v7030
        %7032 = vmatmul.mubr.f32.gmra.mrb[0].mxu0 %v7031
        %v7033 = vpop.f32.mrb[0].mxu0
        %v7034 = vadd.f32 %v6951, %v7033
        %v7035 = vpop.f32.mrb[0].mxu0
        %7036 = vdwg.mxu0
        %7037 = vmatprep.subr.mxu0 0.0
        %v7038 = vand.u32 %v6769, 4294901760
        %7039 = vmatpush1.msra.mxu0 %v7038
        %7040 = vmatprep.subr.mxu0 0.0
        %v7041 = vand.u32 %v6771, 4294901760
        %7042 = vmatpush1.msra.mxu0 %v7041
        %7043 = vmatprep.subr.mxu0 0.0
        %7044 = vmatpush1.msra.mxu0 0.0
        %7045 = vmatprep.subr.mxu0 0.0
        %7046 = vmatpush1.msra.mxu0 0.0
        %7047 = vmatprep.subr.mxu0 0.0
        %7048 = vmatpush1.msra.mxu0 0.0
        %7049 = vmatprep.subr.mxu0 0.0
        %7050 = vmatpush1.msra.mxu0 0.0
        %7051 = vmatprep.subr.mxu0 0.0
        %7052 = vmatpush1.msra.mxu0 0.0
        %7053 = vmatprep.subr.mxu0 0.0
        %7054 = vmatpush1.msra.mxu0 0.0
        %7055 = vmatprep.subr.mxu0 0.0
        %7056 = vmatpush1.msra.mxu0 0.0
        %7057 = vmatprep.subr.mxu0 0.0
        %7058 = vmatpush1.msra.mxu0 0.0
        %7059 = vmatprep.subr.mxu0 0.0
        %7060 = vmatpush1.msra.mxu0 0.0
        %7061 = vmatprep.subr.mxu0 0.0
        %7062 = vmatpush1.msra.mxu0 0.0
        %7063 = vmatprep.subr.mxu0 0.0
        %7064 = vmatpush1.msra.mxu0 0.0
        %7065 = vmatprep.subr.mxu0 0.0
        %7066 = vmatpush1.msra.mxu0 0.0
        %7067 = vmatprep.subr.mxu0 0.0
        %7068 = vmatpush1.msra.mxu0 0.0
        %7069 = vmatprep.subr.mxu0 0.0
        %7070 = vmatpush1.msra.mxu0 0.0
        %7071 = vmatprep.subr.mxu0 0.0
        %7072 = vmatpush1.msra.mxu0 0.0
        %7073 = vmatprep.subr.mxu0 0.0
        %7074 = vmatpush1.msra.mxu0 0.0
        %7075 = vmatprep.subr.mxu0 0.0
        %7076 = vmatpush1.msra.mxu0 0.0
        %7077 = vmatprep.subr.mxu0 0.0
        %7078 = vmatpush1.msra.mxu0 0.0
        %7079 = vmatprep.subr.mxu0 0.0
        %7080 = vmatpush1.msra.mxu0 0.0
        %7081 = vmatprep.subr.mxu0 0.0
        %7082 = vmatpush1.msra.mxu0 0.0
        %7083 = vmatprep.subr.mxu0 0.0
        %7084 = vmatpush1.msra.mxu0 0.0
        %7085 = vmatprep.subr.mxu0 0.0
        %7086 = vmatpush1.msra.mxu0 0.0
        %7087 = vmatprep.subr.mxu0 0.0
        %7088 = vmatpush1.msra.mxu0 0.0
        %7089 = vmatprep.subr.mxu0 0.0
        %7090 = vmatpush1.msra.mxu0 0.0
        %7091 = vmatprep.subr.mxu0 0.0
        %7092 = vmatpush1.msra.mxu0 0.0
        %7093 = vmatprep.subr.mxu0 0.0
        %7094 = vmatpush1.msra.mxu0 0.0
        %7095 = vmatprep.subr.mxu0 0.0
        %7096 = vmatpush1.msra.mxu0 0.0
        %7097 = vmatprep.subr.mxu0 0.0
        %7098 = vmatpush1.msra.mxu0 0.0
        %7099 = vmatprep.subr.mxu0 0.0
        %7100 = vmatpush1.msra.mxu0 0.0
        %7101 = vmatprep.subr.mxu0 0.0
        %7102 = vmatpush1.msra.mxu0 0.0
        %7103 = vmatprep.mubr.f32.mxu0 0.0
        %v7104 = vand.u32 %v6775, 4294901760
        %v7105 = vsub.f32 %v6775, %v7104
        %v7106 = vand.u32 %v7105, 4294901760
        %7107 = vmatmul.mubr.f32.gmra.mrb[0].mxu0 %v7106
        %v7108 = vpop.f32.mrb[0].mxu0
        %v7109 = vadd.f32 %v7027, %v7108
        %v7110 = vpop.f32.mrb[0].mxu0
        %7111 = vmatprep.mubr.f32.mxu0 0.0
        %v7112 = vand.u32 %v6778, 4294901760
        %v7113 = vsub.f32 %v6778, %v7112
        %v7114 = vand.u32 %v7113, 4294901760
        %7115 = vmatmul.mubr.f32.gmra.mrb[0].mxu0 %v7114
        %v7116 = vpop.f32.mrb[0].mxu0
        %v7117 = vadd.f32 %v7034, %v7116
        %v7118 = vpop.f32.mrb[0].mxu0
        %7119 = vdwg.mxu0
        %7120 = vmatprep.subr.mxu0 0.0
        %v7121 = vand.u32 %v6769, 4294901760
        %v7122 = vsub.f32 %v6769, %v7121
        %v7123 = vand.u32 %v7122, 4294901760
        %7124 = vmatpush1.msra.mxu0 %v7123
        %7125 = vmatprep.subr.mxu0 0.0
        %v7126 = vand.u32 %v6771, 4294901760
        %v7127 = vsub.f32 %v6771, %v7126
        %v7128 = vand.u32 %v7127, 4294901760
        %7129 = vmatpush1.msra.mxu0 %v7128
        %7130 = vmatprep.subr.mxu0 0.0
        %7131 = vmatpush1.msra.mxu0 0.0
        %7132 = vmatprep.subr.mxu0 0.0
        %7133 = vmatpush1.msra.mxu0 0.0
        %7134 = vmatprep.subr.mxu0 0.0
        %7135 = vmatpush1.msra.mxu0 0.0
        %7136 = vmatprep.subr.mxu0 0.0
        %7137 = vmatpush1.msra.mxu0 0.0
        %7138 = vmatprep.subr.mxu0 0.0
        %7139 = vmatpush1.msra.mxu0 0.0
        %7140 = vmatprep.subr.mxu0 0.0
        %7141 = vmatpush1.msra.mxu0 0.0
        %7142 = vmatprep.subr.mxu0 0.0
        %7143 = vmatpush1.msra.mxu0 0.0
        %7144 = vmatprep.subr.mxu0 0.0
        %7145 = vmatpush1.msra.mxu0 0.0
        %7146 = vmatprep.subr.mxu0 0.0
        %7147 = vmatpush1.msra.mxu0 0.0
        %7148 = vmatprep.subr.mxu0 0.0
        %7149 = vmatpush1.msra.mxu0 0.0
        %7150 = vmatprep.subr.mxu0 0.0
        %7151 = vmatpush1.msra.mxu0 0.0
        %7152 = vmatprep.subr.mxu0 0.0
        %7153 = vmatpush1.msra.mxu0 0.0
        %7154 = vmatprep.subr.mxu0 0.0
        %7155 = vmatpush1.msra.mxu0 0.0
        %7156 = vmatprep.subr.mxu0 0.0
        %7157 = vmatpush1.msra.mxu0 0.0
        %7158 = vmatprep.subr.mxu0 0.0
        %7159 = vmatpush1.msra.mxu0 0.0
        %7160 = vmatprep.subr.mxu0 0.0
        %7161 = vmatpush1.msra.mxu0 0.0
        %7162 = vmatprep.subr.mxu0 0.0
        %7163 = vmatpush1.msra.mxu0 0.0
        %7164 = vmatprep.subr.mxu0 0.0
        %7165 = vmatpush1.msra.mxu0 0.0
        %7166 = vmatprep.subr.mxu0 0.0
        %7167 = vmatpush1.msra.mxu0 0.0
        %7168 = vmatprep.subr.mxu0 0.0
        %7169 = vmatpush1.msra.mxu0 0.0
        %7170 = vmatprep.subr.mxu0 0.0
        %7171 = vmatpush1.msra.mxu0 0.0
        %7172 = vmatprep.subr.mxu0 0.0
        %7173 = vmatpush1.msra.mxu0 0.0
        %7174 = vmatprep.subr.mxu0 0.0
        %7175 = vmatpush1.msra.mxu0 0.0
        %7176 = vmatprep.subr.mxu0 0.0
        %7177 = vmatpush1.msra.mxu0 0.0
        %7178 = vmatprep.subr.mxu0 0.0
        %7179 = vmatpush1.msra.mxu0 0.0
        %7180 = vmatprep.subr.mxu0 0.0
        %7181 = vmatpush1.msra.mxu0 0.0
        %7182 = vmatprep.subr.mxu0 0.0
        %7183 = vmatpush1.msra.mxu0 0.0
        %7184 = vmatprep.subr.mxu0 0.0
        %7185 = vmatpush1.msra.mxu0 0.0
        %7186 = vmatprep.subr.mxu0 0.0
        %7187 = vmatpush1.msra.mxu0 0.0
        %7188 = vmatprep.subr.mxu0 0.0
        %7189 = vmatpush1.msra.mxu0 0.0
        %7190 = vmatprep.mubr.f32.mxu0 0.0
        %v7191 = vand.u32 %v6775, 4294901760
        %7192 = vmatmul.mubr.f32.gmra.mrb[0].mxu0 %v7191
        %v7193 = vpop.f32.mrb[0].mxu0
        %v7194 = vadd.f32 %v7109, %v7193
        %v7195 = vpop.f32.mrb[0].mxu0
        %7196 = vmatprep.mubr.f32.mxu0 0.0
        %v7197 = vand.u32 %v6778, 4294901760
        %7198 = vmatmul.mubr.f32.gmra.mrb[0].mxu0 %v7197
        %v7199 = vpop.f32.mrb[0].mxu0
        %v7200 = vadd.f32 %v7117, %v7199
        %v7201 = vpop.f32.mrb[0].mxu0
        %7202 = vdwg.mxu0
        %7203 = vmatprep.subr.mxu0 0.0
        %v7204 = vand.u32 %v6769, 4294901760
        %7205 = vmatpush1.msra.mxu0 %v7204
        %7206 = vmatprep.subr.mxu0 0.0
        %v7207 = vand.u32 %v6771, 4294901760
        %7208 = vmatpush1.msra.mxu0 %v7207
        %7209 = vmatprep.subr.mxu0 0.0
        %7210 = vmatpush1.msra.mxu0 0.0
        %7211 = vmatprep.subr.mxu0 0.0
        %7212 = vmatpush1.msra.mxu0 0.0
        %7213 = vmatprep.subr.mxu0 0.0
        %7214 = vmatpush1.msra.mxu0 0.0
        %7215 = vmatprep.subr.mxu0 0.0
        %7216 = vmatpush1.msra.mxu0 0.0
        %7217 = vmatprep.subr.mxu0 0.0
        %7218 = vmatpush1.msra.mxu0 0.0
        %7219 = vmatprep.subr.mxu0 0.0
        %7220 = vmatpush1.msra.mxu0 0.0
        %7221 = vmatprep.subr.mxu0 0.0
        %7222 = vmatpush1.msra.mxu0 0.0
        %7223 = vmatprep.subr.mxu0 0.0
        %7224 = vmatpush1.msra.mxu0 0.0
        %7225 = vmatprep.subr.mxu0 0.0
        %7226 = vmatpush1.msra.mxu0 0.0
        %7227 = vmatprep.subr.mxu0 0.0
        %7228 = vmatpush1.msra.mxu0 0.0
        %7229 = vmatprep.subr.mxu0 0.0
        %7230 = vmatpush1.msra.mxu0 0.0
        %7231 = vmatprep.subr.mxu0 0.0
        %7232 = vmatpush1.msra.mxu0 0.0
        %7233 = vmatprep.subr.mxu0 0.0
        %7234 = vmatpush1.msra.mxu0 0.0
        %7235 = vmatprep.subr.mxu0 0.0
        %7236 = vmatpush1.msra.mxu0 0.0
        %7237 = vmatprep.subr.mxu0 0.0
        %7238 = vmatpush1.msra.mxu0 0.0
        %7239 = vmatprep.subr.mxu0 0.0
        %7240 = vmatpush1.msra.mxu0 0.0
        %7241 = vmatprep.subr.mxu0 0.0
        %7242 = vmatpush1.msra.mxu0 0.0
        %7243 = vmatprep.subr.mxu0 0.0
        %7244 = vmatpush1.msra.mxu0 0.0
        %7245 = vmatprep.subr.mxu0 0.0
        %7246 = vmatpush1.msra.mxu0 0.0
        %7247 = vmatprep.subr.mxu0 0.0
        %7248 = vmatpush1.msra.mxu0 0.0
        %7249 = vmatprep.subr.mxu0 0.0
        %7250 = vmatpush1.msra.mxu0 0.0
        %7251 = vmatprep.subr.mxu0 0.0
        %7252 = vmatpush1.msra.mxu0 0.0
        %7253 = vmatprep.subr.mxu0 0.0
        %7254 = vmatpush1.msra.mxu0 0.0
        %7255 = vmatprep.subr.mxu0 0.0
        %7256 = vmatpush1.msra.mxu0 0.0
        %7257 = vmatprep.subr.mxu0 0.0
        %7258 = vmatpush1.msra.mxu0 0.0
        %7259 = vmatprep.subr.mxu0 0.0
        %7260 = vmatpush1.msra.mxu0 0.0
        %7261 = vmatprep.subr.mxu0 0.0
        %7262 = vmatpush1.msra.mxu0 0.0
        %7263 = vmatprep.subr.mxu0 0.0
        %7264 = vmatpush1.msra.mxu0 0.0
        %7265 = vmatprep.subr.mxu0 0.0
        %7266 = vmatpush1.msra.mxu0 0.0
        %7267 = vmatprep.subr.mxu0 0.0
        %7268 = vmatpush1.msra.mxu0 0.0
        %7269 = vmatprep.mubr.f32.mxu0 0.0
        %v7270 = vand.u32 %v6775, 4294901760
        %7271 = vmatmul.mubr.f32.gmra.mrb[0].mxu0 %v7270
        %v7272 = vpop.f32.mrb[0].mxu0
        %v7273 = vadd.f32 %v7194, %v7272
        %v7274 = vpop.f32.mrb[0].mxu0
        %7275 = vmatprep.mubr.f32.mxu0 0.0
        %v7276 = vand.u32 %v6778, 4294901760
        %7277 = vmatmul.mubr.f32.gmra.mrb[0].mxu0 %v7276
        %v7278 = vpop.f32.mrb[0].mxu0
        %v7279 = vadd.f32 %v7200, %v7278
        %v7280 = vpop.f32.mrb[0].mxu0
        %7281 = vdwg.mxu0
        %v7282 = vrcp.pop %v6764
        %v7283 = vmul.f32 %v7273, %v7282
        %v7284 = vrcp.pop %v6767
        %v7285 = vmul.f32 %v7279, %v7284
        %7286 = vrot.lane.b32.xlu0 %v955, 80
        %v7287 = vpop.permute.xlu0 %7286
        %7288 = vrot.lane.b32.xlu0 %v962, 80
        %v7289 = vpop.permute.xlu0 %7288
        %7290 = vrot.lane.b32.xlu0 %v955, 16
        %v7291 = vpop.permute.xlu0 %7290
        %7292 = vrot.lane.b32.xlu0 %v962, 16
        %v7293 = vpop.permute.xlu0 %7292
        %v7294 = vsel %vm972, %v7287, 0
        %v7296 = vsel %vm972, %v7289, 0
        %v7298 = vsel %vm972, %v7291, 0
        %v7300 = vsel %vm972, %v7293, 0
        %7302 = vmatprep.subr.mxu0 0.0
        %v7303 = vand.u32 %v7298, 4294901760
        %7304 = vmatpush1.xpose.msra.mxu0 %v7303
        %7305 = vmatprep.subr.mxu0 0.0
        %v7306 = vand.u32 %v7300, 4294901760
        %7307 = vmatpush1.xpose.msra.mxu0 %v7306
        %7308 = vmatprep.subr.mxu0 0.0
        %7309 = vmatpush1.xpose.msra.mxu0 0.0
        %7310 = vmatprep.subr.mxu0 0.0
        %7311 = vmatpush1.xpose.msra.mxu0 0.0
        %7312 = vmatprep.subr.mxu0 0.0
        %7313 = vmatpush1.xpose.msra.mxu0 0.0
        %7314 = vmatprep.subr.mxu0 0.0
        %7315 = vmatpush1.xpose.msra.mxu0 0.0
        %7316 = vmatprep.subr.mxu0 0.0
        %7317 = vmatpush1.xpose.msra.mxu0 0.0
        %7318 = vmatprep.subr.mxu0 0.0
        %7319 = vmatpush1.xpose.msra.mxu0 0.0
        %7320 = vmatprep.subr.mxu0 0.0
        %7321 = vmatpush1.xpose.msra.mxu0 0.0
        %7322 = vmatprep.subr.mxu0 0.0
        %7323 = vmatpush1.xpose.msra.mxu0 0.0
        %7324 = vmatprep.subr.mxu0 0.0
        %7325 = vmatpush1.xpose.msra.mxu0 0.0
        %7326 = vmatprep.subr.mxu0 0.0
        %7327 = vmatpush1.xpose.msra.mxu0 0.0
        %7328 = vmatprep.subr.mxu0 0.0
        %7329 = vmatpush1.xpose.msra.mxu0 0.0
        %7330 = vmatprep.subr.mxu0 0.0
        %7331 = vmatpush1.xpose.msra.mxu0 0.0
        %7332 = vmatprep.subr.mxu0 0.0
        %7333 = vmatpush1.xpose.msra.mxu0 0.0
        %7334 = vmatprep.subr.mxu0 0.0
        %7335 = vmatpush1.xpose.msra.mxu0 0.0
        %7336 = vmatprep.subr.mxu0 0.0
        %7337 = vmatpush1.xpose.msra.mxu0 0.0
        %7338 = vmatprep.subr.mxu0 0.0
        %7339 = vmatpush1.xpose.msra.mxu0 0.0
        %7340 = vmatprep.subr.mxu0 0.0
        %7341 = vmatpush1.xpose.msra.mxu0 0.0
        %7342 = vmatprep.subr.mxu0 0.0
        %7343 = vmatpush1.xpose.msra.mxu0 0.0
        %7344 = vmatprep.subr.mxu0 0.0
        %7345 = vmatpush1.xpose.msra.mxu0 0.0
        %7346 = vmatprep.subr.mxu0 0.0
        %7347 = vmatpush1.xpose.msra.mxu0 0.0
        %7348 = vmatprep.subr.mxu0 0.0
        %7349 = vmatpush1.xpose.msra.mxu0 0.0
        %7350 = vmatprep.subr.mxu0 0.0
        %7351 = vmatpush1.xpose.msra.mxu0 0.0
        %7352 = vmatprep.subr.mxu0 0.0
        %7353 = vmatpush1.xpose.msra.mxu0 0.0
        %7354 = vmatprep.subr.mxu0 0.0
        %7355 = vmatpush1.xpose.msra.mxu0 0.0
        %7356 = vmatprep.subr.mxu0 0.0
        %7357 = vmatpush1.xpose.msra.mxu0 0.0
        %7358 = vmatprep.subr.mxu0 0.0
        %7359 = vmatpush1.xpose.msra.mxu0 0.0
        %7360 = vmatprep.subr.mxu0 0.0
        %7361 = vmatpush1.xpose.msra.mxu0 0.0
        %7362 = vmatprep.subr.mxu0 0.0
        %7363 = vmatpush1.xpose.msra.mxu0 0.0
        %7364 = vmatprep.subr.mxu0 0.0
        %7365 = vmatpush1.xpose.msra.mxu0 0.0
        %7366 = vmatprep.subr.mxu0 0.0
        %7367 = vmatpush1.xpose.msra.mxu0 0.0
        %7368 = vmatprep.mubr.f32.mxu0 0.0
        %v7369 = vand.u32 %v7294, 4294901760
        %v7370 = vsub.f32 %v7294, %v7369
        %v7371 = vand.u32 %v7370, 4294901760
        %v7372 = vsub.f32 %v7370, %v7371
        %v7373 = vand.u32 %v7372, 4294901760
        %7374 = vmatmul.mubr.f32.gmra.mrb[0].mxu0 %v7373
        %v7375 = vpop.f32.mrb[0].mxu0
        %v7376 = vadd.f32 0.0, %v7375
        %v7377 = vpop.f32.mrb[0].mxu0
        %7378 = vmatprep.mubr.f32.mxu0 0.0
        %v7379 = vand.u32 %v7296, 4294901760
        %v7380 = vsub.f32 %v7296, %v7379
        %v7381 = vand.u32 %v7380, 4294901760
        %v7382 = vsub.f32 %v7380, %v7381
        %v7383 = vand.u32 %v7382, 4294901760
        %7384 = vmatmul.mubr.f32.gmra.mrb[0].mxu0 %v7383
        %v7385 = vpop.f32.mrb[0].mxu0
        %v7386 = vadd.f32 0.0, %v7385
        %v7387 = vpop.f32.mrb[0].mxu0
        %7388 = vdwg.mxu0
        %7389 = vmatprep.subr.mxu0 0.0
        %v7390 = vand.u32 %v7298, 4294901760
        %v7391 = vsub.f32 %v7298, %v7390
        %v7392 = vand.u32 %v7391, 4294901760
        %v7393 = vsub.f32 %v7391, %v7392
        %v7394 = vand.u32 %v7393, 4294901760
        %7395 = vmatpush1.xpose.msra.mxu0 %v7394
        %7396 = vmatprep.subr.mxu0 0.0
        %v7397 = vand.u32 %v7300, 4294901760
        %v7398 = vsub.f32 %v7300, %v7397
        %v7399 = vand.u32 %v7398, 4294901760
        %v7400 = vsub.f32 %v7398, %v7399
        %v7401 = vand.u32 %v7400, 4294901760
        %7402 = vmatpush1.xpose.msra.mxu0 %v7401
        %7403 = vmatprep.subr.mxu0 0.0
        %7404 = vmatpush1.xpose.msra.mxu0 0.0
        %7405 = vmatprep.subr.mxu0 0.0
        %7406 = vmatpush1.xpose.msra.mxu0 0.0
        %7407 = vmatprep.subr.mxu0 0.0
        %7408 = vmatpush1.xpose.msra.mxu0 0.0
        %7409 = vmatprep.subr.mxu0 0.0
        %7410 = vmatpush1.xpose.msra.mxu0 0.0
        %7411 = vmatprep.subr.mxu0 0.0
        %7412 = vmatpush1.xpose.msra.mxu0 0.0
        %7413 = vmatprep.subr.mxu0 0.0
        %7414 = vmatpush1.xpose.msra.mxu0 0.0
        %7415 = vmatprep.subr.mxu0 0.0
        %7416 = vmatpush1.xpose.msra.mxu0 0.0
        %7417 = vmatprep.subr.mxu0 0.0
        %7418 = vmatpush1.xpose.msra.mxu0 0.0
        %7419 = vmatprep.subr.mxu0 0.0
        %7420 = vmatpush1.xpose.msra.mxu0 0.0
        %7421 = vmatprep.subr.mxu0 0.0
        %7422 = vmatpush1.xpose.msra.mxu0 0.0
        %7423 = vmatprep.subr.mxu0 0.0
        %7424 = vmatpush1.xpose.msra.mxu0 0.0
        %7425 = vmatprep.subr.mxu0 0.0
        %7426 = vmatpush1.xpose.msra.mxu0 0.0
        %7427 = vmatprep.subr.mxu0 0.0
        %7428 = vmatpush1.xpose.msra.mxu0 0.0
        %7429 = vmatprep.subr.mxu0 0.0
        %7430 = vmatpush1.xpose.msra.mxu0 0.0
        %7431 = vmatprep.subr.mxu0 0.0
        %7432 = vmatpush1.xpose.msra.mxu0 0.0
        %7433 = vmatprep.subr.mxu0 0.0
        %7434 = vmatpush1.xpose.msra.mxu0 0.0
        %7435 = vmatprep.subr.mxu0 0.0
        %7436 = vmatpush1.xpose.msra.mxu0 0.0
        %7437 = vmatprep.subr.mxu0 0.0
        %7438 = vmatpush1.xpose.msra.mxu0 0.0
        %7439 = vmatprep.subr.mxu0 0.0
        %7440 = vmatpush1.xpose.msra.mxu0 0.0
        %7441 = vmatprep.subr.mxu0 0.0
        %7442 = vmatpush1.xpose.msra.mxu0 0.0
        %7443 = vmatprep.subr.mxu0 0.0
        %7444 = vmatpush1.xpose.msra.mxu0 0.0
        %7445 = vmatprep.subr.mxu0 0.0
        %7446 = vmatpush1.xpose.msra.mxu0 0.0
        %7447 = vmatprep.subr.mxu0 0.0
        %7448 = vmatpush1.xpose.msra.mxu0 0.0
        %7449 = vmatprep.subr.mxu0 0.0
        %7450 = vmatpush1.xpose.msra.mxu0 0.0
        %7451 = vmatprep.subr.mxu0 0.0
        %7452 = vmatpush1.xpose.msra.mxu0 0.0
        %7453 = vmatprep.subr.mxu0 0.0
        %7454 = vmatpush1.xpose.msra.mxu0 0.0
        %7455 = vmatprep.subr.mxu0 0.0
        %7456 = vmatpush1.xpose.msra.mxu0 0.0
        %7457 = vmatprep.subr.mxu0 0.0
        %7458 = vmatpush1.xpose.msra.mxu0 0.0
        %7459 = vmatprep.subr.mxu0 0.0
        %7460 = vmatpush1.xpose.msra.mxu0 0.0
        %7461 = vmatprep.subr.mxu0 0.0
        %7462 = vmatpush1.xpose.msra.mxu0 0.0
        %7463 = vmatprep.mubr.f32.mxu0 0.0
        %v7464 = vand.u32 %v7294, 4294901760
        %7465 = vmatmul.mubr.f32.gmra.mrb[0].mxu0 %v7464
        %v7466 = vpop.f32.mrb[0].mxu0
        %v7467 = vadd.f32 %v7376, %v7466
        %v7468 = vpop.f32.mrb[0].mxu0
        %7469 = vmatprep.mubr.f32.mxu0 0.0
        %v7470 = vand.u32 %v7296, 4294901760
        %7471 = vmatmul.mubr.f32.gmra.mrb[0].mxu0 %v7470
        %v7472 = vpop.f32.mrb[0].mxu0
        %v7473 = vadd.f32 %v7386, %v7472
        %v7474 = vpop.f32.mrb[0].mxu0
        %7475 = vdwg.mxu0
        %7476 = vmatprep.subr.mxu0 0.0
        %v7477 = vand.u32 %v7298, 4294901760
        %v7478 = vsub.f32 %v7298, %v7477
        %7479 = vmatpush1.xpose.msra.mxu0 %v7478
        %7480 = vmatprep.subr.mxu0 0.0
        %v7481 = vand.u32 %v7300, 4294901760
        %v7482 = vsub.f32 %v7300, %v7481
        %7483 = vmatpush1.xpose.msra.mxu0 %v7482
        %7484 = vmatprep.subr.mxu0 0.0
        %7485 = vmatpush1.xpose.msra.mxu0 0.0
        %7486 = vmatprep.subr.mxu0 0.0
        %7487 = vmatpush1.xpose.msra.mxu0 0.0
        %7488 = vmatprep.subr.mxu0 0.0
        %7489 = vmatpush1.xpose.msra.mxu0 0.0
        %7490 = vmatprep.subr.mxu0 0.0
        %7491 = vmatpush1.xpose.msra.mxu0 0.0
        %7492 = vmatprep.subr.mxu0 0.0
        %7493 = vmatpush1.xpose.msra.mxu0 0.0
        %7494 = vmatprep.subr.mxu0 0.0
        %7495 = vmatpush1.xpose.msra.mxu0 0.0
        %7496 = vmatprep.subr.mxu0 0.0
        %7497 = vmatpush1.xpose.msra.mxu0 0.0
        %7498 = vmatprep.subr.mxu0 0.0
        %7499 = vmatpush1.xpose.msra.mxu0 0.0
        %7500 = vmatprep.subr.mxu0 0.0
        %7501 = vmatpush1.xpose.msra.mxu0 0.0
        %7502 = vmatprep.subr.mxu0 0.0
        %7503 = vmatpush1.xpose.msra.mxu0 0.0
        %7504 = vmatprep.subr.mxu0 0.0
        %7505 = vmatpush1.xpose.msra.mxu0 0.0
        %7506 = vmatprep.subr.mxu0 0.0
        %7507 = vmatpush1.xpose.msra.mxu0 0.0
        %7508 = vmatprep.subr.mxu0 0.0
        %7509 = vmatpush1.xpose.msra.mxu0 0.0
        %7510 = vmatprep.subr.mxu0 0.0
        %7511 = vmatpush1.xpose.msra.mxu0 0.0
        %7512 = vmatprep.subr.mxu0 0.0
        %7513 = vmatpush1.xpose.msra.mxu0 0.0
        %7514 = vmatprep.subr.mxu0 0.0
        %7515 = vmatpush1.xpose.msra.mxu0 0.0
        %7516 = vmatprep.subr.mxu0 0.0
        %7517 = vmatpush1.xpose.msra.mxu0 0.0
        %7518 = vmatprep.subr.mxu0 0.0
        %7519 = vmatpush1.xpose.msra.mxu0 0.0
        %7520 = vmatprep.subr.mxu0 0.0
        %7521 = vmatpush1.xpose.msra.mxu0 0.0
        %7522 = vmatprep.subr.mxu0 0.0
        %7523 = vmatpush1.xpose.msra.mxu0 0.0
        %7524 = vmatprep.subr.mxu0 0.0
        %7525 = vmatpush1.xpose.msra.mxu0 0.0
        %7526 = vmatprep.subr.mxu0 0.0
        %7527 = vmatpush1.xpose.msra.mxu0 0.0
        %7528 = vmatprep.subr.mxu0 0.0
        %7529 = vmatpush1.xpose.msra.mxu0 0.0
        %7530 = vmatprep.subr.mxu0 0.0
        %7531 = vmatpush1.xpose.msra.mxu0 0.0
        %7532 = vmatprep.subr.mxu0 0.0
        %7533 = vmatpush1.xpose.msra.mxu0 0.0
        %7534 = vmatprep.subr.mxu0 0.0
        %7535 = vmatpush1.xpose.msra.mxu0 0.0
        %7536 = vmatprep.subr.mxu0 0.0
        %7537 = vmatpush1.xpose.msra.mxu0 0.0
        %7538 = vmatprep.subr.mxu0 0.0
        %7539 = vmatpush1.xpose.msra.mxu0 0.0
        %7540 = vmatprep.subr.mxu0 0.0
        %7541 = vmatpush1.xpose.msra.mxu0 0.0
        %7542 = vmatprep.subr.mxu0 0.0
        %7543 = vmatpush1.xpose.msra.mxu0 0.0
        %7544 = vmatprep.mubr.f32.mxu0 0.0
        %v7545 = vand.u32 %v7294, 4294901760
        %v7546 = vsub.f32 %v7294, %v7545
        %7547 = vmatmul.mubr.f32.gmra.mrb[0].mxu0 %v7546
        %v7548 = vpop.f32.mrb[0].mxu0
        %v7549 = vadd.f32 %v7467, %v7548
        %v7550 = vpop.f32.mrb[0].mxu0
        %7551 = vmatprep.mubr.f32.mxu0 0.0
        %v7552 = vand.u32 %v7296, 4294901760
        %v7553 = vsub.f32 %v7296, %v7552
        %7554 = vmatmul.mubr.f32.gmra.mrb[0].mxu0 %v7553
        %v7555 = vpop.f32.mrb[0].mxu0
        %v7556 = vadd.f32 %v7473, %v7555
        %v7557 = vpop.f32.mrb[0].mxu0
        %7558 = vdwg.mxu0
        %7559 = vmatprep.subr.mxu0 0.0
        %v7560 = vand.u32 %v7298, 4294901760
        %7561 = vmatpush1.xpose.msra.mxu0 %v7560
        %7562 = vmatprep.subr.mxu0 0.0
        %v7563 = vand.u32 %v7300, 4294901760
        %7564 = vmatpush1.xpose.msra.mxu0 %v7563
        %7565 = vmatprep.subr.mxu0 0.0
        %7566 = vmatpush1.xpose.msra.mxu0 0.0
        %7567 = vmatprep.subr.mxu0 0.0
        %7568 = vmatpush1.xpose.msra.mxu0 0.0
        %7569 = vmatprep.subr.mxu0 0.0
        %7570 = vmatpush1.xpose.msra.mxu0 0.0
        %7571 = vmatprep.subr.mxu0 0.0
        %7572 = vmatpush1.xpose.msra.mxu0 0.0
        %7573 = vmatprep.subr.mxu0 0.0
        %7574 = vmatpush1.xpose.msra.mxu0 0.0
        %7575 = vmatprep.subr.mxu0 0.0
        %7576 = vmatpush1.xpose.msra.mxu0 0.0
        %7577 = vmatprep.subr.mxu0 0.0
        %7578 = vmatpush1.xpose.msra.mxu0 0.0
        %7579 = vmatprep.subr.mxu0 0.0
        %7580 = vmatpush1.xpose.msra.mxu0 0.0
        %7581 = vmatprep.subr.mxu0 0.0
        %7582 = vmatpush1.xpose.msra.mxu0 0.0
        %7583 = vmatprep.subr.mxu0 0.0
        %7584 = vmatpush1.xpose.msra.mxu0 0.0
        %7585 = vmatprep.subr.mxu0 0.0
        %7586 = vmatpush1.xpose.msra.mxu0 0.0
        %7587 = vmatprep.subr.mxu0 0.0
        %7588 = vmatpush1.xpose.msra.mxu0 0.0
        %7589 = vmatprep.subr.mxu0 0.0
        %7590 = vmatpush1.xpose.msra.mxu0 0.0
        %7591 = vmatprep.subr.mxu0 0.0
        %7592 = vmatpush1.xpose.msra.mxu0 0.0
        %7593 = vmatprep.subr.mxu0 0.0
        %7594 = vmatpush1.xpose.msra.mxu0 0.0
        %7595 = vmatprep.subr.mxu0 0.0
        %7596 = vmatpush1.xpose.msra.mxu0 0.0
        %7597 = vmatprep.subr.mxu0 0.0
        %7598 = vmatpush1.xpose.msra.mxu0 0.0
        %7599 = vmatprep.subr.mxu0 0.0
        %7600 = vmatpush1.xpose.msra.mxu0 0.0
        %7601 = vmatprep.subr.mxu0 0.0
        %7602 = vmatpush1.xpose.msra.mxu0 0.0
        %7603 = vmatprep.subr.mxu0 0.0
        %7604 = vmatpush1.xpose.msra.mxu0 0.0
        %7605 = vmatprep.subr.mxu0 0.0
        %7606 = vmatpush1.xpose.msra.mxu0 0.0
        %7607 = vmatprep.subr.mxu0 0.0
        %7608 = vmatpush1.xpose.msra.mxu0 0.0
        %7609 = vmatprep.subr.mxu0 0.0
        %7610 = vmatpush1.xpose.msra.mxu0 0.0
        %7611 = vmatprep.subr.mxu0 0.0
        %7612 = vmatpush1.xpose.msra.mxu0 0.0
        %7613 = vmatprep.subr.mxu0 0.0
        %7614 = vmatpush1.xpose.msra.mxu0 0.0
        %7615 = vmatprep.subr.mxu0 0.0
        %7616 = vmatpush1.xpose.msra.mxu0 0.0
        %7617 = vmatprep.subr.mxu0 0.0
        %7618 = vmatpush1.xpose.msra.mxu0 0.0
        %7619 = vmatprep.subr.mxu0 0.0
        %7620 = vmatpush1.xpose.msra.mxu0 0.0
        %7621 = vmatprep.subr.mxu0 0.0
        %7622 = vmatpush1.xpose.msra.mxu0 0.0
        %7623 = vmatprep.subr.mxu0 0.0
        %7624 = vmatpush1.xpose.msra.mxu0 0.0
        %7625 = vmatprep.mubr.f32.mxu0 0.0
        %v7626 = vand.u32 %v7294, 4294901760
        %v7627 = vsub.f32 %v7294, %v7626
        %v7628 = vand.u32 %v7627, 4294901760
        %7629 = vmatmul.mubr.f32.gmra.mrb[0].mxu0 %v7628
        %v7630 = vpop.f32.mrb[0].mxu0
        %v7631 = vadd.f32 %v7549, %v7630
        %v7632 = vpop.f32.mrb[0].mxu0
        %7633 = vmatprep.mubr.f32.mxu0 0.0
        %v7634 = vand.u32 %v7296, 4294901760
        %v7635 = vsub.f32 %v7296, %v7634
        %v7636 = vand.u32 %v7635, 4294901760
        %7637 = vmatmul.mubr.f32.gmra.mrb[0].mxu0 %v7636
        %v7638 = vpop.f32.mrb[0].mxu0
        %v7639 = vadd.f32 %v7556, %v7638
        %v7640 = vpop.f32.mrb[0].mxu0
        %7641 = vdwg.mxu0
        %7642 = vmatprep.subr.mxu0 0.0
        %v7643 = vand.u32 %v7298, 4294901760
        %v7644 = vsub.f32 %v7298, %v7643
        %v7645 = vand.u32 %v7644, 4294901760
        %7646 = vmatpush1.xpose.msra.mxu0 %v7645
        %7647 = vmatprep.subr.mxu0 0.0
        %v7648 = vand.u32 %v7300, 4294901760
        %v7649 = vsub.f32 %v7300, %v7648
        %v7650 = vand.u32 %v7649, 4294901760
        %7651 = vmatpush1.xpose.msra.mxu0 %v7650
        %7652 = vmatprep.subr.mxu0 0.0
        %7653 = vmatpush1.xpose.msra.mxu0 0.0
        %7654 = vmatprep.subr.mxu0 0.0
        %7655 = vmatpush1.xpose.msra.mxu0 0.0
        %7656 = vmatprep.subr.mxu0 0.0
        %7657 = vmatpush1.xpose.msra.mxu0 0.0
        %7658 = vmatprep.subr.mxu0 0.0
        %7659 = vmatpush1.xpose.msra.mxu0 0.0
        %7660 = vmatprep.subr.mxu0 0.0
        %7661 = vmatpush1.xpose.msra.mxu0 0.0
        %7662 = vmatprep.subr.mxu0 0.0
        %7663 = vmatpush1.xpose.msra.mxu0 0.0
        %7664 = vmatprep.subr.mxu0 0.0
        %7665 = vmatpush1.xpose.msra.mxu0 0.0
        %7666 = vmatprep.subr.mxu0 0.0
        %7667 = vmatpush1.xpose.msra.mxu0 0.0
        %7668 = vmatprep.subr.mxu0 0.0
        %7669 = vmatpush1.xpose.msra.mxu0 0.0
        %7670 = vmatprep.subr.mxu0 0.0
        %7671 = vmatpush1.xpose.msra.mxu0 0.0
        %7672 = vmatprep.subr.mxu0 0.0
        %7673 = vmatpush1.xpose.msra.mxu0 0.0
        %7674 = vmatprep.subr.mxu0 0.0
        %7675 = vmatpush1.xpose.msra.mxu0 0.0
        %7676 = vmatprep.subr.mxu0 0.0
        %7677 = vmatpush1.xpose.msra.mxu0 0.0
        %7678 = vmatprep.subr.mxu0 0.0
        %7679 = vmatpush1.xpose.msra.mxu0 0.0
        %7680 = vmatprep.subr.mxu0 0.0
        %7681 = vmatpush1.xpose.msra.mxu0 0.0
        %7682 = vmatprep.subr.mxu0 0.0
        %7683 = vmatpush1.xpose.msra.mxu0 0.0
        %7684 = vmatprep.subr.mxu0 0.0
        %7685 = vmatpush1.xpose.msra.mxu0 0.0
        %7686 = vmatprep.subr.mxu0 0.0
        %7687 = vmatpush1.xpose.msra.mxu0 0.0
        %7688 = vmatprep.subr.mxu0 0.0
        %7689 = vmatpush1.xpose.msra.mxu0 0.0
        %7690 = vmatprep.subr.mxu0 0.0
        %7691 = vmatpush1.xpose.msra.mxu0 0.0
        %7692 = vmatprep.subr.mxu0 0.0
        %7693 = vmatpush1.xpose.msra.mxu0 0.0
        %7694 = vmatprep.subr.mxu0 0.0
        %7695 = vmatpush1.xpose.msra.mxu0 0.0
        %7696 = vmatprep.subr.mxu0 0.0
        %7697 = vmatpush1.xpose.msra.mxu0 0.0
        %7698 = vmatprep.subr.mxu0 0.0
        %7699 = vmatpush1.xpose.msra.mxu0 0.0
        %7700 = vmatprep.subr.mxu0 0.0
        %7701 = vmatpush1.xpose.msra.mxu0 0.0
        %7702 = vmatprep.subr.mxu0 0.0
        %7703 = vmatpush1.xpose.msra.mxu0 0.0
        %7704 = vmatprep.subr.mxu0 0.0
        %7705 = vmatpush1.xpose.msra.mxu0 0.0
        %7706 = vmatprep.subr.mxu0 0.0
        %7707 = vmatpush1.xpose.msra.mxu0 0.0
        %7708 = vmatprep.subr.mxu0 0.0
        %7709 = vmatpush1.xpose.msra.mxu0 0.0
        %7710 = vmatprep.subr.mxu0 0.0
        %7711 = vmatpush1.xpose.msra.mxu0 0.0
        %7712 = vmatprep.mubr.f32.mxu0 0.0
        %v7713 = vand.u32 %v7294, 4294901760
        %7714 = vmatmul.mubr.f32.gmra.mrb[0].mxu0 %v7713
        %v7715 = vpop.f32.mrb[0].mxu0
        %v7716 = vadd.f32 %v7631, %v7715
        %v7717 = vpop.f32.mrb[0].mxu0
        %7718 = vmatprep.mubr.f32.mxu0 0.0
        %v7719 = vand.u32 %v7296, 4294901760
        %7720 = vmatmul.mubr.f32.gmra.mrb[0].mxu0 %v7719
        %v7721 = vpop.f32.mrb[0].mxu0
        %v7722 = vadd.f32 %v7639, %v7721
        %v7723 = vpop.f32.mrb[0].mxu0
        %7724 = vdwg.mxu0
        %7725 = vmatprep.subr.mxu0 0.0
        %v7726 = vand.u32 %v7298, 4294901760
        %7727 = vmatpush1.xpose.msra.mxu0 %v7726
        %7728 = vmatprep.subr.mxu0 0.0
        %v7729 = vand.u32 %v7300, 4294901760
        %7730 = vmatpush1.xpose.msra.mxu0 %v7729
        %7731 = vmatprep.subr.mxu0 0.0
        %7732 = vmatpush1.xpose.msra.mxu0 0.0
        %7733 = vmatprep.subr.mxu0 0.0
        %7734 = vmatpush1.xpose.msra.mxu0 0.0
        %7735 = vmatprep.subr.mxu0 0.0
        %7736 = vmatpush1.xpose.msra.mxu0 0.0
        %7737 = vmatprep.subr.mxu0 0.0
        %7738 = vmatpush1.xpose.msra.mxu0 0.0
        %7739 = vmatprep.subr.mxu0 0.0
        %7740 = vmatpush1.xpose.msra.mxu0 0.0
        %7741 = vmatprep.subr.mxu0 0.0
        %7742 = vmatpush1.xpose.msra.mxu0 0.0
        %7743 = vmatprep.subr.mxu0 0.0
        %7744 = vmatpush1.xpose.msra.mxu0 0.0
        %7745 = vmatprep.subr.mxu0 0.0
        %7746 = vmatpush1.xpose.msra.mxu0 0.0
        %7747 = vmatprep.subr.mxu0 0.0
        %7748 = vmatpush1.xpose.msra.mxu0 0.0
        %7749 = vmatprep.subr.mxu0 0.0
        %7750 = vmatpush1.xpose.msra.mxu0 0.0
        %7751 = vmatprep.subr.mxu0 0.0
        %7752 = vmatpush1.xpose.msra.mxu0 0.0
        %7753 = vmatprep.subr.mxu0 0.0
        %7754 = vmatpush1.xpose.msra.mxu0 0.0
        %7755 = vmatprep.subr.mxu0 0.0
        %7756 = vmatpush1.xpose.msra.mxu0 0.0
        %7757 = vmatprep.subr.mxu0 0.0
        %7758 = vmatpush1.xpose.msra.mxu0 0.0
        %7759 = vmatprep.subr.mxu0 0.0
        %7760 = vmatpush1.xpose.msra.mxu0 0.0
        %7761 = vmatprep.subr.mxu0 0.0
        %7762 = vmatpush1.xpose.msra.mxu0 0.0
        %7763 = vmatprep.subr.mxu0 0.0
        %7764 = vmatpush1.xpose.msra.mxu0 0.0
        %7765 = vmatprep.subr.mxu0 0.0
        %7766 = vmatpush1.xpose.msra.mxu0 0.0
        %7767 = vmatprep.subr.mxu0 0.0
        %7768 = vmatpush1.xpose.msra.mxu0 0.0
        %7769 = vmatprep.subr.mxu0 0.0
        %7770 = vmatpush1.xpose.msra.mxu0 0.0
        %7771 = vmatprep.subr.mxu0 0.0
        %7772 = vmatpush1.xpose.msra.mxu0 0.0
        %7773 = vmatprep.subr.mxu0 0.0
        %7774 = vmatpush1.xpose.msra.mxu0 0.0
        %7775 = vmatprep.subr.mxu0 0.0
        %7776 = vmatpush1.xpose.msra.mxu0 0.0
        %7777 = vmatprep.subr.mxu0 0.0
        %7778 = vmatpush1.xpose.msra.mxu0 0.0
        %7779 = vmatprep.subr.mxu0 0.0
        %7780 = vmatpush1.xpose.msra.mxu0 0.0
        %7781 = vmatprep.subr.mxu0 0.0
        %7782 = vmatpush1.xpose.msra.mxu0 0.0
        %7783 = vmatprep.subr.mxu0 0.0
        %7784 = vmatpush1.xpose.msra.mxu0 0.0
        %7785 = vmatprep.subr.mxu0 0.0
        %7786 = vmatpush1.xpose.msra.mxu0 0.0
        %7787 = vmatprep.subr.mxu0 0.0
        %7788 = vmatpush1.xpose.msra.mxu0 0.0
        %7789 = vmatprep.subr.mxu0 0.0
        %7790 = vmatpush1.xpose.msra.mxu0 0.0
        %7791 = vmatprep.mubr.f32.mxu0 0.0
        %v7792 = vand.u32 %v7294, 4294901760
        %7793 = vmatmul.mubr.f32.gmra.mrb[0].mxu0 %v7792
        %v7794 = vpop.f32.mrb[0].mxu0
        %v7795 = vadd.f32 %v7716, %v7794
        %v7796 = vpop.f32.mrb[0].mxu0
        %7797 = vmatprep.mubr.f32.mxu0 0.0
        %v7798 = vand.u32 %v7296, 4294901760
        %7799 = vmatmul.mubr.f32.gmra.mrb[0].mxu0 %v7798
        %v7800 = vpop.f32.mrb[0].mxu0
        %v7801 = vadd.f32 %v7722, %v7800
        %v7802 = vpop.f32.mrb[0].mxu0
        %7803 = vdwg.mxu0
        %v7804 = vsel %vm1483, %v7795, -inf
        %7805 = vmax.xlane.f32.xlu0 %v7804
        %v7806 = vpop.xlane.xlu0 %7805
        %v7807 = vsel %vm1483, %v7801, -inf
        %7808 = vmax.xlane.f32.xlu0 %v7807
        %v7809 = vpop.xlane.xlu0 %7808
        %v7810 = vsub.f32 %v7795, %v7806
        %v7811 = vsub.f32 %v7801, %v7809
        %v7812 = vmul.f32 %v7810, 1.442695
        %v7813 = vpow.pop %v7812
        %v7814 = vmul.f32 %v7811, 1.442695
        %v7815 = vpow.pop %v7814
        %v7816 = vsel %vm1483, %v7813, 0.0
        %7817 = vadd.xlane.f32.xlu0 %v7816
        %v7818 = vpop.xlane.xlu0 %7817
        %v7819 = vsel %vm1483, %v7815, 0.0
        %7820 = vadd.xlane.f32.xlu0 %v7819
        %v7821 = vpop.xlane.xlu0 %7820
        %7822 = vrot.lane.b32.xlu0 %v957, 80
        %v7823 = vpop.permute.xlu0 %7822
        %7824 = vrot.lane.b32.xlu0 %v964, 80
        %v7825 = vpop.permute.xlu0 %7824
        %v7829 = vsel %vm1483, %v7813, 0
        %v7832 = vsel %vm1483, %v7815, 0
        %7834 = vmatprep.subr.mxu0 0.0
        %v7835 = vand.u32 %v7823, 4294901760
        %7836 = vmatpush1.msra.mxu0 %v7835
        %7837 = vmatprep.subr.mxu0 0.0
        %v7838 = vand.u32 %v7825, 4294901760
        %7839 = vmatpush1.msra.mxu0 %v7838
        %7840 = vmatprep.subr.mxu0 0.0
        %7841 = vmatpush1.msra.mxu0 0.0
        %7842 = vmatprep.subr.mxu0 0.0
        %7843 = vmatpush1.msra.mxu0 0.0
        %7844 = vmatprep.subr.mxu0 0.0
        %7845 = vmatpush1.msra.mxu0 0.0
        %7846 = vmatprep.subr.mxu0 0.0
        %7847 = vmatpush1.msra.mxu0 0.0
        %7848 = vmatprep.subr.mxu0 0.0
        %7849 = vmatpush1.msra.mxu0 0.0
        %7850 = vmatprep.subr.mxu0 0.0
        %7851 = vmatpush1.msra.mxu0 0.0
        %7852 = vmatprep.subr.mxu0 0.0
        %7853 = vmatpush1.msra.mxu0 0.0
        %7854 = vmatprep.subr.mxu0 0.0
        %7855 = vmatpush1.msra.mxu0 0.0
        %7856 = vmatprep.subr.mxu0 0.0
        %7857 = vmatpush1.msra.mxu0 0.0
        %7858 = vmatprep.subr.mxu0 0.0
        %7859 = vmatpush1.msra.mxu0 0.0
        %7860 = vmatprep.subr.mxu0 0.0
        %7861 = vmatpush1.msra.mxu0 0.0
        %7862 = vmatprep.subr.mxu0 0.0
        %7863 = vmatpush1.msra.mxu0 0.0
        %7864 = vmatprep.subr.mxu0 0.0
        %7865 = vmatpush1.msra.mxu0 0.0
        %7866 = vmatprep.subr.mxu0 0.0
        %7867 = vmatpush1.msra.mxu0 0.0
        %7868 = vmatprep.subr.mxu0 0.0
        %7869 = vmatpush1.msra.mxu0 0.0
        %7870 = vmatprep.subr.mxu0 0.0
        %7871 = vmatpush1.msra.mxu0 0.0
        %7872 = vmatprep.subr.mxu0 0.0
        %7873 = vmatpush1.msra.mxu0 0.0
        %7874 = vmatprep.subr.mxu0 0.0
        %7875 = vmatpush1.msra.mxu0 0.0
        %7876 = vmatprep.subr.mxu0 0.0
        %7877 = vmatpush1.msra.mxu0 0.0
        %7878 = vmatprep.subr.mxu0 0.0
        %7879 = vmatpush1.msra.mxu0 0.0
        %7880 = vmatprep.subr.mxu0 0.0
        %7881 = vmatpush1.msra.mxu0 0.0
        %7882 = vmatprep.subr.mxu0 0.0
        %7883 = vmatpush1.msra.mxu0 0.0
        %7884 = vmatprep.subr.mxu0 0.0
        %7885 = vmatpush1.msra.mxu0 0.0
        %7886 = vmatprep.subr.mxu0 0.0
        %7887 = vmatpush1.msra.mxu0 0.0
        %7888 = vmatprep.subr.mxu0 0.0
        %7889 = vmatpush1.msra.mxu0 0.0
        %7890 = vmatprep.subr.mxu0 0.0
        %7891 = vmatpush1.msra.mxu0 0.0
        %7892 = vmatprep.subr.mxu0 0.0
        %7893 = vmatpush1.msra.mxu0 0.0
        %7894 = vmatprep.subr.mxu0 0.0
        %7895 = vmatpush1.msra.mxu0 0.0
        %7896 = vmatprep.subr.mxu0 0.0
        %7897 = vmatpush1.msra.mxu0 0.0
        %7898 = vmatprep.subr.mxu0 0.0
        %7899 = vmatpush1.msra.mxu0 0.0
        %7900 = vmatprep.mubr.f32.mxu0 0.0
        %v7901 = vand.u32 %v7829, 4294901760
        %v7902 = vsub.f32 %v7829, %v7901
        %v7903 = vand.u32 %v7902, 4294901760
        %v7904 = vsub.f32 %v7902, %v7903
        %v7905 = vand.u32 %v7904, 4294901760
        %7906 = vmatmul.mubr.f32.gmra.mrb[0].mxu0 %v7905
        %v7907 = vpop.f32.mrb[0].mxu0
        %v7908 = vadd.f32 0.0, %v7907
        %v7909 = vpop.f32.mrb[0].mxu0
        %7910 = vmatprep.mubr.f32.mxu0 0.0
        %v7911 = vand.u32 %v7832, 4294901760
        %v7912 = vsub.f32 %v7832, %v7911
        %v7913 = vand.u32 %v7912, 4294901760
        %v7914 = vsub.f32 %v7912, %v7913
        %v7915 = vand.u32 %v7914, 4294901760
        %7916 = vmatmul.mubr.f32.gmra.mrb[0].mxu0 %v7915
        %v7917 = vpop.f32.mrb[0].mxu0
        %v7918 = vadd.f32 0.0, %v7917
        %v7919 = vpop.f32.mrb[0].mxu0
        %7920 = vdwg.mxu0
        %7921 = vmatprep.subr.mxu0 0.0
        %v7922 = vand.u32 %v7823, 4294901760
        %v7923 = vsub.f32 %v7823, %v7922
        %v7924 = vand.u32 %v7923, 4294901760
        %v7925 = vsub.f32 %v7923, %v7924
        %v7926 = vand.u32 %v7925, 4294901760
        %7927 = vmatpush1.msra.mxu0 %v7926
        %7928 = vmatprep.subr.mxu0 0.0
        %v7929 = vand.u32 %v7825, 4294901760
        %v7930 = vsub.f32 %v7825, %v7929
        %v7931 = vand.u32 %v7930, 4294901760
        %v7932 = vsub.f32 %v7930, %v7931
        %v7933 = vand.u32 %v7932, 4294901760
        %7934 = vmatpush1.msra.mxu0 %v7933
        %7935 = vmatprep.subr.mxu0 0.0
        %7936 = vmatpush1.msra.mxu0 0.0
        %7937 = vmatprep.subr.mxu0 0.0
        %7938 = vmatpush1.msra.mxu0 0.0
        %7939 = vmatprep.subr.mxu0 0.0
        %7940 = vmatpush1.msra.mxu0 0.0
        %7941 = vmatprep.subr.mxu0 0.0
        %7942 = vmatpush1.msra.mxu0 0.0
        %7943 = vmatprep.subr.mxu0 0.0
        %7944 = vmatpush1.msra.mxu0 0.0
        %7945 = vmatprep.subr.mxu0 0.0
        %7946 = vmatpush1.msra.mxu0 0.0
        %7947 = vmatprep.subr.mxu0 0.0
        %7948 = vmatpush1.msra.mxu0 0.0
        %7949 = vmatprep.subr.mxu0 0.0
        %7950 = vmatpush1.msra.mxu0 0.0
        %7951 = vmatprep.subr.mxu0 0.0
        %7952 = vmatpush1.msra.mxu0 0.0
        %7953 = vmatprep.subr.mxu0 0.0
        %7954 = vmatpush1.msra.mxu0 0.0
        %7955 = vmatprep.subr.mxu0 0.0
        %7956 = vmatpush1.msra.mxu0 0.0
        %7957 = vmatprep.subr.mxu0 0.0
        %7958 = vmatpush1.msra.mxu0 0.0
        %7959 = vmatprep.subr.mxu0 0.0
        %7960 = vmatpush1.msra.mxu0 0.0
        %7961 = vmatprep.subr.mxu0 0.0
        %7962 = vmatpush1.msra.mxu0 0.0
        %7963 = vmatprep.subr.mxu0 0.0
        %7964 = vmatpush1.msra.mxu0 0.0
        %7965 = vmatprep.subr.mxu0 0.0
        %7966 = vmatpush1.msra.mxu0 0.0
        %7967 = vmatprep.subr.mxu0 0.0
        %7968 = vmatpush1.msra.mxu0 0.0
        %7969 = vmatprep.subr.mxu0 0.0
        %7970 = vmatpush1.msra.mxu0 0.0
        %7971 = vmatprep.subr.mxu0 0.0
        %7972 = vmatpush1.msra.mxu0 0.0
        %7973 = vmatprep.subr.mxu0 0.0
        %7974 = vmatpush1.msra.mxu0 0.0
        %7975 = vmatprep.subr.mxu0 0.0
        %7976 = vmatpush1.msra.mxu0 0.0
        %7977 = vmatprep.subr.mxu0 0.0
        %7978 = vmatpush1.msra.mxu0 0.0
        %7979 = vmatprep.subr.mxu0 0.0
        %7980 = vmatpush1.msra.mxu0 0.0
        %7981 = vmatprep.subr.mxu0 0.0
        %7982 = vmatpush1.msra.mxu0 0.0
        %7983 = vmatprep.subr.mxu0 0.0
        %7984 = vmatpush1.msra.mxu0 0.0
        %7985 = vmatprep.subr.mxu0 0.0
        %7986 = vmatpush1.msra.mxu0 0.0
        %7987 = vmatprep.subr.mxu0 0.0
        %7988 = vmatpush1.msra.mxu0 0.0
        %7989 = vmatprep.subr.mxu0 0.0
        %7990 = vmatpush1.msra.mxu0 0.0
        %7991 = vmatprep.subr.mxu0 0.0
        %7992 = vmatpush1.msra.mxu0 0.0
        %7993 = vmatprep.subr.mxu0 0.0
        %7994 = vmatpush1.msra.mxu0 0.0
        %7995 = vmatprep.mubr.f32.mxu0 0.0
        %v7996 = vand.u32 %v7829, 4294901760
        %7997 = vmatmul.mubr.f32.gmra.mrb[0].mxu0 %v7996
        %v7998 = vpop.f32.mrb[0].mxu0
        %v7999 = vadd.f32 %v7908, %v7998
        %v8000 = vpop.f32.mrb[0].mxu0
        %8001 = vmatprep.mubr.f32.mxu0 0.0
        %v8002 = vand.u32 %v7832, 4294901760
        %8003 = vmatmul.mubr.f32.gmra.mrb[0].mxu0 %v8002
        %v8004 = vpop.f32.mrb[0].mxu0
        %v8005 = vadd.f32 %v7918, %v8004
        %v8006 = vpop.f32.mrb[0].mxu0
        %8007 = vdwg.mxu0
        %8008 = vmatprep.subr.mxu0 0.0
        %v8009 = vand.u32 %v7823, 4294901760
        %v8010 = vsub.f32 %v7823, %v8009
        %8011 = vmatpush1.msra.mxu0 %v8010
        %8012 = vmatprep.subr.mxu0 0.0
        %v8013 = vand.u32 %v7825, 4294901760
        %v8014 = vsub.f32 %v7825, %v8013
        %8015 = vmatpush1.msra.mxu0 %v8014
        %8016 = vmatprep.subr.mxu0 0.0
        %8017 = vmatpush1.msra.mxu0 0.0
        %8018 = vmatprep.subr.mxu0 0.0
        %8019 = vmatpush1.msra.mxu0 0.0
        %8020 = vmatprep.subr.mxu0 0.0
        %8021 = vmatpush1.msra.mxu0 0.0
        %8022 = vmatprep.subr.mxu0 0.0
        %8023 = vmatpush1.msra.mxu0 0.0
        %8024 = vmatprep.subr.mxu0 0.0
        %8025 = vmatpush1.msra.mxu0 0.0
        %8026 = vmatprep.subr.mxu0 0.0
        %8027 = vmatpush1.msra.mxu0 0.0
        %8028 = vmatprep.subr.mxu0 0.0
        %8029 = vmatpush1.msra.mxu0 0.0
        %8030 = vmatprep.subr.mxu0 0.0
        %8031 = vmatpush1.msra.mxu0 0.0
        %8032 = vmatprep.subr.mxu0 0.0
        %8033 = vmatpush1.msra.mxu0 0.0
        %8034 = vmatprep.subr.mxu0 0.0
        %8035 = vmatpush1.msra.mxu0 0.0
        %8036 = vmatprep.subr.mxu0 0.0
        %8037 = vmatpush1.msra.mxu0 0.0
        %8038 = vmatprep.subr.mxu0 0.0
        %8039 = vmatpush1.msra.mxu0 0.0
        %8040 = vmatprep.subr.mxu0 0.0
        %8041 = vmatpush1.msra.mxu0 0.0
        %8042 = vmatprep.subr.mxu0 0.0
        %8043 = vmatpush1.msra.mxu0 0.0
        %8044 = vmatprep.subr.mxu0 0.0
        %8045 = vmatpush1.msra.mxu0 0.0
        %8046 = vmatprep.subr.mxu0 0.0
        %8047 = vmatpush1.msra.mxu0 0.0
        %8048 = vmatprep.subr.mxu0 0.0
        %8049 = vmatpush1.msra.mxu0 0.0
        %8050 = vmatprep.subr.mxu0 0.0
        %8051 = vmatpush1.msra.mxu0 0.0
        %8052 = vmatprep.subr.mxu0 0.0
        %8053 = vmatpush1.msra.mxu0 0.0
        %8054 = vmatprep.subr.mxu0 0.0
        %8055 = vmatpush1.msra.mxu0 0.0
        %8056 = vmatprep.subr.mxu0 0.0
        %8057 = vmatpush1.msra.mxu0 0.0
        %8058 = vmatprep.subr.mxu0 0.0
        %8059 = vmatpush1.msra.mxu0 0.0
        %8060 = vmatprep.subr.mxu0 0.0
        %8061 = vmatpush1.msra.mxu0 0.0
        %8062 = vmatprep.subr.mxu0 0.0
        %8063 = vmatpush1.msra.mxu0 0.0
        %8064 = vmatprep.subr.mxu0 0.0
        %8065 = vmatpush1.msra.mxu0 0.0
        %8066 = vmatprep.subr.mxu0 0.0
        %8067 = vmatpush1.msra.mxu0 0.0
        %8068 = vmatprep.subr.mxu0 0.0
        %8069 = vmatpush1.msra.mxu0 0.0
        %8070 = vmatprep.subr.mxu0 0.0
        %8071 = vmatpush1.msra.mxu0 0.0
        %8072 = vmatprep.subr.mxu0 0.0
        %8073 = vmatpush1.msra.mxu0 0.0
        %8074 = vmatprep.subr.mxu0 0.0
        %8075 = vmatpush1.msra.mxu0 0.0
        %8076 = vmatprep.mubr.f32.mxu0 0.0
        %v8077 = vand.u32 %v7829, 4294901760
        %v8078 = vsub.f32 %v7829, %v8077
        %8079 = vmatmul.mubr.f32.gmra.mrb[0].mxu0 %v8078
        %v8080 = vpop.f32.mrb[0].mxu0
        %v8081 = vadd.f32 %v7999, %v8080
        %v8082 = vpop.f32.mrb[0].mxu0
        %8083 = vmatprep.mubr.f32.mxu0 0.0
        %v8084 = vand.u32 %v7832, 4294901760
        %v8085 = vsub.f32 %v7832, %v8084
        %8086 = vmatmul.mubr.f32.gmra.mrb[0].mxu0 %v8085
        %v8087 = vpop.f32.mrb[0].mxu0
        %v8088 = vadd.f32 %v8005, %v8087
        %v8089 = vpop.f32.mrb[0].mxu0
        %8090 = vdwg.mxu0
        %8091 = vmatprep.subr.mxu0 0.0
        %v8092 = vand.u32 %v7823, 4294901760
        %8093 = vmatpush1.msra.mxu0 %v8092
        %8094 = vmatprep.subr.mxu0 0.0
        %v8095 = vand.u32 %v7825, 4294901760
        %8096 = vmatpush1.msra.mxu0 %v8095
        %8097 = vmatprep.subr.mxu0 0.0
        %8098 = vmatpush1.msra.mxu0 0.0
        %8099 = vmatprep.subr.mxu0 0.0
        %8100 = vmatpush1.msra.mxu0 0.0
        %8101 = vmatprep.subr.mxu0 0.0
        %8102 = vmatpush1.msra.mxu0 0.0
        %8103 = vmatprep.subr.mxu0 0.0
        %8104 = vmatpush1.msra.mxu0 0.0
        %8105 = vmatprep.subr.mxu0 0.0
        %8106 = vmatpush1.msra.mxu0 0.0
        %8107 = vmatprep.subr.mxu0 0.0
        %8108 = vmatpush1.msra.mxu0 0.0
        %8109 = vmatprep.subr.mxu0 0.0
        %8110 = vmatpush1.msra.mxu0 0.0
        %8111 = vmatprep.subr.mxu0 0.0
        %8112 = vmatpush1.msra.mxu0 0.0
        %8113 = vmatprep.subr.mxu0 0.0
        %8114 = vmatpush1.msra.mxu0 0.0
        %8115 = vmatprep.subr.mxu0 0.0
        %8116 = vmatpush1.msra.mxu0 0.0
        %8117 = vmatprep.subr.mxu0 0.0
        %8118 = vmatpush1.msra.mxu0 0.0
        %8119 = vmatprep.subr.mxu0 0.0
        %8120 = vmatpush1.msra.mxu0 0.0
        %8121 = vmatprep.subr.mxu0 0.0
        %8122 = vmatpush1.msra.mxu0 0.0
        %8123 = vmatprep.subr.mxu0 0.0
        %8124 = vmatpush1.msra.mxu0 0.0
        %8125 = vmatprep.subr.mxu0 0.0
        %8126 = vmatpush1.msra.mxu0 0.0
        %8127 = vmatprep.subr.mxu0 0.0
        %8128 = vmatpush1.msra.mxu0 0.0
        %8129 = vmatprep.subr.mxu0 0.0
        %8130 = vmatpush1.msra.mxu0 0.0
        %8131 = vmatprep.subr.mxu0 0.0
        %8132 = vmatpush1.msra.mxu0 0.0
        %8133 = vmatprep.subr.mxu0 0.0
        %8134 = vmatpush1.msra.mxu0 0.0
        %8135 = vmatprep.subr.mxu0 0.0
        %8136 = vmatpush1.msra.mxu0 0.0
        %8137 = vmatprep.subr.mxu0 0.0
        %8138 = vmatpush1.msra.mxu0 0.0
        %8139 = vmatprep.subr.mxu0 0.0
        %8140 = vmatpush1.msra.mxu0 0.0
        %8141 = vmatprep.subr.mxu0 0.0
        %8142 = vmatpush1.msra.mxu0 0.0
        %8143 = vmatprep.subr.mxu0 0.0
        %8144 = vmatpush1.msra.mxu0 0.0
        %8145 = vmatprep.subr.mxu0 0.0
        %8146 = vmatpush1.msra.mxu0 0.0
        %8147 = vmatprep.subr.mxu0 0.0
        %8148 = vmatpush1.msra.mxu0 0.0
        %8149 = vmatprep.subr.mxu0 0.0
        %8150 = vmatpush1.msra.mxu0 0.0
        %8151 = vmatprep.subr.mxu0 0.0
        %8152 = vmatpush1.msra.mxu0 0.0
        %8153 = vmatprep.subr.mxu0 0.0
        %8154 = vmatpush1.msra.mxu0 0.0
        %8155 = vmatprep.subr.mxu0 0.0
        %8156 = vmatpush1.msra.mxu0 0.0
        %8157 = vmatprep.mubr.f32.mxu0 0.0
        %v8158 = vand.u32 %v7829, 4294901760
        %v8159 = vsub.f32 %v7829, %v8158
        %v8160 = vand.u32 %v8159, 4294901760
        %8161 = vmatmul.mubr.f32.gmra.mrb[0].mxu0 %v8160
        %v8162 = vpop.f32.mrb[0].mxu0
        %v8163 = vadd.f32 %v8081, %v8162
        %v8164 = vpop.f32.mrb[0].mxu0
        %8165 = vmatprep.mubr.f32.mxu0 0.0
        %v8166 = vand.u32 %v7832, 4294901760
        %v8167 = vsub.f32 %v7832, %v8166
        %v8168 = vand.u32 %v8167, 4294901760
        %8169 = vmatmul.mubr.f32.gmra.mrb[0].mxu0 %v8168
        %v8170 = vpop.f32.mrb[0].mxu0
        %v8171 = vadd.f32 %v8088, %v8170
        %v8172 = vpop.f32.mrb[0].mxu0
        %8173 = vdwg.mxu0
        %8174 = vmatprep.subr.mxu0 0.0
        %v8175 = vand.u32 %v7823, 4294901760
        %v8176 = vsub.f32 %v7823, %v8175
        %v8177 = vand.u32 %v8176, 4294901760
        %8178 = vmatpush1.msra.mxu0 %v8177
        %8179 = vmatprep.subr.mxu0 0.0
        %v8180 = vand.u32 %v7825, 4294901760
        %v8181 = vsub.f32 %v7825, %v8180
        %v8182 = vand.u32 %v8181, 4294901760
        %8183 = vmatpush1.msra.mxu0 %v8182
        %8184 = vmatprep.subr.mxu0 0.0
        %8185 = vmatpush1.msra.mxu0 0.0
        %8186 = vmatprep.subr.mxu0 0.0
        %8187 = vmatpush1.msra.mxu0 0.0
        %8188 = vmatprep.subr.mxu0 0.0
        %8189 = vmatpush1.msra.mxu0 0.0
        %8190 = vmatprep.subr.mxu0 0.0
        %8191 = vmatpush1.msra.mxu0 0.0
        %8192 = vmatprep.subr.mxu0 0.0
        %8193 = vmatpush1.msra.mxu0 0.0
        %8194 = vmatprep.subr.mxu0 0.0
        %8195 = vmatpush1.msra.mxu0 0.0
        %8196 = vmatprep.subr.mxu0 0.0
        %8197 = vmatpush1.msra.mxu0 0.0
        %8198 = vmatprep.subr.mxu0 0.0
        %8199 = vmatpush1.msra.mxu0 0.0
        %8200 = vmatprep.subr.mxu0 0.0
        %8201 = vmatpush1.msra.mxu0 0.0
        %8202 = vmatprep.subr.mxu0 0.0
        %8203 = vmatpush1.msra.mxu0 0.0
        %8204 = vmatprep.subr.mxu0 0.0
        %8205 = vmatpush1.msra.mxu0 0.0
        %8206 = vmatprep.subr.mxu0 0.0
        %8207 = vmatpush1.msra.mxu0 0.0
        %8208 = vmatprep.subr.mxu0 0.0
        %8209 = vmatpush1.msra.mxu0 0.0
        %8210 = vmatprep.subr.mxu0 0.0
        %8211 = vmatpush1.msra.mxu0 0.0
        %8212 = vmatprep.subr.mxu0 0.0
        %8213 = vmatpush1.msra.mxu0 0.0
        %8214 = vmatprep.subr.mxu0 0.0
        %8215 = vmatpush1.msra.mxu0 0.0
        %8216 = vmatprep.subr.mxu0 0.0
        %8217 = vmatpush1.msra.mxu0 0.0
        %8218 = vmatprep.subr.mxu0 0.0
        %8219 = vmatpush1.msra.mxu0 0.0
        %8220 = vmatprep.subr.mxu0 0.0
        %8221 = vmatpush1.msra.mxu0 0.0
        %8222 = vmatprep.subr.mxu0 0.0
        %8223 = vmatpush1.msra.mxu0 0.0
        %8224 = vmatprep.subr.mxu0 0.0
        %8225 = vmatpush1.msra.mxu0 0.0
        %8226 = vmatprep.subr.mxu0 0.0
        %8227 = vmatpush1.msra.mxu0 0.0
        %8228 = vmatprep.subr.mxu0 0.0
        %8229 = vmatpush1.msra.mxu0 0.0
        %8230 = vmatprep.subr.mxu0 0.0
        %8231 = vmatpush1.msra.mxu0 0.0
        %8232 = vmatprep.subr.mxu0 0.0
        %8233 = vmatpush1.msra.mxu0 0.0
        %8234 = vmatprep.subr.mxu0 0.0
        %8235 = vmatpush1.msra.mxu0 0.0
        %8236 = vmatprep.subr.mxu0 0.0
        %8237 = vmatpush1.msra.mxu0 0.0
        %8238 = vmatprep.subr.mxu0 0.0
        %8239 = vmatpush1.msra.mxu0 0.0
        %8240 = vmatprep.subr.mxu0 0.0
        %8241 = vmatpush1.msra.mxu0 0.0
        %8242 = vmatprep.subr.mxu0 0.0
        %8243 = vmatpush1.msra.mxu0 0.0
        %8244 = vmatprep.mubr.f32.mxu0 0.0
        %v8245 = vand.u32 %v7829, 4294901760
        %8246 = vmatmul.mubr.f32.gmra.mrb[0].mxu0 %v8245
        %v8247 = vpop.f32.mrb[0].mxu0
        %v8248 = vadd.f32 %v8163, %v8247
        %v8249 = vpop.f32.mrb[0].mxu0
        %8250 = vmatprep.mubr.f32.mxu0 0.0
        %v8251 = vand.u32 %v7832, 4294901760
        %8252 = vmatmul.mubr.f32.gmra.mrb[0].mxu0 %v8251
        %v8253 = vpop.f32.mrb[0].mxu0
        %v8254 = vadd.f32 %v8171, %v8253
        %v8255 = vpop.f32.mrb[0].mxu0
        %8256 = vdwg.mxu0
        %8257 = vmatprep.subr.mxu0 0.0
        %v8258 = vand.u32 %v7823, 4294901760
        %8259 = vmatpush1.msra.mxu0 %v8258
        %8260 = vmatprep.subr.mxu0 0.0
        %v8261 = vand.u32 %v7825, 4294901760
        %8262 = vmatpush1.msra.mxu0 %v8261
        %8263 = vmatprep.subr.mxu0 0.0
        %8264 = vmatpush1.msra.mxu0 0.0
        %8265 = vmatprep.subr.mxu0 0.0
        %8266 = vmatpush1.msra.mxu0 0.0
        %8267 = vmatprep.subr.mxu0 0.0
        %8268 = vmatpush1.msra.mxu0 0.0
        %8269 = vmatprep.subr.mxu0 0.0
        %8270 = vmatpush1.msra.mxu0 0.0
        %8271 = vmatprep.subr.mxu0 0.0
        %8272 = vmatpush1.msra.mxu0 0.0
        %8273 = vmatprep.subr.mxu0 0.0
        %8274 = vmatpush1.msra.mxu0 0.0
        %8275 = vmatprep.subr.mxu0 0.0
        %8276 = vmatpush1.msra.mxu0 0.0
        %8277 = vmatprep.subr.mxu0 0.0
        %8278 = vmatpush1.msra.mxu0 0.0
        %8279 = vmatprep.subr.mxu0 0.0
        %8280 = vmatpush1.msra.mxu0 0.0
        %8281 = vmatprep.subr.mxu0 0.0
        %8282 = vmatpush1.msra.mxu0 0.0
        %8283 = vmatprep.subr.mxu0 0.0
        %8284 = vmatpush1.msra.mxu0 0.0
        %8285 = vmatprep.subr.mxu0 0.0
        %8286 = vmatpush1.msra.mxu0 0.0
        %8287 = vmatprep.subr.mxu0 0.0
        %8288 = vmatpush1.msra.mxu0 0.0
        %8289 = vmatprep.subr.mxu0 0.0
        %8290 = vmatpush1.msra.mxu0 0.0
        %8291 = vmatprep.subr.mxu0 0.0
        %8292 = vmatpush1.msra.mxu0 0.0
        %8293 = vmatprep.subr.mxu0 0.0
        %8294 = vmatpush1.msra.mxu0 0.0
        %8295 = vmatprep.subr.mxu0 0.0
        %8296 = vmatpush1.msra.mxu0 0.0
        %8297 = vmatprep.subr.mxu0 0.0
        %8298 = vmatpush1.msra.mxu0 0.0
        %8299 = vmatprep.subr.mxu0 0.0
        %8300 = vmatpush1.msra.mxu0 0.0
        %8301 = vmatprep.subr.mxu0 0.0
        %8302 = vmatpush1.msra.mxu0 0.0
        %8303 = vmatprep.subr.mxu0 0.0
        %8304 = vmatpush1.msra.mxu0 0.0
        %8305 = vmatprep.subr.mxu0 0.0
        %8306 = vmatpush1.msra.mxu0 0.0
        %8307 = vmatprep.subr.mxu0 0.0
        %8308 = vmatpush1.msra.mxu0 0.0
        %8309 = vmatprep.subr.mxu0 0.0
        %8310 = vmatpush1.msra.mxu0 0.0
        %8311 = vmatprep.subr.mxu0 0.0
        %8312 = vmatpush1.msra.mxu0 0.0
        %8313 = vmatprep.subr.mxu0 0.0
        %8314 = vmatpush1.msra.mxu0 0.0
        %8315 = vmatprep.subr.mxu0 0.0
        %8316 = vmatpush1.msra.mxu0 0.0
        %8317 = vmatprep.subr.mxu0 0.0
        %8318 = vmatpush1.msra.mxu0 0.0
        %8319 = vmatprep.subr.mxu0 0.0
        %8320 = vmatpush1.msra.mxu0 0.0
        %8321 = vmatprep.subr.mxu0 0.0
        %8322 = vmatpush1.msra.mxu0 0.0
        %8323 = vmatprep.mubr.f32.mxu0 0.0
        %v8324 = vand.u32 %v7829, 4294901760
        %8325 = vmatmul.mubr.f32.gmra.mrb[0].mxu0 %v8324
        %v8326 = vpop.f32.mrb[0].mxu0
        %v8327 = vadd.f32 %v8248, %v8326
        %v8328 = vpop.f32.mrb[0].mxu0
        %8329 = vmatprep.mubr.f32.mxu0 0.0
        %v8330 = vand.u32 %v7832, 4294901760
        %8331 = vmatmul.mubr.f32.gmra.mrb[0].mxu0 %v8330
        %v8332 = vpop.f32.mrb[0].mxu0
        %v8333 = vadd.f32 %v8254, %v8332
        %v8334 = vpop.f32.mrb[0].mxu0
        %8335 = vdwg.mxu0
        %v8336 = vrcp.pop %v7818
        %v8337 = vmul.f32 %v8327, %v8336
        %v8338 = vrcp.pop %v7821
        %v8339 = vmul.f32 %v8333, %v8338
        %8340 = vrot.lane.b32.xlu0 %v955, 72
        %v8341 = vpop.permute.xlu0 %8340
        %8342 = vrot.lane.b32.xlu0 %v962, 72
        %v8343 = vpop.permute.xlu0 %8342
        %8344 = vrot.lane.b32.xlu0 %v955, 8
        %v8345 = vpop.permute.xlu0 %8344
        %8346 = vrot.lane.b32.xlu0 %v962, 8
        %v8347 = vpop.permute.xlu0 %8346
        %v8348 = vsel %vm972, %v8341, 0
        %v8350 = vsel %vm972, %v8343, 0
        %v8352 = vsel %vm972, %v8345, 0
        %v8354 = vsel %vm972, %v8347, 0
        %8356 = vmatprep.subr.mxu0 0.0
        %v8357 = vand.u32 %v8352, 4294901760
        %8358 = vmatpush1.xpose.msra.mxu0 %v8357
        %8359 = vmatprep.subr.mxu0 0.0
        %v8360 = vand.u32 %v8354, 4294901760
        %8361 = vmatpush1.xpose.msra.mxu0 %v8360
        %8362 = vmatprep.subr.mxu0 0.0
        %8363 = vmatpush1.xpose.msra.mxu0 0.0
        %8364 = vmatprep.subr.mxu0 0.0
        %8365 = vmatpush1.xpose.msra.mxu0 0.0
        %8366 = vmatprep.subr.mxu0 0.0
        %8367 = vmatpush1.xpose.msra.mxu0 0.0
        %8368 = vmatprep.subr.mxu0 0.0
        %8369 = vmatpush1.xpose.msra.mxu0 0.0
        %8370 = vmatprep.subr.mxu0 0.0
        %8371 = vmatpush1.xpose.msra.mxu0 0.0
        %8372 = vmatprep.subr.mxu0 0.0
        %8373 = vmatpush1.xpose.msra.mxu0 0.0
        %8374 = vmatprep.subr.mxu0 0.0
        %8375 = vmatpush1.xpose.msra.mxu0 0.0
        %8376 = vmatprep.subr.mxu0 0.0
        %8377 = vmatpush1.xpose.msra.mxu0 0.0
        %8378 = vmatprep.subr.mxu0 0.0
        %8379 = vmatpush1.xpose.msra.mxu0 0.0
        %8380 = vmatprep.subr.mxu0 0.0
        %8381 = vmatpush1.xpose.msra.mxu0 0.0
        %8382 = vmatprep.subr.mxu0 0.0
        %8383 = vmatpush1.xpose.msra.mxu0 0.0
        %8384 = vmatprep.subr.mxu0 0.0
        %8385 = vmatpush1.xpose.msra.mxu0 0.0
        %8386 = vmatprep.subr.mxu0 0.0
        %8387 = vmatpush1.xpose.msra.mxu0 0.0
        %8388 = vmatprep.subr.mxu0 0.0
        %8389 = vmatpush1.xpose.msra.mxu0 0.0
        %8390 = vmatprep.subr.mxu0 0.0
        %8391 = vmatpush1.xpose.msra.mxu0 0.0
        %8392 = vmatprep.subr.mxu0 0.0
        %8393 = vmatpush1.xpose.msra.mxu0 0.0
        %8394 = vmatprep.subr.mxu0 0.0
        %8395 = vmatpush1.xpose.msra.mxu0 0.0
        %8396 = vmatprep.subr.mxu0 0.0
        %8397 = vmatpush1.xpose.msra.mxu0 0.0
        %8398 = vmatprep.subr.mxu0 0.0
        %8399 = vmatpush1.xpose.msra.mxu0 0.0
        %8400 = vmatprep.subr.mxu0 0.0
        %8401 = vmatpush1.xpose.msra.mxu0 0.0
        %8402 = vmatprep.subr.mxu0 0.0
        %8403 = vmatpush1.xpose.msra.mxu0 0.0
        %8404 = vmatprep.subr.mxu0 0.0
        %8405 = vmatpush1.xpose.msra.mxu0 0.0
        %8406 = vmatprep.subr.mxu0 0.0
        %8407 = vmatpush1.xpose.msra.mxu0 0.0
        %8408 = vmatprep.subr.mxu0 0.0
        %8409 = vmatpush1.xpose.msra.mxu0 0.0
        %8410 = vmatprep.subr.mxu0 0.0
        %8411 = vmatpush1.xpose.msra.mxu0 0.0
        %8412 = vmatprep.subr.mxu0 0.0
        %8413 = vmatpush1.xpose.msra.mxu0 0.0
        %8414 = vmatprep.subr.mxu0 0.0
        %8415 = vmatpush1.xpose.msra.mxu0 0.0
        %8416 = vmatprep.subr.mxu0 0.0
        %8417 = vmatpush1.xpose.msra.mxu0 0.0
        %8418 = vmatprep.subr.mxu0 0.0
        %8419 = vmatpush1.xpose.msra.mxu0 0.0
        %8420 = vmatprep.subr.mxu0 0.0
        %8421 = vmatpush1.xpose.msra.mxu0 0.0
        %8422 = vmatprep.mubr.f32.mxu0 0.0
        %v8423 = vand.u32 %v8348, 4294901760
        %v8424 = vsub.f32 %v8348, %v8423
        %v8425 = vand.u32 %v8424, 4294901760
        %v8426 = vsub.f32 %v8424, %v8425
        %v8427 = vand.u32 %v8426, 4294901760
        %8428 = vmatmul.mubr.f32.gmra.mrb[0].mxu0 %v8427
        %v8429 = vpop.f32.mrb[0].mxu0
        %v8430 = vadd.f32 0.0, %v8429
        %v8431 = vpop.f32.mrb[0].mxu0
        %8432 = vmatprep.mubr.f32.mxu0 0.0
        %v8433 = vand.u32 %v8350, 4294901760
        %v8434 = vsub.f32 %v8350, %v8433
        %v8435 = vand.u32 %v8434, 4294901760
        %v8436 = vsub.f32 %v8434, %v8435
        %v8437 = vand.u32 %v8436, 4294901760
        %8438 = vmatmul.mubr.f32.gmra.mrb[0].mxu0 %v8437
        %v8439 = vpop.f32.mrb[0].mxu0
        %v8440 = vadd.f32 0.0, %v8439
        %v8441 = vpop.f32.mrb[0].mxu0
        %8442 = vdwg.mxu0
        %8443 = vmatprep.subr.mxu0 0.0
        %v8444 = vand.u32 %v8352, 4294901760
        %v8445 = vsub.f32 %v8352, %v8444
        %v8446 = vand.u32 %v8445, 4294901760
        %v8447 = vsub.f32 %v8445, %v8446
        %v8448 = vand.u32 %v8447, 4294901760
        %8449 = vmatpush1.xpose.msra.mxu0 %v8448
        %8450 = vmatprep.subr.mxu0 0.0
        %v8451 = vand.u32 %v8354, 4294901760
        %v8452 = vsub.f32 %v8354, %v8451
        %v8453 = vand.u32 %v8452, 4294901760
        %v8454 = vsub.f32 %v8452, %v8453
        %v8455 = vand.u32 %v8454, 4294901760
        %8456 = vmatpush1.xpose.msra.mxu0 %v8455
        %8457 = vmatprep.subr.mxu0 0.0
        %8458 = vmatpush1.xpose.msra.mxu0 0.0
        %8459 = vmatprep.subr.mxu0 0.0
        %8460 = vmatpush1.xpose.msra.mxu0 0.0
        %8461 = vmatprep.subr.mxu0 0.0
        %8462 = vmatpush1.xpose.msra.mxu0 0.0
        %8463 = vmatprep.subr.mxu0 0.0
        %8464 = vmatpush1.xpose.msra.mxu0 0.0
        %8465 = vmatprep.subr.mxu0 0.0
        %8466 = vmatpush1.xpose.msra.mxu0 0.0
        %8467 = vmatprep.subr.mxu0 0.0
        %8468 = vmatpush1.xpose.msra.mxu0 0.0
        %8469 = vmatprep.subr.mxu0 0.0
        %8470 = vmatpush1.xpose.msra.mxu0 0.0
        %8471 = vmatprep.subr.mxu0 0.0
        %8472 = vmatpush1.xpose.msra.mxu0 0.0
        %8473 = vmatprep.subr.mxu0 0.0
        %8474 = vmatpush1.xpose.msra.mxu0 0.0
        %8475 = vmatprep.subr.mxu0 0.0
        %8476 = vmatpush1.xpose.msra.mxu0 0.0
        %8477 = vmatprep.subr.mxu0 0.0
        %8478 = vmatpush1.xpose.msra.mxu0 0.0
        %8479 = vmatprep.subr.mxu0 0.0
        %8480 = vmatpush1.xpose.msra.mxu0 0.0
        %8481 = vmatprep.subr.mxu0 0.0
        %8482 = vmatpush1.xpose.msra.mxu0 0.0
        %8483 = vmatprep.subr.mxu0 0.0
        %8484 = vmatpush1.xpose.msra.mxu0 0.0
        %8485 = vmatprep.subr.mxu0 0.0
        %8486 = vmatpush1.xpose.msra.mxu0 0.0
        %8487 = vmatprep.subr.mxu0 0.0
        %8488 = vmatpush1.xpose.msra.mxu0 0.0
        %8489 = vmatprep.subr.mxu0 0.0
        %8490 = vmatpush1.xpose.msra.mxu0 0.0
        %8491 = vmatprep.subr.mxu0 0.0
        %8492 = vmatpush1.xpose.msra.mxu0 0.0
        %8493 = vmatprep.subr.mxu0 0.0
        %8494 = vmatpush1.xpose.msra.mxu0 0.0
        %8495 = vmatprep.subr.mxu0 0.0
        %8496 = vmatpush1.xpose.msra.mxu0 0.0
        %8497 = vmatprep.subr.mxu0 0.0
        %8498 = vmatpush1.xpose.msra.mxu0 0.0
        %8499 = vmatprep.subr.mxu0 0.0
        %8500 = vmatpush1.xpose.msra.mxu0 0.0
        %8501 = vmatprep.subr.mxu0 0.0
        %8502 = vmatpush1.xpose.msra.mxu0 0.0
        %8503 = vmatprep.subr.mxu0 0.0
        %8504 = vmatpush1.xpose.msra.mxu0 0.0
        %8505 = vmatprep.subr.mxu0 0.0
        %8506 = vmatpush1.xpose.msra.mxu0 0.0
        %8507 = vmatprep.subr.mxu0 0.0
        %8508 = vmatpush1.xpose.msra.mxu0 0.0
        %8509 = vmatprep.subr.mxu0 0.0
        %8510 = vmatpush1.xpose.msra.mxu0 0.0
        %8511 = vmatprep.subr.mxu0 0.0
        %8512 = vmatpush1.xpose.msra.mxu0 0.0
        %8513 = vmatprep.subr.mxu0 0.0
        %8514 = vmatpush1.xpose.msra.mxu0 0.0
        %8515 = vmatprep.subr.mxu0 0.0
        %8516 = vmatpush1.xpose.msra.mxu0 0.0
        %8517 = vmatprep.mubr.f32.mxu0 0.0
        %v8518 = vand.u32 %v8348, 4294901760
        %8519 = vmatmul.mubr.f32.gmra.mrb[0].mxu0 %v8518
        %v8520 = vpop.f32.mrb[0].mxu0
        %v8521 = vadd.f32 %v8430, %v8520
        %v8522 = vpop.f32.mrb[0].mxu0
        %8523 = vmatprep.mubr.f32.mxu0 0.0
        %v8524 = vand.u32 %v8350, 4294901760
        %8525 = vmatmul.mubr.f32.gmra.mrb[0].mxu0 %v8524
        %v8526 = vpop.f32.mrb[0].mxu0
        %v8527 = vadd.f32 %v8440, %v8526
        %v8528 = vpop.f32.mrb[0].mxu0
        %8529 = vdwg.mxu0
        %8530 = vmatprep.subr.mxu0 0.0
        %v8531 = vand.u32 %v8352, 4294901760
        %v8532 = vsub.f32 %v8352, %v8531
        %8533 = vmatpush1.xpose.msra.mxu0 %v8532
        %8534 = vmatprep.subr.mxu0 0.0
        %v8535 = vand.u32 %v8354, 4294901760
        %v8536 = vsub.f32 %v8354, %v8535
        %8537 = vmatpush1.xpose.msra.mxu0 %v8536
        %8538 = vmatprep.subr.mxu0 0.0
        %8539 = vmatpush1.xpose.msra.mxu0 0.0
        %8540 = vmatprep.subr.mxu0 0.0
        %8541 = vmatpush1.xpose.msra.mxu0 0.0
        %8542 = vmatprep.subr.mxu0 0.0
        %8543 = vmatpush1.xpose.msra.mxu0 0.0
        %8544 = vmatprep.subr.mxu0 0.0
        %8545 = vmatpush1.xpose.msra.mxu0 0.0
        %8546 = vmatprep.subr.mxu0 0.0
        %8547 = vmatpush1.xpose.msra.mxu0 0.0
        %8548 = vmatprep.subr.mxu0 0.0
        %8549 = vmatpush1.xpose.msra.mxu0 0.0
        %8550 = vmatprep.subr.mxu0 0.0
        %8551 = vmatpush1.xpose.msra.mxu0 0.0
        %8552 = vmatprep.subr.mxu0 0.0
        %8553 = vmatpush1.xpose.msra.mxu0 0.0
        %8554 = vmatprep.subr.mxu0 0.0
        %8555 = vmatpush1.xpose.msra.mxu0 0.0
        %8556 = vmatprep.subr.mxu0 0.0
        %8557 = vmatpush1.xpose.msra.mxu0 0.0
        %8558 = vmatprep.subr.mxu0 0.0
        %8559 = vmatpush1.xpose.msra.mxu0 0.0
        %8560 = vmatprep.subr.mxu0 0.0
        %8561 = vmatpush1.xpose.msra.mxu0 0.0
        %8562 = vmatprep.subr.mxu0 0.0
        %8563 = vmatpush1.xpose.msra.mxu0 0.0
        %8564 = vmatprep.subr.mxu0 0.0
        %8565 = vmatpush1.xpose.msra.mxu0 0.0
        %8566 = vmatprep.subr.mxu0 0.0
        %8567 = vmatpush1.xpose.msra.mxu0 0.0
        %8568 = vmatprep.subr.mxu0 0.0
        %8569 = vmatpush1.xpose.msra.mxu0 0.0
        %8570 = vmatprep.subr.mxu0 0.0
        %8571 = vmatpush1.xpose.msra.mxu0 0.0
        %8572 = vmatprep.subr.mxu0 0.0
        %8573 = vmatpush1.xpose.msra.mxu0 0.0
        %8574 = vmatprep.subr.mxu0 0.0
        %8575 = vmatpush1.xpose.msra.mxu0 0.0
        %8576 = vmatprep.subr.mxu0 0.0
        %8577 = vmatpush1.xpose.msra.mxu0 0.0
        %8578 = vmatprep.subr.mxu0 0.0
        %8579 = vmatpush1.xpose.msra.mxu0 0.0
        %8580 = vmatprep.subr.mxu0 0.0
        %8581 = vmatpush1.xpose.msra.mxu0 0.0
        %8582 = vmatprep.subr.mxu0 0.0
        %8583 = vmatpush1.xpose.msra.mxu0 0.0
        %8584 = vmatprep.subr.mxu0 0.0
        %8585 = vmatpush1.xpose.msra.mxu0 0.0
        %8586 = vmatprep.subr.mxu0 0.0
        %8587 = vmatpush1.xpose.msra.mxu0 0.0
        %8588 = vmatprep.subr.mxu0 0.0
        %8589 = vmatpush1.xpose.msra.mxu0 0.0
        %8590 = vmatprep.subr.mxu0 0.0
        %8591 = vmatpush1.xpose.msra.mxu0 0.0
        %8592 = vmatprep.subr.mxu0 0.0
        %8593 = vmatpush1.xpose.msra.mxu0 0.0
        %8594 = vmatprep.subr.mxu0 0.0
        %8595 = vmatpush1.xpose.msra.mxu0 0.0
        %8596 = vmatprep.subr.mxu0 0.0
        %8597 = vmatpush1.xpose.msra.mxu0 0.0
        %8598 = vmatprep.mubr.f32.mxu0 0.0
        %v8599 = vand.u32 %v8348, 4294901760
        %v8600 = vsub.f32 %v8348, %v8599
        %8601 = vmatmul.mubr.f32.gmra.mrb[0].mxu0 %v8600
        %v8602 = vpop.f32.mrb[0].mxu0
        %v8603 = vadd.f32 %v8521, %v8602
        %v8604 = vpop.f32.mrb[0].mxu0
        %8605 = vmatprep.mubr.f32.mxu0 0.0
        %v8606 = vand.u32 %v8350, 4294901760
        %v8607 = vsub.f32 %v8350, %v8606
        %8608 = vmatmul.mubr.f32.gmra.mrb[0].mxu0 %v8607
        %v8609 = vpop.f32.mrb[0].mxu0
        %v8610 = vadd.f32 %v8527, %v8609
        %v8611 = vpop.f32.mrb[0].mxu0
        %8612 = vdwg.mxu0
        %8613 = vmatprep.subr.mxu0 0.0
        %v8614 = vand.u32 %v8352, 4294901760
        %8615 = vmatpush1.xpose.msra.mxu0 %v8614
        %8616 = vmatprep.subr.mxu0 0.0
        %v8617 = vand.u32 %v8354, 4294901760
        %8618 = vmatpush1.xpose.msra.mxu0 %v8617
        %8619 = vmatprep.subr.mxu0 0.0
        %8620 = vmatpush1.xpose.msra.mxu0 0.0
        %8621 = vmatprep.subr.mxu0 0.0
        %8622 = vmatpush1.xpose.msra.mxu0 0.0
        %8623 = vmatprep.subr.mxu0 0.0
        %8624 = vmatpush1.xpose.msra.mxu0 0.0
        %8625 = vmatprep.subr.mxu0 0.0
        %8626 = vmatpush1.xpose.msra.mxu0 0.0
        %8627 = vmatprep.subr.mxu0 0.0
        %8628 = vmatpush1.xpose.msra.mxu0 0.0
        %8629 = vmatprep.subr.mxu0 0.0
        %8630 = vmatpush1.xpose.msra.mxu0 0.0
        %8631 = vmatprep.subr.mxu0 0.0
        %8632 = vmatpush1.xpose.msra.mxu0 0.0
        %8633 = vmatprep.subr.mxu0 0.0
        %8634 = vmatpush1.xpose.msra.mxu0 0.0
        %8635 = vmatprep.subr.mxu0 0.0
        %8636 = vmatpush1.xpose.msra.mxu0 0.0
        %8637 = vmatprep.subr.mxu0 0.0
        %8638 = vmatpush1.xpose.msra.mxu0 0.0
        %8639 = vmatprep.subr.mxu0 0.0
        %8640 = vmatpush1.xpose.msra.mxu0 0.0
        %8641 = vmatprep.subr.mxu0 0.0
        %8642 = vmatpush1.xpose.msra.mxu0 0.0
        %8643 = vmatprep.subr.mxu0 0.0
        %8644 = vmatpush1.xpose.msra.mxu0 0.0
        %8645 = vmatprep.subr.mxu0 0.0
        %8646 = vmatpush1.xpose.msra.mxu0 0.0
        %8647 = vmatprep.subr.mxu0 0.0
        %8648 = vmatpush1.xpose.msra.mxu0 0.0
        %8649 = vmatprep.subr.mxu0 0.0
        %8650 = vmatpush1.xpose.msra.mxu0 0.0
        %8651 = vmatprep.subr.mxu0 0.0
        %8652 = vmatpush1.xpose.msra.mxu0 0.0
        %8653 = vmatprep.subr.mxu0 0.0
        %8654 = vmatpush1.xpose.msra.mxu0 0.0
        %8655 = vmatprep.subr.mxu0 0.0
        %8656 = vmatpush1.xpose.msra.mxu0 0.0
        %8657 = vmatprep.subr.mxu0 0.0
        %8658 = vmatpush1.xpose.msra.mxu0 0.0
        %8659 = vmatprep.subr.mxu0 0.0
        %8660 = vmatpush1.xpose.msra.mxu0 0.0
        %8661 = vmatprep.subr.mxu0 0.0
        %8662 = vmatpush1.xpose.msra.mxu0 0.0
        %8663 = vmatprep.subr.mxu0 0.0
        %8664 = vmatpush1.xpose.msra.mxu0 0.0
        %8665 = vmatprep.subr.mxu0 0.0
        %8666 = vmatpush1.xpose.msra.mxu0 0.0
        %8667 = vmatprep.subr.mxu0 0.0
        %8668 = vmatpush1.xpose.msra.mxu0 0.0
        %8669 = vmatprep.subr.mxu0 0.0
        %8670 = vmatpush1.xpose.msra.mxu0 0.0
        %8671 = vmatprep.subr.mxu0 0.0
        %8672 = vmatpush1.xpose.msra.mxu0 0.0
        %8673 = vmatprep.subr.mxu0 0.0
        %8674 = vmatpush1.xpose.msra.mxu0 0.0
        %8675 = vmatprep.subr.mxu0 0.0
        %8676 = vmatpush1.xpose.msra.mxu0 0.0
        %8677 = vmatprep.subr.mxu0 0.0
        %8678 = vmatpush1.xpose.msra.mxu0 0.0
        %8679 = vmatprep.mubr.f32.mxu0 0.0
        %v8680 = vand.u32 %v8348, 4294901760
        %v8681 = vsub.f32 %v8348, %v8680
        %v8682 = vand.u32 %v8681, 4294901760
        %8683 = vmatmul.mubr.f32.gmra.mrb[0].mxu0 %v8682
        %v8684 = vpop.f32.mrb[0].mxu0
        %v8685 = vadd.f32 %v8603, %v8684
        %v8686 = vpop.f32.mrb[0].mxu0
        %8687 = vmatprep.mubr.f32.mxu0 0.0
        %v8688 = vand.u32 %v8350, 4294901760
        %v8689 = vsub.f32 %v8350, %v8688
        %v8690 = vand.u32 %v8689, 4294901760
        %8691 = vmatmul.mubr.f32.gmra.mrb[0].mxu0 %v8690
        %v8692 = vpop.f32.mrb[0].mxu0
        %v8693 = vadd.f32 %v8610, %v8692
        %v8694 = vpop.f32.mrb[0].mxu0
        %8695 = vdwg.mxu0
        %8696 = vmatprep.subr.mxu0 0.0
        %v8697 = vand.u32 %v8352, 4294901760
        %v8698 = vsub.f32 %v8352, %v8697
        %v8699 = vand.u32 %v8698, 4294901760
        %8700 = vmatpush1.xpose.msra.mxu0 %v8699
        %8701 = vmatprep.subr.mxu0 0.0
        %v8702 = vand.u32 %v8354, 4294901760
        %v8703 = vsub.f32 %v8354, %v8702
        %v8704 = vand.u32 %v8703, 4294901760
        %8705 = vmatpush1.xpose.msra.mxu0 %v8704
        %8706 = vmatprep.subr.mxu0 0.0
        %8707 = vmatpush1.xpose.msra.mxu0 0.0
        %8708 = vmatprep.subr.mxu0 0.0
        %8709 = vmatpush1.xpose.msra.mxu0 0.0
        %8710 = vmatprep.subr.mxu0 0.0
        %8711 = vmatpush1.xpose.msra.mxu0 0.0
        %8712 = vmatprep.subr.mxu0 0.0
        %8713 = vmatpush1.xpose.msra.mxu0 0.0
        %8714 = vmatprep.subr.mxu0 0.0
        %8715 = vmatpush1.xpose.msra.mxu0 0.0
        %8716 = vmatprep.subr.mxu0 0.0
        %8717 = vmatpush1.xpose.msra.mxu0 0.0
        %8718 = vmatprep.subr.mxu0 0.0
        %8719 = vmatpush1.xpose.msra.mxu0 0.0
        %8720 = vmatprep.subr.mxu0 0.0
        %8721 = vmatpush1.xpose.msra.mxu0 0.0
        %8722 = vmatprep.subr.mxu0 0.0
        %8723 = vmatpush1.xpose.msra.mxu0 0.0
        %8724 = vmatprep.subr.mxu0 0.0
        %8725 = vmatpush1.xpose.msra.mxu0 0.0
        %8726 = vmatprep.subr.mxu0 0.0
        %8727 = vmatpush1.xpose.msra.mxu0 0.0
        %8728 = vmatprep.subr.mxu0 0.0
        %8729 = vmatpush1.xpose.msra.mxu0 0.0
        %8730 = vmatprep.subr.mxu0 0.0
        %8731 = vmatpush1.xpose.msra.mxu0 0.0
        %8732 = vmatprep.subr.mxu0 0.0
        %8733 = vmatpush1.xpose.msra.mxu0 0.0
        %8734 = vmatprep.subr.mxu0 0.0
        %8735 = vmatpush1.xpose.msra.mxu0 0.0
        %8736 = vmatprep.subr.mxu0 0.0
        %8737 = vmatpush1.xpose.msra.mxu0 0.0
        %8738 = vmatprep.subr.mxu0 0.0
        %8739 = vmatpush1.xpose.msra.mxu0 0.0
        %8740 = vmatprep.subr.mxu0 0.0
        %8741 = vmatpush1.xpose.msra.mxu0 0.0
        %8742 = vmatprep.subr.mxu0 0.0
        %8743 = vmatpush1.xpose.msra.mxu0 0.0
        %8744 = vmatprep.subr.mxu0 0.0
        %8745 = vmatpush1.xpose.msra.mxu0 0.0
        %8746 = vmatprep.subr.mxu0 0.0
        %8747 = vmatpush1.xpose.msra.mxu0 0.0
        %8748 = vmatprep.subr.mxu0 0.0
        %8749 = vmatpush1.xpose.msra.mxu0 0.0
        %8750 = vmatprep.subr.mxu0 0.0
        %8751 = vmatpush1.xpose.msra.mxu0 0.0
        %8752 = vmatprep.subr.mxu0 0.0
        %8753 = vmatpush1.xpose.msra.mxu0 0.0
        %8754 = vmatprep.subr.mxu0 0.0
        %8755 = vmatpush1.xpose.msra.mxu0 0.0
        %8756 = vmatprep.subr.mxu0 0.0
        %8757 = vmatpush1.xpose.msra.mxu0 0.0
        %8758 = vmatprep.subr.mxu0 0.0
        %8759 = vmatpush1.xpose.msra.mxu0 0.0
        %8760 = vmatprep.subr.mxu0 0.0
        %8761 = vmatpush1.xpose.msra.mxu0 0.0
        %8762 = vmatprep.subr.mxu0 0.0
        %8763 = vmatpush1.xpose.msra.mxu0 0.0
        %8764 = vmatprep.subr.mxu0 0.0
        %8765 = vmatpush1.xpose.msra.mxu0 0.0
        %8766 = vmatprep.mubr.f32.mxu0 0.0
        %v8767 = vand.u32 %v8348, 4294901760
        %8768 = vmatmul.mubr.f32.gmra.mrb[0].mxu0 %v8767
        %v8769 = vpop.f32.mrb[0].mxu0
        %v8770 = vadd.f32 %v8685, %v8769
        %v8771 = vpop.f32.mrb[0].mxu0
        %8772 = vmatprep.mubr.f32.mxu0 0.0
        %v8773 = vand.u32 %v8350, 4294901760
        %8774 = vmatmul.mubr.f32.gmra.mrb[0].mxu0 %v8773
        %v8775 = vpop.f32.mrb[0].mxu0
        %v8776 = vadd.f32 %v8693, %v8775
        %v8777 = vpop.f32.mrb[0].mxu0
        %8778 = vdwg.mxu0
        %8779 = vmatprep.subr.mxu0 0.0
        %v8780 = vand.u32 %v8352, 4294901760
        %8781 = vmatpush1.xpose.msra.mxu0 %v8780
        %8782 = vmatprep.subr.mxu0 0.0
        %v8783 = vand.u32 %v8354, 4294901760
        %8784 = vmatpush1.xpose.msra.mxu0 %v8783
        %8785 = vmatprep.subr.mxu0 0.0
        %8786 = vmatpush1.xpose.msra.mxu0 0.0
        %8787 = vmatprep.subr.mxu0 0.0
        %8788 = vmatpush1.xpose.msra.mxu0 0.0
        %8789 = vmatprep.subr.mxu0 0.0
        %8790 = vmatpush1.xpose.msra.mxu0 0.0
        %8791 = vmatprep.subr.mxu0 0.0
        %8792 = vmatpush1.xpose.msra.mxu0 0.0
        %8793 = vmatprep.subr.mxu0 0.0
        %8794 = vmatpush1.xpose.msra.mxu0 0.0
        %8795 = vmatprep.subr.mxu0 0.0
        %8796 = vmatpush1.xpose.msra.mxu0 0.0
        %8797 = vmatprep.subr.mxu0 0.0
        %8798 = vmatpush1.xpose.msra.mxu0 0.0
        %8799 = vmatprep.subr.mxu0 0.0
        %8800 = vmatpush1.xpose.msra.mxu0 0.0
        %8801 = vmatprep.subr.mxu0 0.0
        %8802 = vmatpush1.xpose.msra.mxu0 0.0
        %8803 = vmatprep.subr.mxu0 0.0
        %8804 = vmatpush1.xpose.msra.mxu0 0.0
        %8805 = vmatprep.subr.mxu0 0.0
        %8806 = vmatpush1.xpose.msra.mxu0 0.0
        %8807 = vmatprep.subr.mxu0 0.0
        %8808 = vmatpush1.xpose.msra.mxu0 0.0
        %8809 = vmatprep.subr.mxu0 0.0
        %8810 = vmatpush1.xpose.msra.mxu0 0.0
        %8811 = vmatprep.subr.mxu0 0.0
        %8812 = vmatpush1.xpose.msra.mxu0 0.0
        %8813 = vmatprep.subr.mxu0 0.0
        %8814 = vmatpush1.xpose.msra.mxu0 0.0
        %8815 = vmatprep.subr.mxu0 0.0
        %8816 = vmatpush1.xpose.msra.mxu0 0.0
        %8817 = vmatprep.subr.mxu0 0.0
        %8818 = vmatpush1.xpose.msra.mxu0 0.0
        %8819 = vmatprep.subr.mxu0 0.0
        %8820 = vmatpush1.xpose.msra.mxu0 0.0
        %8821 = vmatprep.subr.mxu0 0.0
        %8822 = vmatpush1.xpose.msra.mxu0 0.0
        %8823 = vmatprep.subr.mxu0 0.0
        %8824 = vmatpush1.xpose.msra.mxu0 0.0
        %8825 = vmatprep.subr.mxu0 0.0
        %8826 = vmatpush1.xpose.msra.mxu0 0.0
        %8827 = vmatprep.subr.mxu0 0.0
        %8828 = vmatpush1.xpose.msra.mxu0 0.0
        %8829 = vmatprep.subr.mxu0 0.0
        %8830 = vmatpush1.xpose.msra.mxu0 0.0
        %8831 = vmatprep.subr.mxu0 0.0
        %8832 = vmatpush1.xpose.msra.mxu0 0.0
        %8833 = vmatprep.subr.mxu0 0.0
        %8834 = vmatpush1.xpose.msra.mxu0 0.0
        %8835 = vmatprep.subr.mxu0 0.0
        %8836 = vmatpush1.xpose.msra.mxu0 0.0
        %8837 = vmatprep.subr.mxu0 0.0
        %8838 = vmatpush1.xpose.msra.mxu0 0.0
        %8839 = vmatprep.subr.mxu0 0.0
        %8840 = vmatpush1.xpose.msra.mxu0 0.0
        %8841 = vmatprep.subr.mxu0 0.0
        %8842 = vmatpush1.xpose.msra.mxu0 0.0
        %8843 = vmatprep.subr.mxu0 0.0
        %8844 = vmatpush1.xpose.msra.mxu0 0.0
        %8845 = vmatprep.mubr.f32.mxu0 0.0
        %v8846 = vand.u32 %v8348, 4294901760
        %8847 = vmatmul.mubr.f32.gmra.mrb[0].mxu0 %v8846
        %v8848 = vpop.f32.mrb[0].mxu0
        %v8849 = vadd.f32 %v8770, %v8848
        %v8850 = vpop.f32.mrb[0].mxu0
        %8851 = vmatprep.mubr.f32.mxu0 0.0
        %v8852 = vand.u32 %v8350, 4294901760
        %8853 = vmatmul.mubr.f32.gmra.mrb[0].mxu0 %v8852
        %v8854 = vpop.f32.mrb[0].mxu0
        %v8855 = vadd.f32 %v8776, %v8854
        %v8856 = vpop.f32.mrb[0].mxu0
        %8857 = vdwg.mxu0
        %v8858 = vsel %vm1483, %v8849, -inf
        %8859 = vmax.xlane.f32.xlu0 %v8858
        %v8860 = vpop.xlane.xlu0 %8859
        %v8861 = vsel %vm1483, %v8855, -inf
        %8862 = vmax.xlane.f32.xlu0 %v8861
        %v8863 = vpop.xlane.xlu0 %8862
        %v8864 = vsub.f32 %v8849, %v8860
        %v8865 = vsub.f32 %v8855, %v8863
        %v8866 = vmul.f32 %v8864, 1.442695
        %v8867 = vpow.pop %v8866
        %v8868 = vmul.f32 %v8865, 1.442695
        %v8869 = vpow.pop %v8868
        %v8870 = vsel %vm1483, %v8867, 0.0
        %8871 = vadd.xlane.f32.xlu0 %v8870
        %v8872 = vpop.xlane.xlu0 %8871
        %v8873 = vsel %vm1483, %v8869, 0.0
        %8874 = vadd.xlane.f32.xlu0 %v8873
        %v8875 = vpop.xlane.xlu0 %8874
        %8876 = vrot.lane.b32.xlu0 %v957, 72
        %v8877 = vpop.permute.xlu0 %8876
        %8878 = vrot.lane.b32.xlu0 %v964, 72
        %v8879 = vpop.permute.xlu0 %8878
        %v8883 = vsel %vm1483, %v8867, 0
        %v8886 = vsel %vm1483, %v8869, 0
        %8888 = vmatprep.subr.mxu0 0.0
        %v8889 = vand.u32 %v8877, 4294901760
        %8890 = vmatpush1.msra.mxu0 %v8889
        %8891 = vmatprep.subr.mxu0 0.0
        %v8892 = vand.u32 %v8879, 4294901760
        %8893 = vmatpush1.msra.mxu0 %v8892
        %8894 = vmatprep.subr.mxu0 0.0
        %8895 = vmatpush1.msra.mxu0 0.0
        %8896 = vmatprep.subr.mxu0 0.0
        %8897 = vmatpush1.msra.mxu0 0.0
        %8898 = vmatprep.subr.mxu0 0.0
        %8899 = vmatpush1.msra.mxu0 0.0
        %8900 = vmatprep.subr.mxu0 0.0
        %8901 = vmatpush1.msra.mxu0 0.0
        %8902 = vmatprep.subr.mxu0 0.0
        %8903 = vmatpush1.msra.mxu0 0.0
        %8904 = vmatprep.subr.mxu0 0.0
        %8905 = vmatpush1.msra.mxu0 0.0
        %8906 = vmatprep.subr.mxu0 0.0
        %8907 = vmatpush1.msra.mxu0 0.0
        %8908 = vmatprep.subr.mxu0 0.0
        %8909 = vmatpush1.msra.mxu0 0.0
        %8910 = vmatprep.subr.mxu0 0.0
        %8911 = vmatpush1.msra.mxu0 0.0
        %8912 = vmatprep.subr.mxu0 0.0
        %8913 = vmatpush1.msra.mxu0 0.0
        %8914 = vmatprep.subr.mxu0 0.0
        %8915 = vmatpush1.msra.mxu0 0.0
        %8916 = vmatprep.subr.mxu0 0.0
        %8917 = vmatpush1.msra.mxu0 0.0
        %8918 = vmatprep.subr.mxu0 0.0
        %8919 = vmatpush1.msra.mxu0 0.0
        %8920 = vmatprep.subr.mxu0 0.0
        %8921 = vmatpush1.msra.mxu0 0.0
        %8922 = vmatprep.subr.mxu0 0.0
        %8923 = vmatpush1.msra.mxu0 0.0
        %8924 = vmatprep.subr.mxu0 0.0
        %8925 = vmatpush1.msra.mxu0 0.0
        %8926 = vmatprep.subr.mxu0 0.0
        %8927 = vmatpush1.msra.mxu0 0.0
        %8928 = vmatprep.subr.mxu0 0.0
        %8929 = vmatpush1.msra.mxu0 0.0
        %8930 = vmatprep.subr.mxu0 0.0
        %8931 = vmatpush1.msra.mxu0 0.0
        %8932 = vmatprep.subr.mxu0 0.0
        %8933 = vmatpush1.msra.mxu0 0.0
        %8934 = vmatprep.subr.mxu0 0.0
        %8935 = vmatpush1.msra.mxu0 0.0
        %8936 = vmatprep.subr.mxu0 0.0
        %8937 = vmatpush1.msra.mxu0 0.0
        %8938 = vmatprep.subr.mxu0 0.0
        %8939 = vmatpush1.msra.mxu0 0.0
        %8940 = vmatprep.subr.mxu0 0.0
        %8941 = vmatpush1.msra.mxu0 0.0
        %8942 = vmatprep.subr.mxu0 0.0
        %8943 = vmatpush1.msra.mxu0 0.0
        %8944 = vmatprep.subr.mxu0 0.0
        %8945 = vmatpush1.msra.mxu0 0.0
        %8946 = vmatprep.subr.mxu0 0.0
        %8947 = vmatpush1.msra.mxu0 0.0
        %8948 = vmatprep.subr.mxu0 0.0
        %8949 = vmatpush1.msra.mxu0 0.0
        %8950 = vmatprep.subr.mxu0 0.0
        %8951 = vmatpush1.msra.mxu0 0.0
        %8952 = vmatprep.subr.mxu0 0.0
        %8953 = vmatpush1.msra.mxu0 0.0
        %8954 = vmatprep.mubr.f32.mxu0 0.0
        %v8955 = vand.u32 %v8883, 4294901760
        %v8956 = vsub.f32 %v8883, %v8955
        %v8957 = vand.u32 %v8956, 4294901760
        %v8958 = vsub.f32 %v8956, %v8957
        %v8959 = vand.u32 %v8958, 4294901760
        %8960 = vmatmul.mubr.f32.gmra.mrb[0].mxu0 %v8959
        %v8961 = vpop.f32.mrb[0].mxu0
        %v8962 = vadd.f32 0.0, %v8961
        %v8963 = vpop.f32.mrb[0].mxu0
        %8964 = vmatprep.mubr.f32.mxu0 0.0
        %v8965 = vand.u32 %v8886, 4294901760
        %v8966 = vsub.f32 %v8886, %v8965
        %v8967 = vand.u32 %v8966, 4294901760
        %v8968 = vsub.f32 %v8966, %v8967
        %v8969 = vand.u32 %v8968, 4294901760
        %8970 = vmatmul.mubr.f32.gmra.mrb[0].mxu0 %v8969
        %v8971 = vpop.f32.mrb[0].mxu0
        %v8972 = vadd.f32 0.0, %v8971
        %v8973 = vpop.f32.mrb[0].mxu0
        %8974 = vdwg.mxu0
        %8975 = vmatprep.subr.mxu0 0.0
        %v8976 = vand.u32 %v8877, 4294901760
        %v8977 = vsub.f32 %v8877, %v8976
        %v8978 = vand.u32 %v8977, 4294901760
        %v8979 = vsub.f32 %v8977, %v8978
        %v8980 = vand.u32 %v8979, 4294901760
        %8981 = vmatpush1.msra.mxu0 %v8980
        %8982 = vmatprep.subr.mxu0 0.0
        %v8983 = vand.u32 %v8879, 4294901760
        %v8984 = vsub.f32 %v8879, %v8983
        %v8985 = vand.u32 %v8984, 4294901760
        %v8986 = vsub.f32 %v8984, %v8985
        %v8987 = vand.u32 %v8986, 4294901760
        %8988 = vmatpush1.msra.mxu0 %v8987
        %8989 = vmatprep.subr.mxu0 0.0
        %8990 = vmatpush1.msra.mxu0 0.0
        %8991 = vmatprep.subr.mxu0 0.0
        %8992 = vmatpush1.msra.mxu0 0.0
        %8993 = vmatprep.subr.mxu0 0.0
        %8994 = vmatpush1.msra.mxu0 0.0
        %8995 = vmatprep.subr.mxu0 0.0
        %8996 = vmatpush1.msra.mxu0 0.0
        %8997 = vmatprep.subr.mxu0 0.0
        %8998 = vmatpush1.msra.mxu0 0.0
        %8999 = vmatprep.subr.mxu0 0.0
        %9000 = vmatpush1.msra.mxu0 0.0
        %9001 = vmatprep.subr.mxu0 0.0
        %9002 = vmatpush1.msra.mxu0 0.0
        %9003 = vmatprep.subr.mxu0 0.0
        %9004 = vmatpush1.msra.mxu0 0.0
        %9005 = vmatprep.subr.mxu0 0.0
        %9006 = vmatpush1.msra.mxu0 0.0
        %9007 = vmatprep.subr.mxu0 0.0
        %9008 = vmatpush1.msra.mxu0 0.0
        %9009 = vmatprep.subr.mxu0 0.0
        %9010 = vmatpush1.msra.mxu0 0.0
        %9011 = vmatprep.subr.mxu0 0.0
        %9012 = vmatpush1.msra.mxu0 0.0
        %9013 = vmatprep.subr.mxu0 0.0
        %9014 = vmatpush1.msra.mxu0 0.0
        %9015 = vmatprep.subr.mxu0 0.0
        %9016 = vmatpush1.msra.mxu0 0.0
        %9017 = vmatprep.subr.mxu0 0.0
        %9018 = vmatpush1.msra.mxu0 0.0
        %9019 = vmatprep.subr.mxu0 0.0
        %9020 = vmatpush1.msra.mxu0 0.0
        %9021 = vmatprep.subr.mxu0 0.0
        %9022 = vmatpush1.msra.mxu0 0.0
        %9023 = vmatprep.subr.mxu0 0.0
        %9024 = vmatpush1.msra.mxu0 0.0
        %9025 = vmatprep.subr.mxu0 0.0
        %9026 = vmatpush1.msra.mxu0 0.0
        %9027 = vmatprep.subr.mxu0 0.0
        %9028 = vmatpush1.msra.mxu0 0.0
        %9029 = vmatprep.subr.mxu0 0.0
        %9030 = vmatpush1.msra.mxu0 0.0
        %9031 = vmatprep.subr.mxu0 0.0
        %9032 = vmatpush1.msra.mxu0 0.0
        %9033 = vmatprep.subr.mxu0 0.0
        %9034 = vmatpush1.msra.mxu0 0.0
        %9035 = vmatprep.subr.mxu0 0.0
        %9036 = vmatpush1.msra.mxu0 0.0
        %9037 = vmatprep.subr.mxu0 0.0
        %9038 = vmatpush1.msra.mxu0 0.0
        %9039 = vmatprep.subr.mxu0 0.0
        %9040 = vmatpush1.msra.mxu0 0.0
        %9041 = vmatprep.subr.mxu0 0.0
        %9042 = vmatpush1.msra.mxu0 0.0
        %9043 = vmatprep.subr.mxu0 0.0
        %9044 = vmatpush1.msra.mxu0 0.0
        %9045 = vmatprep.subr.mxu0 0.0
        %9046 = vmatpush1.msra.mxu0 0.0
        %9047 = vmatprep.subr.mxu0 0.0
        %9048 = vmatpush1.msra.mxu0 0.0
        %9049 = vmatprep.mubr.f32.mxu0 0.0
        %v9050 = vand.u32 %v8883, 4294901760
        %9051 = vmatmul.mubr.f32.gmra.mrb[0].mxu0 %v9050
        %v9052 = vpop.f32.mrb[0].mxu0
        %v9053 = vadd.f32 %v8962, %v9052
        %v9054 = vpop.f32.mrb[0].mxu0
        %9055 = vmatprep.mubr.f32.mxu0 0.0
        %v9056 = vand.u32 %v8886, 4294901760
        %9057 = vmatmul.mubr.f32.gmra.mrb[0].mxu0 %v9056
        %v9058 = vpop.f32.mrb[0].mxu0
        %v9059 = vadd.f32 %v8972, %v9058
        %v9060 = vpop.f32.mrb[0].mxu0
        %9061 = vdwg.mxu0
        %9062 = vmatprep.subr.mxu0 0.0
        %v9063 = vand.u32 %v8877, 4294901760
        %v9064 = vsub.f32 %v8877, %v9063
        %9065 = vmatpush1.msra.mxu0 %v9064
        %9066 = vmatprep.subr.mxu0 0.0
        %v9067 = vand.u32 %v8879, 4294901760
        %v9068 = vsub.f32 %v8879, %v9067
        %9069 = vmatpush1.msra.mxu0 %v9068
        %9070 = vmatprep.subr.mxu0 0.0
        %9071 = vmatpush1.msra.mxu0 0.0
        %9072 = vmatprep.subr.mxu0 0.0
        %9073 = vmatpush1.msra.mxu0 0.0
        %9074 = vmatprep.subr.mxu0 0.0
        %9075 = vmatpush1.msra.mxu0 0.0
        %9076 = vmatprep.subr.mxu0 0.0
        %9077 = vmatpush1.msra.mxu0 0.0
        %9078 = vmatprep.subr.mxu0 0.0
        %9079 = vmatpush1.msra.mxu0 0.0
        %9080 = vmatprep.subr.mxu0 0.0
        %9081 = vmatpush1.msra.mxu0 0.0
        %9082 = vmatprep.subr.mxu0 0.0
        %9083 = vmatpush1.msra.mxu0 0.0
        %9084 = vmatprep.subr.mxu0 0.0
        %9085 = vmatpush1.msra.mxu0 0.0
        %9086 = vmatprep.subr.mxu0 0.0
        %9087 = vmatpush1.msra.mxu0 0.0
        %9088 = vmatprep.subr.mxu0 0.0
        %9089 = vmatpush1.msra.mxu0 0.0
        %9090 = vmatprep.subr.mxu0 0.0
        %9091 = vmatpush1.msra.mxu0 0.0
        %9092 = vmatprep.subr.mxu0 0.0
        %9093 = vmatpush1.msra.mxu0 0.0
        %9094 = vmatprep.subr.mxu0 0.0
        %9095 = vmatpush1.msra.mxu0 0.0
        %9096 = vmatprep.subr.mxu0 0.0
        %9097 = vmatpush1.msra.mxu0 0.0
        %9098 = vmatprep.subr.mxu0 0.0
        %9099 = vmatpush1.msra.mxu0 0.0
        %9100 = vmatprep.subr.mxu0 0.0
        %9101 = vmatpush1.msra.mxu0 0.0
        %9102 = vmatprep.subr.mxu0 0.0
        %9103 = vmatpush1.msra.mxu0 0.0
        %9104 = vmatprep.subr.mxu0 0.0
        %9105 = vmatpush1.msra.mxu0 0.0
        %9106 = vmatprep.subr.mxu0 0.0
        %9107 = vmatpush1.msra.mxu0 0.0
        %9108 = vmatprep.subr.mxu0 0.0
        %9109 = vmatpush1.msra.mxu0 0.0
        %9110 = vmatprep.subr.mxu0 0.0
        %9111 = vmatpush1.msra.mxu0 0.0
        %9112 = vmatprep.subr.mxu0 0.0
        %9113 = vmatpush1.msra.mxu0 0.0
        %9114 = vmatprep.subr.mxu0 0.0
        %9115 = vmatpush1.msra.mxu0 0.0
        %9116 = vmatprep.subr.mxu0 0.0
        %9117 = vmatpush1.msra.mxu0 0.0
        %9118 = vmatprep.subr.mxu0 0.0
        %9119 = vmatpush1.msra.mxu0 0.0
        %9120 = vmatprep.subr.mxu0 0.0
        %9121 = vmatpush1.msra.mxu0 0.0
        %9122 = vmatprep.subr.mxu0 0.0
        %9123 = vmatpush1.msra.mxu0 0.0
        %9124 = vmatprep.subr.mxu0 0.0
        %9125 = vmatpush1.msra.mxu0 0.0
        %9126 = vmatprep.subr.mxu0 0.0
        %9127 = vmatpush1.msra.mxu0 0.0
        %9128 = vmatprep.subr.mxu0 0.0
        %9129 = vmatpush1.msra.mxu0 0.0
        %9130 = vmatprep.mubr.f32.mxu0 0.0
        %v9131 = vand.u32 %v8883, 4294901760
        %v9132 = vsub.f32 %v8883, %v9131
        %9133 = vmatmul.mubr.f32.gmra.mrb[0].mxu0 %v9132
        %v9134 = vpop.f32.mrb[0].mxu0
        %v9135 = vadd.f32 %v9053, %v9134
        %v9136 = vpop.f32.mrb[0].mxu0
        %9137 = vmatprep.mubr.f32.mxu0 0.0
        %v9138 = vand.u32 %v8886, 4294901760
        %v9139 = vsub.f32 %v8886, %v9138
        %9140 = vmatmul.mubr.f32.gmra.mrb[0].mxu0 %v9139
        %v9141 = vpop.f32.mrb[0].mxu0
        %v9142 = vadd.f32 %v9059, %v9141
        %v9143 = vpop.f32.mrb[0].mxu0
        %9144 = vdwg.mxu0
        %9145 = vmatprep.subr.mxu0 0.0
        %v9146 = vand.u32 %v8877, 4294901760
        %9147 = vmatpush1.msra.mxu0 %v9146
        %9148 = vmatprep.subr.mxu0 0.0
        %v9149 = vand.u32 %v8879, 4294901760
        %9150 = vmatpush1.msra.mxu0 %v9149
        %9151 = vmatprep.subr.mxu0 0.0
        %9152 = vmatpush1.msra.mxu0 0.0
        %9153 = vmatprep.subr.mxu0 0.0
        %9154 = vmatpush1.msra.mxu0 0.0
        %9155 = vmatprep.subr.mxu0 0.0
        %9156 = vmatpush1.msra.mxu0 0.0
        %9157 = vmatprep.subr.mxu0 0.0
        %9158 = vmatpush1.msra.mxu0 0.0
        %9159 = vmatprep.subr.mxu0 0.0
        %9160 = vmatpush1.msra.mxu0 0.0
        %9161 = vmatprep.subr.mxu0 0.0
        %9162 = vmatpush1.msra.mxu0 0.0
        %9163 = vmatprep.subr.mxu0 0.0
        %9164 = vmatpush1.msra.mxu0 0.0
        %9165 = vmatprep.subr.mxu0 0.0
        %9166 = vmatpush1.msra.mxu0 0.0
        %9167 = vmatprep.subr.mxu0 0.0
        %9168 = vmatpush1.msra.mxu0 0.0
        %9169 = vmatprep.subr.mxu0 0.0
        %9170 = vmatpush1.msra.mxu0 0.0
        %9171 = vmatprep.subr.mxu0 0.0
        %9172 = vmatpush1.msra.mxu0 0.0
        %9173 = vmatprep.subr.mxu0 0.0
        %9174 = vmatpush1.msra.mxu0 0.0
        %9175 = vmatprep.subr.mxu0 0.0
        %9176 = vmatpush1.msra.mxu0 0.0
        %9177 = vmatprep.subr.mxu0 0.0
        %9178 = vmatpush1.msra.mxu0 0.0
        %9179 = vmatprep.subr.mxu0 0.0
        %9180 = vmatpush1.msra.mxu0 0.0
        %9181 = vmatprep.subr.mxu0 0.0
        %9182 = vmatpush1.msra.mxu0 0.0
        %9183 = vmatprep.subr.mxu0 0.0
        %9184 = vmatpush1.msra.mxu0 0.0
        %9185 = vmatprep.subr.mxu0 0.0
        %9186 = vmatpush1.msra.mxu0 0.0
        %9187 = vmatprep.subr.mxu0 0.0
        %9188 = vmatpush1.msra.mxu0 0.0
        %9189 = vmatprep.subr.mxu0 0.0
        %9190 = vmatpush1.msra.mxu0 0.0
        %9191 = vmatprep.subr.mxu0 0.0
        %9192 = vmatpush1.msra.mxu0 0.0
        %9193 = vmatprep.subr.mxu0 0.0
        %9194 = vmatpush1.msra.mxu0 0.0
        %9195 = vmatprep.subr.mxu0 0.0
        %9196 = vmatpush1.msra.mxu0 0.0
        %9197 = vmatprep.subr.mxu0 0.0
        %9198 = vmatpush1.msra.mxu0 0.0
        %9199 = vmatprep.subr.mxu0 0.0
        %9200 = vmatpush1.msra.mxu0 0.0
        %9201 = vmatprep.subr.mxu0 0.0
        %9202 = vmatpush1.msra.mxu0 0.0
        %9203 = vmatprep.subr.mxu0 0.0
        %9204 = vmatpush1.msra.mxu0 0.0
        %9205 = vmatprep.subr.mxu0 0.0
        %9206 = vmatpush1.msra.mxu0 0.0
        %9207 = vmatprep.subr.mxu0 0.0
        %9208 = vmatpush1.msra.mxu0 0.0
        %9209 = vmatprep.subr.mxu0 0.0
        %9210 = vmatpush1.msra.mxu0 0.0
        %9211 = vmatprep.mubr.f32.mxu0 0.0
        %v9212 = vand.u32 %v8883, 4294901760
        %v9213 = vsub.f32 %v8883, %v9212
        %v9214 = vand.u32 %v9213, 4294901760
        %9215 = vmatmul.mubr.f32.gmra.mrb[0].mxu0 %v9214
        %v9216 = vpop.f32.mrb[0].mxu0
        %v9217 = vadd.f32 %v9135, %v9216
        %v9218 = vpop.f32.mrb[0].mxu0
        %9219 = vmatprep.mubr.f32.mxu0 0.0
        %v9220 = vand.u32 %v8886, 4294901760
        %v9221 = vsub.f32 %v8886, %v9220
        %v9222 = vand.u32 %v9221, 4294901760
        %9223 = vmatmul.mubr.f32.gmra.mrb[0].mxu0 %v9222
        %v9224 = vpop.f32.mrb[0].mxu0
        %v9225 = vadd.f32 %v9142, %v9224
        %v9226 = vpop.f32.mrb[0].mxu0
        %9227 = vdwg.mxu0
        %9228 = vmatprep.subr.mxu0 0.0
        %v9229 = vand.u32 %v8877, 4294901760
        %v9230 = vsub.f32 %v8877, %v9229
        %v9231 = vand.u32 %v9230, 4294901760
        %9232 = vmatpush1.msra.mxu0 %v9231
        %9233 = vmatprep.subr.mxu0 0.0
        %v9234 = vand.u32 %v8879, 4294901760
        %v9235 = vsub.f32 %v8879, %v9234
        %v9236 = vand.u32 %v9235, 4294901760
        %9237 = vmatpush1.msra.mxu0 %v9236
        %9238 = vmatprep.subr.mxu0 0.0
        %9239 = vmatpush1.msra.mxu0 0.0
        %9240 = vmatprep.subr.mxu0 0.0
        %9241 = vmatpush1.msra.mxu0 0.0
        %9242 = vmatprep.subr.mxu0 0.0
        %9243 = vmatpush1.msra.mxu0 0.0
        %9244 = vmatprep.subr.mxu0 0.0
        %9245 = vmatpush1.msra.mxu0 0.0
        %9246 = vmatprep.subr.mxu0 0.0
        %9247 = vmatpush1.msra.mxu0 0.0
        %9248 = vmatprep.subr.mxu0 0.0
        %9249 = vmatpush1.msra.mxu0 0.0
        %9250 = vmatprep.subr.mxu0 0.0
        %9251 = vmatpush1.msra.mxu0 0.0
        %9252 = vmatprep.subr.mxu0 0.0
        %9253 = vmatpush1.msra.mxu0 0.0
        %9254 = vmatprep.subr.mxu0 0.0
        %9255 = vmatpush1.msra.mxu0 0.0
        %9256 = vmatprep.subr.mxu0 0.0
        %9257 = vmatpush1.msra.mxu0 0.0
        %9258 = vmatprep.subr.mxu0 0.0
        %9259 = vmatpush1.msra.mxu0 0.0
        %9260 = vmatprep.subr.mxu0 0.0
        %9261 = vmatpush1.msra.mxu0 0.0
        %9262 = vmatprep.subr.mxu0 0.0
        %9263 = vmatpush1.msra.mxu0 0.0
        %9264 = vmatprep.subr.mxu0 0.0
        %9265 = vmatpush1.msra.mxu0 0.0
        %9266 = vmatprep.subr.mxu0 0.0
        %9267 = vmatpush1.msra.mxu0 0.0
        %9268 = vmatprep.subr.mxu0 0.0
        %9269 = vmatpush1.msra.mxu0 0.0
        %9270 = vmatprep.subr.mxu0 0.0
        %9271 = vmatpush1.msra.mxu0 0.0
        %9272 = vmatprep.subr.mxu0 0.0
        %9273 = vmatpush1.msra.mxu0 0.0
        %9274 = vmatprep.subr.mxu0 0.0
        %9275 = vmatpush1.msra.mxu0 0.0
        %9276 = vmatprep.subr.mxu0 0.0
        %9277 = vmatpush1.msra.mxu0 0.0
        %9278 = vmatprep.subr.mxu0 0.0
        %9279 = vmatpush1.msra.mxu0 0.0
        %9280 = vmatprep.subr.mxu0 0.0
        %9281 = vmatpush1.msra.mxu0 0.0
        %9282 = vmatprep.subr.mxu0 0.0
        %9283 = vmatpush1.msra.mxu0 0.0
        %9284 = vmatprep.subr.mxu0 0.0
        %9285 = vmatpush1.msra.mxu0 0.0
        %9286 = vmatprep.subr.mxu0 0.0
        %9287 = vmatpush1.msra.mxu0 0.0
        %9288 = vmatprep.subr.mxu0 0.0
        %9289 = vmatpush1.msra.mxu0 0.0
        %9290 = vmatprep.subr.mxu0 0.0
        %9291 = vmatpush1.msra.mxu0 0.0
        %9292 = vmatprep.subr.mxu0 0.0
        %9293 = vmatpush1.msra.mxu0 0.0
        %9294 = vmatprep.subr.mxu0 0.0
        %9295 = vmatpush1.msra.mxu0 0.0
        %9296 = vmatprep.subr.mxu0 0.0
        %9297 = vmatpush1.msra.mxu0 0.0
        %9298 = vmatprep.mubr.f32.mxu0 0.0
        %v9299 = vand.u32 %v8883, 4294901760
        %9300 = vmatmul.mubr.f32.gmra.mrb[0].mxu0 %v9299
        %v9301 = vpop.f32.mrb[0].mxu0
        %v9302 = vadd.f32 %v9217, %v9301
        %v9303 = vpop.f32.mrb[0].mxu0
        %9304 = vmatprep.mubr.f32.mxu0 0.0
        %v9305 = vand.u32 %v8886, 4294901760
        %9306 = vmatmul.mubr.f32.gmra.mrb[0].mxu0 %v9305
        %v9307 = vpop.f32.mrb[0].mxu0
        %v9308 = vadd.f32 %v9225, %v9307
        %v9309 = vpop.f32.mrb[0].mxu0
        %9310 = vdwg.mxu0
        %9311 = vmatprep.subr.mxu0 0.0
        %v9312 = vand.u32 %v8877, 4294901760
        %9313 = vmatpush1.msra.mxu0 %v9312
        %9314 = vmatprep.subr.mxu0 0.0
        %v9315 = vand.u32 %v8879, 4294901760
        %9316 = vmatpush1.msra.mxu0 %v9315
        %9317 = vmatprep.subr.mxu0 0.0
        %9318 = vmatpush1.msra.mxu0 0.0
        %9319 = vmatprep.subr.mxu0 0.0
        %9320 = vmatpush1.msra.mxu0 0.0
        %9321 = vmatprep.subr.mxu0 0.0
        %9322 = vmatpush1.msra.mxu0 0.0
        %9323 = vmatprep.subr.mxu0 0.0
        %9324 = vmatpush1.msra.mxu0 0.0
        %9325 = vmatprep.subr.mxu0 0.0
        %9326 = vmatpush1.msra.mxu0 0.0
        %9327 = vmatprep.subr.mxu0 0.0
        %9328 = vmatpush1.msra.mxu0 0.0
        %9329 = vmatprep.subr.mxu0 0.0
        %9330 = vmatpush1.msra.mxu0 0.0
        %9331 = vmatprep.subr.mxu0 0.0
        %9332 = vmatpush1.msra.mxu0 0.0
        %9333 = vmatprep.subr.mxu0 0.0
        %9334 = vmatpush1.msra.mxu0 0.0
        %9335 = vmatprep.subr.mxu0 0.0
        %9336 = vmatpush1.msra.mxu0 0.0
        %9337 = vmatprep.subr.mxu0 0.0
        %9338 = vmatpush1.msra.mxu0 0.0
        %9339 = vmatprep.subr.mxu0 0.0
        %9340 = vmatpush1.msra.mxu0 0.0
        %9341 = vmatprep.subr.mxu0 0.0
        %9342 = vmatpush1.msra.mxu0 0.0
        %9343 = vmatprep.subr.mxu0 0.0
        %9344 = vmatpush1.msra.mxu0 0.0
        %9345 = vmatprep.subr.mxu0 0.0
        %9346 = vmatpush1.msra.mxu0 0.0
        %9347 = vmatprep.subr.mxu0 0.0
        %9348 = vmatpush1.msra.mxu0 0.0
        %9349 = vmatprep.subr.mxu0 0.0
        %9350 = vmatpush1.msra.mxu0 0.0
        %9351 = vmatprep.subr.mxu0 0.0
        %9352 = vmatpush1.msra.mxu0 0.0
        %9353 = vmatprep.subr.mxu0 0.0
        %9354 = vmatpush1.msra.mxu0 0.0
        %9355 = vmatprep.subr.mxu0 0.0
        %9356 = vmatpush1.msra.mxu0 0.0
        %9357 = vmatprep.subr.mxu0 0.0
        %9358 = vmatpush1.msra.mxu0 0.0
        %9359 = vmatprep.subr.mxu0 0.0
        %9360 = vmatpush1.msra.mxu0 0.0
        %9361 = vmatprep.subr.mxu0 0.0
        %9362 = vmatpush1.msra.mxu0 0.0
        %9363 = vmatprep.subr.mxu0 0.0
        %9364 = vmatpush1.msra.mxu0 0.0
        %9365 = vmatprep.subr.mxu0 0.0
        %9366 = vmatpush1.msra.mxu0 0.0
        %9367 = vmatprep.subr.mxu0 0.0
        %9368 = vmatpush1.msra.mxu0 0.0
        %9369 = vmatprep.subr.mxu0 0.0
        %9370 = vmatpush1.msra.mxu0 0.0
        %9371 = vmatprep.subr.mxu0 0.0
        %9372 = vmatpush1.msra.mxu0 0.0
        %9373 = vmatprep.subr.mxu0 0.0
        %9374 = vmatpush1.msra.mxu0 0.0
        %9375 = vmatprep.subr.mxu0 0.0
        %9376 = vmatpush1.msra.mxu0 0.0
        %9377 = vmatprep.mubr.f32.mxu0 0.0
        %v9378 = vand.u32 %v8883, 4294901760
        %9379 = vmatmul.mubr.f32.gmra.mrb[0].mxu0 %v9378
        %v9380 = vpop.f32.mrb[0].mxu0
        %v9381 = vadd.f32 %v9302, %v9380
        %v9382 = vpop.f32.mrb[0].mxu0
        %9383 = vmatprep.mubr.f32.mxu0 0.0
        %v9384 = vand.u32 %v8886, 4294901760
        %9385 = vmatmul.mubr.f32.gmra.mrb[0].mxu0 %v9384
        %v9386 = vpop.f32.mrb[0].mxu0
        %v9387 = vadd.f32 %v9308, %v9386
        %v9388 = vpop.f32.mrb[0].mxu0
        %9389 = vdwg.mxu0
        %v9390 = vrcp.pop %v8872
        %v9391 = vmul.f32 %v9381, %v9390
        %v9392 = vrcp.pop %v8875
        %v9393 = vmul.f32 %v9387, %v9392
        %9396 = vrot.lane.b32.xlu0 %v3067, 8
        %v9397 = vpop.permute.xlu0 %9396
        %9398 = vrot.lane.b32.xlu0 %v3069, 8
        %v9399 = vpop.permute.xlu0 %9398
        %9404 = vrot.lane.b32.xlu0 %v4121, 16
        %v9405 = vpop.permute.xlu0 %9404
        %9406 = vrot.lane.b32.xlu0 %v4123, 16
        %v9407 = vpop.permute.xlu0 %9406
        %9412 = vrot.lane.b32.xlu0 %v5175, 24
        %v9413 = vpop.permute.xlu0 %9412
        %9414 = vrot.lane.b32.xlu0 %v5177, 24
        %v9415 = vpop.permute.xlu0 %9414
        %9420 = vrot.lane.b32.xlu0 %v6229, 32
        %v9421 = vpop.permute.xlu0 %9420
        %9422 = vrot.lane.b32.xlu0 %v6231, 32
        %v9423 = vpop.permute.xlu0 %9422
        %9428 = vrot.lane.b32.xlu0 %v7283, 40
        %v9429 = vpop.permute.xlu0 %9428
        %9430 = vrot.lane.b32.xlu0 %v7285, 40
        %v9431 = vpop.permute.xlu0 %9430
        %9436 = vrot.lane.b32.xlu0 %v8337, 48
        %v9437 = vpop.permute.xlu0 %9436
        %9438 = vrot.lane.b32.xlu0 %v8339, 48
        %v9439 = vpop.permute.xlu0 %9438
        %9444 = vrot.lane.b32.xlu0 %v9391, 56
        %v9445 = vpop.permute.xlu0 %9444
        %9446 = vrot.lane.b32.xlu0 %v9393, 56
        %v9447 = vpop.permute.xlu0 %9446
        %v9450 = vsel %vm972, %v2011, %v9397
        %v9451 = vsel %vm972, %v2013, %v9399
        %v9452 = vsel %vm1483, %v9450, %v9405
        %v9453 = vsel %vm1483, %v9451, %v9407
        %vm9454 = vcmask 195584
        %v9455 = vsel %vm9454, %v9452, %v9413
        %v9456 = vsel %vm9454, %v9453, %v9415
        %vm9457 = vcmask 261120
        %v9458 = vsel %vm9457, %v9455, %v9421
        %v9459 = vsel %vm9457, %v9456, %v9423
        %vm9460 = vcmask 326656
        %v9461 = vsel %vm9460, %v9458, %v9429
        %v9462 = vsel %vm9460, %v9459, %v9431
        %vm9463 = vcmask 392192
        %v9464 = vsel %vm9463, %v9461, %v9437
        %v9465 = vsel %vm9463, %v9462, %v9439
        %vm9466 = vcmask 457728
        %v9467 = vsel %vm9466, %v9464, %v9445
        %v9468 = vsel %vm9466, %v9465, %v9447
        %v9469 = vld [vmem:[#allocation7] sm:$0xff]
        %v9470 = vld [vmem:[#allocation7 + $0x8] sm:$0xff]
        %v9471 = vld [vmem:[#allocation7 + $0x10] sm:$0xff]
        %v9472 = vld [vmem:[#allocation7 + $0x18] sm:$0xff]
        %v9473 = vld [vmem:[#allocation7 + $0x20] sm:$0xff]
        %v9474 = vld [vmem:[#allocation7 + $0x28] sm:$0xff]
        %v9475 = vld [vmem:[#allocation7 + $0x30] sm:$0xff]
        %v9476 = vld [vmem:[#allocation7 + $0x38] sm:$0xff]
        %v9477 = vld [vmem:[%s3] sm:$0x1]
        %v9479 = vlaneseq
        %v9480 = vshrl.u32 %v9479, 7
        %v9481 = vsub.s32 0, %v9480
        %v9482 = vrot.slane %v9477, %v9481
        %v9485 = vsel %vm263, %v9467, 0
        %v9488 = vsel %vm263, %v9468, 0
        %9490 = vmatprep.subr.mxu0 0.0
        %v9491 = vand.u32 %v9469, 4294901760
        %9492 = vmatpush1.msra.mxu0 %v9491
        %9493 = vmatprep.subr.mxu0 0.0
        %v9494 = vand.u32 %v9470, 4294901760
        %9495 = vmatpush1.msra.mxu0 %v9494
        %9496 = vmatprep.subr.mxu0 0.0
        %v9497 = vand.u32 %v9471, 4294901760
        %9498 = vmatpush1.msra.mxu0 %v9497
        %9499 = vmatprep.subr.mxu0 0.0
        %v9500 = vand.u32 %v9472, 4294901760
        %9501 = vmatpush1.msra.mxu0 %v9500
        %9502 = vmatprep.subr.mxu0 0.0
        %v9503 = vand.u32 %v9473, 4294901760
        %9504 = vmatpush1.msra.mxu0 %v9503
        %9505 = vmatprep.subr.mxu0 0.0
        %v9506 = vand.u32 %v9474, 4294901760
        %9507 = vmatpush1.msra.mxu0 %v9506
        %9508 = vmatprep.subr.mxu0 0.0
        %v9509 = vand.u32 %v9475, 4294901760
        %9510 = vmatpush1.msra.mxu0 %v9509
        %9511 = vmatprep.subr.mxu0 0.0
        %v9512 = vand.u32 %v9476, 4294901760
        %9513 = vmatpush1.msra.mxu0 %v9512
        %9514 = vmatprep.subr.mxu0 0.0
        %9515 = vmatpush1.msra.mxu0 0.0
        %9516 = vmatprep.subr.mxu0 0.0
        %9517 = vmatpush1.msra.mxu0 0.0
        %9518 = vmatprep.subr.mxu0 0.0
        %9519 = vmatpush1.msra.mxu0 0.0
        %9520 = vmatprep.subr.mxu0 0.0
        %9521 = vmatpush1.msra.mxu0 0.0
        %9522 = vmatprep.subr.mxu0 0.0
        %9523 = vmatpush1.msra.mxu0 0.0
        %9524 = vmatprep.subr.mxu0 0.0
        %9525 = vmatpush1.msra.mxu0 0.0
        %9526 = vmatprep.subr.mxu0 0.0
        %9527 = vmatpush1.msra.mxu0 0.0
        %9528 = vmatprep.subr.mxu0 0.0
        %9529 = vmatpush1.msra.mxu0 0.0
        %9530 = vmatprep.subr.mxu0 0.0
        %9531 = vmatpush1.msra.mxu0 0.0
        %9532 = vmatprep.subr.mxu0 0.0
        %9533 = vmatpush1.msra.mxu0 0.0
        %9534 = vmatprep.subr.mxu0 0.0
        %9535 = vmatpush1.msra.mxu0 0.0
        %9536 = vmatprep.subr.mxu0 0.0
        %9537 = vmatpush1.msra.mxu0 0.0
        %9538 = vmatprep.subr.mxu0 0.0
        %9539 = vmatpush1.msra.mxu0 0.0
        %9540 = vmatprep.subr.mxu0 0.0
        %9541 = vmatpush1.msra.mxu0 0.0
        %9542 = vmatprep.subr.mxu0 0.0
        %9543 = vmatpush1.msra.mxu0 0.0
        %9544 = vmatprep.subr.mxu0 0.0
        %9545 = vmatpush1.msra.mxu0 0.0
        %9546 = vmatprep.subr.mxu0 0.0
        %9547 = vmatpush1.msra.mxu0 0.0
        %9548 = vmatprep.subr.mxu0 0.0
        %9549 = vmatpush1.msra.mxu0 0.0
        %9550 = vmatprep.subr.mxu0 0.0
        %9551 = vmatpush1.msra.mxu0 0.0
        %9552 = vmatprep.subr.mxu0 0.0
        %9553 = vmatpush1.msra.mxu0 0.0
        %9554 = vmatprep.subr.mxu0 0.0
        %9555 = vmatpush1.msra.mxu0 0.0
        %9556 = vmatprep.subr.mxu0 0.0
        %9557 = vmatpush1.msra.mxu0 0.0
        %9558 = vmatprep.subr.mxu0 0.0
        %9559 = vmatpush1.msra.mxu0 0.0
        %9560 = vmatprep.subr.mxu0 0.0
        %9561 = vmatpush1.msra.mxu0 0.0
        %9562 = vmatprep.mubr.f32.mxu0 0.0
        %v9563 = vand.u32 %v9485, 4294901760
        %v9564 = vsub.f32 %v9485, %v9563
        %v9565 = vand.u32 %v9564, 4294901760
        %v9566 = vsub.f32 %v9564, %v9565
        %v9567 = vand.u32 %v9566, 4294901760
        %9568 = vmatmul.mubr.f32.gmra.mrb[0].mxu0 %v9567
        %v9569 = vpop.f32.mrb[0].mxu0
        %v9570 = vadd.f32 %v9482, %v9569
        %v9571 = vpop.f32.mrb[0].mxu0
        %9572 = vmatprep.mubr.f32.mxu0 0.0
        %v9573 = vand.u32 %v9488, 4294901760
        %v9574 = vsub.f32 %v9488, %v9573
        %v9575 = vand.u32 %v9574, 4294901760
        %v9576 = vsub.f32 %v9574, %v9575
        %v9577 = vand.u32 %v9576, 4294901760
        %9578 = vmatmul.mubr.f32.gmra.mrb[0].mxu0 %v9577
        %v9579 = vpop.f32.mrb[0].mxu0
        %v9580 = vadd.f32 %v9482, %v9579
        %v9581 = vpop.f32.mrb[0].mxu0
        %9582 = vdwg.mxu0
        %9583 = vmatprep.subr.mxu0 0.0
        %v9584 = vand.u32 %v9469, 4294901760
        %v9585 = vsub.f32 %v9469, %v9584
        %v9586 = vand.u32 %v9585, 4294901760
        %v9587 = vsub.f32 %v9585, %v9586
        %v9588 = vand.u32 %v9587, 4294901760
        %9589 = vmatpush1.msra.mxu0 %v9588
        %9590 = vmatprep.subr.mxu0 0.0
        %v9591 = vand.u32 %v9470, 4294901760
        %v9592 = vsub.f32 %v9470, %v9591
        %v9593 = vand.u32 %v9592, 4294901760
        %v9594 = vsub.f32 %v9592, %v9593
        %v9595 = vand.u32 %v9594, 4294901760
        %9596 = vmatpush1.msra.mxu0 %v9595
        %9597 = vmatprep.subr.mxu0 0.0
        %v9598 = vand.u32 %v9471, 4294901760
        %v9599 = vsub.f32 %v9471, %v9598
        %v9600 = vand.u32 %v9599, 4294901760
        %v9601 = vsub.f32 %v9599, %v9600
        %v9602 = vand.u32 %v9601, 4294901760
        %9603 = vmatpush1.msra.mxu0 %v9602
        %9604 = vmatprep.subr.mxu0 0.0
        %v9605 = vand.u32 %v9472, 4294901760
        %v9606 = vsub.f32 %v9472, %v9605
        %v9607 = vand.u32 %v9606, 4294901760
        %v9608 = vsub.f32 %v9606, %v9607
        %v9609 = vand.u32 %v9608, 4294901760
        %9610 = vmatpush1.msra.mxu0 %v9609
        %9611 = vmatprep.subr.mxu0 0.0
        %v9612 = vand.u32 %v9473, 4294901760
        %v9613 = vsub.f32 %v9473, %v9612
        %v9614 = vand.u32 %v9613, 4294901760
        %v9615 = vsub.f32 %v9613, %v9614
        %v9616 = vand.u32 %v9615, 4294901760
        %9617 = vmatpush1.msra.mxu0 %v9616
        %9618 = vmatprep.subr.mxu0 0.0
        %v9619 = vand.u32 %v9474, 4294901760
        %v9620 = vsub.f32 %v9474, %v9619
        %v9621 = vand.u32 %v9620, 4294901760
        %v9622 = vsub.f32 %v9620, %v9621
        %v9623 = vand.u32 %v9622, 4294901760
        %9624 = vmatpush1.msra.mxu0 %v9623
        %9625 = vmatprep.subr.mxu0 0.0
        %v9626 = vand.u32 %v9475, 4294901760
        %v9627 = vsub.f32 %v9475, %v9626
        %v9628 = vand.u32 %v9627, 4294901760
        %v9629 = vsub.f32 %v9627, %v9628
        %v9630 = vand.u32 %v9629, 4294901760
        %9631 = vmatpush1.msra.mxu0 %v9630
        %9632 = vmatprep.subr.mxu0 0.0
        %v9633 = vand.u32 %v9476, 4294901760
        %v9634 = vsub.f32 %v9476, %v9633
        %v9635 = vand.u32 %v9634, 4294901760
        %v9636 = vsub.f32 %v9634, %v9635
        %v9637 = vand.u32 %v9636, 4294901760
        %9638 = vmatpush1.msra.mxu0 %v9637
        %9639 = vmatprep.subr.mxu0 0.0
        %9640 = vmatpush1.msra.mxu0 0.0
        %9641 = vmatprep.subr.mxu0 0.0
        %9642 = vmatpush1.msra.mxu0 0.0
        %9643 = vmatprep.subr.mxu0 0.0
        %9644 = vmatpush1.msra.mxu0 0.0
        %9645 = vmatprep.subr.mxu0 0.0
        %9646 = vmatpush1.msra.mxu0 0.0
        %9647 = vmatprep.subr.mxu0 0.0
        %9648 = vmatpush1.msra.mxu0 0.0
        %9649 = vmatprep.subr.mxu0 0.0
        %9650 = vmatpush1.msra.mxu0 0.0
        %9651 = vmatprep.subr.mxu0 0.0
        %9652 = vmatpush1.msra.mxu0 0.0
        %9653 = vmatprep.subr.mxu0 0.0
        %9654 = vmatpush1.msra.mxu0 0.0
        %9655 = vmatprep.subr.mxu0 0.0
        %9656 = vmatpush1.msra.mxu0 0.0
        %9657 = vmatprep.subr.mxu0 0.0
        %9658 = vmatpush1.msra.mxu0 0.0
        %9659 = vmatprep.subr.mxu0 0.0
        %9660 = vmatpush1.msra.mxu0 0.0
        %9661 = vmatprep.subr.mxu0 0.0
        %9662 = vmatpush1.msra.mxu0 0.0
        %9663 = vmatprep.subr.mxu0 0.0
        %9664 = vmatpush1.msra.mxu0 0.0
        %9665 = vmatprep.subr.mxu0 0.0
        %9666 = vmatpush1.msra.mxu0 0.0
        %9667 = vmatprep.subr.mxu0 0.0
        %9668 = vmatpush1.msra.mxu0 0.0
        %9669 = vmatprep.subr.mxu0 0.0
        %9670 = vmatpush1.msra.mxu0 0.0
        %9671 = vmatprep.subr.mxu0 0.0
        %9672 = vmatpush1.msra.mxu0 0.0
        %9673 = vmatprep.subr.mxu0 0.0
        %9674 = vmatpush1.msra.mxu0 0.0
        %9675 = vmatprep.subr.mxu0 0.0
        %9676 = vmatpush1.msra.mxu0 0.0
        %9677 = vmatprep.subr.mxu0 0.0
        %9678 = vmatpush1.msra.mxu0 0.0
        %9679 = vmatprep.subr.mxu0 0.0
        %9680 = vmatpush1.msra.mxu0 0.0
        %9681 = vmatprep.subr.mxu0 0.0
        %9682 = vmatpush1.msra.mxu0 0.0
        %9683 = vmatprep.subr.mxu0 0.0
        %9684 = vmatpush1.msra.mxu0 0.0
        %9685 = vmatprep.subr.mxu0 0.0
        %9686 = vmatpush1.msra.mxu0 0.0
        %9687 = vmatprep.mubr.f32.mxu0 0.0
        %v9688 = vand.u32 %v9485, 4294901760
        %9689 = vmatmul.mubr.f32.gmra.mrb[0].mxu0 %v9688
        %v9690 = vpop.f32.mrb[0].mxu0
        %v9691 = vadd.f32 %v9570, %v9690
        %v9692 = vpop.f32.mrb[0].mxu0
        %9693 = vmatprep.mubr.f32.mxu0 0.0
        %v9694 = vand.u32 %v9488, 4294901760
        %9695 = vmatmul.mubr.f32.gmra.mrb[0].mxu0 %v9694
        %v9696 = vpop.f32.mrb[0].mxu0
        %v9697 = vadd.f32 %v9580, %v9696
        %v9698 = vpop.f32.mrb[0].mxu0
        %9699 = vdwg.mxu0
        %9700 = vmatprep.subr.mxu0 0.0
        %v9701 = vand.u32 %v9469, 4294901760
        %v9702 = vsub.f32 %v9469, %v9701
        %9703 = vmatpush1.msra.mxu0 %v9702
        %9704 = vmatprep.subr.mxu0 0.0
        %v9705 = vand.u32 %v9470, 4294901760
        %v9706 = vsub.f32 %v9470, %v9705
        %9707 = vmatpush1.msra.mxu0 %v9706
        %9708 = vmatprep.subr.mxu0 0.0
        %v9709 = vand.u32 %v9471, 4294901760
        %v9710 = vsub.f32 %v9471, %v9709
        %9711 = vmatpush1.msra.mxu0 %v9710
        %9712 = vmatprep.subr.mxu0 0.0
        %v9713 = vand.u32 %v9472, 4294901760
        %v9714 = vsub.f32 %v9472, %v9713
        %9715 = vmatpush1.msra.mxu0 %v9714
        %9716 = vmatprep.subr.mxu0 0.0
        %v9717 = vand.u32 %v9473, 4294901760
        %v9718 = vsub.f32 %v9473, %v9717
        %9719 = vmatpush1.msra.mxu0 %v9718
        %9720 = vmatprep.subr.mxu0 0.0
        %v9721 = vand.u32 %v9474, 4294901760
        %v9722 = vsub.f32 %v9474, %v9721
        %9723 = vmatpush1.msra.mxu0 %v9722
        %9724 = vmatprep.subr.mxu0 0.0
        %v9725 = vand.u32 %v9475, 4294901760
        %v9726 = vsub.f32 %v9475, %v9725
        %9727 = vmatpush1.msra.mxu0 %v9726
        %9728 = vmatprep.subr.mxu0 0.0
        %v9729 = vand.u32 %v9476, 4294901760
        %v9730 = vsub.f32 %v9476, %v9729
        %9731 = vmatpush1.msra.mxu0 %v9730
        %9732 = vmatprep.subr.mxu0 0.0
        %9733 = vmatpush1.msra.mxu0 0.0
        %9734 = vmatprep.subr.mxu0 0.0
        %9735 = vmatpush1.msra.mxu0 0.0
        %9736 = vmatprep.subr.mxu0 0.0
        %9737 = vmatpush1.msra.mxu0 0.0
        %9738 = vmatprep.subr.mxu0 0.0
        %9739 = vmatpush1.msra.mxu0 0.0
        %9740 = vmatprep.subr.mxu0 0.0
        %9741 = vmatpush1.msra.mxu0 0.0
        %9742 = vmatprep.subr.mxu0 0.0
        %9743 = vmatpush1.msra.mxu0 0.0
        %9744 = vmatprep.subr.mxu0 0.0
        %9745 = vmatpush1.msra.mxu0 0.0
        %9746 = vmatprep.subr.mxu0 0.0
        %9747 = vmatpush1.msra.mxu0 0.0
        %9748 = vmatprep.subr.mxu0 0.0
        %9749 = vmatpush1.msra.mxu0 0.0
        %9750 = vmatprep.subr.mxu0 0.0
        %9751 = vmatpush1.msra.mxu0 0.0
        %9752 = vmatprep.subr.mxu0 0.0
        %9753 = vmatpush1.msra.mxu0 0.0
        %9754 = vmatprep.subr.mxu0 0.0
        %9755 = vmatpush1.msra.mxu0 0.0
        %9756 = vmatprep.subr.mxu0 0.0
        %9757 = vmatpush1.msra.mxu0 0.0
        %9758 = vmatprep.subr.mxu0 0.0
        %9759 = vmatpush1.msra.mxu0 0.0
        %9760 = vmatprep.subr.mxu0 0.0
        %9761 = vmatpush1.msra.mxu0 0.0
        %9762 = vmatprep.subr.mxu0 0.0
        %9763 = vmatpush1.msra.mxu0 0.0
        %9764 = vmatprep.subr.mxu0 0.0
        %9765 = vmatpush1.msra.mxu0 0.0
        %9766 = vmatprep.subr.mxu0 0.0
        %9767 = vmatpush1.msra.mxu0 0.0
        %9768 = vmatprep.subr.mxu0 0.0
        %9769 = vmatpush1.msra.mxu0 0.0
        %9770 = vmatprep.subr.mxu0 0.0
        %9771 = vmatpush1.msra.mxu0 0.0
        %9772 = vmatprep.subr.mxu0 0.0
        %9773 = vmatpush1.msra.mxu0 0.0
        %9774 = vmatprep.subr.mxu0 0.0
        %9775 = vmatpush1.msra.mxu0 0.0
        %9776 = vmatprep.subr.mxu0 0.0
        %9777 = vmatpush1.msra.mxu0 0.0
        %9778 = vmatprep.subr.mxu0 0.0
        %9779 = vmatpush1.msra.mxu0 0.0
        %9780 = vmatprep.mubr.f32.mxu0 0.0
        %v9781 = vand.u32 %v9485, 4294901760
        %v9782 = vsub.f32 %v9485, %v9781
        %9783 = vmatmul.mubr.f32.gmra.mrb[0].mxu0 %v9782
        %v9784 = vpop.f32.mrb[0].mxu0
        %v9785 = vadd.f32 %v9691, %v9784
        %v9786 = vpop.f32.mrb[0].mxu0
        %9787 = vmatprep.mubr.f32.mxu0 0.0
        %v9788 = vand.u32 %v9488, 4294901760
        %v9789 = vsub.f32 %v9488, %v9788
        %9790 = vmatmul.mubr.f32.gmra.mrb[0].mxu0 %v9789
        %v9791 = vpop.f32.mrb[0].mxu0
        %v9792 = vadd.f32 %v9697, %v9791
        %v9793 = vpop.f32.mrb[0].mxu0
        %9794 = vdwg.mxu0
        %9795 = vmatprep.subr.mxu0 0.0
        %v9796 = vand.u32 %v9469, 4294901760
        %9797 = vmatpush1.msra.mxu0 %v9796
        %9798 = vmatprep.subr.mxu0 0.0
        %v9799 = vand.u32 %v9470, 4294901760
        %9800 = vmatpush1.msra.mxu0 %v9799
        %9801 = vmatprep.subr.mxu0 0.0
        %v9802 = vand.u32 %v9471, 4294901760
        %9803 = vmatpush1.msra.mxu0 %v9802
        %9804 = vmatprep.subr.mxu0 0.0
        %v9805 = vand.u32 %v9472, 4294901760
        %9806 = vmatpush1.msra.mxu0 %v9805
        %9807 = vmatprep.subr.mxu0 0.0
        %v9808 = vand.u32 %v9473, 4294901760
        %9809 = vmatpush1.msra.mxu0 %v9808
        %9810 = vmatprep.subr.mxu0 0.0
        %v9811 = vand.u32 %v9474, 4294901760
        %9812 = vmatpush1.msra.mxu0 %v9811
        %9813 = vmatprep.subr.mxu0 0.0
        %v9814 = vand.u32 %v9475, 4294901760
        %9815 = vmatpush1.msra.mxu0 %v9814
        %9816 = vmatprep.subr.mxu0 0.0
        %v9817 = vand.u32 %v9476, 4294901760
        %9818 = vmatpush1.msra.mxu0 %v9817
        %9819 = vmatprep.subr.mxu0 0.0
        %9820 = vmatpush1.msra.mxu0 0.0
        %9821 = vmatprep.subr.mxu0 0.0
        %9822 = vmatpush1.msra.mxu0 0.0
        %9823 = vmatprep.subr.mxu0 0.0
        %9824 = vmatpush1.msra.mxu0 0.0
        %9825 = vmatprep.subr.mxu0 0.0
        %9826 = vmatpush1.msra.mxu0 0.0
        %9827 = vmatprep.subr.mxu0 0.0
        %9828 = vmatpush1.msra.mxu0 0.0
        %9829 = vmatprep.subr.mxu0 0.0
        %9830 = vmatpush1.msra.mxu0 0.0
        %9831 = vmatprep.subr.mxu0 0.0
        %9832 = vmatpush1.msra.mxu0 0.0
        %9833 = vmatprep.subr.mxu0 0.0
        %9834 = vmatpush1.msra.mxu0 0.0
        %9835 = vmatprep.subr.mxu0 0.0
        %9836 = vmatpush1.msra.mxu0 0.0
        %9837 = vmatprep.subr.mxu0 0.0
        %9838 = vmatpush1.msra.mxu0 0.0
        %9839 = vmatprep.subr.mxu0 0.0
        %9840 = vmatpush1.msra.mxu0 0.0
        %9841 = vmatprep.subr.mxu0 0.0
        %9842 = vmatpush1.msra.mxu0 0.0
        %9843 = vmatprep.subr.mxu0 0.0
        %9844 = vmatpush1.msra.mxu0 0.0
        %9845 = vmatprep.subr.mxu0 0.0
        %9846 = vmatpush1.msra.mxu0 0.0
        %9847 = vmatprep.subr.mxu0 0.0
        %9848 = vmatpush1.msra.mxu0 0.0
        %9849 = vmatprep.subr.mxu0 0.0
        %9850 = vmatpush1.msra.mxu0 0.0
        %9851 = vmatprep.subr.mxu0 0.0
        %9852 = vmatpush1.msra.mxu0 0.0
        %9853 = vmatprep.subr.mxu0 0.0
        %9854 = vmatpush1.msra.mxu0 0.0
        %9855 = vmatprep.subr.mxu0 0.0
        %9856 = vmatpush1.msra.mxu0 0.0
        %9857 = vmatprep.subr.mxu0 0.0
        %9858 = vmatpush1.msra.mxu0 0.0
        %9859 = vmatprep.subr.mxu0 0.0
        %9860 = vmatpush1.msra.mxu0 0.0
        %9861 = vmatprep.subr.mxu0 0.0
        %9862 = vmatpush1.msra.mxu0 0.0
        %9863 = vmatprep.subr.mxu0 0.0
        %9864 = vmatpush1.msra.mxu0 0.0
        %9865 = vmatprep.subr.mxu0 0.0
        %9866 = vmatpush1.msra.mxu0 0.0
        %9867 = vmatprep.mubr.f32.mxu0 0.0
        %v9868 = vand.u32 %v9485, 4294901760
        %v9869 = vsub.f32 %v9485, %v9868
        %v9870 = vand.u32 %v9869, 4294901760
        %9871 = vmatmul.mubr.f32.gmra.mrb[0].mxu0 %v9870
        %v9872 = vpop.f32.mrb[0].mxu0
        %v9873 = vadd.f32 %v9785, %v9872
        %v9874 = vpop.f32.mrb[0].mxu0
        %9875 = vmatprep.mubr.f32.mxu0 0.0
        %v9876 = vand.u32 %v9488, 4294901760
        %v9877 = vsub.f32 %v9488, %v9876
        %v9878 = vand.u32 %v9877, 4294901760
        %9879 = vmatmul.mubr.f32.gmra.mrb[0].mxu0 %v9878
        %v9880 = vpop.f32.mrb[0].mxu0
        %v9881 = vadd.f32 %v9792, %v9880
        %v9882 = vpop.f32.mrb[0].mxu0
        %9883 = vdwg.mxu0
        %9884 = vmatprep.subr.mxu0 0.0
        %v9885 = vand.u32 %v9469, 4294901760
        %v9886 = vsub.f32 %v9469, %v9885
        %v9887 = vand.u32 %v9886, 4294901760
        %9888 = vmatpush1.msra.mxu0 %v9887
        %9889 = vmatprep.subr.mxu0 0.0
        %v9890 = vand.u32 %v9470, 4294901760
        %v9891 = vsub.f32 %v9470, %v9890
        %v9892 = vand.u32 %v9891, 4294901760
        %9893 = vmatpush1.msra.mxu0 %v9892
        %9894 = vmatprep.subr.mxu0 0.0
        %v9895 = vand.u32 %v9471, 4294901760
        %v9896 = vsub.f32 %v9471, %v9895
        %v9897 = vand.u32 %v9896, 4294901760
        %9898 = vmatpush1.msra.mxu0 %v9897
        %9899 = vmatprep.subr.mxu0 0.0
        %v9900 = vand.u32 %v9472, 4294901760
        %v9901 = vsub.f32 %v9472, %v9900
        %v9902 = vand.u32 %v9901, 4294901760
        %9903 = vmatpush1.msra.mxu0 %v9902
        %9904 = vmatprep.subr.mxu0 0.0
        %v9905 = vand.u32 %v9473, 4294901760
        %v9906 = vsub.f32 %v9473, %v9905
        %v9907 = vand.u32 %v9906, 4294901760
        %9908 = vmatpush1.msra.mxu0 %v9907
        %9909 = vmatprep.subr.mxu0 0.0
        %v9910 = vand.u32 %v9474, 4294901760
        %v9911 = vsub.f32 %v9474, %v9910
        %v9912 = vand.u32 %v9911, 4294901760
        %9913 = vmatpush1.msra.mxu0 %v9912
        %9914 = vmatprep.subr.mxu0 0.0
        %v9915 = vand.u32 %v9475, 4294901760
        %v9916 = vsub.f32 %v9475, %v9915
        %v9917 = vand.u32 %v9916, 4294901760
        %9918 = vmatpush1.msra.mxu0 %v9917
        %9919 = vmatprep.subr.mxu0 0.0
        %v9920 = vand.u32 %v9476, 4294901760
        %v9921 = vsub.f32 %v9476, %v9920
        %v9922 = vand.u32 %v9921, 4294901760
        %9923 = vmatpush1.msra.mxu0 %v9922
        %9924 = vmatprep.subr.mxu0 0.0
        %9925 = vmatpush1.msra.mxu0 0.0
        %9926 = vmatprep.subr.mxu0 0.0
        %9927 = vmatpush1.msra.mxu0 0.0
        %9928 = vmatprep.subr.mxu0 0.0
        %9929 = vmatpush1.msra.mxu0 0.0
        %9930 = vmatprep.subr.mxu0 0.0
        %9931 = vmatpush1.msra.mxu0 0.0
        %9932 = vmatprep.subr.mxu0 0.0
        %9933 = vmatpush1.msra.mxu0 0.0
        %9934 = vmatprep.subr.mxu0 0.0
        %9935 = vmatpush1.msra.mxu0 0.0
        %9936 = vmatprep.subr.mxu0 0.0
        %9937 = vmatpush1.msra.mxu0 0.0
        %9938 = vmatprep.subr.mxu0 0.0
        %9939 = vmatpush1.msra.mxu0 0.0
        %9940 = vmatprep.subr.mxu0 0.0
        %9941 = vmatpush1.msra.mxu0 0.0
        %9942 = vmatprep.subr.mxu0 0.0
        %9943 = vmatpush1.msra.mxu0 0.0
        %9944 = vmatprep.subr.mxu0 0.0
        %9945 = vmatpush1.msra.mxu0 0.0
        %9946 = vmatprep.subr.mxu0 0.0
        %9947 = vmatpush1.msra.mxu0 0.0
        %9948 = vmatprep.subr.mxu0 0.0
        %9949 = vmatpush1.msra.mxu0 0.0
        %9950 = vmatprep.subr.mxu0 0.0
        %9951 = vmatpush1.msra.mxu0 0.0
        %9952 = vmatprep.subr.mxu0 0.0
        %9953 = vmatpush1.msra.mxu0 0.0
        %9954 = vmatprep.subr.mxu0 0.0
        %9955 = vmatpush1.msra.mxu0 0.0
        %9956 = vmatprep.subr.mxu0 0.0
        %9957 = vmatpush1.msra.mxu0 0.0
        %9958 = vmatprep.subr.mxu0 0.0
        %9959 = vmatpush1.msra.mxu0 0.0
        %9960 = vmatprep.subr.mxu0 0.0
        %9961 = vmatpush1.msra.mxu0 0.0
        %9962 = vmatprep.subr.mxu0 0.0
        %9963 = vmatpush1.msra.mxu0 0.0
        %9964 = vmatprep.subr.mxu0 0.0
        %9965 = vmatpush1.msra.mxu0 0.0
        %9966 = vmatprep.subr.mxu0 0.0
        %9967 = vmatpush1.msra.mxu0 0.0
        %9968 = vmatprep.subr.mxu0 0.0
        %9969 = vmatpush1.msra.mxu0 0.0
        %9970 = vmatprep.subr.mxu0 0.0
        %9971 = vmatpush1.msra.mxu0 0.0
        %9972 = vmatprep.mubr.f32.mxu0 0.0
        %v9973 = vand.u32 %v9485, 4294901760
        %9974 = vmatmul.mubr.f32.gmra.mrb[0].mxu0 %v9973
        %v9975 = vpop.f32.mrb[0].mxu0
        %v9976 = vadd.f32 %v9873, %v9975
        %v9977 = vpop.f32.mrb[0].mxu0
        %9978 = vmatprep.mubr.f32.mxu0 0.0
        %v9979 = vand.u32 %v9488, 4294901760
        %9980 = vmatmul.mubr.f32.gmra.mrb[0].mxu0 %v9979
        %v9981 = vpop.f32.mrb[0].mxu0
        %v9982 = vadd.f32 %v9881, %v9981
        %v9983 = vpop.f32.mrb[0].mxu0
        %9984 = vdwg.mxu0
        %9985 = vmatprep.subr.mxu0 0.0
        %v9986 = vand.u32 %v9469, 4294901760
        %9987 = vmatpush1.msra.mxu0 %v9986
        %9988 = vmatprep.subr.mxu0 0.0
        %v9989 = vand.u32 %v9470, 4294901760
        %9990 = vmatpush1.msra.mxu0 %v9989
        %9991 = vmatprep.subr.mxu0 0.0
        %v9992 = vand.u32 %v9471, 4294901760
        %9993 = vmatpush1.msra.mxu0 %v9992
        %9994 = vmatprep.subr.mxu0 0.0
        %v9995 = vand.u32 %v9472, 4294901760
        %9996 = vmatpush1.msra.mxu0 %v9995
        %9997 = vmatprep.subr.mxu0 0.0
        %v9998 = vand.u32 %v9473, 4294901760
        %9999 = vmatpush1.msra.mxu0 %v9998
        %10000 = vmatprep.subr.mxu0 0.0
        %v10001 = vand.u32 %v9474, 4294901760
        %10002 = vmatpush1.msra.mxu0 %v10001
        %10003 = vmatprep.subr.mxu0 0.0
        %v10004 = vand.u32 %v9475, 4294901760
        %10005 = vmatpush1.msra.mxu0 %v10004
        %10006 = vmatprep.subr.mxu0 0.0
        %v10007 = vand.u32 %v9476, 4294901760
        %10008 = vmatpush1.msra.mxu0 %v10007
        %10009 = vmatprep.subr.mxu0 0.0
        %10010 = vmatpush1.msra.mxu0 0.0
        %10011 = vmatprep.subr.mxu0 0.0
        %10012 = vmatpush1.msra.mxu0 0.0
        %10013 = vmatprep.subr.mxu0 0.0
        %10014 = vmatpush1.msra.mxu0 0.0
        %10015 = vmatprep.subr.mxu0 0.0
        %10016 = vmatpush1.msra.mxu0 0.0
        %10017 = vmatprep.subr.mxu0 0.0
        %10018 = vmatpush1.msra.mxu0 0.0
        %10019 = vmatprep.subr.mxu0 0.0
        %10020 = vmatpush1.msra.mxu0 0.0
        %10021 = vmatprep.subr.mxu0 0.0
        %10022 = vmatpush1.msra.mxu0 0.0
        %10023 = vmatprep.subr.mxu0 0.0
        %10024 = vmatpush1.msra.mxu0 0.0
        %10025 = vmatprep.subr.mxu0 0.0
        %10026 = vmatpush1.msra.mxu0 0.0
        %10027 = vmatprep.subr.mxu0 0.0
        %10028 = vmatpush1.msra.mxu0 0.0
        %10029 = vmatprep.subr.mxu0 0.0
        %10030 = vmatpush1.msra.mxu0 0.0
        %10031 = vmatprep.subr.mxu0 0.0
        %10032 = vmatpush1.msra.mxu0 0.0
        %10033 = vmatprep.subr.mxu0 0.0
        %10034 = vmatpush1.msra.mxu0 0.0
        %10035 = vmatprep.subr.mxu0 0.0
        %10036 = vmatpush1.msra.mxu0 0.0
        %10037 = vmatprep.subr.mxu0 0.0
        %10038 = vmatpush1.msra.mxu0 0.0
        %10039 = vmatprep.subr.mxu0 0.0
        %10040 = vmatpush1.msra.mxu0 0.0
        %10041 = vmatprep.subr.mxu0 0.0
        %10042 = vmatpush1.msra.mxu0 0.0
        %10043 = vmatprep.subr.mxu0 0.0
        %10044 = vmatpush1.msra.mxu0 0.0
        %10045 = vmatprep.subr.mxu0 0.0
        %10046 = vmatpush1.msra.mxu0 0.0
        %10047 = vmatprep.subr.mxu0 0.0
        %10048 = vmatpush1.msra.mxu0 0.0
        %10049 = vmatprep.subr.mxu0 0.0
        %10050 = vmatpush1.msra.mxu0 0.0
        %10051 = vmatprep.subr.mxu0 0.0
        %10052 = vmatpush1.msra.mxu0 0.0
        %10053 = vmatprep.subr.mxu0 0.0
        %10054 = vmatpush1.msra.mxu0 0.0
        %10055 = vmatprep.subr.mxu0 0.0
        %10056 = vmatpush1.msra.mxu0 0.0
        %10057 = vmatprep.mubr.f32.mxu0 0.0
        %v10058 = vand.u32 %v9485, 4294901760
        %10059 = vmatmul.mubr.f32.gmra.mrb[0].mxu0 %v10058
        %v10060 = vpop.f32.mrb[0].mxu0
        %v10061 = vadd.f32 %v9976, %v10060
        %v10062 = vpop.f32.mrb[0].mxu0
        %10063 = vmatprep.mubr.f32.mxu0 0.0
        %v10064 = vand.u32 %v9488, 4294901760
        %10065 = vmatmul.mubr.f32.gmra.mrb[0].mxu0 %v10064
        %v10066 = vpop.f32.mrb[0].mxu0
        %v10067 = vadd.f32 %v9982, %v10066
        %v10068 = vpop.f32.mrb[0].mxu0
        %10069 = vdwg.mxu0
        %10070 = vst.msk [vmem:[%s244] sm:$0xff] %vm263, %v10061
        %10071 = vst.msk [vmem:[%s244 + $0x8] sm:$0xff] %vm263, %v10067
        %s10072 = sand.u32 %s119, 1
        %s10073 = scalar_lea.sflag [#allocation4], %s10072
        %s10074 = sand.u32 %s119, 1
        %s10075 = smul.addr %s10074, 16
        %s10076 = scalar_lea.vmem [#allocation8], %s10075
        // Predicated region
        $region49: #{tpu_custom_call.1} parent=35 // pred_check
          %p10077 = pneg %p129
        $region50: #{tpu_custom_call.1} parent=35 // pred_check_branch
          %10079 = sbr.rel (%p10077) target = $region52
        $region51: #{tpu_custom_call.1} parent=35 // pred_region
          %s10081 = ssub.s32 256, 256
          %10082 = vsyncadd %s10073, %s10081
          %s10083 = smul.addr %s22, 2
          %s10084 = smul.addr %s10083, 128
          %s10085 = scalar_lea.hbm %s4, %s10084
          %s10086 = sshll.u32 %s10076, 4
          %s10087 = int_to_ptr.vmem [resolvable:$true] %s10086
          %10092 = dma.vmem_to_hbm [thread:$0]  %s10087, 256, %s10085, %s10073, 128, 128, 8
        $region52: #{tpu_custom_call.1} parent=35 // pred_fallthru
          _
      $region36: #{tpu_custom_call.1} parent=5 // pred_fallthru
        _
      %p10093 = scmp.le.s32.totalorder 2, %s17
      // Predicated region
      $region53: #{tpu_custom_call.1} parent=5 // pred_check
        %p10094 = pneg %p10093
      $region54: #{tpu_custom_call.1} parent=5 // pred_check_branch
        %10096 = sbr.rel (%p10094) target = $region56
      $region55: #{tpu_custom_call.1} parent=5 // pred_region
        %s10097 = ssub.s32 %s17, 2
        // Predicated region
        $region57: #{tpu_custom_call.1} parent=55 // pred_check
          %p10098 = pneg %p135
        $region58: #{tpu_custom_call.1} parent=55 // pred_check_branch
          %10100 = sbr.rel (%p10098) target = $region60
        $region59: #{tpu_custom_call.1} parent=55 // pred_region
          %s10101 = sand.u32 %s120, 1
          %s10102 = scalar_lea.sflag [#allocation4], %s10101
          %s10103 = sand.u32 %s120, 1
          %s10104 = smul.addr %s10103, 16
          %s10105 = scalar_lea.vmem [#allocation8], %s10104
          %10106 = dma.done %s10102, 256
        $region60: #{tpu_custom_call.1} parent=55 // pred_fallthru
          _
      $region56: #{tpu_custom_call.1} parent=5 // pred_fallthru
        _
    $region6: #{tpu_custom_call.1} parent=1 // loop_footer
      %s21 = sadd.s32 1, %s17
    $region7: #{tpu_custom_call.1} parent=1 // loop_footer_branch
      %16 = sbr.rel target = $region3
    $region8: #{tpu_custom_call.1} parent=1 // loop_exit
      _
    %10107 = vsyncpa [#allocation3], 1
    %s10108 = scalar_lea.sflag [#allocation3], 1
    %10109 = vsyncpa %s10108, 1
    %10110 = vsyncpa [#allocation6], 1
    %10111 = vsyncpa [#allocation4], 1
    %s10112 = scalar_lea.sflag [#allocation4], 1
    %10113 = vsyncpa %s10112, 1

</llo_original>
